<compile_context>
chip_gen: v6e
topology: v6e:2x2x1
jax: 0.10.0
libtpu: 0.0.40
codegen_flags: <defaults>
</compile_context>

<pallas_src>
import jax
import jax.numpy as jnp
from jax.experimental import pallas as pl
from jax.experimental.pallas import tpu as pltpu

HIDDEN_DIMS = (1024, 512, 256, 128)
IN_DIM = 3 * 32 * 32
NUM_CLASSES = 200
LANE = 128
SUBLANE = 8
MAX_BATCH_TILE = 256     # rows of x per grid step for large batches
NEG_BIG = -1e30          # padded-class bias -> softmax prob exactly 0


def _round_up(x, m):
    return (x + m - 1) // m * m


def mlp_kernel(x_ref,
               w1_ref, b1_ref,
               w2_ref, b2_ref,
               w3_ref, b3_ref,
               w4_ref, b4_ref,
               w5_ref, b5_ref,
               logits_ref, probas_ref):
    # Full MLP on one batch tile; weights are VMEM-resident (constant index).
    h = x_ref[...]
    h = jnp.maximum(
        jnp.dot(h, w1_ref[...], preferred_element_type=jnp.float32)
        + b1_ref[...], 0.0).astype(jnp.bfloat16)
    h = jnp.maximum(
        jnp.dot(h, w2_ref[...], preferred_element_type=jnp.float32)
        + b2_ref[...], 0.0).astype(jnp.bfloat16)
    h = jnp.maximum(
        jnp.dot(h, w3_ref[...], preferred_element_type=jnp.float32)
        + b3_ref[...], 0.0).astype(jnp.bfloat16)
    h = jnp.maximum(
        jnp.dot(h, w4_ref[...], preferred_element_type=jnp.float32)
        + b4_ref[...], 0.0).astype(jnp.bfloat16)

    logits = jnp.dot(h, w5_ref[...],
                     preferred_element_type=jnp.float32) + b5_ref[...]
    logits_ref[...] = logits

    # Softmax over the lane-padded class dim; padded lanes hold -1e30 so
    # exp underflows to exactly 0 and the real-class probabilities are exact.
    m = jnp.max(logits, axis=-1, keepdims=True)
    e = jnp.exp(logits - m)
    denom = jnp.sum(e, axis=-1, keepdims=True)
    probas_ref[...] = e * pl.reciprocal(denom, approx=True)


def init_params(key, num_classes=NUM_CLASSES):
    """PyTorch-nn.Linear-style init (uniform +-1/sqrt(fan_in)); weights bf16."""
    dims = (IN_DIM,) + HIDDEN_DIMS + (num_classes,)
    params = []
    for i in range(len(dims) - 1):
        fan_in, fan_out = dims[i], dims[i + 1]
        key, kw, kb = jax.random.split(key, 3)
        bound = 1.0 / float(fan_in) ** 0.5
        # Stored transposed vs. torch (we compute x @ W); semantics identical.
        w = jax.random.uniform(kw, (fan_in, fan_out), jnp.float32, -bound, bound)
        b = jax.random.uniform(kb, (1, fan_out), jnp.float32, -bound, bound)
        params.append((w.astype(jnp.bfloat16), b))  # bf16 weights, f32 biases
    return params


def mlp_forward(img, params):
    """img: (B, 3, 32, 32) NCHW -> (logits (B, C), probas (B, C)), both f32."""
    B = img.shape[0]
    num_classes = params[-1][0].shape[1]
    C_pad = _round_up(num_classes, LANE)

    # Batch tiling: one step for small batches, 256-row tiles for large ones.
    if B <= MAX_BATCH_TILE:
        TB = _round_up(max(B, SUBLANE), SUBLANE)
    else:
        TB = MAX_BATCH_TILE
    B_pad = _round_up(B, TB)
    n_tiles = B_pad // TB

    # Same flatten order as torch's img.reshape(B, -1); bf16 for the MXU.
    x2d = img.reshape(B, -1).astype(jnp.bfloat16)
    if B_pad != B:
        x2d = jnp.pad(x2d, ((0, B_pad - B), (0, 0)))

    # Pad classifier to a lane-dense class dim; padded bias lanes -> -1e30.
    w5, b5 = params[-1]
    w5p = jnp.pad(w5.astype(jnp.bfloat16), ((0, 0), (0, C_pad - num_classes)))
    b5p = jnp.pad(b5.astype(jnp.float32), ((0, 0), (0, C_pad - num_classes)),
                  constant_values=NEG_BIG)

    flat = []
    for w, b in params[:-1]:
        flat += [w.astype(jnp.bfloat16), b.astype(jnp.float32)]
    flat += [w5p, b5p]

    def resident(shape):
        # Constant block index -> fetched once, stays resident in VMEM.
        return pl.BlockSpec(shape, lambda i, _s=shape: (0,) * len(_s))

    def batch_tiled(shape):
        return pl.BlockSpec(shape, lambda i: (i, 0))

    dims = (IN_DIM,) + HIDDEN_DIMS
    in_specs = [batch_tiled((TB, IN_DIM))]                 # x batch tile
    for li in range(len(HIDDEN_DIMS)):
        fan_in, fan_out = dims[li], dims[li + 1]
        in_specs += [resident((fan_in, fan_out)),          # W_{li+1}
                     resident((1, fan_out))]               # b_{li+1}
    in_specs += [resident((HIDDEN_DIMS[-1], C_pad)),       # W5 (lane-padded)
                 resident((1, C_pad))]                     # b5 (lane-padded)

    out_specs = (batch_tiled((TB, C_pad)), batch_tiled((TB, C_pad)))

    logits_p, probas_p = pl.pallas_call(
        mlp_kernel,
        out_shape=(jax.ShapeDtypeStruct((B_pad, C_pad), jnp.float32),
                   jax.ShapeDtypeStruct((B_pad, C_pad), jnp.float32)),
        grid_spec=pltpu.PrefetchScalarGridSpec(
            num_scalar_prefetch=0,
            grid=(n_tiles,),
            in_specs=in_specs,
            out_specs=out_specs),
        compiler_params=pltpu.CompilerParams(
            dimension_semantics=("parallel",),   # batch tiles are independent
            vmem_limit_bytes=48 << 20),
    )(x2d, *flat)

    return logits_p[:B, :num_classes], probas_p[:B, :num_classes]


if __name__ == "__main__":
    key = jax.random.PRNGKey(0)
    key, k_img = jax.random.split(key)

    # Small batch; spatial dims fixed by the module (3x32x32 flatten -> 3072).
    img = jax.random.normal(k_img, (2, 3, 32, 32), dtype=jnp.float32)
    params = init_params(key)

    logits, probas = mlp_forward(img, params)
    jax.block_until_ready((logits, probas))

    # Pure-JAX reference of the same math (bf16 weights, f32 accumulation).
    h = img.reshape(img.shape[0], -1).astype(jnp.bfloat16)
    for w, b in params[:-1]:
        h = jnp.maximum(
            jnp.dot(h, w, preferred_element_type=jnp.float32) + b,
            0.0).astype(jnp.bfloat16)
    logits_ref = jnp.dot(h, params[-1][0],
                         preferred_element_type=jnp.float32) + params[-1][1]
    probas_ref = jax.nn.softmax(logits_ref, axis=1)

    assert logits.shape == (2, NUM_CLASSES)
    assert probas.shape == (2, NUM_CLASSES)
    assert jnp.allclose(logits, logits_ref, atol=2e-3, rtol=2e-2), \
        float(jnp.max(jnp.abs(logits - logits_ref)))
    # Tolerances account for the EUP approximate reciprocal in the softmax.
    assert jnp.allclose(probas, probas_ref, atol=2e-3, rtol=2e-2)
    assert jnp.allclose(jnp.sum(probas, axis=1), 1.0, atol=2e-3)

    print("KERNEL_OK")
</pallas_src>

<mosaic_0001>
module attributes {stable_mosaic.version = 11 : i64} {
  func.func @mlp_kernel(%arg0: i32, %arg1: memref<8x3072xbf16, #tpu.memory_space<vmem>>, %arg2: memref<3072x1024xbf16, #tpu.memory_space<vmem>>, %arg3: memref<1x1024xf32, #tpu.memory_space<vmem>>, %arg4: memref<1024x512xbf16, #tpu.memory_space<vmem>>, %arg5: memref<1x512xf32, #tpu.memory_space<vmem>>, %arg6: memref<512x256xbf16, #tpu.memory_space<vmem>>, %arg7: memref<1x256xf32, #tpu.memory_space<vmem>>, %arg8: memref<256x128xbf16, #tpu.memory_space<vmem>>, %arg9: memref<1x128xf32, #tpu.memory_space<vmem>>, %arg10: memref<128x256xbf16, #tpu.memory_space<vmem>>, %arg11: memref<1x256xf32, #tpu.memory_space<vmem>>, %arg12: memref<8x256xf32, #tpu.memory_space<vmem>>, %arg13: memref<8x256xf32, #tpu.memory_space<vmem>>) attributes {dimension_semantics = [#tpu.dimension_semantics<parallel>], iteration_bounds = array<i64: 1>, scalar_prefetch = 0 : i64, scratch_operands = 0 : i64, tpu.core_type = #tpu.core_type<tc>, window_params = [{transform_indices = @transform_0, window_bounds = array<i64: 8, 3072>}, {pipeline_mode = #tpu.pipeline_mode<synchronous>, transform_indices = @transform_1, window_bounds = array<i64: 3072, 1024>}, {pipeline_mode = #tpu.pipeline_mode<synchronous>, transform_indices = @transform_2, window_bounds = array<i64: 1, 1024>}, {pipeline_mode = #tpu.pipeline_mode<synchronous>, transform_indices = @transform_3, window_bounds = array<i64: 1024, 512>}, {pipeline_mode = #tpu.pipeline_mode<synchronous>, transform_indices = @transform_4, window_bounds = array<i64: 1, 512>}, {pipeline_mode = #tpu.pipeline_mode<synchronous>, transform_indices = @transform_5, window_bounds = array<i64: 512, 256>}, {pipeline_mode = #tpu.pipeline_mode<synchronous>, transform_indices = @transform_6, window_bounds = array<i64: 1, 256>}, {pipeline_mode = #tpu.pipeline_mode<synchronous>, transform_indices = @transform_7, window_bounds = array<i64: 256, 128>}, {pipeline_mode = #tpu.pipeline_mode<synchronous>, transform_indices = @transform_8, window_bounds = array<i64: 1, 128>}, {pipeline_mode = #tpu.pipeline_mode<synchronous>, transform_indices = @transform_9, window_bounds = array<i64: 128, 256>}, {pipeline_mode = #tpu.pipeline_mode<synchronous>, transform_indices = @transform_10, window_bounds = array<i64: 1, 256>}, {transform_indices = @transform_11, window_bounds = array<i64: 8, 256>}, {transform_indices = @transform_12, window_bounds = array<i64: 8, 256>}]} {
    %c0 = arith.constant 0 : index
    %c0_0 = arith.constant 0 : index
    %0 = vector.load %arg1[%c0, %c0_0] : memref<8x3072xbf16, #tpu.memory_space<vmem>>, vector<8x3072xbf16>
    %c0_1 = arith.constant 0 : index
    %c0_2 = arith.constant 0 : index
    %1 = vector.load %arg2[%c0_1, %c0_2] : memref<3072x1024xbf16, #tpu.memory_space<vmem>>, vector<3072x1024xbf16>
    %cst = arith.constant dense<0.000000e+00> : vector<8x1024xf32>
    %2 = tpu.matmul %0, %1, %cst {dimension_numbers = #tpu.dot_dimension_numbers<[1], [0], [0], [1], [0, 0, 1, 1], [], []>} : vector<8x3072xbf16>, vector<3072x1024xbf16>, vector<8x1024xf32> -> vector<8x1024xf32>
    %c0_3 = arith.constant 0 : index
    %c0_4 = arith.constant 0 : index
    %3 = vector.load %arg3[%c0_3, %c0_4] : memref<1x1024xf32, #tpu.memory_space<vmem>>, vector<1x1024xf32>
    %4 = vector.broadcast %3 : vector<1x1024xf32> to vector<8x1024xf32>
    %5 = arith.addf %2, %4 : vector<8x1024xf32>
    %cst_5 = arith.constant 0.000000e+00 : f32
    %6 = vector.broadcast %cst_5 : f32 to vector<8x1024xf32>
    %7 = arith.maximumf %5, %6 : vector<8x1024xf32>
    %8 = arith.truncf %7 : vector<8x1024xf32> to vector<8x1024xbf16>
    %c0_6 = arith.constant 0 : index
    %c0_7 = arith.constant 0 : index
    %9 = vector.load %arg4[%c0_6, %c0_7] : memref<1024x512xbf16, #tpu.memory_space<vmem>>, vector<1024x512xbf16>
    %cst_8 = arith.constant dense<0.000000e+00> : vector<8x512xf32>
    %10 = tpu.matmul %8, %9, %cst_8 {dimension_numbers = #tpu.dot_dimension_numbers<[1], [0], [0], [1], [0, 0, 1, 1], [], []>} : vector<8x1024xbf16>, vector<1024x512xbf16>, vector<8x512xf32> -> vector<8x512xf32>
    %c0_9 = arith.constant 0 : index
    %c0_10 = arith.constant 0 : index
    %11 = vector.load %arg5[%c0_9, %c0_10] : memref<1x512xf32, #tpu.memory_space<vmem>>, vector<1x512xf32>
    %12 = vector.broadcast %11 : vector<1x512xf32> to vector<8x512xf32>
    %13 = arith.addf %10, %12 : vector<8x512xf32>
    %cst_11 = arith.constant 0.000000e+00 : f32
    %14 = vector.broadcast %cst_11 : f32 to vector<8x512xf32>
    %15 = arith.maximumf %13, %14 : vector<8x512xf32>
    %16 = arith.truncf %15 : vector<8x512xf32> to vector<8x512xbf16>
    %c0_12 = arith.constant 0 : index
    %c0_13 = arith.constant 0 : index
    %17 = vector.load %arg6[%c0_12, %c0_13] : memref<512x256xbf16, #tpu.memory_space<vmem>>, vector<512x256xbf16>
    %cst_14 = arith.constant dense<0.000000e+00> : vector<8x256xf32>
    %18 = tpu.matmul %16, %17, %cst_14 {dimension_numbers = #tpu.dot_dimension_numbers<[1], [0], [0], [1], [0, 0, 1, 1], [], []>} : vector<8x512xbf16>, vector<512x256xbf16>, vector<8x256xf32> -> vector<8x256xf32>
    %c0_15 = arith.constant 0 : index
    %c0_16 = arith.constant 0 : index
    %19 = vector.load %arg7[%c0_15, %c0_16] : memref<1x256xf32, #tpu.memory_space<vmem>>, vector<1x256xf32>
    %20 = vector.broadcast %19 : vector<1x256xf32> to vector<8x256xf32>
    %21 = arith.addf %18, %20 : vector<8x256xf32>
    %cst_17 = arith.constant 0.000000e+00 : f32
    %22 = vector.broadcast %cst_17 : f32 to vector<8x256xf32>
    %23 = arith.maximumf %21, %22 : vector<8x256xf32>
    %24 = arith.truncf %23 : vector<8x256xf32> to vector<8x256xbf16>
    %c0_18 = arith.constant 0 : index
    %c0_19 = arith.constant 0 : index
    %25 = vector.load %arg8[%c0_18, %c0_19] : memref<256x128xbf16, #tpu.memory_space<vmem>>, vector<256x128xbf16>
    %cst_20 = arith.constant dense<0.000000e+00> : vector<8x128xf32>
    %26 = tpu.matmul %24, %25, %cst_20 {dimension_numbers = #tpu.dot_dimension_numbers<[1], [0], [0], [1], [0, 0, 1, 1], [], []>} : vector<8x256xbf16>, vector<256x128xbf16>, vector<8x128xf32> -> vector<8x128xf32>
    %c0_21 = arith.constant 0 : index
    %c0_22 = arith.constant 0 : index
    %27 = vector.load %arg9[%c0_21, %c0_22] : memref<1x128xf32, #tpu.memory_space<vmem>>, vector<1x128xf32>
    %28 = vector.broadcast %27 : vector<1x128xf32> to vector<8x128xf32>
    %29 = arith.addf %26, %28 : vector<8x128xf32>
    %cst_23 = arith.constant 0.000000e+00 : f32
    %30 = vector.broadcast %cst_23 : f32 to vector<8x128xf32>
    %31 = arith.maximumf %29, %30 : vector<8x128xf32>
    %32 = arith.truncf %31 : vector<8x128xf32> to vector<8x128xbf16>
    %c0_24 = arith.constant 0 : index
    %c0_25 = arith.constant 0 : index
    %33 = vector.load %arg10[%c0_24, %c0_25] : memref<128x256xbf16, #tpu.memory_space<vmem>>, vector<128x256xbf16>
    %cst_26 = arith.constant dense<0.000000e+00> : vector<8x256xf32>
    %34 = tpu.matmul %32, %33, %cst_26 {dimension_numbers = #tpu.dot_dimension_numbers<[1], [0], [0], [1], [0, 0, 1, 1], [], []>} : vector<8x128xbf16>, vector<128x256xbf16>, vector<8x256xf32> -> vector<8x256xf32>
    %c0_27 = arith.constant 0 : index
    %c0_28 = arith.constant 0 : index
    %35 = vector.load %arg11[%c0_27, %c0_28] : memref<1x256xf32, #tpu.memory_space<vmem>>, vector<1x256xf32>
    %36 = vector.broadcast %35 : vector<1x256xf32> to vector<8x256xf32>
    %37 = arith.addf %34, %36 : vector<8x256xf32>
    %c0_29 = arith.constant 0 : index
    %c0_30 = arith.constant 0 : index
    %38 = vector.load %arg12[%c0_29, %c0_30] : memref<8x256xf32, #tpu.memory_space<vmem>>, vector<8x256xf32>
    tpu.vector_store %arg12[%c0_29, %c0_30], %37 {strides = array<i32>} : memref<8x256xf32, #tpu.memory_space<vmem>>, vector<8x256xf32>,
    %cst_31 = arith.constant dense<0xFF800000> : vector<8xf32>
    %39 = vector.multi_reduction <maximumf>, %37, %cst_31 [1] : vector<8x256xf32> to vector<8xf32>
    %40 = vector.shape_cast %39 : vector<8xf32> to vector<8x1xf32>
    %41 = vector.broadcast %40 : vector<8x1xf32> to vector<8x256xf32>
    %42 = arith.subf %37, %41 : vector<8x256xf32>
    %43 = math.exp %42 : vector<8x256xf32>
    %cst_32 = arith.constant dense<0.000000e+00> : vector<8xf32>
    %44 = vector.multi_reduction <add>, %43, %cst_32 [1] : vector<8x256xf32> to vector<8xf32>
    %45 = vector.shape_cast %44 : vector<8xf32> to vector<8x1xf32>
    %46 = tpu.reciprocal %45 {approx = true} : vector<8x1xf32> -> vector<8x1xf32>
    %47 = vector.broadcast %46 : vector<8x1xf32> to vector<8x256xf32>
    %48 = arith.mulf %43, %47 : vector<8x256xf32>
    %c0_33 = arith.constant 0 : index
    %c0_34 = arith.constant 0 : index
    %49 = vector.load %arg13[%c0_33, %c0_34] : memref<8x256xf32, #tpu.memory_space<vmem>>, vector<8x256xf32>
    tpu.vector_store %arg13[%c0_33, %c0_34], %48 {strides = array<i32>} : memref<8x256xf32, #tpu.memory_space<vmem>>, vector<8x256xf32>,
    return
  }
  func.func @transform_0(%arg0: i32) -> (i32, i32) {
    %c0_i32 = arith.constant 0 : i32
    %c0_i32_0 = arith.constant 0 : i32
    return %arg0, %c0_i32 : i32, i32
  }
  func.func @transform_1(%arg0: i32) -> (i32, i32) {
    %c0_i32 = arith.constant 0 : i32
    %c0_i32_0 = arith.constant 0 : i32
    %c0_i32_1 = arith.constant 0 : i32
    return %c0_i32, %c0_i32_0 : i32, i32
  }
  func.func @transform_2(%arg0: i32) -> (i32, i32) {
    %c0_i32 = arith.constant 0 : i32
    %c0_i32_0 = arith.constant 0 : i32
    %c0_i32_1 = arith.constant 0 : i32
    return %c0_i32, %c0_i32_0 : i32, i32
  }
  func.func @transform_3(%arg0: i32) -> (i32, i32) {
    %c0_i32 = arith.constant 0 : i32
    %c0_i32_0 = arith.constant 0 : i32
    %c0_i32_1 = arith.constant 0 : i32
    return %c0_i32, %c0_i32_0 : i32, i32
  }
  func.func @transform_4(%arg0: i32) -> (i32, i32) {
    %c0_i32 = arith.constant 0 : i32
    %c0_i32_0 = arith.constant 0 : i32
    %c0_i32_1 = arith.constant 0 : i32
    return %c0_i32, %c0_i32_0 : i32, i32
  }
  func.func @transform_5(%arg0: i32) -> (i32, i32) {
    %c0_i32 = arith.constant 0 : i32
    %c0_i32_0 = arith.constant 0 : i32
    %c0_i32_1 = arith.constant 0 : i32
    return %c0_i32, %c0_i32_0 : i32, i32
  }
  func.func @transform_6(%arg0: i32) -> (i32, i32) {
    %c0_i32 = arith.constant 0 : i32
    %c0_i32_0 = arith.constant 0 : i32
    %c0_i32_1 = arith.constant 0 : i32
    return %c0_i32, %c0_i32_0 : i32, i32
  }
  func.func @transform_7(%arg0: i32) -> (i32, i32) {
    %c0_i32 = arith.constant 0 : i32
    %c0_i32_0 = arith.constant 0 : i32
    %c0_i32_1 = arith.constant 0 : i32
    return %c0_i32, %c0_i32_0 : i32, i32
  }
  func.func @transform_8(%arg0: i32) -> (i32, i32) {
    %c0_i32 = arith.constant 0 : i32
    %c0_i32_0 = arith.constant 0 : i32
    %c0_i32_1 = arith.constant 0 : i32
    return %c0_i32, %c0_i32_0 : i32, i32
  }
  func.func @transform_9(%arg0: i32) -> (i32, i32) {
    %c0_i32 = arith.constant 0 : i32
    %c0_i32_0 = arith.constant 0 : i32
    %c0_i32_1 = arith.constant 0 : i32
    return %c0_i32, %c0_i32_0 : i32, i32
  }
  func.func @transform_10(%arg0: i32) -> (i32, i32) {
    %c0_i32 = arith.constant 0 : i32
    %c0_i32_0 = arith.constant 0 : i32
    %c0_i32_1 = arith.constant 0 : i32
    return %c0_i32, %c0_i32_0 : i32, i32
  }
  func.func @transform_11(%arg0: i32) -> (i32, i32) {
    %c0_i32 = arith.constant 0 : i32
    %c0_i32_0 = arith.constant 0 : i32
    return %arg0, %c0_i32 : i32, i32
  }
  func.func @transform_12(%arg0: i32) -> (i32, i32) {
    %c0_i32 = arith.constant 0 : i32
    %c0_i32_0 = arith.constant 0 : i32
    return %arg0, %c0_i32 : i32, i32
  }
}

</mosaic_0001>

<llo_original>
// kernel: tpu_custom_call.1
$region0: #{tpu_custom_call.1}
  #allocation0 [shape = 'u32[]', space=smem, size = 0x4, offset = 0x4, fixed_abs, tag = 'smem constant byte address 0x4 - core index']
  #allocation1 [shape = 'u32[144,128]{1,0:T(1,128)}', space=vmem, size = 0x12000, scoped, tag = 'internal scratch']
  %s0 = inlined_call_operand.hbm [shape: bf16[8,3072], index: 0, kind: input, shape index: {}]
  %s1 = inlined_call_operand.hbm [shape: bf16[3072,1024], index: 1, kind: input, shape index: {}]
  %s2 = inlined_call_operand.hbm [shape: f32[1,1024], index: 2, kind: input, shape index: {}]
  %s3 = inlined_call_operand.hbm [shape: bf16[1024,512], index: 3, kind: input, shape index: {}]
  %s4 = inlined_call_operand.hbm [shape: f32[1,512], index: 4, kind: input, shape index: {}]
  %s5 = inlined_call_operand.hbm [shape: bf16[512,256], index: 5, kind: input, shape index: {}]
  %s6 = inlined_call_operand.hbm [shape: f32[1,256], index: 6, kind: input, shape index: {}]
  %s7 = inlined_call_operand.hbm [shape: bf16[256,128], index: 7, kind: input, shape index: {}]
  %s8 = inlined_call_operand.hbm [shape: f32[1,128], index: 8, kind: input, shape index: {}]
  %s9 = inlined_call_operand.hbm [shape: bf16[128,256], index: 9, kind: input, shape index: {}]
  %s10 = inlined_call_operand.hbm [shape: f32[1,256], index: 10, kind: input, shape index: {}]
  %s11 = inlined_call_operand.hbm [shape: f32[8,256], index: 11, kind: output, shape index: {0}]
  %s12 = inlined_call_operand.hbm [shape: f32[8,256], index: 12, kind: output, shape index: {1}]
  %13 = xla_tuple %s11, %s12
  %s14 = sld [smem:[#allocation0]]
  $region106: #{tpu_custom_call.1} parent=0
    _
  %s16 = ssub.s32 1, %s14
  %s17 = scalar_select 0, %s16, %s14
  $region1: #{tpu_custom_call.1} parent=0
    #allocation2 [shape = 'u8[49152]{0}', space=vmem, size = 0xc000, scoped, tag = 'input window, operand 0, single buffered']
    #allocation3 [shape = 's32[1]{0}', space=sflag, size = 0x4, scoped, tag = 'scoped memory for tpu_custom_call.1']
    #allocation4 [shape = 's32[1]{0}', space=sflag, size = 0x4, scoped, tag = 'scoped memory for tpu_custom_call.1']
    #allocation5 [shape = 'u8[6291456]{0}', space=vmem, size = 0x600000, scoped, tag = 'input window, operand 1, single buffered']
    #allocation6 [shape = 's32[1]{0}', space=sflag, size = 0x4, scoped, tag = 'scoped memory for tpu_custom_call.1']
    #allocation7 [shape = 'u8[4096]{0}', space=vmem, size = 0x1000, scoped, tag = 'input window, operand 2, single buffered']
    #allocation8 [shape = 'u8[1048576]{0}', space=vmem, size = 0x100000, scoped, tag = 'input window, operand 3, single buffered']
    #allocation9 [shape = 's32[1]{0}', space=sflag, size = 0x4, scoped, tag = 'scoped memory for tpu_custom_call.1']
    #allocation10 [shape = 'u8[2048]{0}', space=vmem, size = 0x800, scoped, tag = 'input window, operand 4, single buffered']
    #allocation11 [shape = 'u8[262144]{0}', space=vmem, size = 0x40000, scoped, tag = 'input window, operand 5, single buffered']
    #allocation12 [shape = 's32[1]{0}', space=sflag, size = 0x4, scoped, tag = 'scoped memory for tpu_custom_call.1']
    #allocation13 [shape = 'u8[1024]{0}', space=vmem, size = 0x400, scoped, tag = 'input window, operand 6, single buffered']
    #allocation14 [shape = 'u8[65536]{0}', space=vmem, size = 0x10000, scoped, tag = 'input window, operand 7, single buffered']
    #allocation15 [shape = 's32[1]{0}', space=sflag, size = 0x4, scoped, tag = 'scoped memory for tpu_custom_call.1']
    #allocation16 [shape = 'u8[512]{0}', space=vmem, size = 0x400, scoped, tag = 'input window, operand 8, single buffered']
    #allocation17 [shape = 'u8[65536]{0}', space=vmem, size = 0x10000, scoped, tag = 'input window, operand 9, single buffered']
    #allocation18 [shape = 's32[1]{0}', space=sflag, size = 0x4, scoped, tag = 'scoped memory for tpu_custom_call.1']
    #allocation19 [shape = 'u8[1024]{0}', space=vmem, size = 0x400, scoped, tag = 'input window, operand 10, single buffered']
    #allocation20 [shape = 'u8[8192]{0}', space=vmem, size = 0x2000, scoped, tag = 'output window, operand 0, single buffered']
    #allocation21 [shape = 'u8[8192]{0}', space=vmem, size = 0x2000, scoped, tag = 'output window, operand 1, single buffered']
    #allocation22 [shape = 's32[1]{0}', space=sflag, size = 0x4, scoped, tag = 'scoped memory for tpu_custom_call.1']
    %18 = vsyncpa [#allocation3], 0
    %19 = vsyncpa [#allocation6], 0
    %20 = vsyncpa [#allocation9], 0
    %21 = vsyncpa [#allocation12], 0
    %22 = vsyncpa [#allocation15], 0
    %23 = vsyncpa [#allocation18], 0
    %24 = vsyncpa [#allocation4], 0
    %25 = vsyncpa [#allocation22], 0
    // Predicated region
    $region2: #{tpu_custom_call.1} parent=1 // pred_check
      _
    $region3: #{tpu_custom_call.1} parent=1 // pred_check_branch
      %27 = sbr.rel (0) target = $region5
    $region4: #{tpu_custom_call.1} parent=1 // pred_region
      %s29 = ssub.s32 1536, 1536
      %30 = vsyncadd [#allocation3], %s29
      %s32 = sshll.u32 [#allocation2], 4
      %s33 = int_to_ptr.vmem [resolvable:$true] %s32
      %35 = dma.hbm_to_vmem [thread:$0]  %s0, 1536, %s33, [#allocation3]
    $region5: #{tpu_custom_call.1} parent=1 // pred_fallthru
      _
    // Predicated region
    $region6: #{tpu_custom_call.1} parent=1 // pred_check
      _
    $region7: #{tpu_custom_call.1} parent=1 // pred_check_branch
      %37 = sbr.rel (0) target = $region9
    $region8: #{tpu_custom_call.1} parent=1 // pred_region
      %s39 = ssub.s32 196608, 196608
      %40 = vsyncadd [#allocation6], %s39
      %s41 = sshll.u32 [#allocation5], 4
      %s42 = int_to_ptr.vmem [resolvable:$true] %s41
      %47 = dma.hbm_to_vmem [thread:$0]  %s1, 196608, %s42, [#allocation6], 512, 512, 32
    $region9: #{tpu_custom_call.1} parent=1 // pred_fallthru
      _
    // Predicated region
    $region10: #{tpu_custom_call.1} parent=1 // pred_check
      _
    $region11: #{tpu_custom_call.1} parent=1 // pred_check_branch
      %49 = sbr.rel (0) target = $region13
    $region12: #{tpu_custom_call.1} parent=1 // pred_region
      %s51 = ssub.s32 128, 128
      %52 = vsyncadd [#allocation6], %s51
      %s54 = sshll.u32 [#allocation7], 4
      %s55 = int_to_ptr.vmem [resolvable:$true] %s54
      %57 = dma.hbm_to_vmem [thread:$0]  %s2, 128, %s55, [#allocation6]
    $region13: #{tpu_custom_call.1} parent=1 // pred_fallthru
      _
    // Predicated region
    $region14: #{tpu_custom_call.1} parent=1 // pred_check
      _
    $region15: #{tpu_custom_call.1} parent=1 // pred_check_branch
      %59 = sbr.rel (0) target = $region17
    $region16: #{tpu_custom_call.1} parent=1 // pred_region
      %s61 = ssub.s32 32768, 32768
      %62 = vsyncadd [#allocation9], %s61
      %s63 = sshll.u32 [#allocation8], 4
      %s64 = int_to_ptr.vmem [resolvable:$true] %s63
      %69 = dma.hbm_to_vmem [thread:$0]  %s3, 32768, %s64, [#allocation9], 256, 256, 16
    $region17: #{tpu_custom_call.1} parent=1 // pred_fallthru
      _
    // Predicated region
    $region18: #{tpu_custom_call.1} parent=1 // pred_check
      _
    $region19: #{tpu_custom_call.1} parent=1 // pred_check_branch
      %71 = sbr.rel (0) target = $region21
    $region20: #{tpu_custom_call.1} parent=1 // pred_region
      %s73 = ssub.s32 64, 64
      %74 = vsyncadd [#allocation9], %s73
      %s76 = sshll.u32 [#allocation10], 4
      %s77 = int_to_ptr.vmem [resolvable:$true] %s76
      %79 = dma.hbm_to_vmem [thread:$0]  %s4, 64, %s77, [#allocation9]
    $region21: #{tpu_custom_call.1} parent=1 // pred_fallthru
      _
    // Predicated region
    $region22: #{tpu_custom_call.1} parent=1 // pred_check
      _
    $region23: #{tpu_custom_call.1} parent=1 // pred_check_branch
      %81 = sbr.rel (0) target = $region25
    $region24: #{tpu_custom_call.1} parent=1 // pred_region
      %s83 = ssub.s32 8192, 8192
      %84 = vsyncadd [#allocation12], %s83
      %s85 = sshll.u32 [#allocation11], 4
      %s86 = int_to_ptr.vmem [resolvable:$true] %s85
      %91 = dma.hbm_to_vmem [thread:$0]  %s5, 8192, %s86, [#allocation12], 128, 128, 8
    $region25: #{tpu_custom_call.1} parent=1 // pred_fallthru
      _
    // Predicated region
    $region26: #{tpu_custom_call.1} parent=1 // pred_check
      _
    $region27: #{tpu_custom_call.1} parent=1 // pred_check_branch
      %93 = sbr.rel (0) target = $region29
    $region28: #{tpu_custom_call.1} parent=1 // pred_region
      %s95 = ssub.s32 32, 32
      %96 = vsyncadd [#allocation12], %s95
      %s98 = sshll.u32 [#allocation13], 4
      %s99 = int_to_ptr.vmem [resolvable:$true] %s98
      %101 = dma.hbm_to_vmem [thread:$0]  %s6, 32, %s99, [#allocation12]
    $region29: #{tpu_custom_call.1} parent=1 // pred_fallthru
      _
    // Predicated region
    $region30: #{tpu_custom_call.1} parent=1 // pred_check
      _
    $region31: #{tpu_custom_call.1} parent=1 // pred_check_branch
      %103 = sbr.rel (0) target = $region33
    $region32: #{tpu_custom_call.1} parent=1 // pred_region
      %s105 = ssub.s32 2048, 2048
      %106 = vsyncadd [#allocation15], %s105
      %s107 = sshll.u32 [#allocation14], 4
      %s108 = int_to_ptr.vmem [resolvable:$true] %s107
      %113 = dma.hbm_to_vmem [thread:$0]  %s7, 2048, %s108, [#allocation15], 64, 64, 4
    $region33: #{tpu_custom_call.1} parent=1 // pred_fallthru
      _
    // Predicated region
    $region34: #{tpu_custom_call.1} parent=1 // pred_check
      _
    $region35: #{tpu_custom_call.1} parent=1 // pred_check_branch
      %115 = sbr.rel (0) target = $region37
    $region36: #{tpu_custom_call.1} parent=1 // pred_region
      %s117 = ssub.s32 16, 16
      %118 = vsyncadd [#allocation15], %s117
      %s120 = sshll.u32 [#allocation16], 4
      %s121 = int_to_ptr.vmem [resolvable:$true] %s120
      %123 = dma.hbm_to_vmem [thread:$0]  %s8, 16, %s121, [#allocation15]
    $region37: #{tpu_custom_call.1} parent=1 // pred_fallthru
      _
    // Predicated region
    $region38: #{tpu_custom_call.1} parent=1 // pred_check
      _
    $region39: #{tpu_custom_call.1} parent=1 // pred_check_branch
      %125 = sbr.rel (0) target = $region41
    $region40: #{tpu_custom_call.1} parent=1 // pred_region
      %s127 = ssub.s32 2048, 2048
      %128 = vsyncadd [#allocation18], %s127
      %s129 = sshll.u32 [#allocation17], 4
      %s130 = int_to_ptr.vmem [resolvable:$true] %s129
      %135 = dma.hbm_to_vmem [thread:$0]  %s9, 2048, %s130, [#allocation18], 128, 128, 8
    $region41: #{tpu_custom_call.1} parent=1 // pred_fallthru
      _
    // Predicated region
    $region42: #{tpu_custom_call.1} parent=1 // pred_check
      _
    $region43: #{tpu_custom_call.1} parent=1 // pred_check_branch
      %137 = sbr.rel (0) target = $region45
    $region44: #{tpu_custom_call.1} parent=1 // pred_region
      %s139 = ssub.s32 32, 32
      %140 = vsyncadd [#allocation18], %s139
      %s142 = sshll.u32 [#allocation19], 4
      %s143 = int_to_ptr.vmem [resolvable:$true] %s142
      %145 = dma.hbm_to_vmem [thread:$0]  %s10, 32, %s143, [#allocation18]
    $region45: #{tpu_custom_call.1} parent=1 // pred_fallthru
      _
    // Predicated region
    $region46: #{tpu_custom_call.1} parent=1 // pred_check
      _
    $region47: #{tpu_custom_call.1} parent=1 // pred_check_branch
      %147 = sbr.rel (0) target = $region49
    $region48: #{tpu_custom_call.1} parent=1 // pred_region
      %148 = dma.done [#allocation3], 1536
    $region49: #{tpu_custom_call.1} parent=1 // pred_fallthru
      _
    // Predicated region
    $region50: #{tpu_custom_call.1} parent=1 // pred_check
      _
    $region51: #{tpu_custom_call.1} parent=1 // pred_check_branch
      %150 = sbr.rel (0) target = $region53
    $region52: #{tpu_custom_call.1} parent=1 // pred_region
      %151 = dma.done [#allocation6], 196608
    $region53: #{tpu_custom_call.1} parent=1 // pred_fallthru
      _
    // Predicated region
    $region54: #{tpu_custom_call.1} parent=1 // pred_check
      _
    $region55: #{tpu_custom_call.1} parent=1 // pred_check_branch
      %153 = sbr.rel (0) target = $region57
    $region56: #{tpu_custom_call.1} parent=1 // pred_region
      %154 = dma.done [#allocation6], 128
    $region57: #{tpu_custom_call.1} parent=1 // pred_fallthru
      _
    // Predicated region
    $region58: #{tpu_custom_call.1} parent=1 // pred_check
      _
    $region59: #{tpu_custom_call.1} parent=1 // pred_check_branch
      %156 = sbr.rel (0) target = $region61
    $region60: #{tpu_custom_call.1} parent=1 // pred_region
      %157 = dma.done [#allocation9], 32768
    $region61: #{tpu_custom_call.1} parent=1 // pred_fallthru
      _
    // Predicated region
    $region62: #{tpu_custom_call.1} parent=1 // pred_check
      _
    $region63: #{tpu_custom_call.1} parent=1 // pred_check_branch
      %159 = sbr.rel (0) target = $region65
    $region64: #{tpu_custom_call.1} parent=1 // pred_region
      %160 = dma.done [#allocation9], 64
    $region65: #{tpu_custom_call.1} parent=1 // pred_fallthru
      _
    // Predicated region
    $region66: #{tpu_custom_call.1} parent=1 // pred_check
      _
    $region67: #{tpu_custom_call.1} parent=1 // pred_check_branch
      %162 = sbr.rel (0) target = $region69
    $region68: #{tpu_custom_call.1} parent=1 // pred_region
      %163 = dma.done [#allocation12], 8192
    $region69: #{tpu_custom_call.1} parent=1 // pred_fallthru
      _
    // Predicated region
    $region70: #{tpu_custom_call.1} parent=1 // pred_check
      _
    $region71: #{tpu_custom_call.1} parent=1 // pred_check_branch
      %165 = sbr.rel (0) target = $region73
    $region72: #{tpu_custom_call.1} parent=1 // pred_region
      %166 = dma.done [#allocation12], 32
    $region73: #{tpu_custom_call.1} parent=1 // pred_fallthru
      _
    // Predicated region
    $region74: #{tpu_custom_call.1} parent=1 // pred_check
      _
    $region75: #{tpu_custom_call.1} parent=1 // pred_check_branch
      %168 = sbr.rel (0) target = $region77
    $region76: #{tpu_custom_call.1} parent=1 // pred_region
      %169 = dma.done [#allocation15], 2048
    $region77: #{tpu_custom_call.1} parent=1 // pred_fallthru
      _
    // Predicated region
    $region78: #{tpu_custom_call.1} parent=1 // pred_check
      _
    $region79: #{tpu_custom_call.1} parent=1 // pred_check_branch
      %171 = sbr.rel (0) target = $region81
    $region80: #{tpu_custom_call.1} parent=1 // pred_region
      %172 = dma.done [#allocation15], 16
    $region81: #{tpu_custom_call.1} parent=1 // pred_fallthru
      _
    // Predicated region
    $region82: #{tpu_custom_call.1} parent=1 // pred_check
      _
    $region83: #{tpu_custom_call.1} parent=1 // pred_check_branch
      %174 = sbr.rel (0) target = $region85
    $region84: #{tpu_custom_call.1} parent=1 // pred_region
      %175 = dma.done [#allocation18], 2048
    $region85: #{tpu_custom_call.1} parent=1 // pred_fallthru
      _
    // Predicated region
    $region86: #{tpu_custom_call.1} parent=1 // pred_check
      _
    $region87: #{tpu_custom_call.1} parent=1 // pred_check_branch
      %177 = sbr.rel (0) target = $region89
    $region88: #{tpu_custom_call.1} parent=1 // pred_region
      %178 = dma.done [#allocation18], 32
    $region89: #{tpu_custom_call.1} parent=1 // pred_fallthru
      _
    %v180 = vld [vmem:[#allocation2] sm:$0xff]
    %v181 = vld [vmem:[#allocation2 + $0x8] sm:$0xff]
    %v182 = vld [vmem:[#allocation2 + $0x10] sm:$0xff]
    %v183 = vld [vmem:[#allocation2 + $0x18] sm:$0xff]
    %v184 = vld [vmem:[#allocation2 + $0x20] sm:$0xff]
    %v185 = vld [vmem:[#allocation2 + $0x28] sm:$0xff]
    %v186 = vld [vmem:[#allocation2 + $0x30] sm:$0xff]
    %v187 = vld [vmem:[#allocation2 + $0x38] sm:$0xff]
    %v188 = vld [vmem:[#allocation2 + $0x40] sm:$0xff]
    %v189 = vld [vmem:[#allocation2 + $0x48] sm:$0xff]
    %v190 = vld [vmem:[#allocation2 + $0x50] sm:$0xff]
    %v191 = vld [vmem:[#allocation2 + $0x58] sm:$0xff]
    %v192 = vld [vmem:[#allocation5] sm:$0xff]
    %v193 = vld [vmem:[#allocation5 + $0x8] sm:$0xff]
    %v194 = vld [vmem:[#allocation5 + $0x10] sm:$0xff]
    %v195 = vld [vmem:[#allocation5 + $0x18] sm:$0xff]
    %v196 = vld [vmem:[#allocation5 + $0x20] sm:$0xff]
    %v197 = vld [vmem:[#allocation5 + $0x28] sm:$0xff]
    %v198 = vld [vmem:[#allocation5 + $0x30] sm:$0xff]
    %v199 = vld [vmem:[#allocation5 + $0x38] sm:$0xff]
    %v200 = vld [vmem:[#allocation5 + $0x40] sm:$0xff]
    %v201 = vld [vmem:[#allocation5 + $0x48] sm:$0xff]
    %v202 = vld [vmem:[#allocation5 + $0x50] sm:$0xff]
    %v203 = vld [vmem:[#allocation5 + $0x58] sm:$0xff]
    %v204 = vld [vmem:[#allocation5 + $0x60] sm:$0xff]
    %v205 = vld [vmem:[#allocation5 + $0x68] sm:$0xff]
    %v206 = vld [vmem:[#allocation5 + $0x70] sm:$0xff]
    %v207 = vld [vmem:[#allocation5 + $0x78] sm:$0xff]
    %v208 = vld [vmem:[#allocation5 + $0x80] sm:$0xff]
    %v209 = vld [vmem:[#allocation5 + $0x88] sm:$0xff]
    %v210 = vld [vmem:[#allocation5 + $0x90] sm:$0xff]
    %v211 = vld [vmem:[#allocation5 + $0x98] sm:$0xff]
    %v212 = vld [vmem:[#allocation5 + $0xa0] sm:$0xff]
    %v213 = vld [vmem:[#allocation5 + $0xa8] sm:$0xff]
    %v214 = vld [vmem:[#allocation5 + $0xb0] sm:$0xff]
    %v215 = vld [vmem:[#allocation5 + $0xb8] sm:$0xff]
    %v216 = vld [vmem:[#allocation5 + $0xc0] sm:$0xff]
    %v217 = vld [vmem:[#allocation5 + $0xc8] sm:$0xff]
    %v218 = vld [vmem:[#allocation5 + $0xd0] sm:$0xff]
    %v219 = vld [vmem:[#allocation5 + $0xd8] sm:$0xff]
    %v220 = vld [vmem:[#allocation5 + $0xe0] sm:$0xff]
    %v221 = vld [vmem:[#allocation5 + $0xe8] sm:$0xff]
    %v222 = vld [vmem:[#allocation5 + $0xf0] sm:$0xff]
    %v223 = vld [vmem:[#allocation5 + $0xf8] sm:$0xff]
    %v224 = vld [vmem:[#allocation5 + $0x100] sm:$0xff]
    %v225 = vld [vmem:[#allocation5 + $0x108] sm:$0xff]
    %v226 = vld [vmem:[#allocation5 + $0x110] sm:$0xff]
    %v227 = vld [vmem:[#allocation5 + $0x118] sm:$0xff]
    %v228 = vld [vmem:[#allocation5 + $0x120] sm:$0xff]
    %v229 = vld [vmem:[#allocation5 + $0x128] sm:$0xff]
    %v230 = vld [vmem:[#allocation5 + $0x130] sm:$0xff]
    %v231 = vld [vmem:[#allocation5 + $0x138] sm:$0xff]
    %v232 = vld [vmem:[#allocation5 + $0x140] sm:$0xff]
    %v233 = vld [vmem:[#allocation5 + $0x148] sm:$0xff]
    %v234 = vld [vmem:[#allocation5 + $0x150] sm:$0xff]
    %v235 = vld [vmem:[#allocation5 + $0x158] sm:$0xff]
    %v236 = vld [vmem:[#allocation5 + $0x160] sm:$0xff]
    %v237 = vld [vmem:[#allocation5 + $0x168] sm:$0xff]
    %v238 = vld [vmem:[#allocation5 + $0x170] sm:$0xff]
    %v239 = vld [vmem:[#allocation5 + $0x178] sm:$0xff]
    %v240 = vld [vmem:[#allocation5 + $0x180] sm:$0xff]
    %v241 = vld [vmem:[#allocation5 + $0x188] sm:$0xff]
    %v242 = vld [vmem:[#allocation5 + $0x190] sm:$0xff]
    %v243 = vld [vmem:[#allocation5 + $0x198] sm:$0xff]
    %v244 = vld [vmem:[#allocation5 + $0x1a0] sm:$0xff]
    %v245 = vld [vmem:[#allocation5 + $0x1a8] sm:$0xff]
    %v246 = vld [vmem:[#allocation5 + $0x1b0] sm:$0xff]
    %v247 = vld [vmem:[#allocation5 + $0x1b8] sm:$0xff]
    %v248 = vld [vmem:[#allocation5 + $0x1c0] sm:$0xff]
    %v249 = vld [vmem:[#allocation5 + $0x1c8] sm:$0xff]
    %v250 = vld [vmem:[#allocation5 + $0x1d0] sm:$0xff]
    %v251 = vld [vmem:[#allocation5 + $0x1d8] sm:$0xff]
    %v252 = vld [vmem:[#allocation5 + $0x1e0] sm:$0xff]
    %v253 = vld [vmem:[#allocation5 + $0x1e8] sm:$0xff]
    %v254 = vld [vmem:[#allocation5 + $0x1f0] sm:$0xff]
    %v255 = vld [vmem:[#allocation5 + $0x1f8] sm:$0xff]
    %v256 = vld [vmem:[#allocation5 + $0x200] sm:$0xff]
    %v257 = vld [vmem:[#allocation5 + $0x208] sm:$0xff]
    %v258 = vld [vmem:[#allocation5 + $0x210] sm:$0xff]
    %v259 = vld [vmem:[#allocation5 + $0x218] sm:$0xff]
    %v260 = vld [vmem:[#allocation5 + $0x220] sm:$0xff]
    %v261 = vld [vmem:[#allocation5 + $0x228] sm:$0xff]
    %v262 = vld [vmem:[#allocation5 + $0x230] sm:$0xff]
    %v263 = vld [vmem:[#allocation5 + $0x238] sm:$0xff]
    %v264 = vld [vmem:[#allocation5 + $0x240] sm:$0xff]
    %v265 = vld [vmem:[#allocation5 + $0x248] sm:$0xff]
    %v266 = vld [vmem:[#allocation5 + $0x250] sm:$0xff]
    %v267 = vld [vmem:[#allocation5 + $0x258] sm:$0xff]
    %v268 = vld [vmem:[#allocation5 + $0x260] sm:$0xff]
    %v269 = vld [vmem:[#allocation5 + $0x268] sm:$0xff]
    %v270 = vld [vmem:[#allocation5 + $0x270] sm:$0xff]
    %v271 = vld [vmem:[#allocation5 + $0x278] sm:$0xff]
    %v272 = vld [vmem:[#allocation5 + $0x280] sm:$0xff]
    %v273 = vld [vmem:[#allocation5 + $0x288] sm:$0xff]
    %v274 = vld [vmem:[#allocation5 + $0x290] sm:$0xff]
    %v275 = vld [vmem:[#allocation5 + $0x298] sm:$0xff]
    %v276 = vld [vmem:[#allocation5 + $0x2a0] sm:$0xff]
    %v277 = vld [vmem:[#allocation5 + $0x2a8] sm:$0xff]
    %v278 = vld [vmem:[#allocation5 + $0x2b0] sm:$0xff]
    %v279 = vld [vmem:[#allocation5 + $0x2b8] sm:$0xff]
    %v280 = vld [vmem:[#allocation5 + $0x2c0] sm:$0xff]
    %v281 = vld [vmem:[#allocation5 + $0x2c8] sm:$0xff]
    %v282 = vld [vmem:[#allocation5 + $0x2d0] sm:$0xff]
    %v283 = vld [vmem:[#allocation5 + $0x2d8] sm:$0xff]
    %v284 = vld [vmem:[#allocation5 + $0x2e0] sm:$0xff]
    %v285 = vld [vmem:[#allocation5 + $0x2e8] sm:$0xff]
    %v286 = vld [vmem:[#allocation5 + $0x2f0] sm:$0xff]
    %v287 = vld [vmem:[#allocation5 + $0x2f8] sm:$0xff]
    %v288 = vld [vmem:[#allocation5 + $0x300] sm:$0xff]
    %v289 = vld [vmem:[#allocation5 + $0x308] sm:$0xff]
    %v290 = vld [vmem:[#allocation5 + $0x310] sm:$0xff]
    %v291 = vld [vmem:[#allocation5 + $0x318] sm:$0xff]
    %v292 = vld [vmem:[#allocation5 + $0x320] sm:$0xff]
    %v293 = vld [vmem:[#allocation5 + $0x328] sm:$0xff]
    %v294 = vld [vmem:[#allocation5 + $0x330] sm:$0xff]
    %v295 = vld [vmem:[#allocation5 + $0x338] sm:$0xff]
    %v296 = vld [vmem:[#allocation5 + $0x340] sm:$0xff]
    %v297 = vld [vmem:[#allocation5 + $0x348] sm:$0xff]
    %v298 = vld [vmem:[#allocation5 + $0x350] sm:$0xff]
    %v299 = vld [vmem:[#allocation5 + $0x358] sm:$0xff]
    %v300 = vld [vmem:[#allocation5 + $0x360] sm:$0xff]
    %v301 = vld [vmem:[#allocation5 + $0x368] sm:$0xff]
    %v302 = vld [vmem:[#allocation5 + $0x370] sm:$0xff]
    %v303 = vld [vmem:[#allocation5 + $0x378] sm:$0xff]
    %v304 = vld [vmem:[#allocation5 + $0x380] sm:$0xff]
    %v305 = vld [vmem:[#allocation5 + $0x388] sm:$0xff]
    %v306 = vld [vmem:[#allocation5 + $0x390] sm:$0xff]
    %v307 = vld [vmem:[#allocation5 + $0x398] sm:$0xff]
    %v308 = vld [vmem:[#allocation5 + $0x3a0] sm:$0xff]
    %v309 = vld [vmem:[#allocation5 + $0x3a8] sm:$0xff]
    %v310 = vld [vmem:[#allocation5 + $0x3b0] sm:$0xff]
    %v311 = vld [vmem:[#allocation5 + $0x3b8] sm:$0xff]
    %v312 = vld [vmem:[#allocation5 + $0x3c0] sm:$0xff]
    %v313 = vld [vmem:[#allocation5 + $0x3c8] sm:$0xff]
    %v314 = vld [vmem:[#allocation5 + $0x3d0] sm:$0xff]
    %v315 = vld [vmem:[#allocation5 + $0x3d8] sm:$0xff]
    %v316 = vld [vmem:[#allocation5 + $0x3e0] sm:$0xff]
    %v317 = vld [vmem:[#allocation5 + $0x3e8] sm:$0xff]
    %v318 = vld [vmem:[#allocation5 + $0x3f0] sm:$0xff]
    %v319 = vld [vmem:[#allocation5 + $0x3f8] sm:$0xff]
    %v320 = vld [vmem:[#allocation5 + $0x400] sm:$0xff]
    %v321 = vld [vmem:[#allocation5 + $0x408] sm:$0xff]
    %v322 = vld [vmem:[#allocation5 + $0x410] sm:$0xff]
    %v323 = vld [vmem:[#allocation5 + $0x418] sm:$0xff]
    %v324 = vld [vmem:[#allocation5 + $0x420] sm:$0xff]
    %v325 = vld [vmem:[#allocation5 + $0x428] sm:$0xff]
    %v326 = vld [vmem:[#allocation5 + $0x430] sm:$0xff]
    %v327 = vld [vmem:[#allocation5 + $0x438] sm:$0xff]
    %v328 = vld [vmem:[#allocation5 + $0x440] sm:$0xff]
    %v329 = vld [vmem:[#allocation5 + $0x448] sm:$0xff]
    %v330 = vld [vmem:[#allocation5 + $0x450] sm:$0xff]
    %v331 = vld [vmem:[#allocation5 + $0x458] sm:$0xff]
    %v332 = vld [vmem:[#allocation5 + $0x460] sm:$0xff]
    %v333 = vld [vmem:[#allocation5 + $0x468] sm:$0xff]
    %v334 = vld [vmem:[#allocation5 + $0x470] sm:$0xff]
    %v335 = vld [vmem:[#allocation5 + $0x478] sm:$0xff]
    %v336 = vld [vmem:[#allocation5 + $0x480] sm:$0xff]
    %v337 = vld [vmem:[#allocation5 + $0x488] sm:$0xff]
    %v338 = vld [vmem:[#allocation5 + $0x490] sm:$0xff]
    %v339 = vld [vmem:[#allocation5 + $0x498] sm:$0xff]
    %v340 = vld [vmem:[#allocation5 + $0x4a0] sm:$0xff]
    %v341 = vld [vmem:[#allocation5 + $0x4a8] sm:$0xff]
    %v342 = vld [vmem:[#allocation5 + $0x4b0] sm:$0xff]
    %v343 = vld [vmem:[#allocation5 + $0x4b8] sm:$0xff]
    %v344 = vld [vmem:[#allocation5 + $0x4c0] sm:$0xff]
    %v345 = vld [vmem:[#allocation5 + $0x4c8] sm:$0xff]
    %v346 = vld [vmem:[#allocation5 + $0x4d0] sm:$0xff]
    %v347 = vld [vmem:[#allocation5 + $0x4d8] sm:$0xff]
    %v348 = vld [vmem:[#allocation5 + $0x4e0] sm:$0xff]
    %v349 = vld [vmem:[#allocation5 + $0x4e8] sm:$0xff]
    %v350 = vld [vmem:[#allocation5 + $0x4f0] sm:$0xff]
    %v351 = vld [vmem:[#allocation5 + $0x4f8] sm:$0xff]
    %v352 = vld [vmem:[#allocation5 + $0x500] sm:$0xff]
    %v353 = vld [vmem:[#allocation5 + $0x508] sm:$0xff]
    %v354 = vld [vmem:[#allocation5 + $0x510] sm:$0xff]
    %v355 = vld [vmem:[#allocation5 + $0x518] sm:$0xff]
    %v356 = vld [vmem:[#allocation5 + $0x520] sm:$0xff]
    %v357 = vld [vmem:[#allocation5 + $0x528] sm:$0xff]
    %v358 = vld [vmem:[#allocation5 + $0x530] sm:$0xff]
    %v359 = vld [vmem:[#allocation5 + $0x538] sm:$0xff]
    %v360 = vld [vmem:[#allocation5 + $0x540] sm:$0xff]
    %v361 = vld [vmem:[#allocation5 + $0x548] sm:$0xff]
    %v362 = vld [vmem:[#allocation5 + $0x550] sm:$0xff]
    %v363 = vld [vmem:[#allocation5 + $0x558] sm:$0xff]
    %v364 = vld [vmem:[#allocation5 + $0x560] sm:$0xff]
    %v365 = vld [vmem:[#allocation5 + $0x568] sm:$0xff]
    %v366 = vld [vmem:[#allocation5 + $0x570] sm:$0xff]
    %v367 = vld [vmem:[#allocation5 + $0x578] sm:$0xff]
    %v368 = vld [vmem:[#allocation5 + $0x580] sm:$0xff]
    %v369 = vld [vmem:[#allocation5 + $0x588] sm:$0xff]
    %v370 = vld [vmem:[#allocation5 + $0x590] sm:$0xff]
    %v371 = vld [vmem:[#allocation5 + $0x598] sm:$0xff]
    %v372 = vld [vmem:[#allocation5 + $0x5a0] sm:$0xff]
    %v373 = vld [vmem:[#allocation5 + $0x5a8] sm:$0xff]
    %v374 = vld [vmem:[#allocation5 + $0x5b0] sm:$0xff]
    %v375 = vld [vmem:[#allocation5 + $0x5b8] sm:$0xff]
    %v376 = vld [vmem:[#allocation5 + $0x5c0] sm:$0xff]
    %v377 = vld [vmem:[#allocation5 + $0x5c8] sm:$0xff]
    %v378 = vld [vmem:[#allocation5 + $0x5d0] sm:$0xff]
    %v379 = vld [vmem:[#allocation5 + $0x5d8] sm:$0xff]
    %v380 = vld [vmem:[#allocation5 + $0x5e0] sm:$0xff]
    %v381 = vld [vmem:[#allocation5 + $0x5e8] sm:$0xff]
    %v382 = vld [vmem:[#allocation5 + $0x5f0] sm:$0xff]
    %v383 = vld [vmem:[#allocation5 + $0x5f8] sm:$0xff]
    %v384 = vld [vmem:[#allocation5 + $0x600] sm:$0xff]
    %v385 = vld [vmem:[#allocation5 + $0x608] sm:$0xff]
    %v386 = vld [vmem:[#allocation5 + $0x610] sm:$0xff]
    %v387 = vld [vmem:[#allocation5 + $0x618] sm:$0xff]
    %v388 = vld [vmem:[#allocation5 + $0x620] sm:$0xff]
    %v389 = vld [vmem:[#allocation5 + $0x628] sm:$0xff]
    %v390 = vld [vmem:[#allocation5 + $0x630] sm:$0xff]
    %v391 = vld [vmem:[#allocation5 + $0x638] sm:$0xff]
    %v392 = vld [vmem:[#allocation5 + $0x640] sm:$0xff]
    %v393 = vld [vmem:[#allocation5 + $0x648] sm:$0xff]
    %v394 = vld [vmem:[#allocation5 + $0x650] sm:$0xff]
    %v395 = vld [vmem:[#allocation5 + $0x658] sm:$0xff]
    %v396 = vld [vmem:[#allocation5 + $0x660] sm:$0xff]
    %v397 = vld [vmem:[#allocation5 + $0x668] sm:$0xff]
    %v398 = vld [vmem:[#allocation5 + $0x670] sm:$0xff]
    %v399 = vld [vmem:[#allocation5 + $0x678] sm:$0xff]
    %v400 = vld [vmem:[#allocation5 + $0x680] sm:$0xff]
    %v401 = vld [vmem:[#allocation5 + $0x688] sm:$0xff]
    %v402 = vld [vmem:[#allocation5 + $0x690] sm:$0xff]
    %v403 = vld [vmem:[#allocation5 + $0x698] sm:$0xff]
    %v404 = vld [vmem:[#allocation5 + $0x6a0] sm:$0xff]
    %v405 = vld [vmem:[#allocation5 + $0x6a8] sm:$0xff]
    %v406 = vld [vmem:[#allocation5 + $0x6b0] sm:$0xff]
    %v407 = vld [vmem:[#allocation5 + $0x6b8] sm:$0xff]
    %v408 = vld [vmem:[#allocation5 + $0x6c0] sm:$0xff]
    %v409 = vld [vmem:[#allocation5 + $0x6c8] sm:$0xff]
    %v410 = vld [vmem:[#allocation5 + $0x6d0] sm:$0xff]
    %v411 = vld [vmem:[#allocation5 + $0x6d8] sm:$0xff]
    %v412 = vld [vmem:[#allocation5 + $0x6e0] sm:$0xff]
    %v413 = vld [vmem:[#allocation5 + $0x6e8] sm:$0xff]
    %v414 = vld [vmem:[#allocation5 + $0x6f0] sm:$0xff]
    %v415 = vld [vmem:[#allocation5 + $0x6f8] sm:$0xff]
    %v416 = vld [vmem:[#allocation5 + $0x700] sm:$0xff]
    %v417 = vld [vmem:[#allocation5 + $0x708] sm:$0xff]
    %v418 = vld [vmem:[#allocation5 + $0x710] sm:$0xff]
    %v419 = vld [vmem:[#allocation5 + $0x718] sm:$0xff]
    %v420 = vld [vmem:[#allocation5 + $0x720] sm:$0xff]
    %v421 = vld [vmem:[#allocation5 + $0x728] sm:$0xff]
    %v422 = vld [vmem:[#allocation5 + $0x730] sm:$0xff]
    %v423 = vld [vmem:[#allocation5 + $0x738] sm:$0xff]
    %v424 = vld [vmem:[#allocation5 + $0x740] sm:$0xff]
    %v425 = vld [vmem:[#allocation5 + $0x748] sm:$0xff]
    %v426 = vld [vmem:[#allocation5 + $0x750] sm:$0xff]
    %v427 = vld [vmem:[#allocation5 + $0x758] sm:$0xff]
    %v428 = vld [vmem:[#allocation5 + $0x760] sm:$0xff]
    %v429 = vld [vmem:[#allocation5 + $0x768] sm:$0xff]
    %v430 = vld [vmem:[#allocation5 + $0x770] sm:$0xff]
    %v431 = vld [vmem:[#allocation5 + $0x778] sm:$0xff]
    %v432 = vld [vmem:[#allocation5 + $0x780] sm:$0xff]
    %v433 = vld [vmem:[#allocation5 + $0x788] sm:$0xff]
    %v434 = vld [vmem:[#allocation5 + $0x790] sm:$0xff]
    %v435 = vld [vmem:[#allocation5 + $0x798] sm:$0xff]
    %v436 = vld [vmem:[#allocation5 + $0x7a0] sm:$0xff]
    %v437 = vld [vmem:[#allocation5 + $0x7a8] sm:$0xff]
    %v438 = vld [vmem:[#allocation5 + $0x7b0] sm:$0xff]
    %v439 = vld [vmem:[#allocation5 + $0x7b8] sm:$0xff]
    %v440 = vld [vmem:[#allocation5 + $0x7c0] sm:$0xff]
    %v441 = vld [vmem:[#allocation5 + $0x7c8] sm:$0xff]
    %v442 = vld [vmem:[#allocation5 + $0x7d0] sm:$0xff]
    %v443 = vld [vmem:[#allocation5 + $0x7d8] sm:$0xff]
    %v444 = vld [vmem:[#allocation5 + $0x7e0] sm:$0xff]
    %v445 = vld [vmem:[#allocation5 + $0x7e8] sm:$0xff]
    %v446 = vld [vmem:[#allocation5 + $0x7f0] sm:$0xff]
    %v447 = vld [vmem:[#allocation5 + $0x7f8] sm:$0xff]
    %v448 = vld [vmem:[#allocation5 + $0x800] sm:$0xff]
    %v449 = vld [vmem:[#allocation5 + $0x808] sm:$0xff]
    %v450 = vld [vmem:[#allocation5 + $0x810] sm:$0xff]
    %v451 = vld [vmem:[#allocation5 + $0x818] sm:$0xff]
    %v452 = vld [vmem:[#allocation5 + $0x820] sm:$0xff]
    %v453 = vld [vmem:[#allocation5 + $0x828] sm:$0xff]
    %v454 = vld [vmem:[#allocation5 + $0x830] sm:$0xff]
    %v455 = vld [vmem:[#allocation5 + $0x838] sm:$0xff]
    %v456 = vld [vmem:[#allocation5 + $0x840] sm:$0xff]
    %v457 = vld [vmem:[#allocation5 + $0x848] sm:$0xff]
    %v458 = vld [vmem:[#allocation5 + $0x850] sm:$0xff]
    %v459 = vld [vmem:[#allocation5 + $0x858] sm:$0xff]
    %v460 = vld [vmem:[#allocation5 + $0x860] sm:$0xff]
    %v461 = vld [vmem:[#allocation5 + $0x868] sm:$0xff]
    %v462 = vld [vmem:[#allocation5 + $0x870] sm:$0xff]
    %v463 = vld [vmem:[#allocation5 + $0x878] sm:$0xff]
    %v464 = vld [vmem:[#allocation5 + $0x880] sm:$0xff]
    %v465 = vld [vmem:[#allocation5 + $0x888] sm:$0xff]
    %v466 = vld [vmem:[#allocation5 + $0x890] sm:$0xff]
    %v467 = vld [vmem:[#allocation5 + $0x898] sm:$0xff]
    %v468 = vld [vmem:[#allocation5 + $0x8a0] sm:$0xff]
    %v469 = vld [vmem:[#allocation5 + $0x8a8] sm:$0xff]
    %v470 = vld [vmem:[#allocation5 + $0x8b0] sm:$0xff]
    %v471 = vld [vmem:[#allocation5 + $0x8b8] sm:$0xff]
    %v472 = vld [vmem:[#allocation5 + $0x8c0] sm:$0xff]
    %v473 = vld [vmem:[#allocation5 + $0x8c8] sm:$0xff]
    %v474 = vld [vmem:[#allocation5 + $0x8d0] sm:$0xff]
    %v475 = vld [vmem:[#allocation5 + $0x8d8] sm:$0xff]
    %v476 = vld [vmem:[#allocation5 + $0x8e0] sm:$0xff]
    %v477 = vld [vmem:[#allocation5 + $0x8e8] sm:$0xff]
    %v478 = vld [vmem:[#allocation5 + $0x8f0] sm:$0xff]
    %v479 = vld [vmem:[#allocation5 + $0x8f8] sm:$0xff]
    %v480 = vld [vmem:[#allocation5 + $0x900] sm:$0xff]
    %v481 = vld [vmem:[#allocation5 + $0x908] sm:$0xff]
    %v482 = vld [vmem:[#allocation5 + $0x910] sm:$0xff]
    %v483 = vld [vmem:[#allocation5 + $0x918] sm:$0xff]
    %v484 = vld [vmem:[#allocation5 + $0x920] sm:$0xff]
    %v485 = vld [vmem:[#allocation5 + $0x928] sm:$0xff]
    %v486 = vld [vmem:[#allocation5 + $0x930] sm:$0xff]
    %v487 = vld [vmem:[#allocation5 + $0x938] sm:$0xff]
    %v488 = vld [vmem:[#allocation5 + $0x940] sm:$0xff]
    %v489 = vld [vmem:[#allocation5 + $0x948] sm:$0xff]
    %v490 = vld [vmem:[#allocation5 + $0x950] sm:$0xff]
    %v491 = vld [vmem:[#allocation5 + $0x958] sm:$0xff]
    %v492 = vld [vmem:[#allocation5 + $0x960] sm:$0xff]
    %v493 = vld [vmem:[#allocation5 + $0x968] sm:$0xff]
    %v494 = vld [vmem:[#allocation5 + $0x970] sm:$0xff]
    %v495 = vld [vmem:[#allocation5 + $0x978] sm:$0xff]
    %v496 = vld [vmem:[#allocation5 + $0x980] sm:$0xff]
    %v497 = vld [vmem:[#allocation5 + $0x988] sm:$0xff]
    %v498 = vld [vmem:[#allocation5 + $0x990] sm:$0xff]
    %v499 = vld [vmem:[#allocation5 + $0x998] sm:$0xff]
    %v500 = vld [vmem:[#allocation5 + $0x9a0] sm:$0xff]
    %v501 = vld [vmem:[#allocation5 + $0x9a8] sm:$0xff]
    %v502 = vld [vmem:[#allocation5 + $0x9b0] sm:$0xff]
    %v503 = vld [vmem:[#allocation5 + $0x9b8] sm:$0xff]
    %v504 = vld [vmem:[#allocation5 + $0x9c0] sm:$0xff]
    %v505 = vld [vmem:[#allocation5 + $0x9c8] sm:$0xff]
    %v506 = vld [vmem:[#allocation5 + $0x9d0] sm:$0xff]
    %v507 = vld [vmem:[#allocation5 + $0x9d8] sm:$0xff]
    %v508 = vld [vmem:[#allocation5 + $0x9e0] sm:$0xff]
    %v509 = vld [vmem:[#allocation5 + $0x9e8] sm:$0xff]
    %v510 = vld [vmem:[#allocation5 + $0x9f0] sm:$0xff]
    %v511 = vld [vmem:[#allocation5 + $0x9f8] sm:$0xff]
    %v512 = vld [vmem:[#allocation5 + $0xa00] sm:$0xff]
    %v513 = vld [vmem:[#allocation5 + $0xa08] sm:$0xff]
    %v514 = vld [vmem:[#allocation5 + $0xa10] sm:$0xff]
    %v515 = vld [vmem:[#allocation5 + $0xa18] sm:$0xff]
    %v516 = vld [vmem:[#allocation5 + $0xa20] sm:$0xff]
    %v517 = vld [vmem:[#allocation5 + $0xa28] sm:$0xff]
    %v518 = vld [vmem:[#allocation5 + $0xa30] sm:$0xff]
    %v519 = vld [vmem:[#allocation5 + $0xa38] sm:$0xff]
    %v520 = vld [vmem:[#allocation5 + $0xa40] sm:$0xff]
    %v521 = vld [vmem:[#allocation5 + $0xa48] sm:$0xff]
    %v522 = vld [vmem:[#allocation5 + $0xa50] sm:$0xff]
    %v523 = vld [vmem:[#allocation5 + $0xa58] sm:$0xff]
    %v524 = vld [vmem:[#allocation5 + $0xa60] sm:$0xff]
    %v525 = vld [vmem:[#allocation5 + $0xa68] sm:$0xff]
    %v526 = vld [vmem:[#allocation5 + $0xa70] sm:$0xff]
    %v527 = vld [vmem:[#allocation5 + $0xa78] sm:$0xff]
    %v528 = vld [vmem:[#allocation5 + $0xa80] sm:$0xff]
    %v529 = vld [vmem:[#allocation5 + $0xa88] sm:$0xff]
    %v530 = vld [vmem:[#allocation5 + $0xa90] sm:$0xff]
    %v531 = vld [vmem:[#allocation5 + $0xa98] sm:$0xff]
    %v532 = vld [vmem:[#allocation5 + $0xaa0] sm:$0xff]
    %v533 = vld [vmem:[#allocation5 + $0xaa8] sm:$0xff]
    %v534 = vld [vmem:[#allocation5 + $0xab0] sm:$0xff]
    %v535 = vld [vmem:[#allocation5 + $0xab8] sm:$0xff]
    %v536 = vld [vmem:[#allocation5 + $0xac0] sm:$0xff]
    %v537 = vld [vmem:[#allocation5 + $0xac8] sm:$0xff]
    %v538 = vld [vmem:[#allocation5 + $0xad0] sm:$0xff]
    %v539 = vld [vmem:[#allocation5 + $0xad8] sm:$0xff]
    %v540 = vld [vmem:[#allocation5 + $0xae0] sm:$0xff]
    %v541 = vld [vmem:[#allocation5 + $0xae8] sm:$0xff]
    %v542 = vld [vmem:[#allocation5 + $0xaf0] sm:$0xff]
    %v543 = vld [vmem:[#allocation5 + $0xaf8] sm:$0xff]
    %v544 = vld [vmem:[#allocation5 + $0xb00] sm:$0xff]
    %v545 = vld [vmem:[#allocation5 + $0xb08] sm:$0xff]
    %v546 = vld [vmem:[#allocation5 + $0xb10] sm:$0xff]
    %v547 = vld [vmem:[#allocation5 + $0xb18] sm:$0xff]
    %v548 = vld [vmem:[#allocation5 + $0xb20] sm:$0xff]
    %v549 = vld [vmem:[#allocation5 + $0xb28] sm:$0xff]
    %v550 = vld [vmem:[#allocation5 + $0xb30] sm:$0xff]
    %v551 = vld [vmem:[#allocation5 + $0xb38] sm:$0xff]
    %v552 = vld [vmem:[#allocation5 + $0xb40] sm:$0xff]
    %v553 = vld [vmem:[#allocation5 + $0xb48] sm:$0xff]
    %v554 = vld [vmem:[#allocation5 + $0xb50] sm:$0xff]
    %v555 = vld [vmem:[#allocation5 + $0xb58] sm:$0xff]
    %v556 = vld [vmem:[#allocation5 + $0xb60] sm:$0xff]
    %v557 = vld [vmem:[#allocation5 + $0xb68] sm:$0xff]
    %v558 = vld [vmem:[#allocation5 + $0xb70] sm:$0xff]
    %v559 = vld [vmem:[#allocation5 + $0xb78] sm:$0xff]
    %v560 = vld [vmem:[#allocation5 + $0xb80] sm:$0xff]
    %v561 = vld [vmem:[#allocation5 + $0xb88] sm:$0xff]
    %v562 = vld [vmem:[#allocation5 + $0xb90] sm:$0xff]
    %v563 = vld [vmem:[#allocation5 + $0xb98] sm:$0xff]
    %v564 = vld [vmem:[#allocation5 + $0xba0] sm:$0xff]
    %v565 = vld [vmem:[#allocation5 + $0xba8] sm:$0xff]
    %v566 = vld [vmem:[#allocation5 + $0xbb0] sm:$0xff]
    %v567 = vld [vmem:[#allocation5 + $0xbb8] sm:$0xff]
    %v568 = vld [vmem:[#allocation5 + $0xbc0] sm:$0xff]
    %v569 = vld [vmem:[#allocation5 + $0xbc8] sm:$0xff]
    %v570 = vld [vmem:[#allocation5 + $0xbd0] sm:$0xff]
    %v571 = vld [vmem:[#allocation5 + $0xbd8] sm:$0xff]
    %v572 = vld [vmem:[#allocation5 + $0xbe0] sm:$0xff]
    %v573 = vld [vmem:[#allocation5 + $0xbe8] sm:$0xff]
    %v574 = vld [vmem:[#allocation5 + $0xbf0] sm:$0xff]
    %v575 = vld [vmem:[#allocation5 + $0xbf8] sm:$0xff]
    %v576 = vld [vmem:[#allocation5 + $0xc00] sm:$0xff]
    %v577 = vld [vmem:[#allocation5 + $0xc08] sm:$0xff]
    %v578 = vld [vmem:[#allocation5 + $0xc10] sm:$0xff]
    %v579 = vld [vmem:[#allocation5 + $0xc18] sm:$0xff]
    %v580 = vld [vmem:[#allocation5 + $0xc20] sm:$0xff]
    %v581 = vld [vmem:[#allocation5 + $0xc28] sm:$0xff]
    %v582 = vld [vmem:[#allocation5 + $0xc30] sm:$0xff]
    %v583 = vld [vmem:[#allocation5 + $0xc38] sm:$0xff]
    %v584 = vld [vmem:[#allocation5 + $0xc40] sm:$0xff]
    %v585 = vld [vmem:[#allocation5 + $0xc48] sm:$0xff]
    %v586 = vld [vmem:[#allocation5 + $0xc50] sm:$0xff]
    %v587 = vld [vmem:[#allocation5 + $0xc58] sm:$0xff]
    %v588 = vld [vmem:[#allocation5 + $0xc60] sm:$0xff]
    %v589 = vld [vmem:[#allocation5 + $0xc68] sm:$0xff]
    %v590 = vld [vmem:[#allocation5 + $0xc70] sm:$0xff]
    %v591 = vld [vmem:[#allocation5 + $0xc78] sm:$0xff]
    %v592 = vld [vmem:[#allocation5 + $0xc80] sm:$0xff]
    %v593 = vld [vmem:[#allocation5 + $0xc88] sm:$0xff]
    %v594 = vld [vmem:[#allocation5 + $0xc90] sm:$0xff]
    %v595 = vld [vmem:[#allocation5 + $0xc98] sm:$0xff]
    %v596 = vld [vmem:[#allocation5 + $0xca0] sm:$0xff]
    %v597 = vld [vmem:[#allocation5 + $0xca8] sm:$0xff]
    %v598 = vld [vmem:[#allocation5 + $0xcb0] sm:$0xff]
    %v599 = vld [vmem:[#allocation5 + $0xcb8] sm:$0xff]
    %v600 = vld [vmem:[#allocation5 + $0xcc0] sm:$0xff]
    %v601 = vld [vmem:[#allocation5 + $0xcc8] sm:$0xff]
    %v602 = vld [vmem:[#allocation5 + $0xcd0] sm:$0xff]
    %v603 = vld [vmem:[#allocation5 + $0xcd8] sm:$0xff]
    %v604 = vld [vmem:[#allocation5 + $0xce0] sm:$0xff]
    %v605 = vld [vmem:[#allocation5 + $0xce8] sm:$0xff]
    %v606 = vld [vmem:[#allocation5 + $0xcf0] sm:$0xff]
    %v607 = vld [vmem:[#allocation5 + $0xcf8] sm:$0xff]
    %v608 = vld [vmem:[#allocation5 + $0xd00] sm:$0xff]
    %v609 = vld [vmem:[#allocation5 + $0xd08] sm:$0xff]
    %v610 = vld [vmem:[#allocation5 + $0xd10] sm:$0xff]
    %v611 = vld [vmem:[#allocation5 + $0xd18] sm:$0xff]
    %v612 = vld [vmem:[#allocation5 + $0xd20] sm:$0xff]
    %v613 = vld [vmem:[#allocation5 + $0xd28] sm:$0xff]
    %v614 = vld [vmem:[#allocation5 + $0xd30] sm:$0xff]
    %v615 = vld [vmem:[#allocation5 + $0xd38] sm:$0xff]
    %v616 = vld [vmem:[#allocation5 + $0xd40] sm:$0xff]
    %v617 = vld [vmem:[#allocation5 + $0xd48] sm:$0xff]
    %v618 = vld [vmem:[#allocation5 + $0xd50] sm:$0xff]
    %v619 = vld [vmem:[#allocation5 + $0xd58] sm:$0xff]
    %v620 = vld [vmem:[#allocation5 + $0xd60] sm:$0xff]
    %v621 = vld [vmem:[#allocation5 + $0xd68] sm:$0xff]
    %v622 = vld [vmem:[#allocation5 + $0xd70] sm:$0xff]
    %v623 = vld [vmem:[#allocation5 + $0xd78] sm:$0xff]
    %v624 = vld [vmem:[#allocation5 + $0xd80] sm:$0xff]
    %v625 = vld [vmem:[#allocation5 + $0xd88] sm:$0xff]
    %v626 = vld [vmem:[#allocation5 + $0xd90] sm:$0xff]
    %v627 = vld [vmem:[#allocation5 + $0xd98] sm:$0xff]
    %v628 = vld [vmem:[#allocation5 + $0xda0] sm:$0xff]
    %v629 = vld [vmem:[#allocation5 + $0xda8] sm:$0xff]
    %v630 = vld [vmem:[#allocation5 + $0xdb0] sm:$0xff]
    %v631 = vld [vmem:[#allocation5 + $0xdb8] sm:$0xff]
    %v632 = vld [vmem:[#allocation5 + $0xdc0] sm:$0xff]
    %v633 = vld [vmem:[#allocation5 + $0xdc8] sm:$0xff]
    %v634 = vld [vmem:[#allocation5 + $0xdd0] sm:$0xff]
    %v635 = vld [vmem:[#allocation5 + $0xdd8] sm:$0xff]
    %v636 = vld [vmem:[#allocation5 + $0xde0] sm:$0xff]
    %v637 = vld [vmem:[#allocation5 + $0xde8] sm:$0xff]
    %v638 = vld [vmem:[#allocation5 + $0xdf0] sm:$0xff]
    %v639 = vld [vmem:[#allocation5 + $0xdf8] sm:$0xff]
    %v640 = vld [vmem:[#allocation5 + $0xe00] sm:$0xff]
    %v641 = vld [vmem:[#allocation5 + $0xe08] sm:$0xff]
    %v642 = vld [vmem:[#allocation5 + $0xe10] sm:$0xff]
    %v643 = vld [vmem:[#allocation5 + $0xe18] sm:$0xff]
    %v644 = vld [vmem:[#allocation5 + $0xe20] sm:$0xff]
    %v645 = vld [vmem:[#allocation5 + $0xe28] sm:$0xff]
    %v646 = vld [vmem:[#allocation5 + $0xe30] sm:$0xff]
    %v647 = vld [vmem:[#allocation5 + $0xe38] sm:$0xff]
    %v648 = vld [vmem:[#allocation5 + $0xe40] sm:$0xff]
    %v649 = vld [vmem:[#allocation5 + $0xe48] sm:$0xff]
    %v650 = vld [vmem:[#allocation5 + $0xe50] sm:$0xff]
    %v651 = vld [vmem:[#allocation5 + $0xe58] sm:$0xff]
    %v652 = vld [vmem:[#allocation5 + $0xe60] sm:$0xff]
    %v653 = vld [vmem:[#allocation5 + $0xe68] sm:$0xff]
    %v654 = vld [vmem:[#allocation5 + $0xe70] sm:$0xff]
    %v655 = vld [vmem:[#allocation5 + $0xe78] sm:$0xff]
    %v656 = vld [vmem:[#allocation5 + $0xe80] sm:$0xff]
    %v657 = vld [vmem:[#allocation5 + $0xe88] sm:$0xff]
    %v658 = vld [vmem:[#allocation5 + $0xe90] sm:$0xff]
    %v659 = vld [vmem:[#allocation5 + $0xe98] sm:$0xff]
    %v660 = vld [vmem:[#allocation5 + $0xea0] sm:$0xff]
    %v661 = vld [vmem:[#allocation5 + $0xea8] sm:$0xff]
    %v662 = vld [vmem:[#allocation5 + $0xeb0] sm:$0xff]
    %v663 = vld [vmem:[#allocation5 + $0xeb8] sm:$0xff]
    %v664 = vld [vmem:[#allocation5 + $0xec0] sm:$0xff]
    %v665 = vld [vmem:[#allocation5 + $0xec8] sm:$0xff]
    %v666 = vld [vmem:[#allocation5 + $0xed0] sm:$0xff]
    %v667 = vld [vmem:[#allocation5 + $0xed8] sm:$0xff]
    %v668 = vld [vmem:[#allocation5 + $0xee0] sm:$0xff]
    %v669 = vld [vmem:[#allocation5 + $0xee8] sm:$0xff]
    %v670 = vld [vmem:[#allocation5 + $0xef0] sm:$0xff]
    %v671 = vld [vmem:[#allocation5 + $0xef8] sm:$0xff]
    %v672 = vld [vmem:[#allocation5 + $0xf00] sm:$0xff]
    %v673 = vld [vmem:[#allocation5 + $0xf08] sm:$0xff]
    %v674 = vld [vmem:[#allocation5 + $0xf10] sm:$0xff]
    %v675 = vld [vmem:[#allocation5 + $0xf18] sm:$0xff]
    %v676 = vld [vmem:[#allocation5 + $0xf20] sm:$0xff]
    %v677 = vld [vmem:[#allocation5 + $0xf28] sm:$0xff]
    %v678 = vld [vmem:[#allocation5 + $0xf30] sm:$0xff]
    %v679 = vld [vmem:[#allocation5 + $0xf38] sm:$0xff]
    %v680 = vld [vmem:[#allocation5 + $0xf40] sm:$0xff]
    %v681 = vld [vmem:[#allocation5 + $0xf48] sm:$0xff]
    %v682 = vld [vmem:[#allocation5 + $0xf50] sm:$0xff]
    %v683 = vld [vmem:[#allocation5 + $0xf58] sm:$0xff]
    %v684 = vld [vmem:[#allocation5 + $0xf60] sm:$0xff]
    %v685 = vld [vmem:[#allocation5 + $0xf68] sm:$0xff]
    %v686 = vld [vmem:[#allocation5 + $0xf70] sm:$0xff]
    %v687 = vld [vmem:[#allocation5 + $0xf78] sm:$0xff]
    %v688 = vld [vmem:[#allocation5 + $0xf80] sm:$0xff]
    %v689 = vld [vmem:[#allocation5 + $0xf88] sm:$0xff]
    %v690 = vld [vmem:[#allocation5 + $0xf90] sm:$0xff]
    %v691 = vld [vmem:[#allocation5 + $0xf98] sm:$0xff]
    %v692 = vld [vmem:[#allocation5 + $0xfa0] sm:$0xff]
    %v693 = vld [vmem:[#allocation5 + $0xfa8] sm:$0xff]
    %v694 = vld [vmem:[#allocation5 + $0xfb0] sm:$0xff]
    %v695 = vld [vmem:[#allocation5 + $0xfb8] sm:$0xff]
    %v696 = vld [vmem:[#allocation5 + $0xfc0] sm:$0xff]
    %v697 = vld [vmem:[#allocation5 + $0xfc8] sm:$0xff]
    %v698 = vld [vmem:[#allocation5 + $0xfd0] sm:$0xff]
    %v699 = vld [vmem:[#allocation5 + $0xfd8] sm:$0xff]
    %v700 = vld [vmem:[#allocation5 + $0xfe0] sm:$0xff]
    %v701 = vld [vmem:[#allocation5 + $0xfe8] sm:$0xff]
    %v702 = vld [vmem:[#allocation5 + $0xff0] sm:$0xff]
    %v703 = vld [vmem:[#allocation5 + $0xff8] sm:$0xff]
    %v704 = vld [vmem:[#allocation5 + $0x1000] sm:$0xff]
    %v705 = vld [vmem:[#allocation5 + $0x1008] sm:$0xff]
    %v706 = vld [vmem:[#allocation5 + $0x1010] sm:$0xff]
    %v707 = vld [vmem:[#allocation5 + $0x1018] sm:$0xff]
    %v708 = vld [vmem:[#allocation5 + $0x1020] sm:$0xff]
    %v709 = vld [vmem:[#allocation5 + $0x1028] sm:$0xff]
    %v710 = vld [vmem:[#allocation5 + $0x1030] sm:$0xff]
    %v711 = vld [vmem:[#allocation5 + $0x1038] sm:$0xff]
    %v712 = vld [vmem:[#allocation5 + $0x1040] sm:$0xff]
    %v713 = vld [vmem:[#allocation5 + $0x1048] sm:$0xff]
    %v714 = vld [vmem:[#allocation5 + $0x1050] sm:$0xff]
    %v715 = vld [vmem:[#allocation5 + $0x1058] sm:$0xff]
    %v716 = vld [vmem:[#allocation5 + $0x1060] sm:$0xff]
    %v717 = vld [vmem:[#allocation5 + $0x1068] sm:$0xff]
    %v718 = vld [vmem:[#allocation5 + $0x1070] sm:$0xff]
    %v719 = vld [vmem:[#allocation5 + $0x1078] sm:$0xff]
    %v720 = vld [vmem:[#allocation5 + $0x1080] sm:$0xff]
    %v721 = vld [vmem:[#allocation5 + $0x1088] sm:$0xff]
    %v722 = vld [vmem:[#allocation5 + $0x1090] sm:$0xff]
    %v723 = vld [vmem:[#allocation5 + $0x1098] sm:$0xff]
    %v724 = vld [vmem:[#allocation5 + $0x10a0] sm:$0xff]
    %v725 = vld [vmem:[#allocation5 + $0x10a8] sm:$0xff]
    %v726 = vld [vmem:[#allocation5 + $0x10b0] sm:$0xff]
    %v727 = vld [vmem:[#allocation5 + $0x10b8] sm:$0xff]
    %v728 = vld [vmem:[#allocation5 + $0x10c0] sm:$0xff]
    %v729 = vld [vmem:[#allocation5 + $0x10c8] sm:$0xff]
    %v730 = vld [vmem:[#allocation5 + $0x10d0] sm:$0xff]
    %v731 = vld [vmem:[#allocation5 + $0x10d8] sm:$0xff]
    %v732 = vld [vmem:[#allocation5 + $0x10e0] sm:$0xff]
    %v733 = vld [vmem:[#allocation5 + $0x10e8] sm:$0xff]
    %v734 = vld [vmem:[#allocation5 + $0x10f0] sm:$0xff]
    %v735 = vld [vmem:[#allocation5 + $0x10f8] sm:$0xff]
    %v736 = vld [vmem:[#allocation5 + $0x1100] sm:$0xff]
    %v737 = vld [vmem:[#allocation5 + $0x1108] sm:$0xff]
    %v738 = vld [vmem:[#allocation5 + $0x1110] sm:$0xff]
    %v739 = vld [vmem:[#allocation5 + $0x1118] sm:$0xff]
    %v740 = vld [vmem:[#allocation5 + $0x1120] sm:$0xff]
    %v741 = vld [vmem:[#allocation5 + $0x1128] sm:$0xff]
    %v742 = vld [vmem:[#allocation5 + $0x1130] sm:$0xff]
    %v743 = vld [vmem:[#allocation5 + $0x1138] sm:$0xff]
    %v744 = vld [vmem:[#allocation5 + $0x1140] sm:$0xff]
    %v745 = vld [vmem:[#allocation5 + $0x1148] sm:$0xff]
    %v746 = vld [vmem:[#allocation5 + $0x1150] sm:$0xff]
    %v747 = vld [vmem:[#allocation5 + $0x1158] sm:$0xff]
    %v748 = vld [vmem:[#allocation5 + $0x1160] sm:$0xff]
    %v749 = vld [vmem:[#allocation5 + $0x1168] sm:$0xff]
    %v750 = vld [vmem:[#allocation5 + $0x1170] sm:$0xff]
    %v751 = vld [vmem:[#allocation5 + $0x1178] sm:$0xff]
    %v752 = vld [vmem:[#allocation5 + $0x1180] sm:$0xff]
    %v753 = vld [vmem:[#allocation5 + $0x1188] sm:$0xff]
    %v754 = vld [vmem:[#allocation5 + $0x1190] sm:$0xff]
    %v755 = vld [vmem:[#allocation5 + $0x1198] sm:$0xff]
    %v756 = vld [vmem:[#allocation5 + $0x11a0] sm:$0xff]
    %v757 = vld [vmem:[#allocation5 + $0x11a8] sm:$0xff]
    %v758 = vld [vmem:[#allocation5 + $0x11b0] sm:$0xff]
    %v759 = vld [vmem:[#allocation5 + $0x11b8] sm:$0xff]
    %v760 = vld [vmem:[#allocation5 + $0x11c0] sm:$0xff]
    %v761 = vld [vmem:[#allocation5 + $0x11c8] sm:$0xff]
    %v762 = vld [vmem:[#allocation5 + $0x11d0] sm:$0xff]
    %v763 = vld [vmem:[#allocation5 + $0x11d8] sm:$0xff]
    %v764 = vld [vmem:[#allocation5 + $0x11e0] sm:$0xff]
    %v765 = vld [vmem:[#allocation5 + $0x11e8] sm:$0xff]
    %v766 = vld [vmem:[#allocation5 + $0x11f0] sm:$0xff]
    %v767 = vld [vmem:[#allocation5 + $0x11f8] sm:$0xff]
    %v768 = vld [vmem:[#allocation5 + $0x1200] sm:$0xff]
    %v769 = vld [vmem:[#allocation5 + $0x1208] sm:$0xff]
    %v770 = vld [vmem:[#allocation5 + $0x1210] sm:$0xff]
    %v771 = vld [vmem:[#allocation5 + $0x1218] sm:$0xff]
    %v772 = vld [vmem:[#allocation5 + $0x1220] sm:$0xff]
    %v773 = vld [vmem:[#allocation5 + $0x1228] sm:$0xff]
    %v774 = vld [vmem:[#allocation5 + $0x1230] sm:$0xff]
    %v775 = vld [vmem:[#allocation5 + $0x1238] sm:$0xff]
    %v776 = vld [vmem:[#allocation5 + $0x1240] sm:$0xff]
    %v777 = vld [vmem:[#allocation5 + $0x1248] sm:$0xff]
    %v778 = vld [vmem:[#allocation5 + $0x1250] sm:$0xff]
    %v779 = vld [vmem:[#allocation5 + $0x1258] sm:$0xff]
    %v780 = vld [vmem:[#allocation5 + $0x1260] sm:$0xff]
    %v781 = vld [vmem:[#allocation5 + $0x1268] sm:$0xff]
    %v782 = vld [vmem:[#allocation5 + $0x1270] sm:$0xff]
    %v783 = vld [vmem:[#allocation5 + $0x1278] sm:$0xff]
    %v784 = vld [vmem:[#allocation5 + $0x1280] sm:$0xff]
    %v785 = vld [vmem:[#allocation5 + $0x1288] sm:$0xff]
    %v786 = vld [vmem:[#allocation5 + $0x1290] sm:$0xff]
    %v787 = vld [vmem:[#allocation5 + $0x1298] sm:$0xff]
    %v788 = vld [vmem:[#allocation5 + $0x12a0] sm:$0xff]
    %v789 = vld [vmem:[#allocation5 + $0x12a8] sm:$0xff]
    %v790 = vld [vmem:[#allocation5 + $0x12b0] sm:$0xff]
    %v791 = vld [vmem:[#allocation5 + $0x12b8] sm:$0xff]
    %v792 = vld [vmem:[#allocation5 + $0x12c0] sm:$0xff]
    %v793 = vld [vmem:[#allocation5 + $0x12c8] sm:$0xff]
    %v794 = vld [vmem:[#allocation5 + $0x12d0] sm:$0xff]
    %v795 = vld [vmem:[#allocation5 + $0x12d8] sm:$0xff]
    %v796 = vld [vmem:[#allocation5 + $0x12e0] sm:$0xff]
    %v797 = vld [vmem:[#allocation5 + $0x12e8] sm:$0xff]
    %v798 = vld [vmem:[#allocation5 + $0x12f0] sm:$0xff]
    %v799 = vld [vmem:[#allocation5 + $0x12f8] sm:$0xff]
    %v800 = vld [vmem:[#allocation5 + $0x1300] sm:$0xff]
    %v801 = vld [vmem:[#allocation5 + $0x1308] sm:$0xff]
    %v802 = vld [vmem:[#allocation5 + $0x1310] sm:$0xff]
    %v803 = vld [vmem:[#allocation5 + $0x1318] sm:$0xff]
    %v804 = vld [vmem:[#allocation5 + $0x1320] sm:$0xff]
    %v805 = vld [vmem:[#allocation5 + $0x1328] sm:$0xff]
    %v806 = vld [vmem:[#allocation5 + $0x1330] sm:$0xff]
    %v807 = vld [vmem:[#allocation5 + $0x1338] sm:$0xff]
    %v808 = vld [vmem:[#allocation5 + $0x1340] sm:$0xff]
    %v809 = vld [vmem:[#allocation5 + $0x1348] sm:$0xff]
    %v810 = vld [vmem:[#allocation5 + $0x1350] sm:$0xff]
    %v811 = vld [vmem:[#allocation5 + $0x1358] sm:$0xff]
    %v812 = vld [vmem:[#allocation5 + $0x1360] sm:$0xff]
    %v813 = vld [vmem:[#allocation5 + $0x1368] sm:$0xff]
    %v814 = vld [vmem:[#allocation5 + $0x1370] sm:$0xff]
    %v815 = vld [vmem:[#allocation5 + $0x1378] sm:$0xff]
    %v816 = vld [vmem:[#allocation5 + $0x1380] sm:$0xff]
    %v817 = vld [vmem:[#allocation5 + $0x1388] sm:$0xff]
    %v818 = vld [vmem:[#allocation5 + $0x1390] sm:$0xff]
    %v819 = vld [vmem:[#allocation5 + $0x1398] sm:$0xff]
    %v820 = vld [vmem:[#allocation5 + $0x13a0] sm:$0xff]
    %v821 = vld [vmem:[#allocation5 + $0x13a8] sm:$0xff]
    %v822 = vld [vmem:[#allocation5 + $0x13b0] sm:$0xff]
    %v823 = vld [vmem:[#allocation5 + $0x13b8] sm:$0xff]
    %v824 = vld [vmem:[#allocation5 + $0x13c0] sm:$0xff]
    %v825 = vld [vmem:[#allocation5 + $0x13c8] sm:$0xff]
    %v826 = vld [vmem:[#allocation5 + $0x13d0] sm:$0xff]
    %v827 = vld [vmem:[#allocation5 + $0x13d8] sm:$0xff]
    %v828 = vld [vmem:[#allocation5 + $0x13e0] sm:$0xff]
    %v829 = vld [vmem:[#allocation5 + $0x13e8] sm:$0xff]
    %v830 = vld [vmem:[#allocation5 + $0x13f0] sm:$0xff]
    %v831 = vld [vmem:[#allocation5 + $0x13f8] sm:$0xff]
    %v832 = vld [vmem:[#allocation5 + $0x1400] sm:$0xff]
    %v833 = vld [vmem:[#allocation5 + $0x1408] sm:$0xff]
    %v834 = vld [vmem:[#allocation5 + $0x1410] sm:$0xff]
    %v835 = vld [vmem:[#allocation5 + $0x1418] sm:$0xff]
    %v836 = vld [vmem:[#allocation5 + $0x1420] sm:$0xff]
    %v837 = vld [vmem:[#allocation5 + $0x1428] sm:$0xff]
    %v838 = vld [vmem:[#allocation5 + $0x1430] sm:$0xff]
    %v839 = vld [vmem:[#allocation5 + $0x1438] sm:$0xff]
    %v840 = vld [vmem:[#allocation5 + $0x1440] sm:$0xff]
    %v841 = vld [vmem:[#allocation5 + $0x1448] sm:$0xff]
    %v842 = vld [vmem:[#allocation5 + $0x1450] sm:$0xff]
    %v843 = vld [vmem:[#allocation5 + $0x1458] sm:$0xff]
    %v844 = vld [vmem:[#allocation5 + $0x1460] sm:$0xff]
    %v845 = vld [vmem:[#allocation5 + $0x1468] sm:$0xff]
    %v846 = vld [vmem:[#allocation5 + $0x1470] sm:$0xff]
    %v847 = vld [vmem:[#allocation5 + $0x1478] sm:$0xff]
    %v848 = vld [vmem:[#allocation5 + $0x1480] sm:$0xff]
    %v849 = vld [vmem:[#allocation5 + $0x1488] sm:$0xff]
    %v850 = vld [vmem:[#allocation5 + $0x1490] sm:$0xff]
    %v851 = vld [vmem:[#allocation5 + $0x1498] sm:$0xff]
    %v852 = vld [vmem:[#allocation5 + $0x14a0] sm:$0xff]
    %v853 = vld [vmem:[#allocation5 + $0x14a8] sm:$0xff]
    %v854 = vld [vmem:[#allocation5 + $0x14b0] sm:$0xff]
    %v855 = vld [vmem:[#allocation5 + $0x14b8] sm:$0xff]
    %v856 = vld [vmem:[#allocation5 + $0x14c0] sm:$0xff]
    %v857 = vld [vmem:[#allocation5 + $0x14c8] sm:$0xff]
    %v858 = vld [vmem:[#allocation5 + $0x14d0] sm:$0xff]
    %v859 = vld [vmem:[#allocation5 + $0x14d8] sm:$0xff]
    %v860 = vld [vmem:[#allocation5 + $0x14e0] sm:$0xff]
    %v861 = vld [vmem:[#allocation5 + $0x14e8] sm:$0xff]
    %v862 = vld [vmem:[#allocation5 + $0x14f0] sm:$0xff]
    %v863 = vld [vmem:[#allocation5 + $0x14f8] sm:$0xff]
    %v864 = vld [vmem:[#allocation5 + $0x1500] sm:$0xff]
    %v865 = vld [vmem:[#allocation5 + $0x1508] sm:$0xff]
    %v866 = vld [vmem:[#allocation5 + $0x1510] sm:$0xff]
    %v867 = vld [vmem:[#allocation5 + $0x1518] sm:$0xff]
    %v868 = vld [vmem:[#allocation5 + $0x1520] sm:$0xff]
    %v869 = vld [vmem:[#allocation5 + $0x1528] sm:$0xff]
    %v870 = vld [vmem:[#allocation5 + $0x1530] sm:$0xff]
    %v871 = vld [vmem:[#allocation5 + $0x1538] sm:$0xff]
    %v872 = vld [vmem:[#allocation5 + $0x1540] sm:$0xff]
    %v873 = vld [vmem:[#allocation5 + $0x1548] sm:$0xff]
    %v874 = vld [vmem:[#allocation5 + $0x1550] sm:$0xff]
    %v875 = vld [vmem:[#allocation5 + $0x1558] sm:$0xff]
    %v876 = vld [vmem:[#allocation5 + $0x1560] sm:$0xff]
    %v877 = vld [vmem:[#allocation5 + $0x1568] sm:$0xff]
    %v878 = vld [vmem:[#allocation5 + $0x1570] sm:$0xff]
    %v879 = vld [vmem:[#allocation5 + $0x1578] sm:$0xff]
    %v880 = vld [vmem:[#allocation5 + $0x1580] sm:$0xff]
    %v881 = vld [vmem:[#allocation5 + $0x1588] sm:$0xff]
    %v882 = vld [vmem:[#allocation5 + $0x1590] sm:$0xff]
    %v883 = vld [vmem:[#allocation5 + $0x1598] sm:$0xff]
    %v884 = vld [vmem:[#allocation5 + $0x15a0] sm:$0xff]
    %v885 = vld [vmem:[#allocation5 + $0x15a8] sm:$0xff]
    %v886 = vld [vmem:[#allocation5 + $0x15b0] sm:$0xff]
    %v887 = vld [vmem:[#allocation5 + $0x15b8] sm:$0xff]
    %v888 = vld [vmem:[#allocation5 + $0x15c0] sm:$0xff]
    %v889 = vld [vmem:[#allocation5 + $0x15c8] sm:$0xff]
    %v890 = vld [vmem:[#allocation5 + $0x15d0] sm:$0xff]
    %v891 = vld [vmem:[#allocation5 + $0x15d8] sm:$0xff]
    %v892 = vld [vmem:[#allocation5 + $0x15e0] sm:$0xff]
    %v893 = vld [vmem:[#allocation5 + $0x15e8] sm:$0xff]
    %v894 = vld [vmem:[#allocation5 + $0x15f0] sm:$0xff]
    %v895 = vld [vmem:[#allocation5 + $0x15f8] sm:$0xff]
    %v896 = vld [vmem:[#allocation5 + $0x1600] sm:$0xff]
    %v897 = vld [vmem:[#allocation5 + $0x1608] sm:$0xff]
    %v898 = vld [vmem:[#allocation5 + $0x1610] sm:$0xff]
    %v899 = vld [vmem:[#allocation5 + $0x1618] sm:$0xff]
    %v900 = vld [vmem:[#allocation5 + $0x1620] sm:$0xff]
    %v901 = vld [vmem:[#allocation5 + $0x1628] sm:$0xff]
    %v902 = vld [vmem:[#allocation5 + $0x1630] sm:$0xff]
    %v903 = vld [vmem:[#allocation5 + $0x1638] sm:$0xff]
    %v904 = vld [vmem:[#allocation5 + $0x1640] sm:$0xff]
    %v905 = vld [vmem:[#allocation5 + $0x1648] sm:$0xff]
    %v906 = vld [vmem:[#allocation5 + $0x1650] sm:$0xff]
    %v907 = vld [vmem:[#allocation5 + $0x1658] sm:$0xff]
    %v908 = vld [vmem:[#allocation5 + $0x1660] sm:$0xff]
    %v909 = vld [vmem:[#allocation5 + $0x1668] sm:$0xff]
    %v910 = vld [vmem:[#allocation5 + $0x1670] sm:$0xff]
    %v911 = vld [vmem:[#allocation5 + $0x1678] sm:$0xff]
    %v912 = vld [vmem:[#allocation5 + $0x1680] sm:$0xff]
    %v913 = vld [vmem:[#allocation5 + $0x1688] sm:$0xff]
    %v914 = vld [vmem:[#allocation5 + $0x1690] sm:$0xff]
    %v915 = vld [vmem:[#allocation5 + $0x1698] sm:$0xff]
    %v916 = vld [vmem:[#allocation5 + $0x16a0] sm:$0xff]
    %v917 = vld [vmem:[#allocation5 + $0x16a8] sm:$0xff]
    %v918 = vld [vmem:[#allocation5 + $0x16b0] sm:$0xff]
    %v919 = vld [vmem:[#allocation5 + $0x16b8] sm:$0xff]
    %v920 = vld [vmem:[#allocation5 + $0x16c0] sm:$0xff]
    %v921 = vld [vmem:[#allocation5 + $0x16c8] sm:$0xff]
    %v922 = vld [vmem:[#allocation5 + $0x16d0] sm:$0xff]
    %v923 = vld [vmem:[#allocation5 + $0x16d8] sm:$0xff]
    %v924 = vld [vmem:[#allocation5 + $0x16e0] sm:$0xff]
    %v925 = vld [vmem:[#allocation5 + $0x16e8] sm:$0xff]
    %v926 = vld [vmem:[#allocation5 + $0x16f0] sm:$0xff]
    %v927 = vld [vmem:[#allocation5 + $0x16f8] sm:$0xff]
    %v928 = vld [vmem:[#allocation5 + $0x1700] sm:$0xff]
    %v929 = vld [vmem:[#allocation5 + $0x1708] sm:$0xff]
    %v930 = vld [vmem:[#allocation5 + $0x1710] sm:$0xff]
    %v931 = vld [vmem:[#allocation5 + $0x1718] sm:$0xff]
    %v932 = vld [vmem:[#allocation5 + $0x1720] sm:$0xff]
    %v933 = vld [vmem:[#allocation5 + $0x1728] sm:$0xff]
    %v934 = vld [vmem:[#allocation5 + $0x1730] sm:$0xff]
    %v935 = vld [vmem:[#allocation5 + $0x1738] sm:$0xff]
    %v936 = vld [vmem:[#allocation5 + $0x1740] sm:$0xff]
    %v937 = vld [vmem:[#allocation5 + $0x1748] sm:$0xff]
    %v938 = vld [vmem:[#allocation5 + $0x1750] sm:$0xff]
    %v939 = vld [vmem:[#allocation5 + $0x1758] sm:$0xff]
    %v940 = vld [vmem:[#allocation5 + $0x1760] sm:$0xff]
    %v941 = vld [vmem:[#allocation5 + $0x1768] sm:$0xff]
    %v942 = vld [vmem:[#allocation5 + $0x1770] sm:$0xff]
    %v943 = vld [vmem:[#allocation5 + $0x1778] sm:$0xff]
    %v944 = vld [vmem:[#allocation5 + $0x1780] sm:$0xff]
    %v945 = vld [vmem:[#allocation5 + $0x1788] sm:$0xff]
    %v946 = vld [vmem:[#allocation5 + $0x1790] sm:$0xff]
    %v947 = vld [vmem:[#allocation5 + $0x1798] sm:$0xff]
    %v948 = vld [vmem:[#allocation5 + $0x17a0] sm:$0xff]
    %v949 = vld [vmem:[#allocation5 + $0x17a8] sm:$0xff]
    %v950 = vld [vmem:[#allocation5 + $0x17b0] sm:$0xff]
    %v951 = vld [vmem:[#allocation5 + $0x17b8] sm:$0xff]
    %v952 = vld [vmem:[#allocation5 + $0x17c0] sm:$0xff]
    %v953 = vld [vmem:[#allocation5 + $0x17c8] sm:$0xff]
    %v954 = vld [vmem:[#allocation5 + $0x17d0] sm:$0xff]
    %v955 = vld [vmem:[#allocation5 + $0x17d8] sm:$0xff]
    %v956 = vld [vmem:[#allocation5 + $0x17e0] sm:$0xff]
    %v957 = vld [vmem:[#allocation5 + $0x17e8] sm:$0xff]
    %v958 = vld [vmem:[#allocation5 + $0x17f0] sm:$0xff]
    %v959 = vld [vmem:[#allocation5 + $0x17f8] sm:$0xff]
    %v960 = vld [vmem:[#allocation5 + $0x1800] sm:$0xff]
    %v961 = vld [vmem:[#allocation5 + $0x1808] sm:$0xff]
    %v962 = vld [vmem:[#allocation5 + $0x1810] sm:$0xff]
    %v963 = vld [vmem:[#allocation5 + $0x1818] sm:$0xff]
    %v964 = vld [vmem:[#allocation5 + $0x1820] sm:$0xff]
    %v965 = vld [vmem:[#allocation5 + $0x1828] sm:$0xff]
    %v966 = vld [vmem:[#allocation5 + $0x1830] sm:$0xff]
    %v967 = vld [vmem:[#allocation5 + $0x1838] sm:$0xff]
    %v968 = vld [vmem:[#allocation5 + $0x1840] sm:$0xff]
    %v969 = vld [vmem:[#allocation5 + $0x1848] sm:$0xff]
    %v970 = vld [vmem:[#allocation5 + $0x1850] sm:$0xff]
    %v971 = vld [vmem:[#allocation5 + $0x1858] sm:$0xff]
    %v972 = vld [vmem:[#allocation5 + $0x1860] sm:$0xff]
    %v973 = vld [vmem:[#allocation5 + $0x1868] sm:$0xff]
    %v974 = vld [vmem:[#allocation5 + $0x1870] sm:$0xff]
    %v975 = vld [vmem:[#allocation5 + $0x1878] sm:$0xff]
    %v976 = vld [vmem:[#allocation5 + $0x1880] sm:$0xff]
    %v977 = vld [vmem:[#allocation5 + $0x1888] sm:$0xff]
    %v978 = vld [vmem:[#allocation5 + $0x1890] sm:$0xff]
    %v979 = vld [vmem:[#allocation5 + $0x1898] sm:$0xff]
    %v980 = vld [vmem:[#allocation5 + $0x18a0] sm:$0xff]
    %v981 = vld [vmem:[#allocation5 + $0x18a8] sm:$0xff]
    %v982 = vld [vmem:[#allocation5 + $0x18b0] sm:$0xff]
    %v983 = vld [vmem:[#allocation5 + $0x18b8] sm:$0xff]
    %v984 = vld [vmem:[#allocation5 + $0x18c0] sm:$0xff]
    %v985 = vld [vmem:[#allocation5 + $0x18c8] sm:$0xff]
    %v986 = vld [vmem:[#allocation5 + $0x18d0] sm:$0xff]
    %v987 = vld [vmem:[#allocation5 + $0x18d8] sm:$0xff]
    %v988 = vld [vmem:[#allocation5 + $0x18e0] sm:$0xff]
    %v989 = vld [vmem:[#allocation5 + $0x18e8] sm:$0xff]
    %v990 = vld [vmem:[#allocation5 + $0x18f0] sm:$0xff]
    %v991 = vld [vmem:[#allocation5 + $0x18f8] sm:$0xff]
    %v992 = vld [vmem:[#allocation5 + $0x1900] sm:$0xff]
    %v993 = vld [vmem:[#allocation5 + $0x1908] sm:$0xff]
    %v994 = vld [vmem:[#allocation5 + $0x1910] sm:$0xff]
    %v995 = vld [vmem:[#allocation5 + $0x1918] sm:$0xff]
    %v996 = vld [vmem:[#allocation5 + $0x1920] sm:$0xff]
    %v997 = vld [vmem:[#allocation5 + $0x1928] sm:$0xff]
    %v998 = vld [vmem:[#allocation5 + $0x1930] sm:$0xff]
    %v999 = vld [vmem:[#allocation5 + $0x1938] sm:$0xff]
    %v1000 = vld [vmem:[#allocation5 + $0x1940] sm:$0xff]
    %v1001 = vld [vmem:[#allocation5 + $0x1948] sm:$0xff]
    %v1002 = vld [vmem:[#allocation5 + $0x1950] sm:$0xff]
    %v1003 = vld [vmem:[#allocation5 + $0x1958] sm:$0xff]
    %v1004 = vld [vmem:[#allocation5 + $0x1960] sm:$0xff]
    %v1005 = vld [vmem:[#allocation5 + $0x1968] sm:$0xff]
    %v1006 = vld [vmem:[#allocation5 + $0x1970] sm:$0xff]
    %v1007 = vld [vmem:[#allocation5 + $0x1978] sm:$0xff]
    %v1008 = vld [vmem:[#allocation5 + $0x1980] sm:$0xff]
    %v1009 = vld [vmem:[#allocation5 + $0x1988] sm:$0xff]
    %v1010 = vld [vmem:[#allocation5 + $0x1990] sm:$0xff]
    %v1011 = vld [vmem:[#allocation5 + $0x1998] sm:$0xff]
    %v1012 = vld [vmem:[#allocation5 + $0x19a0] sm:$0xff]
    %v1013 = vld [vmem:[#allocation5 + $0x19a8] sm:$0xff]
    %v1014 = vld [vmem:[#allocation5 + $0x19b0] sm:$0xff]
    %v1015 = vld [vmem:[#allocation5 + $0x19b8] sm:$0xff]
    %v1016 = vld [vmem:[#allocation5 + $0x19c0] sm:$0xff]
    %v1017 = vld [vmem:[#allocation5 + $0x19c8] sm:$0xff]
    %v1018 = vld [vmem:[#allocation5 + $0x19d0] sm:$0xff]
    %v1019 = vld [vmem:[#allocation5 + $0x19d8] sm:$0xff]
    %v1020 = vld [vmem:[#allocation5 + $0x19e0] sm:$0xff]
    %v1021 = vld [vmem:[#allocation5 + $0x19e8] sm:$0xff]
    %v1022 = vld [vmem:[#allocation5 + $0x19f0] sm:$0xff]
    %v1023 = vld [vmem:[#allocation5 + $0x19f8] sm:$0xff]
    %v1024 = vld [vmem:[#allocation5 + $0x1a00] sm:$0xff]
    %v1025 = vld [vmem:[#allocation5 + $0x1a08] sm:$0xff]
    %v1026 = vld [vmem:[#allocation5 + $0x1a10] sm:$0xff]
    %v1027 = vld [vmem:[#allocation5 + $0x1a18] sm:$0xff]
    %v1028 = vld [vmem:[#allocation5 + $0x1a20] sm:$0xff]
    %v1029 = vld [vmem:[#allocation5 + $0x1a28] sm:$0xff]
    %v1030 = vld [vmem:[#allocation5 + $0x1a30] sm:$0xff]
    %v1031 = vld [vmem:[#allocation5 + $0x1a38] sm:$0xff]
    %v1032 = vld [vmem:[#allocation5 + $0x1a40] sm:$0xff]
    %v1033 = vld [vmem:[#allocation5 + $0x1a48] sm:$0xff]
    %v1034 = vld [vmem:[#allocation5 + $0x1a50] sm:$0xff]
    %v1035 = vld [vmem:[#allocation5 + $0x1a58] sm:$0xff]
    %v1036 = vld [vmem:[#allocation5 + $0x1a60] sm:$0xff]
    %v1037 = vld [vmem:[#allocation5 + $0x1a68] sm:$0xff]
    %v1038 = vld [vmem:[#allocation5 + $0x1a70] sm:$0xff]
    %v1039 = vld [vmem:[#allocation5 + $0x1a78] sm:$0xff]
    %v1040 = vld [vmem:[#allocation5 + $0x1a80] sm:$0xff]
    %v1041 = vld [vmem:[#allocation5 + $0x1a88] sm:$0xff]
    %v1042 = vld [vmem:[#allocation5 + $0x1a90] sm:$0xff]
    %v1043 = vld [vmem:[#allocation5 + $0x1a98] sm:$0xff]
    %v1044 = vld [vmem:[#allocation5 + $0x1aa0] sm:$0xff]
    %v1045 = vld [vmem:[#allocation5 + $0x1aa8] sm:$0xff]
    %v1046 = vld [vmem:[#allocation5 + $0x1ab0] sm:$0xff]
    %v1047 = vld [vmem:[#allocation5 + $0x1ab8] sm:$0xff]
    %v1048 = vld [vmem:[#allocation5 + $0x1ac0] sm:$0xff]
    %v1049 = vld [vmem:[#allocation5 + $0x1ac8] sm:$0xff]
    %v1050 = vld [vmem:[#allocation5 + $0x1ad0] sm:$0xff]
    %v1051 = vld [vmem:[#allocation5 + $0x1ad8] sm:$0xff]
    %v1052 = vld [vmem:[#allocation5 + $0x1ae0] sm:$0xff]
    %v1053 = vld [vmem:[#allocation5 + $0x1ae8] sm:$0xff]
    %v1054 = vld [vmem:[#allocation5 + $0x1af0] sm:$0xff]
    %v1055 = vld [vmem:[#allocation5 + $0x1af8] sm:$0xff]
    %v1056 = vld [vmem:[#allocation5 + $0x1b00] sm:$0xff]
    %v1057 = vld [vmem:[#allocation5 + $0x1b08] sm:$0xff]
    %v1058 = vld [vmem:[#allocation5 + $0x1b10] sm:$0xff]
    %v1059 = vld [vmem:[#allocation5 + $0x1b18] sm:$0xff]
    %v1060 = vld [vmem:[#allocation5 + $0x1b20] sm:$0xff]
    %v1061 = vld [vmem:[#allocation5 + $0x1b28] sm:$0xff]
    %v1062 = vld [vmem:[#allocation5 + $0x1b30] sm:$0xff]
    %v1063 = vld [vmem:[#allocation5 + $0x1b38] sm:$0xff]
    %v1064 = vld [vmem:[#allocation5 + $0x1b40] sm:$0xff]
    %v1065 = vld [vmem:[#allocation5 + $0x1b48] sm:$0xff]
    %v1066 = vld [vmem:[#allocation5 + $0x1b50] sm:$0xff]
    %v1067 = vld [vmem:[#allocation5 + $0x1b58] sm:$0xff]
    %v1068 = vld [vmem:[#allocation5 + $0x1b60] sm:$0xff]
    %v1069 = vld [vmem:[#allocation5 + $0x1b68] sm:$0xff]
    %v1070 = vld [vmem:[#allocation5 + $0x1b70] sm:$0xff]
    %v1071 = vld [vmem:[#allocation5 + $0x1b78] sm:$0xff]
    %v1072 = vld [vmem:[#allocation5 + $0x1b80] sm:$0xff]
    %v1073 = vld [vmem:[#allocation5 + $0x1b88] sm:$0xff]
    %v1074 = vld [vmem:[#allocation5 + $0x1b90] sm:$0xff]
    %v1075 = vld [vmem:[#allocation5 + $0x1b98] sm:$0xff]
    %v1076 = vld [vmem:[#allocation5 + $0x1ba0] sm:$0xff]
    %v1077 = vld [vmem:[#allocation5 + $0x1ba8] sm:$0xff]
    %v1078 = vld [vmem:[#allocation5 + $0x1bb0] sm:$0xff]
    %v1079 = vld [vmem:[#allocation5 + $0x1bb8] sm:$0xff]
    %v1080 = vld [vmem:[#allocation5 + $0x1bc0] sm:$0xff]
    %v1081 = vld [vmem:[#allocation5 + $0x1bc8] sm:$0xff]
    %v1082 = vld [vmem:[#allocation5 + $0x1bd0] sm:$0xff]
    %v1083 = vld [vmem:[#allocation5 + $0x1bd8] sm:$0xff]
    %v1084 = vld [vmem:[#allocation5 + $0x1be0] sm:$0xff]
    %v1085 = vld [vmem:[#allocation5 + $0x1be8] sm:$0xff]
    %v1086 = vld [vmem:[#allocation5 + $0x1bf0] sm:$0xff]
    %v1087 = vld [vmem:[#allocation5 + $0x1bf8] sm:$0xff]
    %v1088 = vld [vmem:[#allocation5 + $0x1c00] sm:$0xff]
    %v1089 = vld [vmem:[#allocation5 + $0x1c08] sm:$0xff]
    %v1090 = vld [vmem:[#allocation5 + $0x1c10] sm:$0xff]
    %v1091 = vld [vmem:[#allocation5 + $0x1c18] sm:$0xff]
    %v1092 = vld [vmem:[#allocation5 + $0x1c20] sm:$0xff]
    %v1093 = vld [vmem:[#allocation5 + $0x1c28] sm:$0xff]
    %v1094 = vld [vmem:[#allocation5 + $0x1c30] sm:$0xff]
    %v1095 = vld [vmem:[#allocation5 + $0x1c38] sm:$0xff]
    %v1096 = vld [vmem:[#allocation5 + $0x1c40] sm:$0xff]
    %v1097 = vld [vmem:[#allocation5 + $0x1c48] sm:$0xff]
    %v1098 = vld [vmem:[#allocation5 + $0x1c50] sm:$0xff]
    %v1099 = vld [vmem:[#allocation5 + $0x1c58] sm:$0xff]
    %v1100 = vld [vmem:[#allocation5 + $0x1c60] sm:$0xff]
    %v1101 = vld [vmem:[#allocation5 + $0x1c68] sm:$0xff]
    %v1102 = vld [vmem:[#allocation5 + $0x1c70] sm:$0xff]
    %v1103 = vld [vmem:[#allocation5 + $0x1c78] sm:$0xff]
    %v1104 = vld [vmem:[#allocation5 + $0x1c80] sm:$0xff]
    %v1105 = vld [vmem:[#allocation5 + $0x1c88] sm:$0xff]
    %v1106 = vld [vmem:[#allocation5 + $0x1c90] sm:$0xff]
    %v1107 = vld [vmem:[#allocation5 + $0x1c98] sm:$0xff]
    %v1108 = vld [vmem:[#allocation5 + $0x1ca0] sm:$0xff]
    %v1109 = vld [vmem:[#allocation5 + $0x1ca8] sm:$0xff]
    %v1110 = vld [vmem:[#allocation5 + $0x1cb0] sm:$0xff]
    %v1111 = vld [vmem:[#allocation5 + $0x1cb8] sm:$0xff]
    %v1112 = vld [vmem:[#allocation5 + $0x1cc0] sm:$0xff]
    %v1113 = vld [vmem:[#allocation5 + $0x1cc8] sm:$0xff]
    %v1114 = vld [vmem:[#allocation5 + $0x1cd0] sm:$0xff]
    %v1115 = vld [vmem:[#allocation5 + $0x1cd8] sm:$0xff]
    %v1116 = vld [vmem:[#allocation5 + $0x1ce0] sm:$0xff]
    %v1117 = vld [vmem:[#allocation5 + $0x1ce8] sm:$0xff]
    %v1118 = vld [vmem:[#allocation5 + $0x1cf0] sm:$0xff]
    %v1119 = vld [vmem:[#allocation5 + $0x1cf8] sm:$0xff]
    %v1120 = vld [vmem:[#allocation5 + $0x1d00] sm:$0xff]
    %v1121 = vld [vmem:[#allocation5 + $0x1d08] sm:$0xff]
    %v1122 = vld [vmem:[#allocation5 + $0x1d10] sm:$0xff]
    %v1123 = vld [vmem:[#allocation5 + $0x1d18] sm:$0xff]
    %v1124 = vld [vmem:[#allocation5 + $0x1d20] sm:$0xff]
    %v1125 = vld [vmem:[#allocation5 + $0x1d28] sm:$0xff]
    %v1126 = vld [vmem:[#allocation5 + $0x1d30] sm:$0xff]
    %v1127 = vld [vmem:[#allocation5 + $0x1d38] sm:$0xff]
    %v1128 = vld [vmem:[#allocation5 + $0x1d40] sm:$0xff]
    %v1129 = vld [vmem:[#allocation5 + $0x1d48] sm:$0xff]
    %v1130 = vld [vmem:[#allocation5 + $0x1d50] sm:$0xff]
    %v1131 = vld [vmem:[#allocation5 + $0x1d58] sm:$0xff]
    %v1132 = vld [vmem:[#allocation5 + $0x1d60] sm:$0xff]
    %v1133 = vld [vmem:[#allocation5 + $0x1d68] sm:$0xff]
    %v1134 = vld [vmem:[#allocation5 + $0x1d70] sm:$0xff]
    %v1135 = vld [vmem:[#allocation5 + $0x1d78] sm:$0xff]
    %v1136 = vld [vmem:[#allocation5 + $0x1d80] sm:$0xff]
    %v1137 = vld [vmem:[#allocation5 + $0x1d88] sm:$0xff]
    %v1138 = vld [vmem:[#allocation5 + $0x1d90] sm:$0xff]
    %v1139 = vld [vmem:[#allocation5 + $0x1d98] sm:$0xff]
    %v1140 = vld [vmem:[#allocation5 + $0x1da0] sm:$0xff]
    %v1141 = vld [vmem:[#allocation5 + $0x1da8] sm:$0xff]
    %v1142 = vld [vmem:[#allocation5 + $0x1db0] sm:$0xff]
    %v1143 = vld [vmem:[#allocation5 + $0x1db8] sm:$0xff]
    %v1144 = vld [vmem:[#allocation5 + $0x1dc0] sm:$0xff]
    %v1145 = vld [vmem:[#allocation5 + $0x1dc8] sm:$0xff]
    %v1146 = vld [vmem:[#allocation5 + $0x1dd0] sm:$0xff]
    %v1147 = vld [vmem:[#allocation5 + $0x1dd8] sm:$0xff]
    %v1148 = vld [vmem:[#allocation5 + $0x1de0] sm:$0xff]
    %v1149 = vld [vmem:[#allocation5 + $0x1de8] sm:$0xff]
    %v1150 = vld [vmem:[#allocation5 + $0x1df0] sm:$0xff]
    %v1151 = vld [vmem:[#allocation5 + $0x1df8] sm:$0xff]
    %v1152 = vld [vmem:[#allocation5 + $0x1e00] sm:$0xff]
    %v1153 = vld [vmem:[#allocation5 + $0x1e08] sm:$0xff]
    %v1154 = vld [vmem:[#allocation5 + $0x1e10] sm:$0xff]
    %v1155 = vld [vmem:[#allocation5 + $0x1e18] sm:$0xff]
    %v1156 = vld [vmem:[#allocation5 + $0x1e20] sm:$0xff]
    %v1157 = vld [vmem:[#allocation5 + $0x1e28] sm:$0xff]
    %v1158 = vld [vmem:[#allocation5 + $0x1e30] sm:$0xff]
    %v1159 = vld [vmem:[#allocation5 + $0x1e38] sm:$0xff]
    %v1160 = vld [vmem:[#allocation5 + $0x1e40] sm:$0xff]
    %v1161 = vld [vmem:[#allocation5 + $0x1e48] sm:$0xff]
    %v1162 = vld [vmem:[#allocation5 + $0x1e50] sm:$0xff]
    %v1163 = vld [vmem:[#allocation5 + $0x1e58] sm:$0xff]
    %v1164 = vld [vmem:[#allocation5 + $0x1e60] sm:$0xff]
    %v1165 = vld [vmem:[#allocation5 + $0x1e68] sm:$0xff]
    %v1166 = vld [vmem:[#allocation5 + $0x1e70] sm:$0xff]
    %v1167 = vld [vmem:[#allocation5 + $0x1e78] sm:$0xff]
    %v1168 = vld [vmem:[#allocation5 + $0x1e80] sm:$0xff]
    %v1169 = vld [vmem:[#allocation5 + $0x1e88] sm:$0xff]
    %v1170 = vld [vmem:[#allocation5 + $0x1e90] sm:$0xff]
    %v1171 = vld [vmem:[#allocation5 + $0x1e98] sm:$0xff]
    %v1172 = vld [vmem:[#allocation5 + $0x1ea0] sm:$0xff]
    %v1173 = vld [vmem:[#allocation5 + $0x1ea8] sm:$0xff]
    %v1174 = vld [vmem:[#allocation5 + $0x1eb0] sm:$0xff]
    %v1175 = vld [vmem:[#allocation5 + $0x1eb8] sm:$0xff]
    %v1176 = vld [vmem:[#allocation5 + $0x1ec0] sm:$0xff]
    %v1177 = vld [vmem:[#allocation5 + $0x1ec8] sm:$0xff]
    %v1178 = vld [vmem:[#allocation5 + $0x1ed0] sm:$0xff]
    %v1179 = vld [vmem:[#allocation5 + $0x1ed8] sm:$0xff]
    %v1180 = vld [vmem:[#allocation5 + $0x1ee0] sm:$0xff]
    %v1181 = vld [vmem:[#allocation5 + $0x1ee8] sm:$0xff]
    %v1182 = vld [vmem:[#allocation5 + $0x1ef0] sm:$0xff]
    %v1183 = vld [vmem:[#allocation5 + $0x1ef8] sm:$0xff]
    %v1184 = vld [vmem:[#allocation5 + $0x1f00] sm:$0xff]
    %v1185 = vld [vmem:[#allocation5 + $0x1f08] sm:$0xff]
    %v1186 = vld [vmem:[#allocation5 + $0x1f10] sm:$0xff]
    %v1187 = vld [vmem:[#allocation5 + $0x1f18] sm:$0xff]
    %v1188 = vld [vmem:[#allocation5 + $0x1f20] sm:$0xff]
    %v1189 = vld [vmem:[#allocation5 + $0x1f28] sm:$0xff]
    %v1190 = vld [vmem:[#allocation5 + $0x1f30] sm:$0xff]
    %v1191 = vld [vmem:[#allocation5 + $0x1f38] sm:$0xff]
    %v1192 = vld [vmem:[#allocation5 + $0x1f40] sm:$0xff]
    %v1193 = vld [vmem:[#allocation5 + $0x1f48] sm:$0xff]
    %v1194 = vld [vmem:[#allocation5 + $0x1f50] sm:$0xff]
    %v1195 = vld [vmem:[#allocation5 + $0x1f58] sm:$0xff]
    %v1196 = vld [vmem:[#allocation5 + $0x1f60] sm:$0xff]
    %v1197 = vld [vmem:[#allocation5 + $0x1f68] sm:$0xff]
    %v1198 = vld [vmem:[#allocation5 + $0x1f70] sm:$0xff]
    %v1199 = vld [vmem:[#allocation5 + $0x1f78] sm:$0xff]
    %v1200 = vld [vmem:[#allocation5 + $0x1f80] sm:$0xff]
    %v1201 = vld [vmem:[#allocation5 + $0x1f88] sm:$0xff]
    %v1202 = vld [vmem:[#allocation5 + $0x1f90] sm:$0xff]
    %v1203 = vld [vmem:[#allocation5 + $0x1f98] sm:$0xff]
    %v1204 = vld [vmem:[#allocation5 + $0x1fa0] sm:$0xff]
    %v1205 = vld [vmem:[#allocation5 + $0x1fa8] sm:$0xff]
    %v1206 = vld [vmem:[#allocation5 + $0x1fb0] sm:$0xff]
    %v1207 = vld [vmem:[#allocation5 + $0x1fb8] sm:$0xff]
    %v1208 = vld [vmem:[#allocation5 + $0x1fc0] sm:$0xff]
    %v1209 = vld [vmem:[#allocation5 + $0x1fc8] sm:$0xff]
    %v1210 = vld [vmem:[#allocation5 + $0x1fd0] sm:$0xff]
    %v1211 = vld [vmem:[#allocation5 + $0x1fd8] sm:$0xff]
    %v1212 = vld [vmem:[#allocation5 + $0x1fe0] sm:$0xff]
    %v1213 = vld [vmem:[#allocation5 + $0x1fe8] sm:$0xff]
    %v1214 = vld [vmem:[#allocation5 + $0x1ff0] sm:$0xff]
    %v1215 = vld [vmem:[#allocation5 + $0x1ff8] sm:$0xff]
    %v1216 = vld [vmem:[#allocation5 + $0x2000] sm:$0xff]
    %v1217 = vld [vmem:[#allocation5 + $0x2008] sm:$0xff]
    %v1218 = vld [vmem:[#allocation5 + $0x2010] sm:$0xff]
    %v1219 = vld [vmem:[#allocation5 + $0x2018] sm:$0xff]
    %v1220 = vld [vmem:[#allocation5 + $0x2020] sm:$0xff]
    %v1221 = vld [vmem:[#allocation5 + $0x2028] sm:$0xff]
    %v1222 = vld [vmem:[#allocation5 + $0x2030] sm:$0xff]
    %v1223 = vld [vmem:[#allocation5 + $0x2038] sm:$0xff]
    %v1224 = vld [vmem:[#allocation5 + $0x2040] sm:$0xff]
    %v1225 = vld [vmem:[#allocation5 + $0x2048] sm:$0xff]
    %v1226 = vld [vmem:[#allocation5 + $0x2050] sm:$0xff]
    %v1227 = vld [vmem:[#allocation5 + $0x2058] sm:$0xff]
    %v1228 = vld [vmem:[#allocation5 + $0x2060] sm:$0xff]
    %v1229 = vld [vmem:[#allocation5 + $0x2068] sm:$0xff]
    %v1230 = vld [vmem:[#allocation5 + $0x2070] sm:$0xff]
    %v1231 = vld [vmem:[#allocation5 + $0x2078] sm:$0xff]
    %v1232 = vld [vmem:[#allocation5 + $0x2080] sm:$0xff]
    %v1233 = vld [vmem:[#allocation5 + $0x2088] sm:$0xff]
    %v1234 = vld [vmem:[#allocation5 + $0x2090] sm:$0xff]
    %v1235 = vld [vmem:[#allocation5 + $0x2098] sm:$0xff]
    %v1236 = vld [vmem:[#allocation5 + $0x20a0] sm:$0xff]
    %v1237 = vld [vmem:[#allocation5 + $0x20a8] sm:$0xff]
    %v1238 = vld [vmem:[#allocation5 + $0x20b0] sm:$0xff]
    %v1239 = vld [vmem:[#allocation5 + $0x20b8] sm:$0xff]
    %v1240 = vld [vmem:[#allocation5 + $0x20c0] sm:$0xff]
    %v1241 = vld [vmem:[#allocation5 + $0x20c8] sm:$0xff]
    %v1242 = vld [vmem:[#allocation5 + $0x20d0] sm:$0xff]
    %v1243 = vld [vmem:[#allocation5 + $0x20d8] sm:$0xff]
    %v1244 = vld [vmem:[#allocation5 + $0x20e0] sm:$0xff]
    %v1245 = vld [vmem:[#allocation5 + $0x20e8] sm:$0xff]
    %v1246 = vld [vmem:[#allocation5 + $0x20f0] sm:$0xff]
    %v1247 = vld [vmem:[#allocation5 + $0x20f8] sm:$0xff]
    %v1248 = vld [vmem:[#allocation5 + $0x2100] sm:$0xff]
    %v1249 = vld [vmem:[#allocation5 + $0x2108] sm:$0xff]
    %v1250 = vld [vmem:[#allocation5 + $0x2110] sm:$0xff]
    %v1251 = vld [vmem:[#allocation5 + $0x2118] sm:$0xff]
    %v1252 = vld [vmem:[#allocation5 + $0x2120] sm:$0xff]
    %v1253 = vld [vmem:[#allocation5 + $0x2128] sm:$0xff]
    %v1254 = vld [vmem:[#allocation5 + $0x2130] sm:$0xff]
    %v1255 = vld [vmem:[#allocation5 + $0x2138] sm:$0xff]
    %v1256 = vld [vmem:[#allocation5 + $0x2140] sm:$0xff]
    %v1257 = vld [vmem:[#allocation5 + $0x2148] sm:$0xff]
    %v1258 = vld [vmem:[#allocation5 + $0x2150] sm:$0xff]
    %v1259 = vld [vmem:[#allocation5 + $0x2158] sm:$0xff]
    %v1260 = vld [vmem:[#allocation5 + $0x2160] sm:$0xff]
    %v1261 = vld [vmem:[#allocation5 + $0x2168] sm:$0xff]
    %v1262 = vld [vmem:[#allocation5 + $0x2170] sm:$0xff]
    %v1263 = vld [vmem:[#allocation5 + $0x2178] sm:$0xff]
    %v1264 = vld [vmem:[#allocation5 + $0x2180] sm:$0xff]
    %v1265 = vld [vmem:[#allocation5 + $0x2188] sm:$0xff]
    %v1266 = vld [vmem:[#allocation5 + $0x2190] sm:$0xff]
    %v1267 = vld [vmem:[#allocation5 + $0x2198] sm:$0xff]
    %v1268 = vld [vmem:[#allocation5 + $0x21a0] sm:$0xff]
    %v1269 = vld [vmem:[#allocation5 + $0x21a8] sm:$0xff]
    %v1270 = vld [vmem:[#allocation5 + $0x21b0] sm:$0xff]
    %v1271 = vld [vmem:[#allocation5 + $0x21b8] sm:$0xff]
    %v1272 = vld [vmem:[#allocation5 + $0x21c0] sm:$0xff]
    %v1273 = vld [vmem:[#allocation5 + $0x21c8] sm:$0xff]
    %v1274 = vld [vmem:[#allocation5 + $0x21d0] sm:$0xff]
    %v1275 = vld [vmem:[#allocation5 + $0x21d8] sm:$0xff]
    %v1276 = vld [vmem:[#allocation5 + $0x21e0] sm:$0xff]
    %v1277 = vld [vmem:[#allocation5 + $0x21e8] sm:$0xff]
    %v1278 = vld [vmem:[#allocation5 + $0x21f0] sm:$0xff]
    %v1279 = vld [vmem:[#allocation5 + $0x21f8] sm:$0xff]
    %v1280 = vld [vmem:[#allocation5 + $0x2200] sm:$0xff]
    %v1281 = vld [vmem:[#allocation5 + $0x2208] sm:$0xff]
    %v1282 = vld [vmem:[#allocation5 + $0x2210] sm:$0xff]
    %v1283 = vld [vmem:[#allocation5 + $0x2218] sm:$0xff]
    %v1284 = vld [vmem:[#allocation5 + $0x2220] sm:$0xff]
    %v1285 = vld [vmem:[#allocation5 + $0x2228] sm:$0xff]
    %v1286 = vld [vmem:[#allocation5 + $0x2230] sm:$0xff]
    %v1287 = vld [vmem:[#allocation5 + $0x2238] sm:$0xff]
    %v1288 = vld [vmem:[#allocation5 + $0x2240] sm:$0xff]
    %v1289 = vld [vmem:[#allocation5 + $0x2248] sm:$0xff]
    %v1290 = vld [vmem:[#allocation5 + $0x2250] sm:$0xff]
    %v1291 = vld [vmem:[#allocation5 + $0x2258] sm:$0xff]
    %v1292 = vld [vmem:[#allocation5 + $0x2260] sm:$0xff]
    %v1293 = vld [vmem:[#allocation5 + $0x2268] sm:$0xff]
    %v1294 = vld [vmem:[#allocation5 + $0x2270] sm:$0xff]
    %v1295 = vld [vmem:[#allocation5 + $0x2278] sm:$0xff]
    %v1296 = vld [vmem:[#allocation5 + $0x2280] sm:$0xff]
    %v1297 = vld [vmem:[#allocation5 + $0x2288] sm:$0xff]
    %v1298 = vld [vmem:[#allocation5 + $0x2290] sm:$0xff]
    %v1299 = vld [vmem:[#allocation5 + $0x2298] sm:$0xff]
    %v1300 = vld [vmem:[#allocation5 + $0x22a0] sm:$0xff]
    %v1301 = vld [vmem:[#allocation5 + $0x22a8] sm:$0xff]
    %v1302 = vld [vmem:[#allocation5 + $0x22b0] sm:$0xff]
    %v1303 = vld [vmem:[#allocation5 + $0x22b8] sm:$0xff]
    %v1304 = vld [vmem:[#allocation5 + $0x22c0] sm:$0xff]
    %v1305 = vld [vmem:[#allocation5 + $0x22c8] sm:$0xff]
    %v1306 = vld [vmem:[#allocation5 + $0x22d0] sm:$0xff]
    %v1307 = vld [vmem:[#allocation5 + $0x22d8] sm:$0xff]
    %v1308 = vld [vmem:[#allocation5 + $0x22e0] sm:$0xff]
    %v1309 = vld [vmem:[#allocation5 + $0x22e8] sm:$0xff]
    %v1310 = vld [vmem:[#allocation5 + $0x22f0] sm:$0xff]
    %v1311 = vld [vmem:[#allocation5 + $0x22f8] sm:$0xff]
    %v1312 = vld [vmem:[#allocation5 + $0x2300] sm:$0xff]
    %v1313 = vld [vmem:[#allocation5 + $0x2308] sm:$0xff]
    %v1314 = vld [vmem:[#allocation5 + $0x2310] sm:$0xff]
    %v1315 = vld [vmem:[#allocation5 + $0x2318] sm:$0xff]
    %v1316 = vld [vmem:[#allocation5 + $0x2320] sm:$0xff]
    %v1317 = vld [vmem:[#allocation5 + $0x2328] sm:$0xff]
    %v1318 = vld [vmem:[#allocation5 + $0x2330] sm:$0xff]
    %v1319 = vld [vmem:[#allocation5 + $0x2338] sm:$0xff]
    %v1320 = vld [vmem:[#allocation5 + $0x2340] sm:$0xff]
    %v1321 = vld [vmem:[#allocation5 + $0x2348] sm:$0xff]
    %v1322 = vld [vmem:[#allocation5 + $0x2350] sm:$0xff]
    %v1323 = vld [vmem:[#allocation5 + $0x2358] sm:$0xff]
    %v1324 = vld [vmem:[#allocation5 + $0x2360] sm:$0xff]
    %v1325 = vld [vmem:[#allocation5 + $0x2368] sm:$0xff]
    %v1326 = vld [vmem:[#allocation5 + $0x2370] sm:$0xff]
    %v1327 = vld [vmem:[#allocation5 + $0x2378] sm:$0xff]
    %v1328 = vld [vmem:[#allocation5 + $0x2380] sm:$0xff]
    %v1329 = vld [vmem:[#allocation5 + $0x2388] sm:$0xff]
    %v1330 = vld [vmem:[#allocation5 + $0x2390] sm:$0xff]
    %v1331 = vld [vmem:[#allocation5 + $0x2398] sm:$0xff]
    %v1332 = vld [vmem:[#allocation5 + $0x23a0] sm:$0xff]
    %v1333 = vld [vmem:[#allocation5 + $0x23a8] sm:$0xff]
    %v1334 = vld [vmem:[#allocation5 + $0x23b0] sm:$0xff]
    %v1335 = vld [vmem:[#allocation5 + $0x23b8] sm:$0xff]
    %v1336 = vld [vmem:[#allocation5 + $0x23c0] sm:$0xff]
    %v1337 = vld [vmem:[#allocation5 + $0x23c8] sm:$0xff]
    %v1338 = vld [vmem:[#allocation5 + $0x23d0] sm:$0xff]
    %v1339 = vld [vmem:[#allocation5 + $0x23d8] sm:$0xff]
    %v1340 = vld [vmem:[#allocation5 + $0x23e0] sm:$0xff]
    %v1341 = vld [vmem:[#allocation5 + $0x23e8] sm:$0xff]
    %v1342 = vld [vmem:[#allocation5 + $0x23f0] sm:$0xff]
    %v1343 = vld [vmem:[#allocation5 + $0x23f8] sm:$0xff]
    %v1344 = vld [vmem:[#allocation5 + $0x2400] sm:$0xff]
    %v1345 = vld [vmem:[#allocation5 + $0x2408] sm:$0xff]
    %v1346 = vld [vmem:[#allocation5 + $0x2410] sm:$0xff]
    %v1347 = vld [vmem:[#allocation5 + $0x2418] sm:$0xff]
    %v1348 = vld [vmem:[#allocation5 + $0x2420] sm:$0xff]
    %v1349 = vld [vmem:[#allocation5 + $0x2428] sm:$0xff]
    %v1350 = vld [vmem:[#allocation5 + $0x2430] sm:$0xff]
    %v1351 = vld [vmem:[#allocation5 + $0x2438] sm:$0xff]
    %v1352 = vld [vmem:[#allocation5 + $0x2440] sm:$0xff]
    %v1353 = vld [vmem:[#allocation5 + $0x2448] sm:$0xff]
    %v1354 = vld [vmem:[#allocation5 + $0x2450] sm:$0xff]
    %v1355 = vld [vmem:[#allocation5 + $0x2458] sm:$0xff]
    %v1356 = vld [vmem:[#allocation5 + $0x2460] sm:$0xff]
    %v1357 = vld [vmem:[#allocation5 + $0x2468] sm:$0xff]
    %v1358 = vld [vmem:[#allocation5 + $0x2470] sm:$0xff]
    %v1359 = vld [vmem:[#allocation5 + $0x2478] sm:$0xff]
    %v1360 = vld [vmem:[#allocation5 + $0x2480] sm:$0xff]
    %v1361 = vld [vmem:[#allocation5 + $0x2488] sm:$0xff]
    %v1362 = vld [vmem:[#allocation5 + $0x2490] sm:$0xff]
    %v1363 = vld [vmem:[#allocation5 + $0x2498] sm:$0xff]
    %v1364 = vld [vmem:[#allocation5 + $0x24a0] sm:$0xff]
    %v1365 = vld [vmem:[#allocation5 + $0x24a8] sm:$0xff]
    %v1366 = vld [vmem:[#allocation5 + $0x24b0] sm:$0xff]
    %v1367 = vld [vmem:[#allocation5 + $0x24b8] sm:$0xff]
    %v1368 = vld [vmem:[#allocation5 + $0x24c0] sm:$0xff]
    %v1369 = vld [vmem:[#allocation5 + $0x24c8] sm:$0xff]
    %v1370 = vld [vmem:[#allocation5 + $0x24d0] sm:$0xff]
    %v1371 = vld [vmem:[#allocation5 + $0x24d8] sm:$0xff]
    %v1372 = vld [vmem:[#allocation5 + $0x24e0] sm:$0xff]
    %v1373 = vld [vmem:[#allocation5 + $0x24e8] sm:$0xff]
    %v1374 = vld [vmem:[#allocation5 + $0x24f0] sm:$0xff]
    %v1375 = vld [vmem:[#allocation5 + $0x24f8] sm:$0xff]
    %v1376 = vld [vmem:[#allocation5 + $0x2500] sm:$0xff]
    %v1377 = vld [vmem:[#allocation5 + $0x2508] sm:$0xff]
    %v1378 = vld [vmem:[#allocation5 + $0x2510] sm:$0xff]
    %v1379 = vld [vmem:[#allocation5 + $0x2518] sm:$0xff]
    %v1380 = vld [vmem:[#allocation5 + $0x2520] sm:$0xff]
    %v1381 = vld [vmem:[#allocation5 + $0x2528] sm:$0xff]
    %v1382 = vld [vmem:[#allocation5 + $0x2530] sm:$0xff]
    %v1383 = vld [vmem:[#allocation5 + $0x2538] sm:$0xff]
    %v1384 = vld [vmem:[#allocation5 + $0x2540] sm:$0xff]
    %v1385 = vld [vmem:[#allocation5 + $0x2548] sm:$0xff]
    %v1386 = vld [vmem:[#allocation5 + $0x2550] sm:$0xff]
    %v1387 = vld [vmem:[#allocation5 + $0x2558] sm:$0xff]
    %v1388 = vld [vmem:[#allocation5 + $0x2560] sm:$0xff]
    %v1389 = vld [vmem:[#allocation5 + $0x2568] sm:$0xff]
    %v1390 = vld [vmem:[#allocation5 + $0x2570] sm:$0xff]
    %v1391 = vld [vmem:[#allocation5 + $0x2578] sm:$0xff]
    %v1392 = vld [vmem:[#allocation5 + $0x2580] sm:$0xff]
    %v1393 = vld [vmem:[#allocation5 + $0x2588] sm:$0xff]
    %v1394 = vld [vmem:[#allocation5 + $0x2590] sm:$0xff]
    %v1395 = vld [vmem:[#allocation5 + $0x2598] sm:$0xff]
    %v1396 = vld [vmem:[#allocation5 + $0x25a0] sm:$0xff]
    %v1397 = vld [vmem:[#allocation5 + $0x25a8] sm:$0xff]
    %v1398 = vld [vmem:[#allocation5 + $0x25b0] sm:$0xff]
    %v1399 = vld [vmem:[#allocation5 + $0x25b8] sm:$0xff]
    %v1400 = vld [vmem:[#allocation5 + $0x25c0] sm:$0xff]
    %v1401 = vld [vmem:[#allocation5 + $0x25c8] sm:$0xff]
    %v1402 = vld [vmem:[#allocation5 + $0x25d0] sm:$0xff]
    %v1403 = vld [vmem:[#allocation5 + $0x25d8] sm:$0xff]
    %v1404 = vld [vmem:[#allocation5 + $0x25e0] sm:$0xff]
    %v1405 = vld [vmem:[#allocation5 + $0x25e8] sm:$0xff]
    %v1406 = vld [vmem:[#allocation5 + $0x25f0] sm:$0xff]
    %v1407 = vld [vmem:[#allocation5 + $0x25f8] sm:$0xff]
    %v1408 = vld [vmem:[#allocation5 + $0x2600] sm:$0xff]
    %v1409 = vld [vmem:[#allocation5 + $0x2608] sm:$0xff]
    %v1410 = vld [vmem:[#allocation5 + $0x2610] sm:$0xff]
    %v1411 = vld [vmem:[#allocation5 + $0x2618] sm:$0xff]
    %v1412 = vld [vmem:[#allocation5 + $0x2620] sm:$0xff]
    %v1413 = vld [vmem:[#allocation5 + $0x2628] sm:$0xff]
    %v1414 = vld [vmem:[#allocation5 + $0x2630] sm:$0xff]
    %v1415 = vld [vmem:[#allocation5 + $0x2638] sm:$0xff]
    %v1416 = vld [vmem:[#allocation5 + $0x2640] sm:$0xff]
    %v1417 = vld [vmem:[#allocation5 + $0x2648] sm:$0xff]
    %v1418 = vld [vmem:[#allocation5 + $0x2650] sm:$0xff]
    %v1419 = vld [vmem:[#allocation5 + $0x2658] sm:$0xff]
    %v1420 = vld [vmem:[#allocation5 + $0x2660] sm:$0xff]
    %v1421 = vld [vmem:[#allocation5 + $0x2668] sm:$0xff]
    %v1422 = vld [vmem:[#allocation5 + $0x2670] sm:$0xff]
    %v1423 = vld [vmem:[#allocation5 + $0x2678] sm:$0xff]
    %v1424 = vld [vmem:[#allocation5 + $0x2680] sm:$0xff]
    %v1425 = vld [vmem:[#allocation5 + $0x2688] sm:$0xff]
    %v1426 = vld [vmem:[#allocation5 + $0x2690] sm:$0xff]
    %v1427 = vld [vmem:[#allocation5 + $0x2698] sm:$0xff]
    %v1428 = vld [vmem:[#allocation5 + $0x26a0] sm:$0xff]
    %v1429 = vld [vmem:[#allocation5 + $0x26a8] sm:$0xff]
    %v1430 = vld [vmem:[#allocation5 + $0x26b0] sm:$0xff]
    %v1431 = vld [vmem:[#allocation5 + $0x26b8] sm:$0xff]
    %v1432 = vld [vmem:[#allocation5 + $0x26c0] sm:$0xff]
    %v1433 = vld [vmem:[#allocation5 + $0x26c8] sm:$0xff]
    %v1434 = vld [vmem:[#allocation5 + $0x26d0] sm:$0xff]
    %v1435 = vld [vmem:[#allocation5 + $0x26d8] sm:$0xff]
    %v1436 = vld [vmem:[#allocation5 + $0x26e0] sm:$0xff]
    %v1437 = vld [vmem:[#allocation5 + $0x26e8] sm:$0xff]
    %v1438 = vld [vmem:[#allocation5 + $0x26f0] sm:$0xff]
    %v1439 = vld [vmem:[#allocation5 + $0x26f8] sm:$0xff]
    %v1440 = vld [vmem:[#allocation5 + $0x2700] sm:$0xff]
    %v1441 = vld [vmem:[#allocation5 + $0x2708] sm:$0xff]
    %v1442 = vld [vmem:[#allocation5 + $0x2710] sm:$0xff]
    %v1443 = vld [vmem:[#allocation5 + $0x2718] sm:$0xff]
    %v1444 = vld [vmem:[#allocation5 + $0x2720] sm:$0xff]
    %v1445 = vld [vmem:[#allocation5 + $0x2728] sm:$0xff]
    %v1446 = vld [vmem:[#allocation5 + $0x2730] sm:$0xff]
    %v1447 = vld [vmem:[#allocation5 + $0x2738] sm:$0xff]
    %v1448 = vld [vmem:[#allocation5 + $0x2740] sm:$0xff]
    %v1449 = vld [vmem:[#allocation5 + $0x2748] sm:$0xff]
    %v1450 = vld [vmem:[#allocation5 + $0x2750] sm:$0xff]
    %v1451 = vld [vmem:[#allocation5 + $0x2758] sm:$0xff]
    %v1452 = vld [vmem:[#allocation5 + $0x2760] sm:$0xff]
    %v1453 = vld [vmem:[#allocation5 + $0x2768] sm:$0xff]
    %v1454 = vld [vmem:[#allocation5 + $0x2770] sm:$0xff]
    %v1455 = vld [vmem:[#allocation5 + $0x2778] sm:$0xff]
    %v1456 = vld [vmem:[#allocation5 + $0x2780] sm:$0xff]
    %v1457 = vld [vmem:[#allocation5 + $0x2788] sm:$0xff]
    %v1458 = vld [vmem:[#allocation5 + $0x2790] sm:$0xff]
    %v1459 = vld [vmem:[#allocation5 + $0x2798] sm:$0xff]
    %v1460 = vld [vmem:[#allocation5 + $0x27a0] sm:$0xff]
    %v1461 = vld [vmem:[#allocation5 + $0x27a8] sm:$0xff]
    %v1462 = vld [vmem:[#allocation5 + $0x27b0] sm:$0xff]
    %v1463 = vld [vmem:[#allocation5 + $0x27b8] sm:$0xff]
    %v1464 = vld [vmem:[#allocation5 + $0x27c0] sm:$0xff]
    %v1465 = vld [vmem:[#allocation5 + $0x27c8] sm:$0xff]
    %v1466 = vld [vmem:[#allocation5 + $0x27d0] sm:$0xff]
    %v1467 = vld [vmem:[#allocation5 + $0x27d8] sm:$0xff]
    %v1468 = vld [vmem:[#allocation5 + $0x27e0] sm:$0xff]
    %v1469 = vld [vmem:[#allocation5 + $0x27e8] sm:$0xff]
    %v1470 = vld [vmem:[#allocation5 + $0x27f0] sm:$0xff]
    %v1471 = vld [vmem:[#allocation5 + $0x27f8] sm:$0xff]
    %v1472 = vld [vmem:[#allocation5 + $0x2800] sm:$0xff]
    %v1473 = vld [vmem:[#allocation5 + $0x2808] sm:$0xff]
    %v1474 = vld [vmem:[#allocation5 + $0x2810] sm:$0xff]
    %v1475 = vld [vmem:[#allocation5 + $0x2818] sm:$0xff]
    %v1476 = vld [vmem:[#allocation5 + $0x2820] sm:$0xff]
    %v1477 = vld [vmem:[#allocation5 + $0x2828] sm:$0xff]
    %v1478 = vld [vmem:[#allocation5 + $0x2830] sm:$0xff]
    %v1479 = vld [vmem:[#allocation5 + $0x2838] sm:$0xff]
    %v1480 = vld [vmem:[#allocation5 + $0x2840] sm:$0xff]
    %v1481 = vld [vmem:[#allocation5 + $0x2848] sm:$0xff]
    %v1482 = vld [vmem:[#allocation5 + $0x2850] sm:$0xff]
    %v1483 = vld [vmem:[#allocation5 + $0x2858] sm:$0xff]
    %v1484 = vld [vmem:[#allocation5 + $0x2860] sm:$0xff]
    %v1485 = vld [vmem:[#allocation5 + $0x2868] sm:$0xff]
    %v1486 = vld [vmem:[#allocation5 + $0x2870] sm:$0xff]
    %v1487 = vld [vmem:[#allocation5 + $0x2878] sm:$0xff]
    %v1488 = vld [vmem:[#allocation5 + $0x2880] sm:$0xff]
    %v1489 = vld [vmem:[#allocation5 + $0x2888] sm:$0xff]
    %v1490 = vld [vmem:[#allocation5 + $0x2890] sm:$0xff]
    %v1491 = vld [vmem:[#allocation5 + $0x2898] sm:$0xff]
    %v1492 = vld [vmem:[#allocation5 + $0x28a0] sm:$0xff]
    %v1493 = vld [vmem:[#allocation5 + $0x28a8] sm:$0xff]
    %v1494 = vld [vmem:[#allocation5 + $0x28b0] sm:$0xff]
    %v1495 = vld [vmem:[#allocation5 + $0x28b8] sm:$0xff]
    %v1496 = vld [vmem:[#allocation5 + $0x28c0] sm:$0xff]
    %v1497 = vld [vmem:[#allocation5 + $0x28c8] sm:$0xff]
    %v1498 = vld [vmem:[#allocation5 + $0x28d0] sm:$0xff]
    %v1499 = vld [vmem:[#allocation5 + $0x28d8] sm:$0xff]
    %v1500 = vld [vmem:[#allocation5 + $0x28e0] sm:$0xff]
    %v1501 = vld [vmem:[#allocation5 + $0x28e8] sm:$0xff]
    %v1502 = vld [vmem:[#allocation5 + $0x28f0] sm:$0xff]
    %v1503 = vld [vmem:[#allocation5 + $0x28f8] sm:$0xff]
    %v1504 = vld [vmem:[#allocation5 + $0x2900] sm:$0xff]
    %v1505 = vld [vmem:[#allocation5 + $0x2908] sm:$0xff]
    %v1506 = vld [vmem:[#allocation5 + $0x2910] sm:$0xff]
    %v1507 = vld [vmem:[#allocation5 + $0x2918] sm:$0xff]
    %v1508 = vld [vmem:[#allocation5 + $0x2920] sm:$0xff]
    %v1509 = vld [vmem:[#allocation5 + $0x2928] sm:$0xff]
    %v1510 = vld [vmem:[#allocation5 + $0x2930] sm:$0xff]
    %v1511 = vld [vmem:[#allocation5 + $0x2938] sm:$0xff]
    %v1512 = vld [vmem:[#allocation5 + $0x2940] sm:$0xff]
    %v1513 = vld [vmem:[#allocation5 + $0x2948] sm:$0xff]
    %v1514 = vld [vmem:[#allocation5 + $0x2950] sm:$0xff]
    %v1515 = vld [vmem:[#allocation5 + $0x2958] sm:$0xff]
    %v1516 = vld [vmem:[#allocation5 + $0x2960] sm:$0xff]
    %v1517 = vld [vmem:[#allocation5 + $0x2968] sm:$0xff]
    %v1518 = vld [vmem:[#allocation5 + $0x2970] sm:$0xff]
    %v1519 = vld [vmem:[#allocation5 + $0x2978] sm:$0xff]
    %v1520 = vld [vmem:[#allocation5 + $0x2980] sm:$0xff]
    %v1521 = vld [vmem:[#allocation5 + $0x2988] sm:$0xff]
    %v1522 = vld [vmem:[#allocation5 + $0x2990] sm:$0xff]
    %v1523 = vld [vmem:[#allocation5 + $0x2998] sm:$0xff]
    %v1524 = vld [vmem:[#allocation5 + $0x29a0] sm:$0xff]
    %v1525 = vld [vmem:[#allocation5 + $0x29a8] sm:$0xff]
    %v1526 = vld [vmem:[#allocation5 + $0x29b0] sm:$0xff]
    %v1527 = vld [vmem:[#allocation5 + $0x29b8] sm:$0xff]
    %v1528 = vld [vmem:[#allocation5 + $0x29c0] sm:$0xff]
    %v1529 = vld [vmem:[#allocation5 + $0x29c8] sm:$0xff]
    %v1530 = vld [vmem:[#allocation5 + $0x29d0] sm:$0xff]
    %v1531 = vld [vmem:[#allocation5 + $0x29d8] sm:$0xff]
    %v1532 = vld [vmem:[#allocation5 + $0x29e0] sm:$0xff]
    %v1533 = vld [vmem:[#allocation5 + $0x29e8] sm:$0xff]
    %v1534 = vld [vmem:[#allocation5 + $0x29f0] sm:$0xff]
    %v1535 = vld [vmem:[#allocation5 + $0x29f8] sm:$0xff]
    %v1536 = vld [vmem:[#allocation5 + $0x2a00] sm:$0xff]
    %v1537 = vld [vmem:[#allocation5 + $0x2a08] sm:$0xff]
    %v1538 = vld [vmem:[#allocation5 + $0x2a10] sm:$0xff]
    %v1539 = vld [vmem:[#allocation5 + $0x2a18] sm:$0xff]
    %v1540 = vld [vmem:[#allocation5 + $0x2a20] sm:$0xff]
    %v1541 = vld [vmem:[#allocation5 + $0x2a28] sm:$0xff]
    %v1542 = vld [vmem:[#allocation5 + $0x2a30] sm:$0xff]
    %v1543 = vld [vmem:[#allocation5 + $0x2a38] sm:$0xff]
    %v1544 = vld [vmem:[#allocation5 + $0x2a40] sm:$0xff]
    %v1545 = vld [vmem:[#allocation5 + $0x2a48] sm:$0xff]
    %v1546 = vld [vmem:[#allocation5 + $0x2a50] sm:$0xff]
    %v1547 = vld [vmem:[#allocation5 + $0x2a58] sm:$0xff]
    %v1548 = vld [vmem:[#allocation5 + $0x2a60] sm:$0xff]
    %v1549 = vld [vmem:[#allocation5 + $0x2a68] sm:$0xff]
    %v1550 = vld [vmem:[#allocation5 + $0x2a70] sm:$0xff]
    %v1551 = vld [vmem:[#allocation5 + $0x2a78] sm:$0xff]
    %v1552 = vld [vmem:[#allocation5 + $0x2a80] sm:$0xff]
    %v1553 = vld [vmem:[#allocation5 + $0x2a88] sm:$0xff]
    %v1554 = vld [vmem:[#allocation5 + $0x2a90] sm:$0xff]
    %v1555 = vld [vmem:[#allocation5 + $0x2a98] sm:$0xff]
    %v1556 = vld [vmem:[#allocation5 + $0x2aa0] sm:$0xff]
    %v1557 = vld [vmem:[#allocation5 + $0x2aa8] sm:$0xff]
    %v1558 = vld [vmem:[#allocation5 + $0x2ab0] sm:$0xff]
    %v1559 = vld [vmem:[#allocation5 + $0x2ab8] sm:$0xff]
    %v1560 = vld [vmem:[#allocation5 + $0x2ac0] sm:$0xff]
    %v1561 = vld [vmem:[#allocation5 + $0x2ac8] sm:$0xff]
    %v1562 = vld [vmem:[#allocation5 + $0x2ad0] sm:$0xff]
    %v1563 = vld [vmem:[#allocation5 + $0x2ad8] sm:$0xff]
    %v1564 = vld [vmem:[#allocation5 + $0x2ae0] sm:$0xff]
    %v1565 = vld [vmem:[#allocation5 + $0x2ae8] sm:$0xff]
    %v1566 = vld [vmem:[#allocation5 + $0x2af0] sm:$0xff]
    %v1567 = vld [vmem:[#allocation5 + $0x2af8] sm:$0xff]
    %v1568 = vld [vmem:[#allocation5 + $0x2b00] sm:$0xff]
    %v1569 = vld [vmem:[#allocation5 + $0x2b08] sm:$0xff]
    %v1570 = vld [vmem:[#allocation5 + $0x2b10] sm:$0xff]
    %v1571 = vld [vmem:[#allocation5 + $0x2b18] sm:$0xff]
    %v1572 = vld [vmem:[#allocation5 + $0x2b20] sm:$0xff]
    %v1573 = vld [vmem:[#allocation5 + $0x2b28] sm:$0xff]
    %v1574 = vld [vmem:[#allocation5 + $0x2b30] sm:$0xff]
    %v1575 = vld [vmem:[#allocation5 + $0x2b38] sm:$0xff]
    %v1576 = vld [vmem:[#allocation5 + $0x2b40] sm:$0xff]
    %v1577 = vld [vmem:[#allocation5 + $0x2b48] sm:$0xff]
    %v1578 = vld [vmem:[#allocation5 + $0x2b50] sm:$0xff]
    %v1579 = vld [vmem:[#allocation5 + $0x2b58] sm:$0xff]
    %v1580 = vld [vmem:[#allocation5 + $0x2b60] sm:$0xff]
    %v1581 = vld [vmem:[#allocation5 + $0x2b68] sm:$0xff]
    %v1582 = vld [vmem:[#allocation5 + $0x2b70] sm:$0xff]
    %v1583 = vld [vmem:[#allocation5 + $0x2b78] sm:$0xff]
    %v1584 = vld [vmem:[#allocation5 + $0x2b80] sm:$0xff]
    %v1585 = vld [vmem:[#allocation5 + $0x2b88] sm:$0xff]
    %v1586 = vld [vmem:[#allocation5 + $0x2b90] sm:$0xff]
    %v1587 = vld [vmem:[#allocation5 + $0x2b98] sm:$0xff]
    %v1588 = vld [vmem:[#allocation5 + $0x2ba0] sm:$0xff]
    %v1589 = vld [vmem:[#allocation5 + $0x2ba8] sm:$0xff]
    %v1590 = vld [vmem:[#allocation5 + $0x2bb0] sm:$0xff]
    %v1591 = vld [vmem:[#allocation5 + $0x2bb8] sm:$0xff]
    %v1592 = vld [vmem:[#allocation5 + $0x2bc0] sm:$0xff]
    %v1593 = vld [vmem:[#allocation5 + $0x2bc8] sm:$0xff]
    %v1594 = vld [vmem:[#allocation5 + $0x2bd0] sm:$0xff]
    %v1595 = vld [vmem:[#allocation5 + $0x2bd8] sm:$0xff]
    %v1596 = vld [vmem:[#allocation5 + $0x2be0] sm:$0xff]
    %v1597 = vld [vmem:[#allocation5 + $0x2be8] sm:$0xff]
    %v1598 = vld [vmem:[#allocation5 + $0x2bf0] sm:$0xff]
    %v1599 = vld [vmem:[#allocation5 + $0x2bf8] sm:$0xff]
    %v1600 = vld [vmem:[#allocation5 + $0x2c00] sm:$0xff]
    %v1601 = vld [vmem:[#allocation5 + $0x2c08] sm:$0xff]
    %v1602 = vld [vmem:[#allocation5 + $0x2c10] sm:$0xff]
    %v1603 = vld [vmem:[#allocation5 + $0x2c18] sm:$0xff]
    %v1604 = vld [vmem:[#allocation5 + $0x2c20] sm:$0xff]
    %v1605 = vld [vmem:[#allocation5 + $0x2c28] sm:$0xff]
    %v1606 = vld [vmem:[#allocation5 + $0x2c30] sm:$0xff]
    %v1607 = vld [vmem:[#allocation5 + $0x2c38] sm:$0xff]
    %v1608 = vld [vmem:[#allocation5 + $0x2c40] sm:$0xff]
    %v1609 = vld [vmem:[#allocation5 + $0x2c48] sm:$0xff]
    %v1610 = vld [vmem:[#allocation5 + $0x2c50] sm:$0xff]
    %v1611 = vld [vmem:[#allocation5 + $0x2c58] sm:$0xff]
    %v1612 = vld [vmem:[#allocation5 + $0x2c60] sm:$0xff]
    %v1613 = vld [vmem:[#allocation5 + $0x2c68] sm:$0xff]
    %v1614 = vld [vmem:[#allocation5 + $0x2c70] sm:$0xff]
    %v1615 = vld [vmem:[#allocation5 + $0x2c78] sm:$0xff]
    %v1616 = vld [vmem:[#allocation5 + $0x2c80] sm:$0xff]
    %v1617 = vld [vmem:[#allocation5 + $0x2c88] sm:$0xff]
    %v1618 = vld [vmem:[#allocation5 + $0x2c90] sm:$0xff]
    %v1619 = vld [vmem:[#allocation5 + $0x2c98] sm:$0xff]
    %v1620 = vld [vmem:[#allocation5 + $0x2ca0] sm:$0xff]
    %v1621 = vld [vmem:[#allocation5 + $0x2ca8] sm:$0xff]
    %v1622 = vld [vmem:[#allocation5 + $0x2cb0] sm:$0xff]
    %v1623 = vld [vmem:[#allocation5 + $0x2cb8] sm:$0xff]
    %v1624 = vld [vmem:[#allocation5 + $0x2cc0] sm:$0xff]
    %v1625 = vld [vmem:[#allocation5 + $0x2cc8] sm:$0xff]
    %v1626 = vld [vmem:[#allocation5 + $0x2cd0] sm:$0xff]
    %v1627 = vld [vmem:[#allocation5 + $0x2cd8] sm:$0xff]
    %v1628 = vld [vmem:[#allocation5 + $0x2ce0] sm:$0xff]
    %v1629 = vld [vmem:[#allocation5 + $0x2ce8] sm:$0xff]
    %v1630 = vld [vmem:[#allocation5 + $0x2cf0] sm:$0xff]
    %v1631 = vld [vmem:[#allocation5 + $0x2cf8] sm:$0xff]
    %v1632 = vld [vmem:[#allocation5 + $0x2d00] sm:$0xff]
    %v1633 = vld [vmem:[#allocation5 + $0x2d08] sm:$0xff]
    %v1634 = vld [vmem:[#allocation5 + $0x2d10] sm:$0xff]
    %v1635 = vld [vmem:[#allocation5 + $0x2d18] sm:$0xff]
    %v1636 = vld [vmem:[#allocation5 + $0x2d20] sm:$0xff]
    %v1637 = vld [vmem:[#allocation5 + $0x2d28] sm:$0xff]
    %v1638 = vld [vmem:[#allocation5 + $0x2d30] sm:$0xff]
    %v1639 = vld [vmem:[#allocation5 + $0x2d38] sm:$0xff]
    %v1640 = vld [vmem:[#allocation5 + $0x2d40] sm:$0xff]
    %v1641 = vld [vmem:[#allocation5 + $0x2d48] sm:$0xff]
    %v1642 = vld [vmem:[#allocation5 + $0x2d50] sm:$0xff]
    %v1643 = vld [vmem:[#allocation5 + $0x2d58] sm:$0xff]
    %v1644 = vld [vmem:[#allocation5 + $0x2d60] sm:$0xff]
    %v1645 = vld [vmem:[#allocation5 + $0x2d68] sm:$0xff]
    %v1646 = vld [vmem:[#allocation5 + $0x2d70] sm:$0xff]
    %v1647 = vld [vmem:[#allocation5 + $0x2d78] sm:$0xff]
    %v1648 = vld [vmem:[#allocation5 + $0x2d80] sm:$0xff]
    %v1649 = vld [vmem:[#allocation5 + $0x2d88] sm:$0xff]
    %v1650 = vld [vmem:[#allocation5 + $0x2d90] sm:$0xff]
    %v1651 = vld [vmem:[#allocation5 + $0x2d98] sm:$0xff]
    %v1652 = vld [vmem:[#allocation5 + $0x2da0] sm:$0xff]
    %v1653 = vld [vmem:[#allocation5 + $0x2da8] sm:$0xff]
    %v1654 = vld [vmem:[#allocation5 + $0x2db0] sm:$0xff]
    %v1655 = vld [vmem:[#allocation5 + $0x2db8] sm:$0xff]
    %v1656 = vld [vmem:[#allocation5 + $0x2dc0] sm:$0xff]
    %v1657 = vld [vmem:[#allocation5 + $0x2dc8] sm:$0xff]
    %v1658 = vld [vmem:[#allocation5 + $0x2dd0] sm:$0xff]
    %v1659 = vld [vmem:[#allocation5 + $0x2dd8] sm:$0xff]
    %v1660 = vld [vmem:[#allocation5 + $0x2de0] sm:$0xff]
    %v1661 = vld [vmem:[#allocation5 + $0x2de8] sm:$0xff]
    %v1662 = vld [vmem:[#allocation5 + $0x2df0] sm:$0xff]
    %v1663 = vld [vmem:[#allocation5 + $0x2df8] sm:$0xff]
    %v1664 = vld [vmem:[#allocation5 + $0x2e00] sm:$0xff]
    %v1665 = vld [vmem:[#allocation5 + $0x2e08] sm:$0xff]
    %v1666 = vld [vmem:[#allocation5 + $0x2e10] sm:$0xff]
    %v1667 = vld [vmem:[#allocation5 + $0x2e18] sm:$0xff]
    %v1668 = vld [vmem:[#allocation5 + $0x2e20] sm:$0xff]
    %v1669 = vld [vmem:[#allocation5 + $0x2e28] sm:$0xff]
    %v1670 = vld [vmem:[#allocation5 + $0x2e30] sm:$0xff]
    %v1671 = vld [vmem:[#allocation5 + $0x2e38] sm:$0xff]
    %v1672 = vld [vmem:[#allocation5 + $0x2e40] sm:$0xff]
    %v1673 = vld [vmem:[#allocation5 + $0x2e48] sm:$0xff]
    %v1674 = vld [vmem:[#allocation5 + $0x2e50] sm:$0xff]
    %v1675 = vld [vmem:[#allocation5 + $0x2e58] sm:$0xff]
    %v1676 = vld [vmem:[#allocation5 + $0x2e60] sm:$0xff]
    %v1677 = vld [vmem:[#allocation5 + $0x2e68] sm:$0xff]
    %v1678 = vld [vmem:[#allocation5 + $0x2e70] sm:$0xff]
    %v1679 = vld [vmem:[#allocation5 + $0x2e78] sm:$0xff]
    %v1680 = vld [vmem:[#allocation5 + $0x2e80] sm:$0xff]
    %v1681 = vld [vmem:[#allocation5 + $0x2e88] sm:$0xff]
    %v1682 = vld [vmem:[#allocation5 + $0x2e90] sm:$0xff]
    %v1683 = vld [vmem:[#allocation5 + $0x2e98] sm:$0xff]
    %v1684 = vld [vmem:[#allocation5 + $0x2ea0] sm:$0xff]
    %v1685 = vld [vmem:[#allocation5 + $0x2ea8] sm:$0xff]
    %v1686 = vld [vmem:[#allocation5 + $0x2eb0] sm:$0xff]
    %v1687 = vld [vmem:[#allocation5 + $0x2eb8] sm:$0xff]
    %v1688 = vld [vmem:[#allocation5 + $0x2ec0] sm:$0xff]
    %v1689 = vld [vmem:[#allocation5 + $0x2ec8] sm:$0xff]
    %v1690 = vld [vmem:[#allocation5 + $0x2ed0] sm:$0xff]
    %v1691 = vld [vmem:[#allocation5 + $0x2ed8] sm:$0xff]
    %v1692 = vld [vmem:[#allocation5 + $0x2ee0] sm:$0xff]
    %v1693 = vld [vmem:[#allocation5 + $0x2ee8] sm:$0xff]
    %v1694 = vld [vmem:[#allocation5 + $0x2ef0] sm:$0xff]
    %v1695 = vld [vmem:[#allocation5 + $0x2ef8] sm:$0xff]
    %v1696 = vld [vmem:[#allocation5 + $0x2f00] sm:$0xff]
    %v1697 = vld [vmem:[#allocation5 + $0x2f08] sm:$0xff]
    %v1698 = vld [vmem:[#allocation5 + $0x2f10] sm:$0xff]
    %v1699 = vld [vmem:[#allocation5 + $0x2f18] sm:$0xff]
    %v1700 = vld [vmem:[#allocation5 + $0x2f20] sm:$0xff]
    %v1701 = vld [vmem:[#allocation5 + $0x2f28] sm:$0xff]
    %v1702 = vld [vmem:[#allocation5 + $0x2f30] sm:$0xff]
    %v1703 = vld [vmem:[#allocation5 + $0x2f38] sm:$0xff]
    %v1704 = vld [vmem:[#allocation5 + $0x2f40] sm:$0xff]
    %v1705 = vld [vmem:[#allocation5 + $0x2f48] sm:$0xff]
    %v1706 = vld [vmem:[#allocation5 + $0x2f50] sm:$0xff]
    %v1707 = vld [vmem:[#allocation5 + $0x2f58] sm:$0xff]
    %v1708 = vld [vmem:[#allocation5 + $0x2f60] sm:$0xff]
    %v1709 = vld [vmem:[#allocation5 + $0x2f68] sm:$0xff]
    %v1710 = vld [vmem:[#allocation5 + $0x2f70] sm:$0xff]
    %v1711 = vld [vmem:[#allocation5 + $0x2f78] sm:$0xff]
    %v1712 = vld [vmem:[#allocation5 + $0x2f80] sm:$0xff]
    %v1713 = vld [vmem:[#allocation5 + $0x2f88] sm:$0xff]
    %v1714 = vld [vmem:[#allocation5 + $0x2f90] sm:$0xff]
    %v1715 = vld [vmem:[#allocation5 + $0x2f98] sm:$0xff]
    %v1716 = vld [vmem:[#allocation5 + $0x2fa0] sm:$0xff]
    %v1717 = vld [vmem:[#allocation5 + $0x2fa8] sm:$0xff]
    %v1718 = vld [vmem:[#allocation5 + $0x2fb0] sm:$0xff]
    %v1719 = vld [vmem:[#allocation5 + $0x2fb8] sm:$0xff]
    %v1720 = vld [vmem:[#allocation5 + $0x2fc0] sm:$0xff]
    %v1721 = vld [vmem:[#allocation5 + $0x2fc8] sm:$0xff]
    %v1722 = vld [vmem:[#allocation5 + $0x2fd0] sm:$0xff]
    %v1723 = vld [vmem:[#allocation5 + $0x2fd8] sm:$0xff]
    %v1724 = vld [vmem:[#allocation5 + $0x2fe0] sm:$0xff]
    %v1725 = vld [vmem:[#allocation5 + $0x2fe8] sm:$0xff]
    %v1726 = vld [vmem:[#allocation5 + $0x2ff0] sm:$0xff]
    %v1727 = vld [vmem:[#allocation5 + $0x2ff8] sm:$0xff]
    %v1728 = vld [vmem:[#allocation7] sm:$0xff]
    %v1730 = vlaneseq
    %v1731 = vshrl.u32 %v1730, 7
    %v1732 = vsub.s32 0, %v1731
    %v1733 = vrot.slane %v1728, %v1732
    %v1734 = vlaneseq
    %v1735 = vshrl.u32 %v1734, 7
    %v1736 = vsub.s32 1, %v1735
    %v1737 = vrot.slane %v1728, %v1736
    %v1738 = vlaneseq
    %v1739 = vshrl.u32 %v1738, 7
    %v1740 = vsub.s32 2, %v1739
    %v1741 = vrot.slane %v1728, %v1740
    %v1742 = vlaneseq
    %v1743 = vshrl.u32 %v1742, 7
    %v1744 = vsub.s32 3, %v1743
    %v1745 = vrot.slane %v1728, %v1744
    %v1746 = vlaneseq
    %v1747 = vshrl.u32 %v1746, 7
    %v1748 = vsub.s32 4, %v1747
    %v1749 = vrot.slane %v1728, %v1748
    %v1750 = vlaneseq
    %v1751 = vshrl.u32 %v1750, 7
    %v1752 = vsub.s32 5, %v1751
    %v1753 = vrot.slane %v1728, %v1752
    %v1754 = vlaneseq
    %v1755 = vshrl.u32 %v1754, 7
    %v1756 = vsub.s32 6, %v1755
    %v1757 = vrot.slane %v1728, %v1756
    %v1758 = vlaneseq
    %v1759 = vshrl.u32 %v1758, 7
    %v1760 = vsub.s32 7, %v1759
    %v1761 = vrot.slane %v1728, %v1760
    %v1782 = vunpack.c.l.b16 %v180
    %v1783 = vunpack.c.h.b16 %v180
    %v1784 = vunpack.c.l.b16 %v181
    %v1785 = vunpack.c.h.b16 %v181
    %v1786 = vunpack.c.l.b16 %v182
    %v1787 = vunpack.c.h.b16 %v182
    %v1788 = vunpack.c.l.b16 %v183
    %v1789 = vunpack.c.h.b16 %v183
    %v1790 = vunpack.c.l.b16 %v184
    %v1791 = vunpack.c.h.b16 %v184
    %v1792 = vunpack.c.l.b16 %v185
    %v1793 = vunpack.c.h.b16 %v185
    %v1794 = vunpack.c.l.b16 %v186
    %v1795 = vunpack.c.h.b16 %v186
    %v1796 = vunpack.c.l.b16 %v187
    %v1797 = vunpack.c.h.b16 %v187
    %v1798 = vunpack.c.l.b16 %v188
    %v1799 = vunpack.c.h.b16 %v188
    %v1800 = vunpack.c.l.b16 %v189
    %v1801 = vunpack.c.h.b16 %v189
    %v1802 = vunpack.c.l.b16 %v190
    %v1803 = vunpack.c.h.b16 %v190
    %v1804 = vunpack.c.l.b16 %v191
    %v1805 = vunpack.c.h.b16 %v191
    %v1806 = vpack.c.b16 %v1782, %v1782
    %v1807 = vpack.c.b16 %v1783, %v1783
    %v1808 = vpack.c.b16 %v1784, %v1784
    %v1809 = vpack.c.b16 %v1785, %v1785
    %v1810 = vpack.c.b16 %v1786, %v1786
    %v1811 = vpack.c.b16 %v1787, %v1787
    %v1812 = vpack.c.b16 %v1788, %v1788
    %v1813 = vpack.c.b16 %v1789, %v1789
    %v1814 = vpack.c.b16 %v1790, %v1790
    %v1815 = vpack.c.b16 %v1791, %v1791
    %v1816 = vpack.c.b16 %v1792, %v1792
    %v1817 = vpack.c.b16 %v1793, %v1793
    %v1818 = vpack.c.b16 %v1794, %v1794
    %v1819 = vpack.c.b16 %v1795, %v1795
    %v1820 = vpack.c.b16 %v1796, %v1796
    %v1821 = vpack.c.b16 %v1797, %v1797
    %v1822 = vpack.c.b16 %v1798, %v1798
    %v1823 = vpack.c.b16 %v1799, %v1799
    %v1824 = vpack.c.b16 %v1800, %v1800
    %v1825 = vpack.c.b16 %v1801, %v1801
    %v1826 = vpack.c.b16 %v1802, %v1802
    %v1827 = vpack.c.b16 %v1803, %v1803
    %v1828 = vpack.c.b16 %v1804, %v1804
    %v1829 = vpack.c.b16 %v1805, %v1805
    %v3390 = vunpack.c.l.b16 %v192
    %v3391 = vunpack.c.h.b16 %v192
    %v3392 = vunpack.c.l.b16 %v193
    %v3393 = vunpack.c.h.b16 %v193
    %v3394 = vunpack.c.l.b16 %v194
    %v3395 = vunpack.c.h.b16 %v194
    %v3396 = vunpack.c.l.b16 %v195
    %v3397 = vunpack.c.h.b16 %v195
    %v3398 = vunpack.c.l.b16 %v196
    %v3399 = vunpack.c.h.b16 %v196
    %v3400 = vunpack.c.l.b16 %v197
    %v3401 = vunpack.c.h.b16 %v197
    %v3402 = vunpack.c.l.b16 %v198
    %v3403 = vunpack.c.h.b16 %v198
    %v3404 = vunpack.c.l.b16 %v199
    %v3405 = vunpack.c.h.b16 %v199
    %v3406 = vunpack.c.l.b16 %v200
    %v3407 = vunpack.c.h.b16 %v200
    %v3408 = vunpack.c.l.b16 %v201
    %v3409 = vunpack.c.h.b16 %v201
    %v3410 = vunpack.c.l.b16 %v202
    %v3411 = vunpack.c.h.b16 %v202
    %v3412 = vunpack.c.l.b16 %v203
    %v3413 = vunpack.c.h.b16 %v203
    %v3414 = vunpack.c.l.b16 %v204
    %v3415 = vunpack.c.h.b16 %v204
    %v3416 = vunpack.c.l.b16 %v205
    %v3417 = vunpack.c.h.b16 %v205
    %v3418 = vunpack.c.l.b16 %v206
    %v3419 = vunpack.c.h.b16 %v206
    %v3420 = vunpack.c.l.b16 %v207
    %v3421 = vunpack.c.h.b16 %v207
    %v3422 = vunpack.c.l.b16 %v208
    %v3423 = vunpack.c.h.b16 %v208
    %v3424 = vunpack.c.l.b16 %v209
    %v3425 = vunpack.c.h.b16 %v209
    %v3426 = vunpack.c.l.b16 %v210
    %v3427 = vunpack.c.h.b16 %v210
    %v3428 = vunpack.c.l.b16 %v211
    %v3429 = vunpack.c.h.b16 %v211
    %v3430 = vunpack.c.l.b16 %v212
    %v3431 = vunpack.c.h.b16 %v212
    %v3432 = vunpack.c.l.b16 %v213
    %v3433 = vunpack.c.h.b16 %v213
    %v3434 = vunpack.c.l.b16 %v214
    %v3435 = vunpack.c.h.b16 %v214
    %v3436 = vunpack.c.l.b16 %v215
    %v3437 = vunpack.c.h.b16 %v215
    %v3438 = vunpack.c.l.b16 %v216
    %v3439 = vunpack.c.h.b16 %v216
    %v3440 = vunpack.c.l.b16 %v217
    %v3441 = vunpack.c.h.b16 %v217
    %v3442 = vunpack.c.l.b16 %v218
    %v3443 = vunpack.c.h.b16 %v218
    %v3444 = vunpack.c.l.b16 %v219
    %v3445 = vunpack.c.h.b16 %v219
    %v3446 = vunpack.c.l.b16 %v220
    %v3447 = vunpack.c.h.b16 %v220
    %v3448 = vunpack.c.l.b16 %v221
    %v3449 = vunpack.c.h.b16 %v221
    %v3450 = vunpack.c.l.b16 %v222
    %v3451 = vunpack.c.h.b16 %v222
    %v3452 = vunpack.c.l.b16 %v223
    %v3453 = vunpack.c.h.b16 %v223
    %v3454 = vunpack.c.l.b16 %v224
    %v3455 = vunpack.c.h.b16 %v224
    %v3456 = vunpack.c.l.b16 %v225
    %v3457 = vunpack.c.h.b16 %v225
    %v3458 = vunpack.c.l.b16 %v226
    %v3459 = vunpack.c.h.b16 %v226
    %v3460 = vunpack.c.l.b16 %v227
    %v3461 = vunpack.c.h.b16 %v227
    %v3462 = vunpack.c.l.b16 %v228
    %v3463 = vunpack.c.h.b16 %v228
    %v3464 = vunpack.c.l.b16 %v229
    %v3465 = vunpack.c.h.b16 %v229
    %v3466 = vunpack.c.l.b16 %v230
    %v3467 = vunpack.c.h.b16 %v230
    %v3468 = vunpack.c.l.b16 %v231
    %v3469 = vunpack.c.h.b16 %v231
    %v3470 = vunpack.c.l.b16 %v232
    %v3471 = vunpack.c.h.b16 %v232
    %v3472 = vunpack.c.l.b16 %v233
    %v3473 = vunpack.c.h.b16 %v233
    %v3474 = vunpack.c.l.b16 %v234
    %v3475 = vunpack.c.h.b16 %v234
    %v3476 = vunpack.c.l.b16 %v235
    %v3477 = vunpack.c.h.b16 %v235
    %v3478 = vunpack.c.l.b16 %v236
    %v3479 = vunpack.c.h.b16 %v236
    %v3480 = vunpack.c.l.b16 %v237
    %v3481 = vunpack.c.h.b16 %v237
    %v3482 = vunpack.c.l.b16 %v238
    %v3483 = vunpack.c.h.b16 %v238
    %v3484 = vunpack.c.l.b16 %v239
    %v3485 = vunpack.c.h.b16 %v239
    %v3486 = vunpack.c.l.b16 %v240
    %v3487 = vunpack.c.h.b16 %v240
    %v3488 = vunpack.c.l.b16 %v241
    %v3489 = vunpack.c.h.b16 %v241
    %v3490 = vunpack.c.l.b16 %v242
    %v3491 = vunpack.c.h.b16 %v242
    %v3492 = vunpack.c.l.b16 %v243
    %v3493 = vunpack.c.h.b16 %v243
    %v3494 = vunpack.c.l.b16 %v244
    %v3495 = vunpack.c.h.b16 %v244
    %v3496 = vunpack.c.l.b16 %v245
    %v3497 = vunpack.c.h.b16 %v245
    %v3498 = vunpack.c.l.b16 %v246
    %v3499 = vunpack.c.h.b16 %v246
    %v3500 = vunpack.c.l.b16 %v247
    %v3501 = vunpack.c.h.b16 %v247
    %v3502 = vunpack.c.l.b16 %v248
    %v3503 = vunpack.c.h.b16 %v248
    %v3504 = vunpack.c.l.b16 %v249
    %v3505 = vunpack.c.h.b16 %v249
    %v3506 = vunpack.c.l.b16 %v250
    %v3507 = vunpack.c.h.b16 %v250
    %v3508 = vunpack.c.l.b16 %v251
    %v3509 = vunpack.c.h.b16 %v251
    %v3510 = vunpack.c.l.b16 %v252
    %v3511 = vunpack.c.h.b16 %v252
    %v3512 = vunpack.c.l.b16 %v253
    %v3513 = vunpack.c.h.b16 %v253
    %v3514 = vunpack.c.l.b16 %v254
    %v3515 = vunpack.c.h.b16 %v254
    %v3516 = vunpack.c.l.b16 %v255
    %v3517 = vunpack.c.h.b16 %v255
    %v3518 = vunpack.c.l.b16 %v256
    %v3519 = vunpack.c.h.b16 %v256
    %v3520 = vunpack.c.l.b16 %v257
    %v3521 = vunpack.c.h.b16 %v257
    %v3522 = vunpack.c.l.b16 %v258
    %v3523 = vunpack.c.h.b16 %v258
    %v3524 = vunpack.c.l.b16 %v259
    %v3525 = vunpack.c.h.b16 %v259
    %v3526 = vunpack.c.l.b16 %v260
    %v3527 = vunpack.c.h.b16 %v260
    %v3528 = vunpack.c.l.b16 %v261
    %v3529 = vunpack.c.h.b16 %v261
    %v3530 = vunpack.c.l.b16 %v262
    %v3531 = vunpack.c.h.b16 %v262
    %v3532 = vunpack.c.l.b16 %v263
    %v3533 = vunpack.c.h.b16 %v263
    %v3534 = vunpack.c.l.b16 %v264
    %v3535 = vunpack.c.h.b16 %v264
    %v3536 = vunpack.c.l.b16 %v265
    %v3537 = vunpack.c.h.b16 %v265
    %v3538 = vunpack.c.l.b16 %v266
    %v3539 = vunpack.c.h.b16 %v266
    %v3540 = vunpack.c.l.b16 %v267
    %v3541 = vunpack.c.h.b16 %v267
    %v3542 = vunpack.c.l.b16 %v268
    %v3543 = vunpack.c.h.b16 %v268
    %v3544 = vunpack.c.l.b16 %v269
    %v3545 = vunpack.c.h.b16 %v269
    %v3546 = vunpack.c.l.b16 %v270
    %v3547 = vunpack.c.h.b16 %v270
    %v3548 = vunpack.c.l.b16 %v271
    %v3549 = vunpack.c.h.b16 %v271
    %v3550 = vunpack.c.l.b16 %v272
    %v3551 = vunpack.c.h.b16 %v272
    %v3552 = vunpack.c.l.b16 %v273
    %v3553 = vunpack.c.h.b16 %v273
    %v3554 = vunpack.c.l.b16 %v274
    %v3555 = vunpack.c.h.b16 %v274
    %v3556 = vunpack.c.l.b16 %v275
    %v3557 = vunpack.c.h.b16 %v275
    %v3558 = vunpack.c.l.b16 %v276
    %v3559 = vunpack.c.h.b16 %v276
    %v3560 = vunpack.c.l.b16 %v277
    %v3561 = vunpack.c.h.b16 %v277
    %v3562 = vunpack.c.l.b16 %v278
    %v3563 = vunpack.c.h.b16 %v278
    %v3564 = vunpack.c.l.b16 %v279
    %v3565 = vunpack.c.h.b16 %v279
    %v3566 = vunpack.c.l.b16 %v280
    %v3567 = vunpack.c.h.b16 %v280
    %v3568 = vunpack.c.l.b16 %v281
    %v3569 = vunpack.c.h.b16 %v281
    %v3570 = vunpack.c.l.b16 %v282
    %v3571 = vunpack.c.h.b16 %v282
    %v3572 = vunpack.c.l.b16 %v283
    %v3573 = vunpack.c.h.b16 %v283
    %v3574 = vunpack.c.l.b16 %v284
    %v3575 = vunpack.c.h.b16 %v284
    %v3576 = vunpack.c.l.b16 %v285
    %v3577 = vunpack.c.h.b16 %v285
    %v3578 = vunpack.c.l.b16 %v286
    %v3579 = vunpack.c.h.b16 %v286
    %v3580 = vunpack.c.l.b16 %v287
    %v3581 = vunpack.c.h.b16 %v287
    %v3582 = vunpack.c.l.b16 %v288
    %v3583 = vunpack.c.h.b16 %v288
    %v3584 = vunpack.c.l.b16 %v289
    %v3585 = vunpack.c.h.b16 %v289
    %v3586 = vunpack.c.l.b16 %v290
    %v3587 = vunpack.c.h.b16 %v290
    %v3588 = vunpack.c.l.b16 %v291
    %v3589 = vunpack.c.h.b16 %v291
    %v3590 = vunpack.c.l.b16 %v292
    %v3591 = vunpack.c.h.b16 %v292
    %v3592 = vunpack.c.l.b16 %v293
    %v3593 = vunpack.c.h.b16 %v293
    %v3594 = vunpack.c.l.b16 %v294
    %v3595 = vunpack.c.h.b16 %v294
    %v3596 = vunpack.c.l.b16 %v295
    %v3597 = vunpack.c.h.b16 %v295
    %v3598 = vunpack.c.l.b16 %v296
    %v3599 = vunpack.c.h.b16 %v296
    %v3600 = vunpack.c.l.b16 %v297
    %v3601 = vunpack.c.h.b16 %v297
    %v3602 = vunpack.c.l.b16 %v298
    %v3603 = vunpack.c.h.b16 %v298
    %v3604 = vunpack.c.l.b16 %v299
    %v3605 = vunpack.c.h.b16 %v299
    %v3606 = vunpack.c.l.b16 %v300
    %v3607 = vunpack.c.h.b16 %v300
    %v3608 = vunpack.c.l.b16 %v301
    %v3609 = vunpack.c.h.b16 %v301
    %v3610 = vunpack.c.l.b16 %v302
    %v3611 = vunpack.c.h.b16 %v302
    %v3612 = vunpack.c.l.b16 %v303
    %v3613 = vunpack.c.h.b16 %v303
    %v3614 = vunpack.c.l.b16 %v304
    %v3615 = vunpack.c.h.b16 %v304
    %v3616 = vunpack.c.l.b16 %v305
    %v3617 = vunpack.c.h.b16 %v305
    %v3618 = vunpack.c.l.b16 %v306
    %v3619 = vunpack.c.h.b16 %v306
    %v3620 = vunpack.c.l.b16 %v307
    %v3621 = vunpack.c.h.b16 %v307
    %v3622 = vunpack.c.l.b16 %v308
    %v3623 = vunpack.c.h.b16 %v308
    %v3624 = vunpack.c.l.b16 %v309
    %v3625 = vunpack.c.h.b16 %v309
    %v3626 = vunpack.c.l.b16 %v310
    %v3627 = vunpack.c.h.b16 %v310
    %v3628 = vunpack.c.l.b16 %v311
    %v3629 = vunpack.c.h.b16 %v311
    %v3630 = vunpack.c.l.b16 %v312
    %v3631 = vunpack.c.h.b16 %v312
    %v3632 = vunpack.c.l.b16 %v313
    %v3633 = vunpack.c.h.b16 %v313
    %v3634 = vunpack.c.l.b16 %v314
    %v3635 = vunpack.c.h.b16 %v314
    %v3636 = vunpack.c.l.b16 %v315
    %v3637 = vunpack.c.h.b16 %v315
    %v3638 = vunpack.c.l.b16 %v316
    %v3639 = vunpack.c.h.b16 %v316
    %v3640 = vunpack.c.l.b16 %v317
    %v3641 = vunpack.c.h.b16 %v317
    %v3642 = vunpack.c.l.b16 %v318
    %v3643 = vunpack.c.h.b16 %v318
    %v3644 = vunpack.c.l.b16 %v319
    %v3645 = vunpack.c.h.b16 %v319
    %v3646 = vunpack.c.l.b16 %v320
    %v3647 = vunpack.c.h.b16 %v320
    %v3648 = vunpack.c.l.b16 %v321
    %v3649 = vunpack.c.h.b16 %v321
    %v3650 = vunpack.c.l.b16 %v322
    %v3651 = vunpack.c.h.b16 %v322
    %v3652 = vunpack.c.l.b16 %v323
    %v3653 = vunpack.c.h.b16 %v323
    %v3654 = vunpack.c.l.b16 %v324
    %v3655 = vunpack.c.h.b16 %v324
    %v3656 = vunpack.c.l.b16 %v325
    %v3657 = vunpack.c.h.b16 %v325
    %v3658 = vunpack.c.l.b16 %v326
    %v3659 = vunpack.c.h.b16 %v326
    %v3660 = vunpack.c.l.b16 %v327
    %v3661 = vunpack.c.h.b16 %v327
    %v3662 = vunpack.c.l.b16 %v328
    %v3663 = vunpack.c.h.b16 %v328
    %v3664 = vunpack.c.l.b16 %v329
    %v3665 = vunpack.c.h.b16 %v329
    %v3666 = vunpack.c.l.b16 %v330
    %v3667 = vunpack.c.h.b16 %v330
    %v3668 = vunpack.c.l.b16 %v331
    %v3669 = vunpack.c.h.b16 %v331
    %v3670 = vunpack.c.l.b16 %v332
    %v3671 = vunpack.c.h.b16 %v332
    %v3672 = vunpack.c.l.b16 %v333
    %v3673 = vunpack.c.h.b16 %v333
    %v3674 = vunpack.c.l.b16 %v334
    %v3675 = vunpack.c.h.b16 %v334
    %v3676 = vunpack.c.l.b16 %v335
    %v3677 = vunpack.c.h.b16 %v335
    %v3678 = vunpack.c.l.b16 %v336
    %v3679 = vunpack.c.h.b16 %v336
    %v3680 = vunpack.c.l.b16 %v337
    %v3681 = vunpack.c.h.b16 %v337
    %v3682 = vunpack.c.l.b16 %v338
    %v3683 = vunpack.c.h.b16 %v338
    %v3684 = vunpack.c.l.b16 %v339
    %v3685 = vunpack.c.h.b16 %v339
    %v3686 = vunpack.c.l.b16 %v340
    %v3687 = vunpack.c.h.b16 %v340
    %v3688 = vunpack.c.l.b16 %v341
    %v3689 = vunpack.c.h.b16 %v341
    %v3690 = vunpack.c.l.b16 %v342
    %v3691 = vunpack.c.h.b16 %v342
    %v3692 = vunpack.c.l.b16 %v343
    %v3693 = vunpack.c.h.b16 %v343
    %v3694 = vunpack.c.l.b16 %v344
    %v3695 = vunpack.c.h.b16 %v344
    %v3696 = vunpack.c.l.b16 %v345
    %v3697 = vunpack.c.h.b16 %v345
    %v3698 = vunpack.c.l.b16 %v346
    %v3699 = vunpack.c.h.b16 %v346
    %v3700 = vunpack.c.l.b16 %v347
    %v3701 = vunpack.c.h.b16 %v347
    %v3702 = vunpack.c.l.b16 %v348
    %v3703 = vunpack.c.h.b16 %v348
    %v3704 = vunpack.c.l.b16 %v349
    %v3705 = vunpack.c.h.b16 %v349
    %v3706 = vunpack.c.l.b16 %v350
    %v3707 = vunpack.c.h.b16 %v350
    %v3708 = vunpack.c.l.b16 %v351
    %v3709 = vunpack.c.h.b16 %v351
    %v3710 = vunpack.c.l.b16 %v352
    %v3711 = vunpack.c.h.b16 %v352
    %v3712 = vunpack.c.l.b16 %v353
    %v3713 = vunpack.c.h.b16 %v353
    %v3714 = vunpack.c.l.b16 %v354
    %v3715 = vunpack.c.h.b16 %v354
    %v3716 = vunpack.c.l.b16 %v355
    %v3717 = vunpack.c.h.b16 %v355
    %v3718 = vunpack.c.l.b16 %v356
    %v3719 = vunpack.c.h.b16 %v356
    %v3720 = vunpack.c.l.b16 %v357
    %v3721 = vunpack.c.h.b16 %v357
    %v3722 = vunpack.c.l.b16 %v358
    %v3723 = vunpack.c.h.b16 %v358
    %v3724 = vunpack.c.l.b16 %v359
    %v3725 = vunpack.c.h.b16 %v359
    %v3726 = vunpack.c.l.b16 %v360
    %v3727 = vunpack.c.h.b16 %v360
    %v3728 = vunpack.c.l.b16 %v361
    %v3729 = vunpack.c.h.b16 %v361
    %v3730 = vunpack.c.l.b16 %v362
    %v3731 = vunpack.c.h.b16 %v362
    %v3732 = vunpack.c.l.b16 %v363
    %v3733 = vunpack.c.h.b16 %v363
    %v3734 = vunpack.c.l.b16 %v364
    %v3735 = vunpack.c.h.b16 %v364
    %v3736 = vunpack.c.l.b16 %v365
    %v3737 = vunpack.c.h.b16 %v365
    %v3738 = vunpack.c.l.b16 %v366
    %v3739 = vunpack.c.h.b16 %v366
    %v3740 = vunpack.c.l.b16 %v367
    %v3741 = vunpack.c.h.b16 %v367
    %v3742 = vunpack.c.l.b16 %v368
    %v3743 = vunpack.c.h.b16 %v368
    %v3744 = vunpack.c.l.b16 %v369
    %v3745 = vunpack.c.h.b16 %v369
    %v3746 = vunpack.c.l.b16 %v370
    %v3747 = vunpack.c.h.b16 %v370
    %v3748 = vunpack.c.l.b16 %v371
    %v3749 = vunpack.c.h.b16 %v371
    %v3750 = vunpack.c.l.b16 %v372
    %v3751 = vunpack.c.h.b16 %v372
    %v3752 = vunpack.c.l.b16 %v373
    %v3753 = vunpack.c.h.b16 %v373
    %v3754 = vunpack.c.l.b16 %v374
    %v3755 = vunpack.c.h.b16 %v374
    %v3756 = vunpack.c.l.b16 %v375
    %v3757 = vunpack.c.h.b16 %v375
    %v3758 = vunpack.c.l.b16 %v376
    %v3759 = vunpack.c.h.b16 %v376
    %v3760 = vunpack.c.l.b16 %v377
    %v3761 = vunpack.c.h.b16 %v377
    %v3762 = vunpack.c.l.b16 %v378
    %v3763 = vunpack.c.h.b16 %v378
    %v3764 = vunpack.c.l.b16 %v379
    %v3765 = vunpack.c.h.b16 %v379
    %v3766 = vunpack.c.l.b16 %v380
    %v3767 = vunpack.c.h.b16 %v380
    %v3768 = vunpack.c.l.b16 %v381
    %v3769 = vunpack.c.h.b16 %v381
    %v3770 = vunpack.c.l.b16 %v382
    %v3771 = vunpack.c.h.b16 %v382
    %v3772 = vunpack.c.l.b16 %v383
    %v3773 = vunpack.c.h.b16 %v383
    %v3774 = vunpack.c.l.b16 %v384
    %v3775 = vunpack.c.h.b16 %v384
    %v3776 = vunpack.c.l.b16 %v385
    %v3777 = vunpack.c.h.b16 %v385
    %v3778 = vunpack.c.l.b16 %v386
    %v3779 = vunpack.c.h.b16 %v386
    %v3780 = vunpack.c.l.b16 %v387
    %v3781 = vunpack.c.h.b16 %v387
    %v3782 = vunpack.c.l.b16 %v388
    %v3783 = vunpack.c.h.b16 %v388
    %v3784 = vunpack.c.l.b16 %v389
    %v3785 = vunpack.c.h.b16 %v389
    %v3786 = vunpack.c.l.b16 %v390
    %v3787 = vunpack.c.h.b16 %v390
    %v3788 = vunpack.c.l.b16 %v391
    %v3789 = vunpack.c.h.b16 %v391
    %v3790 = vunpack.c.l.b16 %v392
    %v3791 = vunpack.c.h.b16 %v392
    %v3792 = vunpack.c.l.b16 %v393
    %v3793 = vunpack.c.h.b16 %v393
    %v3794 = vunpack.c.l.b16 %v394
    %v3795 = vunpack.c.h.b16 %v394
    %v3796 = vunpack.c.l.b16 %v395
    %v3797 = vunpack.c.h.b16 %v395
    %v3798 = vunpack.c.l.b16 %v396
    %v3799 = vunpack.c.h.b16 %v396
    %v3800 = vunpack.c.l.b16 %v397
    %v3801 = vunpack.c.h.b16 %v397
    %v3802 = vunpack.c.l.b16 %v398
    %v3803 = vunpack.c.h.b16 %v398
    %v3804 = vunpack.c.l.b16 %v399
    %v3805 = vunpack.c.h.b16 %v399
    %v3806 = vunpack.c.l.b16 %v400
    %v3807 = vunpack.c.h.b16 %v400
    %v3808 = vunpack.c.l.b16 %v401
    %v3809 = vunpack.c.h.b16 %v401
    %v3810 = vunpack.c.l.b16 %v402
    %v3811 = vunpack.c.h.b16 %v402
    %v3812 = vunpack.c.l.b16 %v403
    %v3813 = vunpack.c.h.b16 %v403
    %v3814 = vunpack.c.l.b16 %v404
    %v3815 = vunpack.c.h.b16 %v404
    %v3816 = vunpack.c.l.b16 %v405
    %v3817 = vunpack.c.h.b16 %v405
    %v3818 = vunpack.c.l.b16 %v406
    %v3819 = vunpack.c.h.b16 %v406
    %v3820 = vunpack.c.l.b16 %v407
    %v3821 = vunpack.c.h.b16 %v407
    %v3822 = vunpack.c.l.b16 %v408
    %v3823 = vunpack.c.h.b16 %v408
    %v3824 = vunpack.c.l.b16 %v409
    %v3825 = vunpack.c.h.b16 %v409
    %v3826 = vunpack.c.l.b16 %v410
    %v3827 = vunpack.c.h.b16 %v410
    %v3828 = vunpack.c.l.b16 %v411
    %v3829 = vunpack.c.h.b16 %v411
    %v3830 = vunpack.c.l.b16 %v412
    %v3831 = vunpack.c.h.b16 %v412
    %v3832 = vunpack.c.l.b16 %v413
    %v3833 = vunpack.c.h.b16 %v413
    %v3834 = vunpack.c.l.b16 %v414
    %v3835 = vunpack.c.h.b16 %v414
    %v3836 = vunpack.c.l.b16 %v415
    %v3837 = vunpack.c.h.b16 %v415
    %v3838 = vunpack.c.l.b16 %v416
    %v3839 = vunpack.c.h.b16 %v416
    %v3840 = vunpack.c.l.b16 %v417
    %v3841 = vunpack.c.h.b16 %v417
    %v3842 = vunpack.c.l.b16 %v418
    %v3843 = vunpack.c.h.b16 %v418
    %v3844 = vunpack.c.l.b16 %v419
    %v3845 = vunpack.c.h.b16 %v419
    %v3846 = vunpack.c.l.b16 %v420
    %v3847 = vunpack.c.h.b16 %v420
    %v3848 = vunpack.c.l.b16 %v421
    %v3849 = vunpack.c.h.b16 %v421
    %v3850 = vunpack.c.l.b16 %v422
    %v3851 = vunpack.c.h.b16 %v422
    %v3852 = vunpack.c.l.b16 %v423
    %v3853 = vunpack.c.h.b16 %v423
    %v3854 = vunpack.c.l.b16 %v424
    %v3855 = vunpack.c.h.b16 %v424
    %v3856 = vunpack.c.l.b16 %v425
    %v3857 = vunpack.c.h.b16 %v425
    %v3858 = vunpack.c.l.b16 %v426
    %v3859 = vunpack.c.h.b16 %v426
    %v3860 = vunpack.c.l.b16 %v427
    %v3861 = vunpack.c.h.b16 %v427
    %v3862 = vunpack.c.l.b16 %v428
    %v3863 = vunpack.c.h.b16 %v428
    %v3864 = vunpack.c.l.b16 %v429
    %v3865 = vunpack.c.h.b16 %v429
    %v3866 = vunpack.c.l.b16 %v430
    %v3867 = vunpack.c.h.b16 %v430
    %v3868 = vunpack.c.l.b16 %v431
    %v3869 = vunpack.c.h.b16 %v431
    %v3870 = vunpack.c.l.b16 %v432
    %v3871 = vunpack.c.h.b16 %v432
    %v3872 = vunpack.c.l.b16 %v433
    %v3873 = vunpack.c.h.b16 %v433
    %v3874 = vunpack.c.l.b16 %v434
    %v3875 = vunpack.c.h.b16 %v434
    %v3876 = vunpack.c.l.b16 %v435
    %v3877 = vunpack.c.h.b16 %v435
    %v3878 = vunpack.c.l.b16 %v436
    %v3879 = vunpack.c.h.b16 %v436
    %v3880 = vunpack.c.l.b16 %v437
    %v3881 = vunpack.c.h.b16 %v437
    %v3882 = vunpack.c.l.b16 %v438
    %v3883 = vunpack.c.h.b16 %v438
    %v3884 = vunpack.c.l.b16 %v439
    %v3885 = vunpack.c.h.b16 %v439
    %v3886 = vunpack.c.l.b16 %v440
    %v3887 = vunpack.c.h.b16 %v440
    %v3888 = vunpack.c.l.b16 %v441
    %v3889 = vunpack.c.h.b16 %v441
    %v3890 = vunpack.c.l.b16 %v442
    %v3891 = vunpack.c.h.b16 %v442
    %v3892 = vunpack.c.l.b16 %v443
    %v3893 = vunpack.c.h.b16 %v443
    %v3894 = vunpack.c.l.b16 %v444
    %v3895 = vunpack.c.h.b16 %v444
    %v3896 = vunpack.c.l.b16 %v445
    %v3897 = vunpack.c.h.b16 %v445
    %v3898 = vunpack.c.l.b16 %v446
    %v3899 = vunpack.c.h.b16 %v446
    %v3900 = vunpack.c.l.b16 %v447
    %v3901 = vunpack.c.h.b16 %v447
    %v3902 = vunpack.c.l.b16 %v448
    %v3903 = vunpack.c.h.b16 %v448
    %v3904 = vunpack.c.l.b16 %v449
    %v3905 = vunpack.c.h.b16 %v449
    %v3906 = vunpack.c.l.b16 %v450
    %v3907 = vunpack.c.h.b16 %v450
    %v3908 = vunpack.c.l.b16 %v451
    %v3909 = vunpack.c.h.b16 %v451
    %v3910 = vunpack.c.l.b16 %v452
    %v3911 = vunpack.c.h.b16 %v452
    %v3912 = vunpack.c.l.b16 %v453
    %v3913 = vunpack.c.h.b16 %v453
    %v3914 = vunpack.c.l.b16 %v454
    %v3915 = vunpack.c.h.b16 %v454
    %v3916 = vunpack.c.l.b16 %v455
    %v3917 = vunpack.c.h.b16 %v455
    %v3918 = vunpack.c.l.b16 %v456
    %v3919 = vunpack.c.h.b16 %v456
    %v3920 = vunpack.c.l.b16 %v457
    %v3921 = vunpack.c.h.b16 %v457
    %v3922 = vunpack.c.l.b16 %v458
    %v3923 = vunpack.c.h.b16 %v458
    %v3924 = vunpack.c.l.b16 %v459
    %v3925 = vunpack.c.h.b16 %v459
    %v3926 = vunpack.c.l.b16 %v460
    %v3927 = vunpack.c.h.b16 %v460
    %v3928 = vunpack.c.l.b16 %v461
    %v3929 = vunpack.c.h.b16 %v461
    %v3930 = vunpack.c.l.b16 %v462
    %v3931 = vunpack.c.h.b16 %v462
    %v3932 = vunpack.c.l.b16 %v463
    %v3933 = vunpack.c.h.b16 %v463
    %v3934 = vunpack.c.l.b16 %v464
    %v3935 = vunpack.c.h.b16 %v464
    %v3936 = vunpack.c.l.b16 %v465
    %v3937 = vunpack.c.h.b16 %v465
    %v3938 = vunpack.c.l.b16 %v466
    %v3939 = vunpack.c.h.b16 %v466
    %v3940 = vunpack.c.l.b16 %v467
    %v3941 = vunpack.c.h.b16 %v467
    %v3942 = vunpack.c.l.b16 %v468
    %v3943 = vunpack.c.h.b16 %v468
    %v3944 = vunpack.c.l.b16 %v469
    %v3945 = vunpack.c.h.b16 %v469
    %v3946 = vunpack.c.l.b16 %v470
    %v3947 = vunpack.c.h.b16 %v470
    %v3948 = vunpack.c.l.b16 %v471
    %v3949 = vunpack.c.h.b16 %v471
    %v3950 = vunpack.c.l.b16 %v472
    %v3951 = vunpack.c.h.b16 %v472
    %v3952 = vunpack.c.l.b16 %v473
    %v3953 = vunpack.c.h.b16 %v473
    %v3954 = vunpack.c.l.b16 %v474
    %v3955 = vunpack.c.h.b16 %v474
    %v3956 = vunpack.c.l.b16 %v475
    %v3957 = vunpack.c.h.b16 %v475
    %v3958 = vunpack.c.l.b16 %v476
    %v3959 = vunpack.c.h.b16 %v476
    %v3960 = vunpack.c.l.b16 %v477
    %v3961 = vunpack.c.h.b16 %v477
    %v3962 = vunpack.c.l.b16 %v478
    %v3963 = vunpack.c.h.b16 %v478
    %v3964 = vunpack.c.l.b16 %v479
    %v3965 = vunpack.c.h.b16 %v479
    %v3966 = vunpack.c.l.b16 %v480
    %v3967 = vunpack.c.h.b16 %v480
    %v3968 = vunpack.c.l.b16 %v481
    %v3969 = vunpack.c.h.b16 %v481
    %v3970 = vunpack.c.l.b16 %v482
    %v3971 = vunpack.c.h.b16 %v482
    %v3972 = vunpack.c.l.b16 %v483
    %v3973 = vunpack.c.h.b16 %v483
    %v3974 = vunpack.c.l.b16 %v484
    %v3975 = vunpack.c.h.b16 %v484
    %v3976 = vunpack.c.l.b16 %v485
    %v3977 = vunpack.c.h.b16 %v485
    %v3978 = vunpack.c.l.b16 %v486
    %v3979 = vunpack.c.h.b16 %v486
    %v3980 = vunpack.c.l.b16 %v487
    %v3981 = vunpack.c.h.b16 %v487
    %v3982 = vunpack.c.l.b16 %v488
    %v3983 = vunpack.c.h.b16 %v488
    %v3984 = vunpack.c.l.b16 %v489
    %v3985 = vunpack.c.h.b16 %v489
    %v3986 = vunpack.c.l.b16 %v490
    %v3987 = vunpack.c.h.b16 %v490
    %v3988 = vunpack.c.l.b16 %v491
    %v3989 = vunpack.c.h.b16 %v491
    %v3990 = vunpack.c.l.b16 %v492
    %v3991 = vunpack.c.h.b16 %v492
    %v3992 = vunpack.c.l.b16 %v493
    %v3993 = vunpack.c.h.b16 %v493
    %v3994 = vunpack.c.l.b16 %v494
    %v3995 = vunpack.c.h.b16 %v494
    %v3996 = vunpack.c.l.b16 %v495
    %v3997 = vunpack.c.h.b16 %v495
    %v3998 = vunpack.c.l.b16 %v496
    %v3999 = vunpack.c.h.b16 %v496
    %v4000 = vunpack.c.l.b16 %v497
    %v4001 = vunpack.c.h.b16 %v497
    %v4002 = vunpack.c.l.b16 %v498
    %v4003 = vunpack.c.h.b16 %v498
    %v4004 = vunpack.c.l.b16 %v499
    %v4005 = vunpack.c.h.b16 %v499
    %v4006 = vunpack.c.l.b16 %v500
    %v4007 = vunpack.c.h.b16 %v500
    %v4008 = vunpack.c.l.b16 %v501
    %v4009 = vunpack.c.h.b16 %v501
    %v4010 = vunpack.c.l.b16 %v502
    %v4011 = vunpack.c.h.b16 %v502
    %v4012 = vunpack.c.l.b16 %v503
    %v4013 = vunpack.c.h.b16 %v503
    %v4014 = vunpack.c.l.b16 %v504
    %v4015 = vunpack.c.h.b16 %v504
    %v4016 = vunpack.c.l.b16 %v505
    %v4017 = vunpack.c.h.b16 %v505
    %v4018 = vunpack.c.l.b16 %v506
    %v4019 = vunpack.c.h.b16 %v506
    %v4020 = vunpack.c.l.b16 %v507
    %v4021 = vunpack.c.h.b16 %v507
    %v4022 = vunpack.c.l.b16 %v508
    %v4023 = vunpack.c.h.b16 %v508
    %v4024 = vunpack.c.l.b16 %v509
    %v4025 = vunpack.c.h.b16 %v509
    %v4026 = vunpack.c.l.b16 %v510
    %v4027 = vunpack.c.h.b16 %v510
    %v4028 = vunpack.c.l.b16 %v511
    %v4029 = vunpack.c.h.b16 %v511
    %v4030 = vunpack.c.l.b16 %v512
    %v4031 = vunpack.c.h.b16 %v512
    %v4032 = vunpack.c.l.b16 %v513
    %v4033 = vunpack.c.h.b16 %v513
    %v4034 = vunpack.c.l.b16 %v514
    %v4035 = vunpack.c.h.b16 %v514
    %v4036 = vunpack.c.l.b16 %v515
    %v4037 = vunpack.c.h.b16 %v515
    %v4038 = vunpack.c.l.b16 %v516
    %v4039 = vunpack.c.h.b16 %v516
    %v4040 = vunpack.c.l.b16 %v517
    %v4041 = vunpack.c.h.b16 %v517
    %v4042 = vunpack.c.l.b16 %v518
    %v4043 = vunpack.c.h.b16 %v518
    %v4044 = vunpack.c.l.b16 %v519
    %v4045 = vunpack.c.h.b16 %v519
    %v4046 = vunpack.c.l.b16 %v520
    %v4047 = vunpack.c.h.b16 %v520
    %v4048 = vunpack.c.l.b16 %v521
    %v4049 = vunpack.c.h.b16 %v521
    %v4050 = vunpack.c.l.b16 %v522
    %v4051 = vunpack.c.h.b16 %v522
    %v4052 = vunpack.c.l.b16 %v523
    %v4053 = vunpack.c.h.b16 %v523
    %v4054 = vunpack.c.l.b16 %v524
    %v4055 = vunpack.c.h.b16 %v524
    %v4056 = vunpack.c.l.b16 %v525
    %v4057 = vunpack.c.h.b16 %v525
    %v4058 = vunpack.c.l.b16 %v526
    %v4059 = vunpack.c.h.b16 %v526
    %v4060 = vunpack.c.l.b16 %v527
    %v4061 = vunpack.c.h.b16 %v527
    %v4062 = vunpack.c.l.b16 %v528
    %v4063 = vunpack.c.h.b16 %v528
    %v4064 = vunpack.c.l.b16 %v529
    %v4065 = vunpack.c.h.b16 %v529
    %v4066 = vunpack.c.l.b16 %v530
    %v4067 = vunpack.c.h.b16 %v530
    %v4068 = vunpack.c.l.b16 %v531
    %v4069 = vunpack.c.h.b16 %v531
    %v4070 = vunpack.c.l.b16 %v532
    %v4071 = vunpack.c.h.b16 %v532
    %v4072 = vunpack.c.l.b16 %v533
    %v4073 = vunpack.c.h.b16 %v533
    %v4074 = vunpack.c.l.b16 %v534
    %v4075 = vunpack.c.h.b16 %v534
    %v4076 = vunpack.c.l.b16 %v535
    %v4077 = vunpack.c.h.b16 %v535
    %v4078 = vunpack.c.l.b16 %v536
    %v4079 = vunpack.c.h.b16 %v536
    %v4080 = vunpack.c.l.b16 %v537
    %v4081 = vunpack.c.h.b16 %v537
    %v4082 = vunpack.c.l.b16 %v538
    %v4083 = vunpack.c.h.b16 %v538
    %v4084 = vunpack.c.l.b16 %v539
    %v4085 = vunpack.c.h.b16 %v539
    %v4086 = vunpack.c.l.b16 %v540
    %v4087 = vunpack.c.h.b16 %v540
    %v4088 = vunpack.c.l.b16 %v541
    %v4089 = vunpack.c.h.b16 %v541
    %v4090 = vunpack.c.l.b16 %v542
    %v4091 = vunpack.c.h.b16 %v542
    %v4092 = vunpack.c.l.b16 %v543
    %v4093 = vunpack.c.h.b16 %v543
    %v4094 = vunpack.c.l.b16 %v544
    %v4095 = vunpack.c.h.b16 %v544
    %v4096 = vunpack.c.l.b16 %v545
    %v4097 = vunpack.c.h.b16 %v545
    %v4098 = vunpack.c.l.b16 %v546
    %v4099 = vunpack.c.h.b16 %v546
    %v4100 = vunpack.c.l.b16 %v547
    %v4101 = vunpack.c.h.b16 %v547
    %v4102 = vunpack.c.l.b16 %v548
    %v4103 = vunpack.c.h.b16 %v548
    %v4104 = vunpack.c.l.b16 %v549
    %v4105 = vunpack.c.h.b16 %v549
    %v4106 = vunpack.c.l.b16 %v550
    %v4107 = vunpack.c.h.b16 %v550
    %v4108 = vunpack.c.l.b16 %v551
    %v4109 = vunpack.c.h.b16 %v551
    %v4110 = vunpack.c.l.b16 %v552
    %v4111 = vunpack.c.h.b16 %v552
    %v4112 = vunpack.c.l.b16 %v553
    %v4113 = vunpack.c.h.b16 %v553
    %v4114 = vunpack.c.l.b16 %v554
    %v4115 = vunpack.c.h.b16 %v554
    %v4116 = vunpack.c.l.b16 %v555
    %v4117 = vunpack.c.h.b16 %v555
    %v4118 = vunpack.c.l.b16 %v556
    %v4119 = vunpack.c.h.b16 %v556
    %v4120 = vunpack.c.l.b16 %v557
    %v4121 = vunpack.c.h.b16 %v557
    %v4122 = vunpack.c.l.b16 %v558
    %v4123 = vunpack.c.h.b16 %v558
    %v4124 = vunpack.c.l.b16 %v559
    %v4125 = vunpack.c.h.b16 %v559
    %v4126 = vunpack.c.l.b16 %v560
    %v4127 = vunpack.c.h.b16 %v560
    %v4128 = vunpack.c.l.b16 %v561
    %v4129 = vunpack.c.h.b16 %v561
    %v4130 = vunpack.c.l.b16 %v562
    %v4131 = vunpack.c.h.b16 %v562
    %v4132 = vunpack.c.l.b16 %v563
    %v4133 = vunpack.c.h.b16 %v563
    %v4134 = vunpack.c.l.b16 %v564
    %v4135 = vunpack.c.h.b16 %v564
    %v4136 = vunpack.c.l.b16 %v565
    %v4137 = vunpack.c.h.b16 %v565
    %v4138 = vunpack.c.l.b16 %v566
    %v4139 = vunpack.c.h.b16 %v566
    %v4140 = vunpack.c.l.b16 %v567
    %v4141 = vunpack.c.h.b16 %v567
    %v4142 = vunpack.c.l.b16 %v568
    %v4143 = vunpack.c.h.b16 %v568
    %v4144 = vunpack.c.l.b16 %v569
    %v4145 = vunpack.c.h.b16 %v569
    %v4146 = vunpack.c.l.b16 %v570
    %v4147 = vunpack.c.h.b16 %v570
    %v4148 = vunpack.c.l.b16 %v571
    %v4149 = vunpack.c.h.b16 %v571
    %v4150 = vunpack.c.l.b16 %v572
    %v4151 = vunpack.c.h.b16 %v572
    %v4152 = vunpack.c.l.b16 %v573
    %v4153 = vunpack.c.h.b16 %v573
    %v4154 = vunpack.c.l.b16 %v574
    %v4155 = vunpack.c.h.b16 %v574
    %v4156 = vunpack.c.l.b16 %v575
    %v4157 = vunpack.c.h.b16 %v575
    %v4158 = vunpack.c.l.b16 %v576
    %v4159 = vunpack.c.h.b16 %v576
    %v4160 = vunpack.c.l.b16 %v577
    %v4161 = vunpack.c.h.b16 %v577
    %v4162 = vunpack.c.l.b16 %v578
    %v4163 = vunpack.c.h.b16 %v578
    %v4164 = vunpack.c.l.b16 %v579
    %v4165 = vunpack.c.h.b16 %v579
    %v4166 = vunpack.c.l.b16 %v580
    %v4167 = vunpack.c.h.b16 %v580
    %v4168 = vunpack.c.l.b16 %v581
    %v4169 = vunpack.c.h.b16 %v581
    %v4170 = vunpack.c.l.b16 %v582
    %v4171 = vunpack.c.h.b16 %v582
    %v4172 = vunpack.c.l.b16 %v583
    %v4173 = vunpack.c.h.b16 %v583
    %v4174 = vunpack.c.l.b16 %v584
    %v4175 = vunpack.c.h.b16 %v584
    %v4176 = vunpack.c.l.b16 %v585
    %v4177 = vunpack.c.h.b16 %v585
    %v4178 = vunpack.c.l.b16 %v586
    %v4179 = vunpack.c.h.b16 %v586
    %v4180 = vunpack.c.l.b16 %v587
    %v4181 = vunpack.c.h.b16 %v587
    %v4182 = vunpack.c.l.b16 %v588
    %v4183 = vunpack.c.h.b16 %v588
    %v4184 = vunpack.c.l.b16 %v589
    %v4185 = vunpack.c.h.b16 %v589
    %v4186 = vunpack.c.l.b16 %v590
    %v4187 = vunpack.c.h.b16 %v590
    %v4188 = vunpack.c.l.b16 %v591
    %v4189 = vunpack.c.h.b16 %v591
    %v4190 = vunpack.c.l.b16 %v592
    %v4191 = vunpack.c.h.b16 %v592
    %v4192 = vunpack.c.l.b16 %v593
    %v4193 = vunpack.c.h.b16 %v593
    %v4194 = vunpack.c.l.b16 %v594
    %v4195 = vunpack.c.h.b16 %v594
    %v4196 = vunpack.c.l.b16 %v595
    %v4197 = vunpack.c.h.b16 %v595
    %v4198 = vunpack.c.l.b16 %v596
    %v4199 = vunpack.c.h.b16 %v596
    %v4200 = vunpack.c.l.b16 %v597
    %v4201 = vunpack.c.h.b16 %v597
    %v4202 = vunpack.c.l.b16 %v598
    %v4203 = vunpack.c.h.b16 %v598
    %v4204 = vunpack.c.l.b16 %v599
    %v4205 = vunpack.c.h.b16 %v599
    %v4206 = vunpack.c.l.b16 %v600
    %v4207 = vunpack.c.h.b16 %v600
    %v4208 = vunpack.c.l.b16 %v601
    %v4209 = vunpack.c.h.b16 %v601
    %v4210 = vunpack.c.l.b16 %v602
    %v4211 = vunpack.c.h.b16 %v602
    %v4212 = vunpack.c.l.b16 %v603
    %v4213 = vunpack.c.h.b16 %v603
    %v4214 = vunpack.c.l.b16 %v604
    %v4215 = vunpack.c.h.b16 %v604
    %v4216 = vunpack.c.l.b16 %v605
    %v4217 = vunpack.c.h.b16 %v605
    %v4218 = vunpack.c.l.b16 %v606
    %v4219 = vunpack.c.h.b16 %v606
    %v4220 = vunpack.c.l.b16 %v607
    %v4221 = vunpack.c.h.b16 %v607
    %v4222 = vunpack.c.l.b16 %v608
    %v4223 = vunpack.c.h.b16 %v608
    %v4224 = vunpack.c.l.b16 %v609
    %v4225 = vunpack.c.h.b16 %v609
    %v4226 = vunpack.c.l.b16 %v610
    %v4227 = vunpack.c.h.b16 %v610
    %v4228 = vunpack.c.l.b16 %v611
    %v4229 = vunpack.c.h.b16 %v611
    %v4230 = vunpack.c.l.b16 %v612
    %v4231 = vunpack.c.h.b16 %v612
    %v4232 = vunpack.c.l.b16 %v613
    %v4233 = vunpack.c.h.b16 %v613
    %v4234 = vunpack.c.l.b16 %v614
    %v4235 = vunpack.c.h.b16 %v614
    %v4236 = vunpack.c.l.b16 %v615
    %v4237 = vunpack.c.h.b16 %v615
    %v4238 = vunpack.c.l.b16 %v616
    %v4239 = vunpack.c.h.b16 %v616
    %v4240 = vunpack.c.l.b16 %v617
    %v4241 = vunpack.c.h.b16 %v617
    %v4242 = vunpack.c.l.b16 %v618
    %v4243 = vunpack.c.h.b16 %v618
    %v4244 = vunpack.c.l.b16 %v619
    %v4245 = vunpack.c.h.b16 %v619
    %v4246 = vunpack.c.l.b16 %v620
    %v4247 = vunpack.c.h.b16 %v620
    %v4248 = vunpack.c.l.b16 %v621
    %v4249 = vunpack.c.h.b16 %v621
    %v4250 = vunpack.c.l.b16 %v622
    %v4251 = vunpack.c.h.b16 %v622
    %v4252 = vunpack.c.l.b16 %v623
    %v4253 = vunpack.c.h.b16 %v623
    %v4254 = vunpack.c.l.b16 %v624
    %v4255 = vunpack.c.h.b16 %v624
    %v4256 = vunpack.c.l.b16 %v625
    %v4257 = vunpack.c.h.b16 %v625
    %v4258 = vunpack.c.l.b16 %v626
    %v4259 = vunpack.c.h.b16 %v626
    %v4260 = vunpack.c.l.b16 %v627
    %v4261 = vunpack.c.h.b16 %v627
    %v4262 = vunpack.c.l.b16 %v628
    %v4263 = vunpack.c.h.b16 %v628
    %v4264 = vunpack.c.l.b16 %v629
    %v4265 = vunpack.c.h.b16 %v629
    %v4266 = vunpack.c.l.b16 %v630
    %v4267 = vunpack.c.h.b16 %v630
    %v4268 = vunpack.c.l.b16 %v631
    %v4269 = vunpack.c.h.b16 %v631
    %v4270 = vunpack.c.l.b16 %v632
    %v4271 = vunpack.c.h.b16 %v632
    %v4272 = vunpack.c.l.b16 %v633
    %v4273 = vunpack.c.h.b16 %v633
    %v4274 = vunpack.c.l.b16 %v634
    %v4275 = vunpack.c.h.b16 %v634
    %v4276 = vunpack.c.l.b16 %v635
    %v4277 = vunpack.c.h.b16 %v635
    %v4278 = vunpack.c.l.b16 %v636
    %v4279 = vunpack.c.h.b16 %v636
    %v4280 = vunpack.c.l.b16 %v637
    %v4281 = vunpack.c.h.b16 %v637
    %v4282 = vunpack.c.l.b16 %v638
    %v4283 = vunpack.c.h.b16 %v638
    %v4284 = vunpack.c.l.b16 %v639
    %v4285 = vunpack.c.h.b16 %v639
    %v4286 = vunpack.c.l.b16 %v640
    %v4287 = vunpack.c.h.b16 %v640
    %v4288 = vunpack.c.l.b16 %v641
    %v4289 = vunpack.c.h.b16 %v641
    %v4290 = vunpack.c.l.b16 %v642
    %v4291 = vunpack.c.h.b16 %v642
    %v4292 = vunpack.c.l.b16 %v643
    %v4293 = vunpack.c.h.b16 %v643
    %v4294 = vunpack.c.l.b16 %v644
    %v4295 = vunpack.c.h.b16 %v644
    %v4296 = vunpack.c.l.b16 %v645
    %v4297 = vunpack.c.h.b16 %v645
    %v4298 = vunpack.c.l.b16 %v646
    %v4299 = vunpack.c.h.b16 %v646
    %v4300 = vunpack.c.l.b16 %v647
    %v4301 = vunpack.c.h.b16 %v647
    %v4302 = vunpack.c.l.b16 %v648
    %v4303 = vunpack.c.h.b16 %v648
    %v4304 = vunpack.c.l.b16 %v649
    %v4305 = vunpack.c.h.b16 %v649
    %v4306 = vunpack.c.l.b16 %v650
    %v4307 = vunpack.c.h.b16 %v650
    %v4308 = vunpack.c.l.b16 %v651
    %v4309 = vunpack.c.h.b16 %v651
    %v4310 = vunpack.c.l.b16 %v652
    %v4311 = vunpack.c.h.b16 %v652
    %v4312 = vunpack.c.l.b16 %v653
    %v4313 = vunpack.c.h.b16 %v653
    %v4314 = vunpack.c.l.b16 %v654
    %v4315 = vunpack.c.h.b16 %v654
    %v4316 = vunpack.c.l.b16 %v655
    %v4317 = vunpack.c.h.b16 %v655
    %v4318 = vunpack.c.l.b16 %v656
    %v4319 = vunpack.c.h.b16 %v656
    %v4320 = vunpack.c.l.b16 %v657
    %v4321 = vunpack.c.h.b16 %v657
    %v4322 = vunpack.c.l.b16 %v658
    %v4323 = vunpack.c.h.b16 %v658
    %v4324 = vunpack.c.l.b16 %v659
    %v4325 = vunpack.c.h.b16 %v659
    %v4326 = vunpack.c.l.b16 %v660
    %v4327 = vunpack.c.h.b16 %v660
    %v4328 = vunpack.c.l.b16 %v661
    %v4329 = vunpack.c.h.b16 %v661
    %v4330 = vunpack.c.l.b16 %v662
    %v4331 = vunpack.c.h.b16 %v662
    %v4332 = vunpack.c.l.b16 %v663
    %v4333 = vunpack.c.h.b16 %v663
    %v4334 = vunpack.c.l.b16 %v664
    %v4335 = vunpack.c.h.b16 %v664
    %v4336 = vunpack.c.l.b16 %v665
    %v4337 = vunpack.c.h.b16 %v665
    %v4338 = vunpack.c.l.b16 %v666
    %v4339 = vunpack.c.h.b16 %v666
    %v4340 = vunpack.c.l.b16 %v667
    %v4341 = vunpack.c.h.b16 %v667
    %v4342 = vunpack.c.l.b16 %v668
    %v4343 = vunpack.c.h.b16 %v668
    %v4344 = vunpack.c.l.b16 %v669
    %v4345 = vunpack.c.h.b16 %v669
    %v4346 = vunpack.c.l.b16 %v670
    %v4347 = vunpack.c.h.b16 %v670
    %v4348 = vunpack.c.l.b16 %v671
    %v4349 = vunpack.c.h.b16 %v671
    %v4350 = vunpack.c.l.b16 %v672
    %v4351 = vunpack.c.h.b16 %v672
    %v4352 = vunpack.c.l.b16 %v673
    %v4353 = vunpack.c.h.b16 %v673
    %v4354 = vunpack.c.l.b16 %v674
    %v4355 = vunpack.c.h.b16 %v674
    %v4356 = vunpack.c.l.b16 %v675
    %v4357 = vunpack.c.h.b16 %v675
    %v4358 = vunpack.c.l.b16 %v676
    %v4359 = vunpack.c.h.b16 %v676
    %v4360 = vunpack.c.l.b16 %v677
    %v4361 = vunpack.c.h.b16 %v677
    %v4362 = vunpack.c.l.b16 %v678
    %v4363 = vunpack.c.h.b16 %v678
    %v4364 = vunpack.c.l.b16 %v679
    %v4365 = vunpack.c.h.b16 %v679
    %v4366 = vunpack.c.l.b16 %v680
    %v4367 = vunpack.c.h.b16 %v680
    %v4368 = vunpack.c.l.b16 %v681
    %v4369 = vunpack.c.h.b16 %v681
    %v4370 = vunpack.c.l.b16 %v682
    %v4371 = vunpack.c.h.b16 %v682
    %v4372 = vunpack.c.l.b16 %v683
    %v4373 = vunpack.c.h.b16 %v683
    %v4374 = vunpack.c.l.b16 %v684
    %v4375 = vunpack.c.h.b16 %v684
    %v4376 = vunpack.c.l.b16 %v685
    %v4377 = vunpack.c.h.b16 %v685
    %v4378 = vunpack.c.l.b16 %v686
    %v4379 = vunpack.c.h.b16 %v686
    %v4380 = vunpack.c.l.b16 %v687
    %v4381 = vunpack.c.h.b16 %v687
    %v4382 = vunpack.c.l.b16 %v688
    %v4383 = vunpack.c.h.b16 %v688
    %v4384 = vunpack.c.l.b16 %v689
    %v4385 = vunpack.c.h.b16 %v689
    %v4386 = vunpack.c.l.b16 %v690
    %v4387 = vunpack.c.h.b16 %v690
    %v4388 = vunpack.c.l.b16 %v691
    %v4389 = vunpack.c.h.b16 %v691
    %v4390 = vunpack.c.l.b16 %v692
    %v4391 = vunpack.c.h.b16 %v692
    %v4392 = vunpack.c.l.b16 %v693
    %v4393 = vunpack.c.h.b16 %v693
    %v4394 = vunpack.c.l.b16 %v694
    %v4395 = vunpack.c.h.b16 %v694
    %v4396 = vunpack.c.l.b16 %v695
    %v4397 = vunpack.c.h.b16 %v695
    %v4398 = vunpack.c.l.b16 %v696
    %v4399 = vunpack.c.h.b16 %v696
    %v4400 = vunpack.c.l.b16 %v697
    %v4401 = vunpack.c.h.b16 %v697
    %v4402 = vunpack.c.l.b16 %v698
    %v4403 = vunpack.c.h.b16 %v698
    %v4404 = vunpack.c.l.b16 %v699
    %v4405 = vunpack.c.h.b16 %v699
    %v4406 = vunpack.c.l.b16 %v700
    %v4407 = vunpack.c.h.b16 %v700
    %v4408 = vunpack.c.l.b16 %v701
    %v4409 = vunpack.c.h.b16 %v701
    %v4410 = vunpack.c.l.b16 %v702
    %v4411 = vunpack.c.h.b16 %v702
    %v4412 = vunpack.c.l.b16 %v703
    %v4413 = vunpack.c.h.b16 %v703
    %v4414 = vunpack.c.l.b16 %v704
    %v4415 = vunpack.c.h.b16 %v704
    %v4416 = vunpack.c.l.b16 %v705
    %v4417 = vunpack.c.h.b16 %v705
    %v4418 = vunpack.c.l.b16 %v706
    %v4419 = vunpack.c.h.b16 %v706
    %v4420 = vunpack.c.l.b16 %v707
    %v4421 = vunpack.c.h.b16 %v707
    %v4422 = vunpack.c.l.b16 %v708
    %v4423 = vunpack.c.h.b16 %v708
    %v4424 = vunpack.c.l.b16 %v709
    %v4425 = vunpack.c.h.b16 %v709
    %v4426 = vunpack.c.l.b16 %v710
    %v4427 = vunpack.c.h.b16 %v710
    %v4428 = vunpack.c.l.b16 %v711
    %v4429 = vunpack.c.h.b16 %v711
    %v4430 = vunpack.c.l.b16 %v712
    %v4431 = vunpack.c.h.b16 %v712
    %v4432 = vunpack.c.l.b16 %v713
    %v4433 = vunpack.c.h.b16 %v713
    %v4434 = vunpack.c.l.b16 %v714
    %v4435 = vunpack.c.h.b16 %v714
    %v4436 = vunpack.c.l.b16 %v715
    %v4437 = vunpack.c.h.b16 %v715
    %v4438 = vunpack.c.l.b16 %v716
    %v4439 = vunpack.c.h.b16 %v716
    %v4440 = vunpack.c.l.b16 %v717
    %v4441 = vunpack.c.h.b16 %v717
    %v4442 = vunpack.c.l.b16 %v718
    %v4443 = vunpack.c.h.b16 %v718
    %v4444 = vunpack.c.l.b16 %v719
    %v4445 = vunpack.c.h.b16 %v719
    %v4446 = vunpack.c.l.b16 %v720
    %v4447 = vunpack.c.h.b16 %v720
    %v4448 = vunpack.c.l.b16 %v721
    %v4449 = vunpack.c.h.b16 %v721
    %v4450 = vunpack.c.l.b16 %v722
    %v4451 = vunpack.c.h.b16 %v722
    %v4452 = vunpack.c.l.b16 %v723
    %v4453 = vunpack.c.h.b16 %v723
    %v4454 = vunpack.c.l.b16 %v724
    %v4455 = vunpack.c.h.b16 %v724
    %v4456 = vunpack.c.l.b16 %v725
    %v4457 = vunpack.c.h.b16 %v725
    %v4458 = vunpack.c.l.b16 %v726
    %v4459 = vunpack.c.h.b16 %v726
    %v4460 = vunpack.c.l.b16 %v727
    %v4461 = vunpack.c.h.b16 %v727
    %v4462 = vunpack.c.l.b16 %v728
    %v4463 = vunpack.c.h.b16 %v728
    %v4464 = vunpack.c.l.b16 %v729
    %v4465 = vunpack.c.h.b16 %v729
    %v4466 = vunpack.c.l.b16 %v730
    %v4467 = vunpack.c.h.b16 %v730
    %v4468 = vunpack.c.l.b16 %v731
    %v4469 = vunpack.c.h.b16 %v731
    %v4470 = vunpack.c.l.b16 %v732
    %v4471 = vunpack.c.h.b16 %v732
    %v4472 = vunpack.c.l.b16 %v733
    %v4473 = vunpack.c.h.b16 %v733
    %v4474 = vunpack.c.l.b16 %v734
    %v4475 = vunpack.c.h.b16 %v734
    %v4476 = vunpack.c.l.b16 %v735
    %v4477 = vunpack.c.h.b16 %v735
    %v4478 = vunpack.c.l.b16 %v736
    %v4479 = vunpack.c.h.b16 %v736
    %v4480 = vunpack.c.l.b16 %v737
    %v4481 = vunpack.c.h.b16 %v737
    %v4482 = vunpack.c.l.b16 %v738
    %v4483 = vunpack.c.h.b16 %v738
    %v4484 = vunpack.c.l.b16 %v739
    %v4485 = vunpack.c.h.b16 %v739
    %v4486 = vunpack.c.l.b16 %v740
    %v4487 = vunpack.c.h.b16 %v740
    %v4488 = vunpack.c.l.b16 %v741
    %v4489 = vunpack.c.h.b16 %v741
    %v4490 = vunpack.c.l.b16 %v742
    %v4491 = vunpack.c.h.b16 %v742
    %v4492 = vunpack.c.l.b16 %v743
    %v4493 = vunpack.c.h.b16 %v743
    %v4494 = vunpack.c.l.b16 %v744
    %v4495 = vunpack.c.h.b16 %v744
    %v4496 = vunpack.c.l.b16 %v745
    %v4497 = vunpack.c.h.b16 %v745
    %v4498 = vunpack.c.l.b16 %v746
    %v4499 = vunpack.c.h.b16 %v746
    %v4500 = vunpack.c.l.b16 %v747
    %v4501 = vunpack.c.h.b16 %v747
    %v4502 = vunpack.c.l.b16 %v748
    %v4503 = vunpack.c.h.b16 %v748
    %v4504 = vunpack.c.l.b16 %v749
    %v4505 = vunpack.c.h.b16 %v749
    %v4506 = vunpack.c.l.b16 %v750
    %v4507 = vunpack.c.h.b16 %v750
    %v4508 = vunpack.c.l.b16 %v751
    %v4509 = vunpack.c.h.b16 %v751
    %v4510 = vunpack.c.l.b16 %v752
    %v4511 = vunpack.c.h.b16 %v752
    %v4512 = vunpack.c.l.b16 %v753
    %v4513 = vunpack.c.h.b16 %v753
    %v4514 = vunpack.c.l.b16 %v754
    %v4515 = vunpack.c.h.b16 %v754
    %v4516 = vunpack.c.l.b16 %v755
    %v4517 = vunpack.c.h.b16 %v755
    %v4518 = vunpack.c.l.b16 %v756
    %v4519 = vunpack.c.h.b16 %v756
    %v4520 = vunpack.c.l.b16 %v757
    %v4521 = vunpack.c.h.b16 %v757
    %v4522 = vunpack.c.l.b16 %v758
    %v4523 = vunpack.c.h.b16 %v758
    %v4524 = vunpack.c.l.b16 %v759
    %v4525 = vunpack.c.h.b16 %v759
    %v4526 = vunpack.c.l.b16 %v760
    %v4527 = vunpack.c.h.b16 %v760
    %v4528 = vunpack.c.l.b16 %v761
    %v4529 = vunpack.c.h.b16 %v761
    %v4530 = vunpack.c.l.b16 %v762
    %v4531 = vunpack.c.h.b16 %v762
    %v4532 = vunpack.c.l.b16 %v763
    %v4533 = vunpack.c.h.b16 %v763
    %v4534 = vunpack.c.l.b16 %v764
    %v4535 = vunpack.c.h.b16 %v764
    %v4536 = vunpack.c.l.b16 %v765
    %v4537 = vunpack.c.h.b16 %v765
    %v4538 = vunpack.c.l.b16 %v766
    %v4539 = vunpack.c.h.b16 %v766
    %v4540 = vunpack.c.l.b16 %v767
    %v4541 = vunpack.c.h.b16 %v767
    %v4542 = vunpack.c.l.b16 %v768
    %v4543 = vunpack.c.h.b16 %v768
    %v4544 = vunpack.c.l.b16 %v769
    %v4545 = vunpack.c.h.b16 %v769
    %v4546 = vunpack.c.l.b16 %v770
    %v4547 = vunpack.c.h.b16 %v770
    %v4548 = vunpack.c.l.b16 %v771
    %v4549 = vunpack.c.h.b16 %v771
    %v4550 = vunpack.c.l.b16 %v772
    %v4551 = vunpack.c.h.b16 %v772
    %v4552 = vunpack.c.l.b16 %v773
    %v4553 = vunpack.c.h.b16 %v773
    %v4554 = vunpack.c.l.b16 %v774
    %v4555 = vunpack.c.h.b16 %v774
    %v4556 = vunpack.c.l.b16 %v775
    %v4557 = vunpack.c.h.b16 %v775
    %v4558 = vunpack.c.l.b16 %v776
    %v4559 = vunpack.c.h.b16 %v776
    %v4560 = vunpack.c.l.b16 %v777
    %v4561 = vunpack.c.h.b16 %v777
    %v4562 = vunpack.c.l.b16 %v778
    %v4563 = vunpack.c.h.b16 %v778
    %v4564 = vunpack.c.l.b16 %v779
    %v4565 = vunpack.c.h.b16 %v779
    %v4566 = vunpack.c.l.b16 %v780
    %v4567 = vunpack.c.h.b16 %v780
    %v4568 = vunpack.c.l.b16 %v781
    %v4569 = vunpack.c.h.b16 %v781
    %v4570 = vunpack.c.l.b16 %v782
    %v4571 = vunpack.c.h.b16 %v782
    %v4572 = vunpack.c.l.b16 %v783
    %v4573 = vunpack.c.h.b16 %v783
    %v4574 = vunpack.c.l.b16 %v784
    %v4575 = vunpack.c.h.b16 %v784
    %v4576 = vunpack.c.l.b16 %v785
    %v4577 = vunpack.c.h.b16 %v785
    %v4578 = vunpack.c.l.b16 %v786
    %v4579 = vunpack.c.h.b16 %v786
    %v4580 = vunpack.c.l.b16 %v787
    %v4581 = vunpack.c.h.b16 %v787
    %v4582 = vunpack.c.l.b16 %v788
    %v4583 = vunpack.c.h.b16 %v788
    %v4584 = vunpack.c.l.b16 %v789
    %v4585 = vunpack.c.h.b16 %v789
    %v4586 = vunpack.c.l.b16 %v790
    %v4587 = vunpack.c.h.b16 %v790
    %v4588 = vunpack.c.l.b16 %v791
    %v4589 = vunpack.c.h.b16 %v791
    %v4590 = vunpack.c.l.b16 %v792
    %v4591 = vunpack.c.h.b16 %v792
    %v4592 = vunpack.c.l.b16 %v793
    %v4593 = vunpack.c.h.b16 %v793
    %v4594 = vunpack.c.l.b16 %v794
    %v4595 = vunpack.c.h.b16 %v794
    %v4596 = vunpack.c.l.b16 %v795
    %v4597 = vunpack.c.h.b16 %v795
    %v4598 = vunpack.c.l.b16 %v796
    %v4599 = vunpack.c.h.b16 %v796
    %v4600 = vunpack.c.l.b16 %v797
    %v4601 = vunpack.c.h.b16 %v797
    %v4602 = vunpack.c.l.b16 %v798
    %v4603 = vunpack.c.h.b16 %v798
    %v4604 = vunpack.c.l.b16 %v799
    %v4605 = vunpack.c.h.b16 %v799
    %v4606 = vunpack.c.l.b16 %v800
    %v4607 = vunpack.c.h.b16 %v800
    %v4608 = vunpack.c.l.b16 %v801
    %v4609 = vunpack.c.h.b16 %v801
    %v4610 = vunpack.c.l.b16 %v802
    %v4611 = vunpack.c.h.b16 %v802
    %v4612 = vunpack.c.l.b16 %v803
    %v4613 = vunpack.c.h.b16 %v803
    %v4614 = vunpack.c.l.b16 %v804
    %v4615 = vunpack.c.h.b16 %v804
    %v4616 = vunpack.c.l.b16 %v805
    %v4617 = vunpack.c.h.b16 %v805
    %v4618 = vunpack.c.l.b16 %v806
    %v4619 = vunpack.c.h.b16 %v806
    %v4620 = vunpack.c.l.b16 %v807
    %v4621 = vunpack.c.h.b16 %v807
    %v4622 = vunpack.c.l.b16 %v808
    %v4623 = vunpack.c.h.b16 %v808
    %v4624 = vunpack.c.l.b16 %v809
    %v4625 = vunpack.c.h.b16 %v809
    %v4626 = vunpack.c.l.b16 %v810
    %v4627 = vunpack.c.h.b16 %v810
    %v4628 = vunpack.c.l.b16 %v811
    %v4629 = vunpack.c.h.b16 %v811
    %v4630 = vunpack.c.l.b16 %v812
    %v4631 = vunpack.c.h.b16 %v812
    %v4632 = vunpack.c.l.b16 %v813
    %v4633 = vunpack.c.h.b16 %v813
    %v4634 = vunpack.c.l.b16 %v814
    %v4635 = vunpack.c.h.b16 %v814
    %v4636 = vunpack.c.l.b16 %v815
    %v4637 = vunpack.c.h.b16 %v815
    %v4638 = vunpack.c.l.b16 %v816
    %v4639 = vunpack.c.h.b16 %v816
    %v4640 = vunpack.c.l.b16 %v817
    %v4641 = vunpack.c.h.b16 %v817
    %v4642 = vunpack.c.l.b16 %v818
    %v4643 = vunpack.c.h.b16 %v818
    %v4644 = vunpack.c.l.b16 %v819
    %v4645 = vunpack.c.h.b16 %v819
    %v4646 = vunpack.c.l.b16 %v820
    %v4647 = vunpack.c.h.b16 %v820
    %v4648 = vunpack.c.l.b16 %v821
    %v4649 = vunpack.c.h.b16 %v821
    %v4650 = vunpack.c.l.b16 %v822
    %v4651 = vunpack.c.h.b16 %v822
    %v4652 = vunpack.c.l.b16 %v823
    %v4653 = vunpack.c.h.b16 %v823
    %v4654 = vunpack.c.l.b16 %v824
    %v4655 = vunpack.c.h.b16 %v824
    %v4656 = vunpack.c.l.b16 %v825
    %v4657 = vunpack.c.h.b16 %v825
    %v4658 = vunpack.c.l.b16 %v826
    %v4659 = vunpack.c.h.b16 %v826
    %v4660 = vunpack.c.l.b16 %v827
    %v4661 = vunpack.c.h.b16 %v827
    %v4662 = vunpack.c.l.b16 %v828
    %v4663 = vunpack.c.h.b16 %v828
    %v4664 = vunpack.c.l.b16 %v829
    %v4665 = vunpack.c.h.b16 %v829
    %v4666 = vunpack.c.l.b16 %v830
    %v4667 = vunpack.c.h.b16 %v830
    %v4668 = vunpack.c.l.b16 %v831
    %v4669 = vunpack.c.h.b16 %v831
    %v4670 = vunpack.c.l.b16 %v832
    %v4671 = vunpack.c.h.b16 %v832
    %v4672 = vunpack.c.l.b16 %v833
    %v4673 = vunpack.c.h.b16 %v833
    %v4674 = vunpack.c.l.b16 %v834
    %v4675 = vunpack.c.h.b16 %v834
    %v4676 = vunpack.c.l.b16 %v835
    %v4677 = vunpack.c.h.b16 %v835
    %v4678 = vunpack.c.l.b16 %v836
    %v4679 = vunpack.c.h.b16 %v836
    %v4680 = vunpack.c.l.b16 %v837
    %v4681 = vunpack.c.h.b16 %v837
    %v4682 = vunpack.c.l.b16 %v838
    %v4683 = vunpack.c.h.b16 %v838
    %v4684 = vunpack.c.l.b16 %v839
    %v4685 = vunpack.c.h.b16 %v839
    %v4686 = vunpack.c.l.b16 %v840
    %v4687 = vunpack.c.h.b16 %v840
    %v4688 = vunpack.c.l.b16 %v841
    %v4689 = vunpack.c.h.b16 %v841
    %v4690 = vunpack.c.l.b16 %v842
    %v4691 = vunpack.c.h.b16 %v842
    %v4692 = vunpack.c.l.b16 %v843
    %v4693 = vunpack.c.h.b16 %v843
    %v4694 = vunpack.c.l.b16 %v844
    %v4695 = vunpack.c.h.b16 %v844
    %v4696 = vunpack.c.l.b16 %v845
    %v4697 = vunpack.c.h.b16 %v845
    %v4698 = vunpack.c.l.b16 %v846
    %v4699 = vunpack.c.h.b16 %v846
    %v4700 = vunpack.c.l.b16 %v847
    %v4701 = vunpack.c.h.b16 %v847
    %v4702 = vunpack.c.l.b16 %v848
    %v4703 = vunpack.c.h.b16 %v848
    %v4704 = vunpack.c.l.b16 %v849
    %v4705 = vunpack.c.h.b16 %v849
    %v4706 = vunpack.c.l.b16 %v850
    %v4707 = vunpack.c.h.b16 %v850
    %v4708 = vunpack.c.l.b16 %v851
    %v4709 = vunpack.c.h.b16 %v851
    %v4710 = vunpack.c.l.b16 %v852
    %v4711 = vunpack.c.h.b16 %v852
    %v4712 = vunpack.c.l.b16 %v853
    %v4713 = vunpack.c.h.b16 %v853
    %v4714 = vunpack.c.l.b16 %v854
    %v4715 = vunpack.c.h.b16 %v854
    %v4716 = vunpack.c.l.b16 %v855
    %v4717 = vunpack.c.h.b16 %v855
    %v4718 = vunpack.c.l.b16 %v856
    %v4719 = vunpack.c.h.b16 %v856
    %v4720 = vunpack.c.l.b16 %v857
    %v4721 = vunpack.c.h.b16 %v857
    %v4722 = vunpack.c.l.b16 %v858
    %v4723 = vunpack.c.h.b16 %v858
    %v4724 = vunpack.c.l.b16 %v859
    %v4725 = vunpack.c.h.b16 %v859
    %v4726 = vunpack.c.l.b16 %v860
    %v4727 = vunpack.c.h.b16 %v860
    %v4728 = vunpack.c.l.b16 %v861
    %v4729 = vunpack.c.h.b16 %v861
    %v4730 = vunpack.c.l.b16 %v862
    %v4731 = vunpack.c.h.b16 %v862
    %v4732 = vunpack.c.l.b16 %v863
    %v4733 = vunpack.c.h.b16 %v863
    %v4734 = vunpack.c.l.b16 %v864
    %v4735 = vunpack.c.h.b16 %v864
    %v4736 = vunpack.c.l.b16 %v865
    %v4737 = vunpack.c.h.b16 %v865
    %v4738 = vunpack.c.l.b16 %v866
    %v4739 = vunpack.c.h.b16 %v866
    %v4740 = vunpack.c.l.b16 %v867
    %v4741 = vunpack.c.h.b16 %v867
    %v4742 = vunpack.c.l.b16 %v868
    %v4743 = vunpack.c.h.b16 %v868
    %v4744 = vunpack.c.l.b16 %v869
    %v4745 = vunpack.c.h.b16 %v869
    %v4746 = vunpack.c.l.b16 %v870
    %v4747 = vunpack.c.h.b16 %v870
    %v4748 = vunpack.c.l.b16 %v871
    %v4749 = vunpack.c.h.b16 %v871
    %v4750 = vunpack.c.l.b16 %v872
    %v4751 = vunpack.c.h.b16 %v872
    %v4752 = vunpack.c.l.b16 %v873
    %v4753 = vunpack.c.h.b16 %v873
    %v4754 = vunpack.c.l.b16 %v874
    %v4755 = vunpack.c.h.b16 %v874
    %v4756 = vunpack.c.l.b16 %v875
    %v4757 = vunpack.c.h.b16 %v875
    %v4758 = vunpack.c.l.b16 %v876
    %v4759 = vunpack.c.h.b16 %v876
    %v4760 = vunpack.c.l.b16 %v877
    %v4761 = vunpack.c.h.b16 %v877
    %v4762 = vunpack.c.l.b16 %v878
    %v4763 = vunpack.c.h.b16 %v878
    %v4764 = vunpack.c.l.b16 %v879
    %v4765 = vunpack.c.h.b16 %v879
    %v4766 = vunpack.c.l.b16 %v880
    %v4767 = vunpack.c.h.b16 %v880
    %v4768 = vunpack.c.l.b16 %v881
    %v4769 = vunpack.c.h.b16 %v881
    %v4770 = vunpack.c.l.b16 %v882
    %v4771 = vunpack.c.h.b16 %v882
    %v4772 = vunpack.c.l.b16 %v883
    %v4773 = vunpack.c.h.b16 %v883
    %v4774 = vunpack.c.l.b16 %v884
    %v4775 = vunpack.c.h.b16 %v884
    %v4776 = vunpack.c.l.b16 %v885
    %v4777 = vunpack.c.h.b16 %v885
    %v4778 = vunpack.c.l.b16 %v886
    %v4779 = vunpack.c.h.b16 %v886
    %v4780 = vunpack.c.l.b16 %v887
    %v4781 = vunpack.c.h.b16 %v887
    %v4782 = vunpack.c.l.b16 %v888
    %v4783 = vunpack.c.h.b16 %v888
    %v4784 = vunpack.c.l.b16 %v889
    %v4785 = vunpack.c.h.b16 %v889
    %v4786 = vunpack.c.l.b16 %v890
    %v4787 = vunpack.c.h.b16 %v890
    %v4788 = vunpack.c.l.b16 %v891
    %v4789 = vunpack.c.h.b16 %v891
    %v4790 = vunpack.c.l.b16 %v892
    %v4791 = vunpack.c.h.b16 %v892
    %v4792 = vunpack.c.l.b16 %v893
    %v4793 = vunpack.c.h.b16 %v893
    %v4794 = vunpack.c.l.b16 %v894
    %v4795 = vunpack.c.h.b16 %v894
    %v4796 = vunpack.c.l.b16 %v895
    %v4797 = vunpack.c.h.b16 %v895
    %v4798 = vunpack.c.l.b16 %v896
    %v4799 = vunpack.c.h.b16 %v896
    %v4800 = vunpack.c.l.b16 %v897
    %v4801 = vunpack.c.h.b16 %v897
    %v4802 = vunpack.c.l.b16 %v898
    %v4803 = vunpack.c.h.b16 %v898
    %v4804 = vunpack.c.l.b16 %v899
    %v4805 = vunpack.c.h.b16 %v899
    %v4806 = vunpack.c.l.b16 %v900
    %v4807 = vunpack.c.h.b16 %v900
    %v4808 = vunpack.c.l.b16 %v901
    %v4809 = vunpack.c.h.b16 %v901
    %v4810 = vunpack.c.l.b16 %v902
    %v4811 = vunpack.c.h.b16 %v902
    %v4812 = vunpack.c.l.b16 %v903
    %v4813 = vunpack.c.h.b16 %v903
    %v4814 = vunpack.c.l.b16 %v904
    %v4815 = vunpack.c.h.b16 %v904
    %v4816 = vunpack.c.l.b16 %v905
    %v4817 = vunpack.c.h.b16 %v905
    %v4818 = vunpack.c.l.b16 %v906
    %v4819 = vunpack.c.h.b16 %v906
    %v4820 = vunpack.c.l.b16 %v907
    %v4821 = vunpack.c.h.b16 %v907
    %v4822 = vunpack.c.l.b16 %v908
    %v4823 = vunpack.c.h.b16 %v908
    %v4824 = vunpack.c.l.b16 %v909
    %v4825 = vunpack.c.h.b16 %v909
    %v4826 = vunpack.c.l.b16 %v910
    %v4827 = vunpack.c.h.b16 %v910
    %v4828 = vunpack.c.l.b16 %v911
    %v4829 = vunpack.c.h.b16 %v911
    %v4830 = vunpack.c.l.b16 %v912
    %v4831 = vunpack.c.h.b16 %v912
    %v4832 = vunpack.c.l.b16 %v913
    %v4833 = vunpack.c.h.b16 %v913
    %v4834 = vunpack.c.l.b16 %v914
    %v4835 = vunpack.c.h.b16 %v914
    %v4836 = vunpack.c.l.b16 %v915
    %v4837 = vunpack.c.h.b16 %v915
    %v4838 = vunpack.c.l.b16 %v916
    %v4839 = vunpack.c.h.b16 %v916
    %v4840 = vunpack.c.l.b16 %v917
    %v4841 = vunpack.c.h.b16 %v917
    %v4842 = vunpack.c.l.b16 %v918
    %v4843 = vunpack.c.h.b16 %v918
    %v4844 = vunpack.c.l.b16 %v919
    %v4845 = vunpack.c.h.b16 %v919
    %v4846 = vunpack.c.l.b16 %v920
    %v4847 = vunpack.c.h.b16 %v920
    %v4848 = vunpack.c.l.b16 %v921
    %v4849 = vunpack.c.h.b16 %v921
    %v4850 = vunpack.c.l.b16 %v922
    %v4851 = vunpack.c.h.b16 %v922
    %v4852 = vunpack.c.l.b16 %v923
    %v4853 = vunpack.c.h.b16 %v923
    %v4854 = vunpack.c.l.b16 %v924
    %v4855 = vunpack.c.h.b16 %v924
    %v4856 = vunpack.c.l.b16 %v925
    %v4857 = vunpack.c.h.b16 %v925
    %v4858 = vunpack.c.l.b16 %v926
    %v4859 = vunpack.c.h.b16 %v926
    %v4860 = vunpack.c.l.b16 %v927
    %v4861 = vunpack.c.h.b16 %v927
    %v4862 = vunpack.c.l.b16 %v928
    %v4863 = vunpack.c.h.b16 %v928
    %v4864 = vunpack.c.l.b16 %v929
    %v4865 = vunpack.c.h.b16 %v929
    %v4866 = vunpack.c.l.b16 %v930
    %v4867 = vunpack.c.h.b16 %v930
    %v4868 = vunpack.c.l.b16 %v931
    %v4869 = vunpack.c.h.b16 %v931
    %v4870 = vunpack.c.l.b16 %v932
    %v4871 = vunpack.c.h.b16 %v932
    %v4872 = vunpack.c.l.b16 %v933
    %v4873 = vunpack.c.h.b16 %v933
    %v4874 = vunpack.c.l.b16 %v934
    %v4875 = vunpack.c.h.b16 %v934
    %v4876 = vunpack.c.l.b16 %v935
    %v4877 = vunpack.c.h.b16 %v935
    %v4878 = vunpack.c.l.b16 %v936
    %v4879 = vunpack.c.h.b16 %v936
    %v4880 = vunpack.c.l.b16 %v937
    %v4881 = vunpack.c.h.b16 %v937
    %v4882 = vunpack.c.l.b16 %v938
    %v4883 = vunpack.c.h.b16 %v938
    %v4884 = vunpack.c.l.b16 %v939
    %v4885 = vunpack.c.h.b16 %v939
    %v4886 = vunpack.c.l.b16 %v940
    %v4887 = vunpack.c.h.b16 %v940
    %v4888 = vunpack.c.l.b16 %v941
    %v4889 = vunpack.c.h.b16 %v941
    %v4890 = vunpack.c.l.b16 %v942
    %v4891 = vunpack.c.h.b16 %v942
    %v4892 = vunpack.c.l.b16 %v943
    %v4893 = vunpack.c.h.b16 %v943
    %v4894 = vunpack.c.l.b16 %v944
    %v4895 = vunpack.c.h.b16 %v944
    %v4896 = vunpack.c.l.b16 %v945
    %v4897 = vunpack.c.h.b16 %v945
    %v4898 = vunpack.c.l.b16 %v946
    %v4899 = vunpack.c.h.b16 %v946
    %v4900 = vunpack.c.l.b16 %v947
    %v4901 = vunpack.c.h.b16 %v947
    %v4902 = vunpack.c.l.b16 %v948
    %v4903 = vunpack.c.h.b16 %v948
    %v4904 = vunpack.c.l.b16 %v949
    %v4905 = vunpack.c.h.b16 %v949
    %v4906 = vunpack.c.l.b16 %v950
    %v4907 = vunpack.c.h.b16 %v950
    %v4908 = vunpack.c.l.b16 %v951
    %v4909 = vunpack.c.h.b16 %v951
    %v4910 = vunpack.c.l.b16 %v952
    %v4911 = vunpack.c.h.b16 %v952
    %v4912 = vunpack.c.l.b16 %v953
    %v4913 = vunpack.c.h.b16 %v953
    %v4914 = vunpack.c.l.b16 %v954
    %v4915 = vunpack.c.h.b16 %v954
    %v4916 = vunpack.c.l.b16 %v955
    %v4917 = vunpack.c.h.b16 %v955
    %v4918 = vunpack.c.l.b16 %v956
    %v4919 = vunpack.c.h.b16 %v956
    %v4920 = vunpack.c.l.b16 %v957
    %v4921 = vunpack.c.h.b16 %v957
    %v4922 = vunpack.c.l.b16 %v958
    %v4923 = vunpack.c.h.b16 %v958
    %v4924 = vunpack.c.l.b16 %v959
    %v4925 = vunpack.c.h.b16 %v959
    %v4926 = vunpack.c.l.b16 %v960
    %v4927 = vunpack.c.h.b16 %v960
    %v4928 = vunpack.c.l.b16 %v961
    %v4929 = vunpack.c.h.b16 %v961
    %v4930 = vunpack.c.l.b16 %v962
    %v4931 = vunpack.c.h.b16 %v962
    %v4932 = vunpack.c.l.b16 %v963
    %v4933 = vunpack.c.h.b16 %v963
    %v4934 = vunpack.c.l.b16 %v964
    %v4935 = vunpack.c.h.b16 %v964
    %v4936 = vunpack.c.l.b16 %v965
    %v4937 = vunpack.c.h.b16 %v965
    %v4938 = vunpack.c.l.b16 %v966
    %v4939 = vunpack.c.h.b16 %v966
    %v4940 = vunpack.c.l.b16 %v967
    %v4941 = vunpack.c.h.b16 %v967
    %v4942 = vunpack.c.l.b16 %v968
    %v4943 = vunpack.c.h.b16 %v968
    %v4944 = vunpack.c.l.b16 %v969
    %v4945 = vunpack.c.h.b16 %v969
    %v4946 = vunpack.c.l.b16 %v970
    %v4947 = vunpack.c.h.b16 %v970
    %v4948 = vunpack.c.l.b16 %v971
    %v4949 = vunpack.c.h.b16 %v971
    %v4950 = vunpack.c.l.b16 %v972
    %v4951 = vunpack.c.h.b16 %v972
    %v4952 = vunpack.c.l.b16 %v973
    %v4953 = vunpack.c.h.b16 %v973
    %v4954 = vunpack.c.l.b16 %v974
    %v4955 = vunpack.c.h.b16 %v974
    %v4956 = vunpack.c.l.b16 %v975
    %v4957 = vunpack.c.h.b16 %v975
    %v4958 = vunpack.c.l.b16 %v976
    %v4959 = vunpack.c.h.b16 %v976
    %v4960 = vunpack.c.l.b16 %v977
    %v4961 = vunpack.c.h.b16 %v977
    %v4962 = vunpack.c.l.b16 %v978
    %v4963 = vunpack.c.h.b16 %v978
    %v4964 = vunpack.c.l.b16 %v979
    %v4965 = vunpack.c.h.b16 %v979
    %v4966 = vunpack.c.l.b16 %v980
    %v4967 = vunpack.c.h.b16 %v980
    %v4968 = vunpack.c.l.b16 %v981
    %v4969 = vunpack.c.h.b16 %v981
    %v4970 = vunpack.c.l.b16 %v982
    %v4971 = vunpack.c.h.b16 %v982
    %v4972 = vunpack.c.l.b16 %v983
    %v4973 = vunpack.c.h.b16 %v983
    %v4974 = vunpack.c.l.b16 %v984
    %v4975 = vunpack.c.h.b16 %v984
    %v4976 = vunpack.c.l.b16 %v985
    %v4977 = vunpack.c.h.b16 %v985
    %v4978 = vunpack.c.l.b16 %v986
    %v4979 = vunpack.c.h.b16 %v986
    %v4980 = vunpack.c.l.b16 %v987
    %v4981 = vunpack.c.h.b16 %v987
    %v4982 = vunpack.c.l.b16 %v988
    %v4983 = vunpack.c.h.b16 %v988
    %v4984 = vunpack.c.l.b16 %v989
    %v4985 = vunpack.c.h.b16 %v989
    %v4986 = vunpack.c.l.b16 %v990
    %v4987 = vunpack.c.h.b16 %v990
    %v4988 = vunpack.c.l.b16 %v991
    %v4989 = vunpack.c.h.b16 %v991
    %v4990 = vunpack.c.l.b16 %v992
    %v4991 = vunpack.c.h.b16 %v992
    %v4992 = vunpack.c.l.b16 %v993
    %v4993 = vunpack.c.h.b16 %v993
    %v4994 = vunpack.c.l.b16 %v994
    %v4995 = vunpack.c.h.b16 %v994
    %v4996 = vunpack.c.l.b16 %v995
    %v4997 = vunpack.c.h.b16 %v995
    %v4998 = vunpack.c.l.b16 %v996
    %v4999 = vunpack.c.h.b16 %v996
    %v5000 = vunpack.c.l.b16 %v997
    %v5001 = vunpack.c.h.b16 %v997
    %v5002 = vunpack.c.l.b16 %v998
    %v5003 = vunpack.c.h.b16 %v998
    %v5004 = vunpack.c.l.b16 %v999
    %v5005 = vunpack.c.h.b16 %v999
    %v5006 = vunpack.c.l.b16 %v1000
    %v5007 = vunpack.c.h.b16 %v1000
    %v5008 = vunpack.c.l.b16 %v1001
    %v5009 = vunpack.c.h.b16 %v1001
    %v5010 = vunpack.c.l.b16 %v1002
    %v5011 = vunpack.c.h.b16 %v1002
    %v5012 = vunpack.c.l.b16 %v1003
    %v5013 = vunpack.c.h.b16 %v1003
    %v5014 = vunpack.c.l.b16 %v1004
    %v5015 = vunpack.c.h.b16 %v1004
    %v5016 = vunpack.c.l.b16 %v1005
    %v5017 = vunpack.c.h.b16 %v1005
    %v5018 = vunpack.c.l.b16 %v1006
    %v5019 = vunpack.c.h.b16 %v1006
    %v5020 = vunpack.c.l.b16 %v1007
    %v5021 = vunpack.c.h.b16 %v1007
    %v5022 = vunpack.c.l.b16 %v1008
    %v5023 = vunpack.c.h.b16 %v1008
    %v5024 = vunpack.c.l.b16 %v1009
    %v5025 = vunpack.c.h.b16 %v1009
    %v5026 = vunpack.c.l.b16 %v1010
    %v5027 = vunpack.c.h.b16 %v1010
    %v5028 = vunpack.c.l.b16 %v1011
    %v5029 = vunpack.c.h.b16 %v1011
    %v5030 = vunpack.c.l.b16 %v1012
    %v5031 = vunpack.c.h.b16 %v1012
    %v5032 = vunpack.c.l.b16 %v1013
    %v5033 = vunpack.c.h.b16 %v1013
    %v5034 = vunpack.c.l.b16 %v1014
    %v5035 = vunpack.c.h.b16 %v1014
    %v5036 = vunpack.c.l.b16 %v1015
    %v5037 = vunpack.c.h.b16 %v1015
    %v5038 = vunpack.c.l.b16 %v1016
    %v5039 = vunpack.c.h.b16 %v1016
    %v5040 = vunpack.c.l.b16 %v1017
    %v5041 = vunpack.c.h.b16 %v1017
    %v5042 = vunpack.c.l.b16 %v1018
    %v5043 = vunpack.c.h.b16 %v1018
    %v5044 = vunpack.c.l.b16 %v1019
    %v5045 = vunpack.c.h.b16 %v1019
    %v5046 = vunpack.c.l.b16 %v1020
    %v5047 = vunpack.c.h.b16 %v1020
    %v5048 = vunpack.c.l.b16 %v1021
    %v5049 = vunpack.c.h.b16 %v1021
    %v5050 = vunpack.c.l.b16 %v1022
    %v5051 = vunpack.c.h.b16 %v1022
    %v5052 = vunpack.c.l.b16 %v1023
    %v5053 = vunpack.c.h.b16 %v1023
    %v5054 = vunpack.c.l.b16 %v1024
    %v5055 = vunpack.c.h.b16 %v1024
    %v5056 = vunpack.c.l.b16 %v1025
    %v5057 = vunpack.c.h.b16 %v1025
    %v5058 = vunpack.c.l.b16 %v1026
    %v5059 = vunpack.c.h.b16 %v1026
    %v5060 = vunpack.c.l.b16 %v1027
    %v5061 = vunpack.c.h.b16 %v1027
    %v5062 = vunpack.c.l.b16 %v1028
    %v5063 = vunpack.c.h.b16 %v1028
    %v5064 = vunpack.c.l.b16 %v1029
    %v5065 = vunpack.c.h.b16 %v1029
    %v5066 = vunpack.c.l.b16 %v1030
    %v5067 = vunpack.c.h.b16 %v1030
    %v5068 = vunpack.c.l.b16 %v1031
    %v5069 = vunpack.c.h.b16 %v1031
    %v5070 = vunpack.c.l.b16 %v1032
    %v5071 = vunpack.c.h.b16 %v1032
    %v5072 = vunpack.c.l.b16 %v1033
    %v5073 = vunpack.c.h.b16 %v1033
    %v5074 = vunpack.c.l.b16 %v1034
    %v5075 = vunpack.c.h.b16 %v1034
    %v5076 = vunpack.c.l.b16 %v1035
    %v5077 = vunpack.c.h.b16 %v1035
    %v5078 = vunpack.c.l.b16 %v1036
    %v5079 = vunpack.c.h.b16 %v1036
    %v5080 = vunpack.c.l.b16 %v1037
    %v5081 = vunpack.c.h.b16 %v1037
    %v5082 = vunpack.c.l.b16 %v1038
    %v5083 = vunpack.c.h.b16 %v1038
    %v5084 = vunpack.c.l.b16 %v1039
    %v5085 = vunpack.c.h.b16 %v1039
    %v5086 = vunpack.c.l.b16 %v1040
    %v5087 = vunpack.c.h.b16 %v1040
    %v5088 = vunpack.c.l.b16 %v1041
    %v5089 = vunpack.c.h.b16 %v1041
    %v5090 = vunpack.c.l.b16 %v1042
    %v5091 = vunpack.c.h.b16 %v1042
    %v5092 = vunpack.c.l.b16 %v1043
    %v5093 = vunpack.c.h.b16 %v1043
    %v5094 = vunpack.c.l.b16 %v1044
    %v5095 = vunpack.c.h.b16 %v1044
    %v5096 = vunpack.c.l.b16 %v1045
    %v5097 = vunpack.c.h.b16 %v1045
    %v5098 = vunpack.c.l.b16 %v1046
    %v5099 = vunpack.c.h.b16 %v1046
    %v5100 = vunpack.c.l.b16 %v1047
    %v5101 = vunpack.c.h.b16 %v1047
    %v5102 = vunpack.c.l.b16 %v1048
    %v5103 = vunpack.c.h.b16 %v1048
    %v5104 = vunpack.c.l.b16 %v1049
    %v5105 = vunpack.c.h.b16 %v1049
    %v5106 = vunpack.c.l.b16 %v1050
    %v5107 = vunpack.c.h.b16 %v1050
    %v5108 = vunpack.c.l.b16 %v1051
    %v5109 = vunpack.c.h.b16 %v1051
    %v5110 = vunpack.c.l.b16 %v1052
    %v5111 = vunpack.c.h.b16 %v1052
    %v5112 = vunpack.c.l.b16 %v1053
    %v5113 = vunpack.c.h.b16 %v1053
    %v5114 = vunpack.c.l.b16 %v1054
    %v5115 = vunpack.c.h.b16 %v1054
    %v5116 = vunpack.c.l.b16 %v1055
    %v5117 = vunpack.c.h.b16 %v1055
    %v5118 = vunpack.c.l.b16 %v1056
    %v5119 = vunpack.c.h.b16 %v1056
    %v5120 = vunpack.c.l.b16 %v1057
    %v5121 = vunpack.c.h.b16 %v1057
    %v5122 = vunpack.c.l.b16 %v1058
    %v5123 = vunpack.c.h.b16 %v1058
    %v5124 = vunpack.c.l.b16 %v1059
    %v5125 = vunpack.c.h.b16 %v1059
    %v5126 = vunpack.c.l.b16 %v1060
    %v5127 = vunpack.c.h.b16 %v1060
    %v5128 = vunpack.c.l.b16 %v1061
    %v5129 = vunpack.c.h.b16 %v1061
    %v5130 = vunpack.c.l.b16 %v1062
    %v5131 = vunpack.c.h.b16 %v1062
    %v5132 = vunpack.c.l.b16 %v1063
    %v5133 = vunpack.c.h.b16 %v1063
    %v5134 = vunpack.c.l.b16 %v1064
    %v5135 = vunpack.c.h.b16 %v1064
    %v5136 = vunpack.c.l.b16 %v1065
    %v5137 = vunpack.c.h.b16 %v1065
    %v5138 = vunpack.c.l.b16 %v1066
    %v5139 = vunpack.c.h.b16 %v1066
    %v5140 = vunpack.c.l.b16 %v1067
    %v5141 = vunpack.c.h.b16 %v1067
    %v5142 = vunpack.c.l.b16 %v1068
    %v5143 = vunpack.c.h.b16 %v1068
    %v5144 = vunpack.c.l.b16 %v1069
    %v5145 = vunpack.c.h.b16 %v1069
    %v5146 = vunpack.c.l.b16 %v1070
    %v5147 = vunpack.c.h.b16 %v1070
    %v5148 = vunpack.c.l.b16 %v1071
    %v5149 = vunpack.c.h.b16 %v1071
    %v5150 = vunpack.c.l.b16 %v1072
    %v5151 = vunpack.c.h.b16 %v1072
    %v5152 = vunpack.c.l.b16 %v1073
    %v5153 = vunpack.c.h.b16 %v1073
    %v5154 = vunpack.c.l.b16 %v1074
    %v5155 = vunpack.c.h.b16 %v1074
    %v5156 = vunpack.c.l.b16 %v1075
    %v5157 = vunpack.c.h.b16 %v1075
    %v5158 = vunpack.c.l.b16 %v1076
    %v5159 = vunpack.c.h.b16 %v1076
    %v5160 = vunpack.c.l.b16 %v1077
    %v5161 = vunpack.c.h.b16 %v1077
    %v5162 = vunpack.c.l.b16 %v1078
    %v5163 = vunpack.c.h.b16 %v1078
    %v5164 = vunpack.c.l.b16 %v1079
    %v5165 = vunpack.c.h.b16 %v1079
    %v5166 = vunpack.c.l.b16 %v1080
    %v5167 = vunpack.c.h.b16 %v1080
    %v5168 = vunpack.c.l.b16 %v1081
    %v5169 = vunpack.c.h.b16 %v1081
    %v5170 = vunpack.c.l.b16 %v1082
    %v5171 = vunpack.c.h.b16 %v1082
    %v5172 = vunpack.c.l.b16 %v1083
    %v5173 = vunpack.c.h.b16 %v1083
    %v5174 = vunpack.c.l.b16 %v1084
    %v5175 = vunpack.c.h.b16 %v1084
    %v5176 = vunpack.c.l.b16 %v1085
    %v5177 = vunpack.c.h.b16 %v1085
    %v5178 = vunpack.c.l.b16 %v1086
    %v5179 = vunpack.c.h.b16 %v1086
    %v5180 = vunpack.c.l.b16 %v1087
    %v5181 = vunpack.c.h.b16 %v1087
    %v5182 = vunpack.c.l.b16 %v1088
    %v5183 = vunpack.c.h.b16 %v1088
    %v5184 = vunpack.c.l.b16 %v1089
    %v5185 = vunpack.c.h.b16 %v1089
    %v5186 = vunpack.c.l.b16 %v1090
    %v5187 = vunpack.c.h.b16 %v1090
    %v5188 = vunpack.c.l.b16 %v1091
    %v5189 = vunpack.c.h.b16 %v1091
    %v5190 = vunpack.c.l.b16 %v1092
    %v5191 = vunpack.c.h.b16 %v1092
    %v5192 = vunpack.c.l.b16 %v1093
    %v5193 = vunpack.c.h.b16 %v1093
    %v5194 = vunpack.c.l.b16 %v1094
    %v5195 = vunpack.c.h.b16 %v1094
    %v5196 = vunpack.c.l.b16 %v1095
    %v5197 = vunpack.c.h.b16 %v1095
    %v5198 = vunpack.c.l.b16 %v1096
    %v5199 = vunpack.c.h.b16 %v1096
    %v5200 = vunpack.c.l.b16 %v1097
    %v5201 = vunpack.c.h.b16 %v1097
    %v5202 = vunpack.c.l.b16 %v1098
    %v5203 = vunpack.c.h.b16 %v1098
    %v5204 = vunpack.c.l.b16 %v1099
    %v5205 = vunpack.c.h.b16 %v1099
    %v5206 = vunpack.c.l.b16 %v1100
    %v5207 = vunpack.c.h.b16 %v1100
    %v5208 = vunpack.c.l.b16 %v1101
    %v5209 = vunpack.c.h.b16 %v1101
    %v5210 = vunpack.c.l.b16 %v1102
    %v5211 = vunpack.c.h.b16 %v1102
    %v5212 = vunpack.c.l.b16 %v1103
    %v5213 = vunpack.c.h.b16 %v1103
    %v5214 = vunpack.c.l.b16 %v1104
    %v5215 = vunpack.c.h.b16 %v1104
    %v5216 = vunpack.c.l.b16 %v1105
    %v5217 = vunpack.c.h.b16 %v1105
    %v5218 = vunpack.c.l.b16 %v1106
    %v5219 = vunpack.c.h.b16 %v1106
    %v5220 = vunpack.c.l.b16 %v1107
    %v5221 = vunpack.c.h.b16 %v1107
    %v5222 = vunpack.c.l.b16 %v1108
    %v5223 = vunpack.c.h.b16 %v1108
    %v5224 = vunpack.c.l.b16 %v1109
    %v5225 = vunpack.c.h.b16 %v1109
    %v5226 = vunpack.c.l.b16 %v1110
    %v5227 = vunpack.c.h.b16 %v1110
    %v5228 = vunpack.c.l.b16 %v1111
    %v5229 = vunpack.c.h.b16 %v1111
    %v5230 = vunpack.c.l.b16 %v1112
    %v5231 = vunpack.c.h.b16 %v1112
    %v5232 = vunpack.c.l.b16 %v1113
    %v5233 = vunpack.c.h.b16 %v1113
    %v5234 = vunpack.c.l.b16 %v1114
    %v5235 = vunpack.c.h.b16 %v1114
    %v5236 = vunpack.c.l.b16 %v1115
    %v5237 = vunpack.c.h.b16 %v1115
    %v5238 = vunpack.c.l.b16 %v1116
    %v5239 = vunpack.c.h.b16 %v1116
    %v5240 = vunpack.c.l.b16 %v1117
    %v5241 = vunpack.c.h.b16 %v1117
    %v5242 = vunpack.c.l.b16 %v1118
    %v5243 = vunpack.c.h.b16 %v1118
    %v5244 = vunpack.c.l.b16 %v1119
    %v5245 = vunpack.c.h.b16 %v1119
    %v5246 = vunpack.c.l.b16 %v1120
    %v5247 = vunpack.c.h.b16 %v1120
    %v5248 = vunpack.c.l.b16 %v1121
    %v5249 = vunpack.c.h.b16 %v1121
    %v5250 = vunpack.c.l.b16 %v1122
    %v5251 = vunpack.c.h.b16 %v1122
    %v5252 = vunpack.c.l.b16 %v1123
    %v5253 = vunpack.c.h.b16 %v1123
    %v5254 = vunpack.c.l.b16 %v1124
    %v5255 = vunpack.c.h.b16 %v1124
    %v5256 = vunpack.c.l.b16 %v1125
    %v5257 = vunpack.c.h.b16 %v1125
    %v5258 = vunpack.c.l.b16 %v1126
    %v5259 = vunpack.c.h.b16 %v1126
    %v5260 = vunpack.c.l.b16 %v1127
    %v5261 = vunpack.c.h.b16 %v1127
    %v5262 = vunpack.c.l.b16 %v1128
    %v5263 = vunpack.c.h.b16 %v1128
    %v5264 = vunpack.c.l.b16 %v1129
    %v5265 = vunpack.c.h.b16 %v1129
    %v5266 = vunpack.c.l.b16 %v1130
    %v5267 = vunpack.c.h.b16 %v1130
    %v5268 = vunpack.c.l.b16 %v1131
    %v5269 = vunpack.c.h.b16 %v1131
    %v5270 = vunpack.c.l.b16 %v1132
    %v5271 = vunpack.c.h.b16 %v1132
    %v5272 = vunpack.c.l.b16 %v1133
    %v5273 = vunpack.c.h.b16 %v1133
    %v5274 = vunpack.c.l.b16 %v1134
    %v5275 = vunpack.c.h.b16 %v1134
    %v5276 = vunpack.c.l.b16 %v1135
    %v5277 = vunpack.c.h.b16 %v1135
    %v5278 = vunpack.c.l.b16 %v1136
    %v5279 = vunpack.c.h.b16 %v1136
    %v5280 = vunpack.c.l.b16 %v1137
    %v5281 = vunpack.c.h.b16 %v1137
    %v5282 = vunpack.c.l.b16 %v1138
    %v5283 = vunpack.c.h.b16 %v1138
    %v5284 = vunpack.c.l.b16 %v1139
    %v5285 = vunpack.c.h.b16 %v1139
    %v5286 = vunpack.c.l.b16 %v1140
    %v5287 = vunpack.c.h.b16 %v1140
    %v5288 = vunpack.c.l.b16 %v1141
    %v5289 = vunpack.c.h.b16 %v1141
    %v5290 = vunpack.c.l.b16 %v1142
    %v5291 = vunpack.c.h.b16 %v1142
    %v5292 = vunpack.c.l.b16 %v1143
    %v5293 = vunpack.c.h.b16 %v1143
    %v5294 = vunpack.c.l.b16 %v1144
    %v5295 = vunpack.c.h.b16 %v1144
    %v5296 = vunpack.c.l.b16 %v1145
    %v5297 = vunpack.c.h.b16 %v1145
    %v5298 = vunpack.c.l.b16 %v1146
    %v5299 = vunpack.c.h.b16 %v1146
    %v5300 = vunpack.c.l.b16 %v1147
    %v5301 = vunpack.c.h.b16 %v1147
    %v5302 = vunpack.c.l.b16 %v1148
    %v5303 = vunpack.c.h.b16 %v1148
    %v5304 = vunpack.c.l.b16 %v1149
    %v5305 = vunpack.c.h.b16 %v1149
    %v5306 = vunpack.c.l.b16 %v1150
    %v5307 = vunpack.c.h.b16 %v1150
    %v5308 = vunpack.c.l.b16 %v1151
    %v5309 = vunpack.c.h.b16 %v1151
    %v5310 = vunpack.c.l.b16 %v1152
    %v5311 = vunpack.c.h.b16 %v1152
    %v5312 = vunpack.c.l.b16 %v1153
    %v5313 = vunpack.c.h.b16 %v1153
    %v5314 = vunpack.c.l.b16 %v1154
    %v5315 = vunpack.c.h.b16 %v1154
    %v5316 = vunpack.c.l.b16 %v1155
    %v5317 = vunpack.c.h.b16 %v1155
    %v5318 = vunpack.c.l.b16 %v1156
    %v5319 = vunpack.c.h.b16 %v1156
    %v5320 = vunpack.c.l.b16 %v1157
    %v5321 = vunpack.c.h.b16 %v1157
    %v5322 = vunpack.c.l.b16 %v1158
    %v5323 = vunpack.c.h.b16 %v1158
    %v5324 = vunpack.c.l.b16 %v1159
    %v5325 = vunpack.c.h.b16 %v1159
    %v5326 = vunpack.c.l.b16 %v1160
    %v5327 = vunpack.c.h.b16 %v1160
    %v5328 = vunpack.c.l.b16 %v1161
    %v5329 = vunpack.c.h.b16 %v1161
    %v5330 = vunpack.c.l.b16 %v1162
    %v5331 = vunpack.c.h.b16 %v1162
    %v5332 = vunpack.c.l.b16 %v1163
    %v5333 = vunpack.c.h.b16 %v1163
    %v5334 = vunpack.c.l.b16 %v1164
    %v5335 = vunpack.c.h.b16 %v1164
    %v5336 = vunpack.c.l.b16 %v1165
    %v5337 = vunpack.c.h.b16 %v1165
    %v5338 = vunpack.c.l.b16 %v1166
    %v5339 = vunpack.c.h.b16 %v1166
    %v5340 = vunpack.c.l.b16 %v1167
    %v5341 = vunpack.c.h.b16 %v1167
    %v5342 = vunpack.c.l.b16 %v1168
    %v5343 = vunpack.c.h.b16 %v1168
    %v5344 = vunpack.c.l.b16 %v1169
    %v5345 = vunpack.c.h.b16 %v1169
    %v5346 = vunpack.c.l.b16 %v1170
    %v5347 = vunpack.c.h.b16 %v1170
    %v5348 = vunpack.c.l.b16 %v1171
    %v5349 = vunpack.c.h.b16 %v1171
    %v5350 = vunpack.c.l.b16 %v1172
    %v5351 = vunpack.c.h.b16 %v1172
    %v5352 = vunpack.c.l.b16 %v1173
    %v5353 = vunpack.c.h.b16 %v1173
    %v5354 = vunpack.c.l.b16 %v1174
    %v5355 = vunpack.c.h.b16 %v1174
    %v5356 = vunpack.c.l.b16 %v1175
    %v5357 = vunpack.c.h.b16 %v1175
    %v5358 = vunpack.c.l.b16 %v1176
    %v5359 = vunpack.c.h.b16 %v1176
    %v5360 = vunpack.c.l.b16 %v1177
    %v5361 = vunpack.c.h.b16 %v1177
    %v5362 = vunpack.c.l.b16 %v1178
    %v5363 = vunpack.c.h.b16 %v1178
    %v5364 = vunpack.c.l.b16 %v1179
    %v5365 = vunpack.c.h.b16 %v1179
    %v5366 = vunpack.c.l.b16 %v1180
    %v5367 = vunpack.c.h.b16 %v1180
    %v5368 = vunpack.c.l.b16 %v1181
    %v5369 = vunpack.c.h.b16 %v1181
    %v5370 = vunpack.c.l.b16 %v1182
    %v5371 = vunpack.c.h.b16 %v1182
    %v5372 = vunpack.c.l.b16 %v1183
    %v5373 = vunpack.c.h.b16 %v1183
    %v5374 = vunpack.c.l.b16 %v1184
    %v5375 = vunpack.c.h.b16 %v1184
    %v5376 = vunpack.c.l.b16 %v1185
    %v5377 = vunpack.c.h.b16 %v1185
    %v5378 = vunpack.c.l.b16 %v1186
    %v5379 = vunpack.c.h.b16 %v1186
    %v5380 = vunpack.c.l.b16 %v1187
    %v5381 = vunpack.c.h.b16 %v1187
    %v5382 = vunpack.c.l.b16 %v1188
    %v5383 = vunpack.c.h.b16 %v1188
    %v5384 = vunpack.c.l.b16 %v1189
    %v5385 = vunpack.c.h.b16 %v1189
    %v5386 = vunpack.c.l.b16 %v1190
    %v5387 = vunpack.c.h.b16 %v1190
    %v5388 = vunpack.c.l.b16 %v1191
    %v5389 = vunpack.c.h.b16 %v1191
    %v5390 = vunpack.c.l.b16 %v1192
    %v5391 = vunpack.c.h.b16 %v1192
    %v5392 = vunpack.c.l.b16 %v1193
    %v5393 = vunpack.c.h.b16 %v1193
    %v5394 = vunpack.c.l.b16 %v1194
    %v5395 = vunpack.c.h.b16 %v1194
    %v5396 = vunpack.c.l.b16 %v1195
    %v5397 = vunpack.c.h.b16 %v1195
    %v5398 = vunpack.c.l.b16 %v1196
    %v5399 = vunpack.c.h.b16 %v1196
    %v5400 = vunpack.c.l.b16 %v1197
    %v5401 = vunpack.c.h.b16 %v1197
    %v5402 = vunpack.c.l.b16 %v1198
    %v5403 = vunpack.c.h.b16 %v1198
    %v5404 = vunpack.c.l.b16 %v1199
    %v5405 = vunpack.c.h.b16 %v1199
    %v5406 = vunpack.c.l.b16 %v1200
    %v5407 = vunpack.c.h.b16 %v1200
    %v5408 = vunpack.c.l.b16 %v1201
    %v5409 = vunpack.c.h.b16 %v1201
    %v5410 = vunpack.c.l.b16 %v1202
    %v5411 = vunpack.c.h.b16 %v1202
    %v5412 = vunpack.c.l.b16 %v1203
    %v5413 = vunpack.c.h.b16 %v1203
    %v5414 = vunpack.c.l.b16 %v1204
    %v5415 = vunpack.c.h.b16 %v1204
    %v5416 = vunpack.c.l.b16 %v1205
    %v5417 = vunpack.c.h.b16 %v1205
    %v5418 = vunpack.c.l.b16 %v1206
    %v5419 = vunpack.c.h.b16 %v1206
    %v5420 = vunpack.c.l.b16 %v1207
    %v5421 = vunpack.c.h.b16 %v1207
    %v5422 = vunpack.c.l.b16 %v1208
    %v5423 = vunpack.c.h.b16 %v1208
    %v5424 = vunpack.c.l.b16 %v1209
    %v5425 = vunpack.c.h.b16 %v1209
    %v5426 = vunpack.c.l.b16 %v1210
    %v5427 = vunpack.c.h.b16 %v1210
    %v5428 = vunpack.c.l.b16 %v1211
    %v5429 = vunpack.c.h.b16 %v1211
    %v5430 = vunpack.c.l.b16 %v1212
    %v5431 = vunpack.c.h.b16 %v1212
    %v5432 = vunpack.c.l.b16 %v1213
    %v5433 = vunpack.c.h.b16 %v1213
    %v5434 = vunpack.c.l.b16 %v1214
    %v5435 = vunpack.c.h.b16 %v1214
    %v5436 = vunpack.c.l.b16 %v1215
    %v5437 = vunpack.c.h.b16 %v1215
    %v5438 = vunpack.c.l.b16 %v1216
    %v5439 = vunpack.c.h.b16 %v1216
    %v5440 = vunpack.c.l.b16 %v1217
    %v5441 = vunpack.c.h.b16 %v1217
    %v5442 = vunpack.c.l.b16 %v1218
    %v5443 = vunpack.c.h.b16 %v1218
    %v5444 = vunpack.c.l.b16 %v1219
    %v5445 = vunpack.c.h.b16 %v1219
    %v5446 = vunpack.c.l.b16 %v1220
    %v5447 = vunpack.c.h.b16 %v1220
    %v5448 = vunpack.c.l.b16 %v1221
    %v5449 = vunpack.c.h.b16 %v1221
    %v5450 = vunpack.c.l.b16 %v1222
    %v5451 = vunpack.c.h.b16 %v1222
    %v5452 = vunpack.c.l.b16 %v1223
    %v5453 = vunpack.c.h.b16 %v1223
    %v5454 = vunpack.c.l.b16 %v1224
    %v5455 = vunpack.c.h.b16 %v1224
    %v5456 = vunpack.c.l.b16 %v1225
    %v5457 = vunpack.c.h.b16 %v1225
    %v5458 = vunpack.c.l.b16 %v1226
    %v5459 = vunpack.c.h.b16 %v1226
    %v5460 = vunpack.c.l.b16 %v1227
    %v5461 = vunpack.c.h.b16 %v1227
    %v5462 = vunpack.c.l.b16 %v1228
    %v5463 = vunpack.c.h.b16 %v1228
    %v5464 = vunpack.c.l.b16 %v1229
    %v5465 = vunpack.c.h.b16 %v1229
    %v5466 = vunpack.c.l.b16 %v1230
    %v5467 = vunpack.c.h.b16 %v1230
    %v5468 = vunpack.c.l.b16 %v1231
    %v5469 = vunpack.c.h.b16 %v1231
    %v5470 = vunpack.c.l.b16 %v1232
    %v5471 = vunpack.c.h.b16 %v1232
    %v5472 = vunpack.c.l.b16 %v1233
    %v5473 = vunpack.c.h.b16 %v1233
    %v5474 = vunpack.c.l.b16 %v1234
    %v5475 = vunpack.c.h.b16 %v1234
    %v5476 = vunpack.c.l.b16 %v1235
    %v5477 = vunpack.c.h.b16 %v1235
    %v5478 = vunpack.c.l.b16 %v1236
    %v5479 = vunpack.c.h.b16 %v1236
    %v5480 = vunpack.c.l.b16 %v1237
    %v5481 = vunpack.c.h.b16 %v1237
    %v5482 = vunpack.c.l.b16 %v1238
    %v5483 = vunpack.c.h.b16 %v1238
    %v5484 = vunpack.c.l.b16 %v1239
    %v5485 = vunpack.c.h.b16 %v1239
    %v5486 = vunpack.c.l.b16 %v1240
    %v5487 = vunpack.c.h.b16 %v1240
    %v5488 = vunpack.c.l.b16 %v1241
    %v5489 = vunpack.c.h.b16 %v1241
    %v5490 = vunpack.c.l.b16 %v1242
    %v5491 = vunpack.c.h.b16 %v1242
    %v5492 = vunpack.c.l.b16 %v1243
    %v5493 = vunpack.c.h.b16 %v1243
    %v5494 = vunpack.c.l.b16 %v1244
    %v5495 = vunpack.c.h.b16 %v1244
    %v5496 = vunpack.c.l.b16 %v1245
    %v5497 = vunpack.c.h.b16 %v1245
    %v5498 = vunpack.c.l.b16 %v1246
    %v5499 = vunpack.c.h.b16 %v1246
    %v5500 = vunpack.c.l.b16 %v1247
    %v5501 = vunpack.c.h.b16 %v1247
    %v5502 = vunpack.c.l.b16 %v1248
    %v5503 = vunpack.c.h.b16 %v1248
    %v5504 = vunpack.c.l.b16 %v1249
    %v5505 = vunpack.c.h.b16 %v1249
    %v5506 = vunpack.c.l.b16 %v1250
    %v5507 = vunpack.c.h.b16 %v1250
    %v5508 = vunpack.c.l.b16 %v1251
    %v5509 = vunpack.c.h.b16 %v1251
    %v5510 = vunpack.c.l.b16 %v1252
    %v5511 = vunpack.c.h.b16 %v1252
    %v5512 = vunpack.c.l.b16 %v1253
    %v5513 = vunpack.c.h.b16 %v1253
    %v5514 = vunpack.c.l.b16 %v1254
    %v5515 = vunpack.c.h.b16 %v1254
    %v5516 = vunpack.c.l.b16 %v1255
    %v5517 = vunpack.c.h.b16 %v1255
    %v5518 = vunpack.c.l.b16 %v1256
    %v5519 = vunpack.c.h.b16 %v1256
    %v5520 = vunpack.c.l.b16 %v1257
    %v5521 = vunpack.c.h.b16 %v1257
    %v5522 = vunpack.c.l.b16 %v1258
    %v5523 = vunpack.c.h.b16 %v1258
    %v5524 = vunpack.c.l.b16 %v1259
    %v5525 = vunpack.c.h.b16 %v1259
    %v5526 = vunpack.c.l.b16 %v1260
    %v5527 = vunpack.c.h.b16 %v1260
    %v5528 = vunpack.c.l.b16 %v1261
    %v5529 = vunpack.c.h.b16 %v1261
    %v5530 = vunpack.c.l.b16 %v1262
    %v5531 = vunpack.c.h.b16 %v1262
    %v5532 = vunpack.c.l.b16 %v1263
    %v5533 = vunpack.c.h.b16 %v1263
    %v5534 = vunpack.c.l.b16 %v1264
    %v5535 = vunpack.c.h.b16 %v1264
    %v5536 = vunpack.c.l.b16 %v1265
    %v5537 = vunpack.c.h.b16 %v1265
    %v5538 = vunpack.c.l.b16 %v1266
    %v5539 = vunpack.c.h.b16 %v1266
    %v5540 = vunpack.c.l.b16 %v1267
    %v5541 = vunpack.c.h.b16 %v1267
    %v5542 = vunpack.c.l.b16 %v1268
    %v5543 = vunpack.c.h.b16 %v1268
    %v5544 = vunpack.c.l.b16 %v1269
    %v5545 = vunpack.c.h.b16 %v1269
    %v5546 = vunpack.c.l.b16 %v1270
    %v5547 = vunpack.c.h.b16 %v1270
    %v5548 = vunpack.c.l.b16 %v1271
    %v5549 = vunpack.c.h.b16 %v1271
    %v5550 = vunpack.c.l.b16 %v1272
    %v5551 = vunpack.c.h.b16 %v1272
    %v5552 = vunpack.c.l.b16 %v1273
    %v5553 = vunpack.c.h.b16 %v1273
    %v5554 = vunpack.c.l.b16 %v1274
    %v5555 = vunpack.c.h.b16 %v1274
    %v5556 = vunpack.c.l.b16 %v1275
    %v5557 = vunpack.c.h.b16 %v1275
    %v5558 = vunpack.c.l.b16 %v1276
    %v5559 = vunpack.c.h.b16 %v1276
    %v5560 = vunpack.c.l.b16 %v1277
    %v5561 = vunpack.c.h.b16 %v1277
    %v5562 = vunpack.c.l.b16 %v1278
    %v5563 = vunpack.c.h.b16 %v1278
    %v5564 = vunpack.c.l.b16 %v1279
    %v5565 = vunpack.c.h.b16 %v1279
    %v5566 = vunpack.c.l.b16 %v1280
    %v5567 = vunpack.c.h.b16 %v1280
    %v5568 = vunpack.c.l.b16 %v1281
    %v5569 = vunpack.c.h.b16 %v1281
    %v5570 = vunpack.c.l.b16 %v1282
    %v5571 = vunpack.c.h.b16 %v1282
    %v5572 = vunpack.c.l.b16 %v1283
    %v5573 = vunpack.c.h.b16 %v1283
    %v5574 = vunpack.c.l.b16 %v1284
    %v5575 = vunpack.c.h.b16 %v1284
    %v5576 = vunpack.c.l.b16 %v1285
    %v5577 = vunpack.c.h.b16 %v1285
    %v5578 = vunpack.c.l.b16 %v1286
    %v5579 = vunpack.c.h.b16 %v1286
    %v5580 = vunpack.c.l.b16 %v1287
    %v5581 = vunpack.c.h.b16 %v1287
    %v5582 = vunpack.c.l.b16 %v1288
    %v5583 = vunpack.c.h.b16 %v1288
    %v5584 = vunpack.c.l.b16 %v1289
    %v5585 = vunpack.c.h.b16 %v1289
    %v5586 = vunpack.c.l.b16 %v1290
    %v5587 = vunpack.c.h.b16 %v1290
    %v5588 = vunpack.c.l.b16 %v1291
    %v5589 = vunpack.c.h.b16 %v1291
    %v5590 = vunpack.c.l.b16 %v1292
    %v5591 = vunpack.c.h.b16 %v1292
    %v5592 = vunpack.c.l.b16 %v1293
    %v5593 = vunpack.c.h.b16 %v1293
    %v5594 = vunpack.c.l.b16 %v1294
    %v5595 = vunpack.c.h.b16 %v1294
    %v5596 = vunpack.c.l.b16 %v1295
    %v5597 = vunpack.c.h.b16 %v1295
    %v5598 = vunpack.c.l.b16 %v1296
    %v5599 = vunpack.c.h.b16 %v1296
    %v5600 = vunpack.c.l.b16 %v1297
    %v5601 = vunpack.c.h.b16 %v1297
    %v5602 = vunpack.c.l.b16 %v1298
    %v5603 = vunpack.c.h.b16 %v1298
    %v5604 = vunpack.c.l.b16 %v1299
    %v5605 = vunpack.c.h.b16 %v1299
    %v5606 = vunpack.c.l.b16 %v1300
    %v5607 = vunpack.c.h.b16 %v1300
    %v5608 = vunpack.c.l.b16 %v1301
    %v5609 = vunpack.c.h.b16 %v1301
    %v5610 = vunpack.c.l.b16 %v1302
    %v5611 = vunpack.c.h.b16 %v1302
    %v5612 = vunpack.c.l.b16 %v1303
    %v5613 = vunpack.c.h.b16 %v1303
    %v5614 = vunpack.c.l.b16 %v1304
    %v5615 = vunpack.c.h.b16 %v1304
    %v5616 = vunpack.c.l.b16 %v1305
    %v5617 = vunpack.c.h.b16 %v1305
    %v5618 = vunpack.c.l.b16 %v1306
    %v5619 = vunpack.c.h.b16 %v1306
    %v5620 = vunpack.c.l.b16 %v1307
    %v5621 = vunpack.c.h.b16 %v1307
    %v5622 = vunpack.c.l.b16 %v1308
    %v5623 = vunpack.c.h.b16 %v1308
    %v5624 = vunpack.c.l.b16 %v1309
    %v5625 = vunpack.c.h.b16 %v1309
    %v5626 = vunpack.c.l.b16 %v1310
    %v5627 = vunpack.c.h.b16 %v1310
    %v5628 = vunpack.c.l.b16 %v1311
    %v5629 = vunpack.c.h.b16 %v1311
    %v5630 = vunpack.c.l.b16 %v1312
    %v5631 = vunpack.c.h.b16 %v1312
    %v5632 = vunpack.c.l.b16 %v1313
    %v5633 = vunpack.c.h.b16 %v1313
    %v5634 = vunpack.c.l.b16 %v1314
    %v5635 = vunpack.c.h.b16 %v1314
    %v5636 = vunpack.c.l.b16 %v1315
    %v5637 = vunpack.c.h.b16 %v1315
    %v5638 = vunpack.c.l.b16 %v1316
    %v5639 = vunpack.c.h.b16 %v1316
    %v5640 = vunpack.c.l.b16 %v1317
    %v5641 = vunpack.c.h.b16 %v1317
    %v5642 = vunpack.c.l.b16 %v1318
    %v5643 = vunpack.c.h.b16 %v1318
    %v5644 = vunpack.c.l.b16 %v1319
    %v5645 = vunpack.c.h.b16 %v1319
    %v5646 = vunpack.c.l.b16 %v1320
    %v5647 = vunpack.c.h.b16 %v1320
    %v5648 = vunpack.c.l.b16 %v1321
    %v5649 = vunpack.c.h.b16 %v1321
    %v5650 = vunpack.c.l.b16 %v1322
    %v5651 = vunpack.c.h.b16 %v1322
    %v5652 = vunpack.c.l.b16 %v1323
    %v5653 = vunpack.c.h.b16 %v1323
    %v5654 = vunpack.c.l.b16 %v1324
    %v5655 = vunpack.c.h.b16 %v1324
    %v5656 = vunpack.c.l.b16 %v1325
    %v5657 = vunpack.c.h.b16 %v1325
    %v5658 = vunpack.c.l.b16 %v1326
    %v5659 = vunpack.c.h.b16 %v1326
    %v5660 = vunpack.c.l.b16 %v1327
    %v5661 = vunpack.c.h.b16 %v1327
    %v5662 = vunpack.c.l.b16 %v1328
    %v5663 = vunpack.c.h.b16 %v1328
    %v5664 = vunpack.c.l.b16 %v1329
    %v5665 = vunpack.c.h.b16 %v1329
    %v5666 = vunpack.c.l.b16 %v1330
    %v5667 = vunpack.c.h.b16 %v1330
    %v5668 = vunpack.c.l.b16 %v1331
    %v5669 = vunpack.c.h.b16 %v1331
    %v5670 = vunpack.c.l.b16 %v1332
    %v5671 = vunpack.c.h.b16 %v1332
    %v5672 = vunpack.c.l.b16 %v1333
    %v5673 = vunpack.c.h.b16 %v1333
    %v5674 = vunpack.c.l.b16 %v1334
    %v5675 = vunpack.c.h.b16 %v1334
    %v5676 = vunpack.c.l.b16 %v1335
    %v5677 = vunpack.c.h.b16 %v1335
    %v5678 = vunpack.c.l.b16 %v1336
    %v5679 = vunpack.c.h.b16 %v1336
    %v5680 = vunpack.c.l.b16 %v1337
    %v5681 = vunpack.c.h.b16 %v1337
    %v5682 = vunpack.c.l.b16 %v1338
    %v5683 = vunpack.c.h.b16 %v1338
    %v5684 = vunpack.c.l.b16 %v1339
    %v5685 = vunpack.c.h.b16 %v1339
    %v5686 = vunpack.c.l.b16 %v1340
    %v5687 = vunpack.c.h.b16 %v1340
    %v5688 = vunpack.c.l.b16 %v1341
    %v5689 = vunpack.c.h.b16 %v1341
    %v5690 = vunpack.c.l.b16 %v1342
    %v5691 = vunpack.c.h.b16 %v1342
    %v5692 = vunpack.c.l.b16 %v1343
    %v5693 = vunpack.c.h.b16 %v1343
    %v5694 = vunpack.c.l.b16 %v1344
    %v5695 = vunpack.c.h.b16 %v1344
    %v5696 = vunpack.c.l.b16 %v1345
    %v5697 = vunpack.c.h.b16 %v1345
    %v5698 = vunpack.c.l.b16 %v1346
    %v5699 = vunpack.c.h.b16 %v1346
    %v5700 = vunpack.c.l.b16 %v1347
    %v5701 = vunpack.c.h.b16 %v1347
    %v5702 = vunpack.c.l.b16 %v1348
    %v5703 = vunpack.c.h.b16 %v1348
    %v5704 = vunpack.c.l.b16 %v1349
    %v5705 = vunpack.c.h.b16 %v1349
    %v5706 = vunpack.c.l.b16 %v1350
    %v5707 = vunpack.c.h.b16 %v1350
    %v5708 = vunpack.c.l.b16 %v1351
    %v5709 = vunpack.c.h.b16 %v1351
    %v5710 = vunpack.c.l.b16 %v1352
    %v5711 = vunpack.c.h.b16 %v1352
    %v5712 = vunpack.c.l.b16 %v1353
    %v5713 = vunpack.c.h.b16 %v1353
    %v5714 = vunpack.c.l.b16 %v1354
    %v5715 = vunpack.c.h.b16 %v1354
    %v5716 = vunpack.c.l.b16 %v1355
    %v5717 = vunpack.c.h.b16 %v1355
    %v5718 = vunpack.c.l.b16 %v1356
    %v5719 = vunpack.c.h.b16 %v1356
    %v5720 = vunpack.c.l.b16 %v1357
    %v5721 = vunpack.c.h.b16 %v1357
    %v5722 = vunpack.c.l.b16 %v1358
    %v5723 = vunpack.c.h.b16 %v1358
    %v5724 = vunpack.c.l.b16 %v1359
    %v5725 = vunpack.c.h.b16 %v1359
    %v5726 = vunpack.c.l.b16 %v1360
    %v5727 = vunpack.c.h.b16 %v1360
    %v5728 = vunpack.c.l.b16 %v1361
    %v5729 = vunpack.c.h.b16 %v1361
    %v5730 = vunpack.c.l.b16 %v1362
    %v5731 = vunpack.c.h.b16 %v1362
    %v5732 = vunpack.c.l.b16 %v1363
    %v5733 = vunpack.c.h.b16 %v1363
    %v5734 = vunpack.c.l.b16 %v1364
    %v5735 = vunpack.c.h.b16 %v1364
    %v5736 = vunpack.c.l.b16 %v1365
    %v5737 = vunpack.c.h.b16 %v1365
    %v5738 = vunpack.c.l.b16 %v1366
    %v5739 = vunpack.c.h.b16 %v1366
    %v5740 = vunpack.c.l.b16 %v1367
    %v5741 = vunpack.c.h.b16 %v1367
    %v5742 = vunpack.c.l.b16 %v1368
    %v5743 = vunpack.c.h.b16 %v1368
    %v5744 = vunpack.c.l.b16 %v1369
    %v5745 = vunpack.c.h.b16 %v1369
    %v5746 = vunpack.c.l.b16 %v1370
    %v5747 = vunpack.c.h.b16 %v1370
    %v5748 = vunpack.c.l.b16 %v1371
    %v5749 = vunpack.c.h.b16 %v1371
    %v5750 = vunpack.c.l.b16 %v1372
    %v5751 = vunpack.c.h.b16 %v1372
    %v5752 = vunpack.c.l.b16 %v1373
    %v5753 = vunpack.c.h.b16 %v1373
    %v5754 = vunpack.c.l.b16 %v1374
    %v5755 = vunpack.c.h.b16 %v1374
    %v5756 = vunpack.c.l.b16 %v1375
    %v5757 = vunpack.c.h.b16 %v1375
    %v5758 = vunpack.c.l.b16 %v1376
    %v5759 = vunpack.c.h.b16 %v1376
    %v5760 = vunpack.c.l.b16 %v1377
    %v5761 = vunpack.c.h.b16 %v1377
    %v5762 = vunpack.c.l.b16 %v1378
    %v5763 = vunpack.c.h.b16 %v1378
    %v5764 = vunpack.c.l.b16 %v1379
    %v5765 = vunpack.c.h.b16 %v1379
    %v5766 = vunpack.c.l.b16 %v1380
    %v5767 = vunpack.c.h.b16 %v1380
    %v5768 = vunpack.c.l.b16 %v1381
    %v5769 = vunpack.c.h.b16 %v1381
    %v5770 = vunpack.c.l.b16 %v1382
    %v5771 = vunpack.c.h.b16 %v1382
    %v5772 = vunpack.c.l.b16 %v1383
    %v5773 = vunpack.c.h.b16 %v1383
    %v5774 = vunpack.c.l.b16 %v1384
    %v5775 = vunpack.c.h.b16 %v1384
    %v5776 = vunpack.c.l.b16 %v1385
    %v5777 = vunpack.c.h.b16 %v1385
    %v5778 = vunpack.c.l.b16 %v1386
    %v5779 = vunpack.c.h.b16 %v1386
    %v5780 = vunpack.c.l.b16 %v1387
    %v5781 = vunpack.c.h.b16 %v1387
    %v5782 = vunpack.c.l.b16 %v1388
    %v5783 = vunpack.c.h.b16 %v1388
    %v5784 = vunpack.c.l.b16 %v1389
    %v5785 = vunpack.c.h.b16 %v1389
    %v5786 = vunpack.c.l.b16 %v1390
    %v5787 = vunpack.c.h.b16 %v1390
    %v5788 = vunpack.c.l.b16 %v1391
    %v5789 = vunpack.c.h.b16 %v1391
    %v5790 = vunpack.c.l.b16 %v1392
    %v5791 = vunpack.c.h.b16 %v1392
    %v5792 = vunpack.c.l.b16 %v1393
    %v5793 = vunpack.c.h.b16 %v1393
    %v5794 = vunpack.c.l.b16 %v1394
    %v5795 = vunpack.c.h.b16 %v1394
    %v5796 = vunpack.c.l.b16 %v1395
    %v5797 = vunpack.c.h.b16 %v1395
    %v5798 = vunpack.c.l.b16 %v1396
    %v5799 = vunpack.c.h.b16 %v1396
    %v5800 = vunpack.c.l.b16 %v1397
    %v5801 = vunpack.c.h.b16 %v1397
    %v5802 = vunpack.c.l.b16 %v1398
    %v5803 = vunpack.c.h.b16 %v1398
    %v5804 = vunpack.c.l.b16 %v1399
    %v5805 = vunpack.c.h.b16 %v1399
    %v5806 = vunpack.c.l.b16 %v1400
    %v5807 = vunpack.c.h.b16 %v1400
    %v5808 = vunpack.c.l.b16 %v1401
    %v5809 = vunpack.c.h.b16 %v1401
    %v5810 = vunpack.c.l.b16 %v1402
    %v5811 = vunpack.c.h.b16 %v1402
    %v5812 = vunpack.c.l.b16 %v1403
    %v5813 = vunpack.c.h.b16 %v1403
    %v5814 = vunpack.c.l.b16 %v1404
    %v5815 = vunpack.c.h.b16 %v1404
    %v5816 = vunpack.c.l.b16 %v1405
    %v5817 = vunpack.c.h.b16 %v1405
    %v5818 = vunpack.c.l.b16 %v1406
    %v5819 = vunpack.c.h.b16 %v1406
    %v5820 = vunpack.c.l.b16 %v1407
    %v5821 = vunpack.c.h.b16 %v1407
    %v5822 = vunpack.c.l.b16 %v1408
    %v5823 = vunpack.c.h.b16 %v1408
    %v5824 = vunpack.c.l.b16 %v1409
    %v5825 = vunpack.c.h.b16 %v1409
    %v5826 = vunpack.c.l.b16 %v1410
    %v5827 = vunpack.c.h.b16 %v1410
    %v5828 = vunpack.c.l.b16 %v1411
    %v5829 = vunpack.c.h.b16 %v1411
    %v5830 = vunpack.c.l.b16 %v1412
    %v5831 = vunpack.c.h.b16 %v1412
    %v5832 = vunpack.c.l.b16 %v1413
    %v5833 = vunpack.c.h.b16 %v1413
    %v5834 = vunpack.c.l.b16 %v1414
    %v5835 = vunpack.c.h.b16 %v1414
    %v5836 = vunpack.c.l.b16 %v1415
    %v5837 = vunpack.c.h.b16 %v1415
    %v5838 = vunpack.c.l.b16 %v1416
    %v5839 = vunpack.c.h.b16 %v1416
    %v5840 = vunpack.c.l.b16 %v1417
    %v5841 = vunpack.c.h.b16 %v1417
    %v5842 = vunpack.c.l.b16 %v1418
    %v5843 = vunpack.c.h.b16 %v1418
    %v5844 = vunpack.c.l.b16 %v1419
    %v5845 = vunpack.c.h.b16 %v1419
    %v5846 = vunpack.c.l.b16 %v1420
    %v5847 = vunpack.c.h.b16 %v1420
    %v5848 = vunpack.c.l.b16 %v1421
    %v5849 = vunpack.c.h.b16 %v1421
    %v5850 = vunpack.c.l.b16 %v1422
    %v5851 = vunpack.c.h.b16 %v1422
    %v5852 = vunpack.c.l.b16 %v1423
    %v5853 = vunpack.c.h.b16 %v1423
    %v5854 = vunpack.c.l.b16 %v1424
    %v5855 = vunpack.c.h.b16 %v1424
    %v5856 = vunpack.c.l.b16 %v1425
    %v5857 = vunpack.c.h.b16 %v1425
    %v5858 = vunpack.c.l.b16 %v1426
    %v5859 = vunpack.c.h.b16 %v1426
    %v5860 = vunpack.c.l.b16 %v1427
    %v5861 = vunpack.c.h.b16 %v1427
    %v5862 = vunpack.c.l.b16 %v1428
    %v5863 = vunpack.c.h.b16 %v1428
    %v5864 = vunpack.c.l.b16 %v1429
    %v5865 = vunpack.c.h.b16 %v1429
    %v5866 = vunpack.c.l.b16 %v1430
    %v5867 = vunpack.c.h.b16 %v1430
    %v5868 = vunpack.c.l.b16 %v1431
    %v5869 = vunpack.c.h.b16 %v1431
    %v5870 = vunpack.c.l.b16 %v1432
    %v5871 = vunpack.c.h.b16 %v1432
    %v5872 = vunpack.c.l.b16 %v1433
    %v5873 = vunpack.c.h.b16 %v1433
    %v5874 = vunpack.c.l.b16 %v1434
    %v5875 = vunpack.c.h.b16 %v1434
    %v5876 = vunpack.c.l.b16 %v1435
    %v5877 = vunpack.c.h.b16 %v1435
    %v5878 = vunpack.c.l.b16 %v1436
    %v5879 = vunpack.c.h.b16 %v1436
    %v5880 = vunpack.c.l.b16 %v1437
    %v5881 = vunpack.c.h.b16 %v1437
    %v5882 = vunpack.c.l.b16 %v1438
    %v5883 = vunpack.c.h.b16 %v1438
    %v5884 = vunpack.c.l.b16 %v1439
    %v5885 = vunpack.c.h.b16 %v1439
    %v5886 = vunpack.c.l.b16 %v1440
    %v5887 = vunpack.c.h.b16 %v1440
    %v5888 = vunpack.c.l.b16 %v1441
    %v5889 = vunpack.c.h.b16 %v1441
    %v5890 = vunpack.c.l.b16 %v1442
    %v5891 = vunpack.c.h.b16 %v1442
    %v5892 = vunpack.c.l.b16 %v1443
    %v5893 = vunpack.c.h.b16 %v1443
    %v5894 = vunpack.c.l.b16 %v1444
    %v5895 = vunpack.c.h.b16 %v1444
    %v5896 = vunpack.c.l.b16 %v1445
    %v5897 = vunpack.c.h.b16 %v1445
    %v5898 = vunpack.c.l.b16 %v1446
    %v5899 = vunpack.c.h.b16 %v1446
    %v5900 = vunpack.c.l.b16 %v1447
    %v5901 = vunpack.c.h.b16 %v1447
    %v5902 = vunpack.c.l.b16 %v1448
    %v5903 = vunpack.c.h.b16 %v1448
    %v5904 = vunpack.c.l.b16 %v1449
    %v5905 = vunpack.c.h.b16 %v1449
    %v5906 = vunpack.c.l.b16 %v1450
    %v5907 = vunpack.c.h.b16 %v1450
    %v5908 = vunpack.c.l.b16 %v1451
    %v5909 = vunpack.c.h.b16 %v1451
    %v5910 = vunpack.c.l.b16 %v1452
    %v5911 = vunpack.c.h.b16 %v1452
    %v5912 = vunpack.c.l.b16 %v1453
    %v5913 = vunpack.c.h.b16 %v1453
    %v5914 = vunpack.c.l.b16 %v1454
    %v5915 = vunpack.c.h.b16 %v1454
    %v5916 = vunpack.c.l.b16 %v1455
    %v5917 = vunpack.c.h.b16 %v1455
    %v5918 = vunpack.c.l.b16 %v1456
    %v5919 = vunpack.c.h.b16 %v1456
    %v5920 = vunpack.c.l.b16 %v1457
    %v5921 = vunpack.c.h.b16 %v1457
    %v5922 = vunpack.c.l.b16 %v1458
    %v5923 = vunpack.c.h.b16 %v1458
    %v5924 = vunpack.c.l.b16 %v1459
    %v5925 = vunpack.c.h.b16 %v1459
    %v5926 = vunpack.c.l.b16 %v1460
    %v5927 = vunpack.c.h.b16 %v1460
    %v5928 = vunpack.c.l.b16 %v1461
    %v5929 = vunpack.c.h.b16 %v1461
    %v5930 = vunpack.c.l.b16 %v1462
    %v5931 = vunpack.c.h.b16 %v1462
    %v5932 = vunpack.c.l.b16 %v1463
    %v5933 = vunpack.c.h.b16 %v1463
    %v5934 = vunpack.c.l.b16 %v1464
    %v5935 = vunpack.c.h.b16 %v1464
    %v5936 = vunpack.c.l.b16 %v1465
    %v5937 = vunpack.c.h.b16 %v1465
    %v5938 = vunpack.c.l.b16 %v1466
    %v5939 = vunpack.c.h.b16 %v1466
    %v5940 = vunpack.c.l.b16 %v1467
    %v5941 = vunpack.c.h.b16 %v1467
    %v5942 = vunpack.c.l.b16 %v1468
    %v5943 = vunpack.c.h.b16 %v1468
    %v5944 = vunpack.c.l.b16 %v1469
    %v5945 = vunpack.c.h.b16 %v1469
    %v5946 = vunpack.c.l.b16 %v1470
    %v5947 = vunpack.c.h.b16 %v1470
    %v5948 = vunpack.c.l.b16 %v1471
    %v5949 = vunpack.c.h.b16 %v1471
    %v5950 = vunpack.c.l.b16 %v1472
    %v5951 = vunpack.c.h.b16 %v1472
    %v5952 = vunpack.c.l.b16 %v1473
    %v5953 = vunpack.c.h.b16 %v1473
    %v5954 = vunpack.c.l.b16 %v1474
    %v5955 = vunpack.c.h.b16 %v1474
    %v5956 = vunpack.c.l.b16 %v1475
    %v5957 = vunpack.c.h.b16 %v1475
    %v5958 = vunpack.c.l.b16 %v1476
    %v5959 = vunpack.c.h.b16 %v1476
    %v5960 = vunpack.c.l.b16 %v1477
    %v5961 = vunpack.c.h.b16 %v1477
    %v5962 = vunpack.c.l.b16 %v1478
    %v5963 = vunpack.c.h.b16 %v1478
    %v5964 = vunpack.c.l.b16 %v1479
    %v5965 = vunpack.c.h.b16 %v1479
    %v5966 = vunpack.c.l.b16 %v1480
    %v5967 = vunpack.c.h.b16 %v1480
    %v5968 = vunpack.c.l.b16 %v1481
    %v5969 = vunpack.c.h.b16 %v1481
    %v5970 = vunpack.c.l.b16 %v1482
    %v5971 = vunpack.c.h.b16 %v1482
    %v5972 = vunpack.c.l.b16 %v1483
    %v5973 = vunpack.c.h.b16 %v1483
    %v5974 = vunpack.c.l.b16 %v1484
    %v5975 = vunpack.c.h.b16 %v1484
    %v5976 = vunpack.c.l.b16 %v1485
    %v5977 = vunpack.c.h.b16 %v1485
    %v5978 = vunpack.c.l.b16 %v1486
    %v5979 = vunpack.c.h.b16 %v1486
    %v5980 = vunpack.c.l.b16 %v1487
    %v5981 = vunpack.c.h.b16 %v1487
    %v5982 = vunpack.c.l.b16 %v1488
    %v5983 = vunpack.c.h.b16 %v1488
    %v5984 = vunpack.c.l.b16 %v1489
    %v5985 = vunpack.c.h.b16 %v1489
    %v5986 = vunpack.c.l.b16 %v1490
    %v5987 = vunpack.c.h.b16 %v1490
    %v5988 = vunpack.c.l.b16 %v1491
    %v5989 = vunpack.c.h.b16 %v1491
    %v5990 = vunpack.c.l.b16 %v1492
    %v5991 = vunpack.c.h.b16 %v1492
    %v5992 = vunpack.c.l.b16 %v1493
    %v5993 = vunpack.c.h.b16 %v1493
    %v5994 = vunpack.c.l.b16 %v1494
    %v5995 = vunpack.c.h.b16 %v1494
    %v5996 = vunpack.c.l.b16 %v1495
    %v5997 = vunpack.c.h.b16 %v1495
    %v5998 = vunpack.c.l.b16 %v1496
    %v5999 = vunpack.c.h.b16 %v1496
    %v6000 = vunpack.c.l.b16 %v1497
    %v6001 = vunpack.c.h.b16 %v1497
    %v6002 = vunpack.c.l.b16 %v1498
    %v6003 = vunpack.c.h.b16 %v1498
    %v6004 = vunpack.c.l.b16 %v1499
    %v6005 = vunpack.c.h.b16 %v1499
    %v6006 = vunpack.c.l.b16 %v1500
    %v6007 = vunpack.c.h.b16 %v1500
    %v6008 = vunpack.c.l.b16 %v1501
    %v6009 = vunpack.c.h.b16 %v1501
    %v6010 = vunpack.c.l.b16 %v1502
    %v6011 = vunpack.c.h.b16 %v1502
    %v6012 = vunpack.c.l.b16 %v1503
    %v6013 = vunpack.c.h.b16 %v1503
    %v6014 = vunpack.c.l.b16 %v1504
    %v6015 = vunpack.c.h.b16 %v1504
    %v6016 = vunpack.c.l.b16 %v1505
    %v6017 = vunpack.c.h.b16 %v1505
    %v6018 = vunpack.c.l.b16 %v1506
    %v6019 = vunpack.c.h.b16 %v1506
    %v6020 = vunpack.c.l.b16 %v1507
    %v6021 = vunpack.c.h.b16 %v1507
    %v6022 = vunpack.c.l.b16 %v1508
    %v6023 = vunpack.c.h.b16 %v1508
    %v6024 = vunpack.c.l.b16 %v1509
    %v6025 = vunpack.c.h.b16 %v1509
    %v6026 = vunpack.c.l.b16 %v1510
    %v6027 = vunpack.c.h.b16 %v1510
    %v6028 = vunpack.c.l.b16 %v1511
    %v6029 = vunpack.c.h.b16 %v1511
    %v6030 = vunpack.c.l.b16 %v1512
    %v6031 = vunpack.c.h.b16 %v1512
    %v6032 = vunpack.c.l.b16 %v1513
    %v6033 = vunpack.c.h.b16 %v1513
    %v6034 = vunpack.c.l.b16 %v1514
    %v6035 = vunpack.c.h.b16 %v1514
    %v6036 = vunpack.c.l.b16 %v1515
    %v6037 = vunpack.c.h.b16 %v1515
    %v6038 = vunpack.c.l.b16 %v1516
    %v6039 = vunpack.c.h.b16 %v1516
    %v6040 = vunpack.c.l.b16 %v1517
    %v6041 = vunpack.c.h.b16 %v1517
    %v6042 = vunpack.c.l.b16 %v1518
    %v6043 = vunpack.c.h.b16 %v1518
    %v6044 = vunpack.c.l.b16 %v1519
    %v6045 = vunpack.c.h.b16 %v1519
    %v6046 = vunpack.c.l.b16 %v1520
    %v6047 = vunpack.c.h.b16 %v1520
    %v6048 = vunpack.c.l.b16 %v1521
    %v6049 = vunpack.c.h.b16 %v1521
    %v6050 = vunpack.c.l.b16 %v1522
    %v6051 = vunpack.c.h.b16 %v1522
    %v6052 = vunpack.c.l.b16 %v1523
    %v6053 = vunpack.c.h.b16 %v1523
    %v6054 = vunpack.c.l.b16 %v1524
    %v6055 = vunpack.c.h.b16 %v1524
    %v6056 = vunpack.c.l.b16 %v1525
    %v6057 = vunpack.c.h.b16 %v1525
    %v6058 = vunpack.c.l.b16 %v1526
    %v6059 = vunpack.c.h.b16 %v1526
    %v6060 = vunpack.c.l.b16 %v1527
    %v6061 = vunpack.c.h.b16 %v1527
    %v6062 = vunpack.c.l.b16 %v1528
    %v6063 = vunpack.c.h.b16 %v1528
    %v6064 = vunpack.c.l.b16 %v1529
    %v6065 = vunpack.c.h.b16 %v1529
    %v6066 = vunpack.c.l.b16 %v1530
    %v6067 = vunpack.c.h.b16 %v1530
    %v6068 = vunpack.c.l.b16 %v1531
    %v6069 = vunpack.c.h.b16 %v1531
    %v6070 = vunpack.c.l.b16 %v1532
    %v6071 = vunpack.c.h.b16 %v1532
    %v6072 = vunpack.c.l.b16 %v1533
    %v6073 = vunpack.c.h.b16 %v1533
    %v6074 = vunpack.c.l.b16 %v1534
    %v6075 = vunpack.c.h.b16 %v1534
    %v6076 = vunpack.c.l.b16 %v1535
    %v6077 = vunpack.c.h.b16 %v1535
    %v6078 = vunpack.c.l.b16 %v1536
    %v6079 = vunpack.c.h.b16 %v1536
    %v6080 = vunpack.c.l.b16 %v1537
    %v6081 = vunpack.c.h.b16 %v1537
    %v6082 = vunpack.c.l.b16 %v1538
    %v6083 = vunpack.c.h.b16 %v1538
    %v6084 = vunpack.c.l.b16 %v1539
    %v6085 = vunpack.c.h.b16 %v1539
    %v6086 = vunpack.c.l.b16 %v1540
    %v6087 = vunpack.c.h.b16 %v1540
    %v6088 = vunpack.c.l.b16 %v1541
    %v6089 = vunpack.c.h.b16 %v1541
    %v6090 = vunpack.c.l.b16 %v1542
    %v6091 = vunpack.c.h.b16 %v1542
    %v6092 = vunpack.c.l.b16 %v1543
    %v6093 = vunpack.c.h.b16 %v1543
    %v6094 = vunpack.c.l.b16 %v1544
    %v6095 = vunpack.c.h.b16 %v1544
    %v6096 = vunpack.c.l.b16 %v1545
    %v6097 = vunpack.c.h.b16 %v1545
    %v6098 = vunpack.c.l.b16 %v1546
    %v6099 = vunpack.c.h.b16 %v1546
    %v6100 = vunpack.c.l.b16 %v1547
    %v6101 = vunpack.c.h.b16 %v1547
    %v6102 = vunpack.c.l.b16 %v1548
    %v6103 = vunpack.c.h.b16 %v1548
    %v6104 = vunpack.c.l.b16 %v1549
    %v6105 = vunpack.c.h.b16 %v1549
    %v6106 = vunpack.c.l.b16 %v1550
    %v6107 = vunpack.c.h.b16 %v1550
    %v6108 = vunpack.c.l.b16 %v1551
    %v6109 = vunpack.c.h.b16 %v1551
    %v6110 = vunpack.c.l.b16 %v1552
    %v6111 = vunpack.c.h.b16 %v1552
    %v6112 = vunpack.c.l.b16 %v1553
    %v6113 = vunpack.c.h.b16 %v1553
    %v6114 = vunpack.c.l.b16 %v1554
    %v6115 = vunpack.c.h.b16 %v1554
    %v6116 = vunpack.c.l.b16 %v1555
    %v6117 = vunpack.c.h.b16 %v1555
    %v6118 = vunpack.c.l.b16 %v1556
    %v6119 = vunpack.c.h.b16 %v1556
    %v6120 = vunpack.c.l.b16 %v1557
    %v6121 = vunpack.c.h.b16 %v1557
    %v6122 = vunpack.c.l.b16 %v1558
    %v6123 = vunpack.c.h.b16 %v1558
    %v6124 = vunpack.c.l.b16 %v1559
    %v6125 = vunpack.c.h.b16 %v1559
    %v6126 = vunpack.c.l.b16 %v1560
    %v6127 = vunpack.c.h.b16 %v1560
    %v6128 = vunpack.c.l.b16 %v1561
    %v6129 = vunpack.c.h.b16 %v1561
    %v6130 = vunpack.c.l.b16 %v1562
    %v6131 = vunpack.c.h.b16 %v1562
    %v6132 = vunpack.c.l.b16 %v1563
    %v6133 = vunpack.c.h.b16 %v1563
    %v6134 = vunpack.c.l.b16 %v1564
    %v6135 = vunpack.c.h.b16 %v1564
    %v6136 = vunpack.c.l.b16 %v1565
    %v6137 = vunpack.c.h.b16 %v1565
    %v6138 = vunpack.c.l.b16 %v1566
    %v6139 = vunpack.c.h.b16 %v1566
    %v6140 = vunpack.c.l.b16 %v1567
    %v6141 = vunpack.c.h.b16 %v1567
    %v6142 = vunpack.c.l.b16 %v1568
    %v6143 = vunpack.c.h.b16 %v1568
    %v6144 = vunpack.c.l.b16 %v1569
    %v6145 = vunpack.c.h.b16 %v1569
    %v6146 = vunpack.c.l.b16 %v1570
    %v6147 = vunpack.c.h.b16 %v1570
    %v6148 = vunpack.c.l.b16 %v1571
    %v6149 = vunpack.c.h.b16 %v1571
    %v6150 = vunpack.c.l.b16 %v1572
    %v6151 = vunpack.c.h.b16 %v1572
    %v6152 = vunpack.c.l.b16 %v1573
    %v6153 = vunpack.c.h.b16 %v1573
    %v6154 = vunpack.c.l.b16 %v1574
    %v6155 = vunpack.c.h.b16 %v1574
    %v6156 = vunpack.c.l.b16 %v1575
    %v6157 = vunpack.c.h.b16 %v1575
    %v6158 = vunpack.c.l.b16 %v1576
    %v6159 = vunpack.c.h.b16 %v1576
    %v6160 = vunpack.c.l.b16 %v1577
    %v6161 = vunpack.c.h.b16 %v1577
    %v6162 = vunpack.c.l.b16 %v1578
    %v6163 = vunpack.c.h.b16 %v1578
    %v6164 = vunpack.c.l.b16 %v1579
    %v6165 = vunpack.c.h.b16 %v1579
    %v6166 = vunpack.c.l.b16 %v1580
    %v6167 = vunpack.c.h.b16 %v1580
    %v6168 = vunpack.c.l.b16 %v1581
    %v6169 = vunpack.c.h.b16 %v1581
    %v6170 = vunpack.c.l.b16 %v1582
    %v6171 = vunpack.c.h.b16 %v1582
    %v6172 = vunpack.c.l.b16 %v1583
    %v6173 = vunpack.c.h.b16 %v1583
    %v6174 = vunpack.c.l.b16 %v1584
    %v6175 = vunpack.c.h.b16 %v1584
    %v6176 = vunpack.c.l.b16 %v1585
    %v6177 = vunpack.c.h.b16 %v1585
    %v6178 = vunpack.c.l.b16 %v1586
    %v6179 = vunpack.c.h.b16 %v1586
    %v6180 = vunpack.c.l.b16 %v1587
    %v6181 = vunpack.c.h.b16 %v1587
    %v6182 = vunpack.c.l.b16 %v1588
    %v6183 = vunpack.c.h.b16 %v1588
    %v6184 = vunpack.c.l.b16 %v1589
    %v6185 = vunpack.c.h.b16 %v1589
    %v6186 = vunpack.c.l.b16 %v1590
    %v6187 = vunpack.c.h.b16 %v1590
    %v6188 = vunpack.c.l.b16 %v1591
    %v6189 = vunpack.c.h.b16 %v1591
    %v6190 = vunpack.c.l.b16 %v1592
    %v6191 = vunpack.c.h.b16 %v1592
    %v6192 = vunpack.c.l.b16 %v1593
    %v6193 = vunpack.c.h.b16 %v1593
    %v6194 = vunpack.c.l.b16 %v1594
    %v6195 = vunpack.c.h.b16 %v1594
    %v6196 = vunpack.c.l.b16 %v1595
    %v6197 = vunpack.c.h.b16 %v1595
    %v6198 = vunpack.c.l.b16 %v1596
    %v6199 = vunpack.c.h.b16 %v1596
    %v6200 = vunpack.c.l.b16 %v1597
    %v6201 = vunpack.c.h.b16 %v1597
    %v6202 = vunpack.c.l.b16 %v1598
    %v6203 = vunpack.c.h.b16 %v1598
    %v6204 = vunpack.c.l.b16 %v1599
    %v6205 = vunpack.c.h.b16 %v1599
    %v6206 = vunpack.c.l.b16 %v1600
    %v6207 = vunpack.c.h.b16 %v1600
    %v6208 = vunpack.c.l.b16 %v1601
    %v6209 = vunpack.c.h.b16 %v1601
    %v6210 = vunpack.c.l.b16 %v1602
    %v6211 = vunpack.c.h.b16 %v1602
    %v6212 = vunpack.c.l.b16 %v1603
    %v6213 = vunpack.c.h.b16 %v1603
    %v6214 = vunpack.c.l.b16 %v1604
    %v6215 = vunpack.c.h.b16 %v1604
    %v6216 = vunpack.c.l.b16 %v1605
    %v6217 = vunpack.c.h.b16 %v1605
    %v6218 = vunpack.c.l.b16 %v1606
    %v6219 = vunpack.c.h.b16 %v1606
    %v6220 = vunpack.c.l.b16 %v1607
    %v6221 = vunpack.c.h.b16 %v1607
    %v6222 = vunpack.c.l.b16 %v1608
    %v6223 = vunpack.c.h.b16 %v1608
    %v6224 = vunpack.c.l.b16 %v1609
    %v6225 = vunpack.c.h.b16 %v1609
    %v6226 = vunpack.c.l.b16 %v1610
    %v6227 = vunpack.c.h.b16 %v1610
    %v6228 = vunpack.c.l.b16 %v1611
    %v6229 = vunpack.c.h.b16 %v1611
    %v6230 = vunpack.c.l.b16 %v1612
    %v6231 = vunpack.c.h.b16 %v1612
    %v6232 = vunpack.c.l.b16 %v1613
    %v6233 = vunpack.c.h.b16 %v1613
    %v6234 = vunpack.c.l.b16 %v1614
    %v6235 = vunpack.c.h.b16 %v1614
    %v6236 = vunpack.c.l.b16 %v1615
    %v6237 = vunpack.c.h.b16 %v1615
    %v6238 = vunpack.c.l.b16 %v1616
    %v6239 = vunpack.c.h.b16 %v1616
    %v6240 = vunpack.c.l.b16 %v1617
    %v6241 = vunpack.c.h.b16 %v1617
    %v6242 = vunpack.c.l.b16 %v1618
    %v6243 = vunpack.c.h.b16 %v1618
    %v6244 = vunpack.c.l.b16 %v1619
    %v6245 = vunpack.c.h.b16 %v1619
    %v6246 = vunpack.c.l.b16 %v1620
    %v6247 = vunpack.c.h.b16 %v1620
    %v6248 = vunpack.c.l.b16 %v1621
    %v6249 = vunpack.c.h.b16 %v1621
    %v6250 = vunpack.c.l.b16 %v1622
    %v6251 = vunpack.c.h.b16 %v1622
    %v6252 = vunpack.c.l.b16 %v1623
    %v6253 = vunpack.c.h.b16 %v1623
    %v6254 = vunpack.c.l.b16 %v1624
    %v6255 = vunpack.c.h.b16 %v1624
    %v6256 = vunpack.c.l.b16 %v1625
    %v6257 = vunpack.c.h.b16 %v1625
    %v6258 = vunpack.c.l.b16 %v1626
    %v6259 = vunpack.c.h.b16 %v1626
    %v6260 = vunpack.c.l.b16 %v1627
    %v6261 = vunpack.c.h.b16 %v1627
    %v6262 = vunpack.c.l.b16 %v1628
    %v6263 = vunpack.c.h.b16 %v1628
    %v6264 = vunpack.c.l.b16 %v1629
    %v6265 = vunpack.c.h.b16 %v1629
    %v6266 = vunpack.c.l.b16 %v1630
    %v6267 = vunpack.c.h.b16 %v1630
    %v6268 = vunpack.c.l.b16 %v1631
    %v6269 = vunpack.c.h.b16 %v1631
    %v6270 = vunpack.c.l.b16 %v1632
    %v6271 = vunpack.c.h.b16 %v1632
    %v6272 = vunpack.c.l.b16 %v1633
    %v6273 = vunpack.c.h.b16 %v1633
    %v6274 = vunpack.c.l.b16 %v1634
    %v6275 = vunpack.c.h.b16 %v1634
    %v6276 = vunpack.c.l.b16 %v1635
    %v6277 = vunpack.c.h.b16 %v1635
    %v6278 = vunpack.c.l.b16 %v1636
    %v6279 = vunpack.c.h.b16 %v1636
    %v6280 = vunpack.c.l.b16 %v1637
    %v6281 = vunpack.c.h.b16 %v1637
    %v6282 = vunpack.c.l.b16 %v1638
    %v6283 = vunpack.c.h.b16 %v1638
    %v6284 = vunpack.c.l.b16 %v1639
    %v6285 = vunpack.c.h.b16 %v1639
    %v6286 = vunpack.c.l.b16 %v1640
    %v6287 = vunpack.c.h.b16 %v1640
    %v6288 = vunpack.c.l.b16 %v1641
    %v6289 = vunpack.c.h.b16 %v1641
    %v6290 = vunpack.c.l.b16 %v1642
    %v6291 = vunpack.c.h.b16 %v1642
    %v6292 = vunpack.c.l.b16 %v1643
    %v6293 = vunpack.c.h.b16 %v1643
    %v6294 = vunpack.c.l.b16 %v1644
    %v6295 = vunpack.c.h.b16 %v1644
    %v6296 = vunpack.c.l.b16 %v1645
    %v6297 = vunpack.c.h.b16 %v1645
    %v6298 = vunpack.c.l.b16 %v1646
    %v6299 = vunpack.c.h.b16 %v1646
    %v6300 = vunpack.c.l.b16 %v1647
    %v6301 = vunpack.c.h.b16 %v1647
    %v6302 = vunpack.c.l.b16 %v1648
    %v6303 = vunpack.c.h.b16 %v1648
    %v6304 = vunpack.c.l.b16 %v1649
    %v6305 = vunpack.c.h.b16 %v1649
    %v6306 = vunpack.c.l.b16 %v1650
    %v6307 = vunpack.c.h.b16 %v1650
    %v6308 = vunpack.c.l.b16 %v1651
    %v6309 = vunpack.c.h.b16 %v1651
    %v6310 = vunpack.c.l.b16 %v1652
    %v6311 = vunpack.c.h.b16 %v1652
    %v6312 = vunpack.c.l.b16 %v1653
    %v6313 = vunpack.c.h.b16 %v1653
    %v6314 = vunpack.c.l.b16 %v1654
    %v6315 = vunpack.c.h.b16 %v1654
    %v6316 = vunpack.c.l.b16 %v1655
    %v6317 = vunpack.c.h.b16 %v1655
    %v6318 = vunpack.c.l.b16 %v1656
    %v6319 = vunpack.c.h.b16 %v1656
    %v6320 = vunpack.c.l.b16 %v1657
    %v6321 = vunpack.c.h.b16 %v1657
    %v6322 = vunpack.c.l.b16 %v1658
    %v6323 = vunpack.c.h.b16 %v1658
    %v6324 = vunpack.c.l.b16 %v1659
    %v6325 = vunpack.c.h.b16 %v1659
    %v6326 = vunpack.c.l.b16 %v1660
    %v6327 = vunpack.c.h.b16 %v1660
    %v6328 = vunpack.c.l.b16 %v1661
    %v6329 = vunpack.c.h.b16 %v1661
    %v6330 = vunpack.c.l.b16 %v1662
    %v6331 = vunpack.c.h.b16 %v1662
    %v6332 = vunpack.c.l.b16 %v1663
    %v6333 = vunpack.c.h.b16 %v1663
    %v6334 = vunpack.c.l.b16 %v1664
    %v6335 = vunpack.c.h.b16 %v1664
    %v6336 = vunpack.c.l.b16 %v1665
    %v6337 = vunpack.c.h.b16 %v1665
    %v6338 = vunpack.c.l.b16 %v1666
    %v6339 = vunpack.c.h.b16 %v1666
    %v6340 = vunpack.c.l.b16 %v1667
    %v6341 = vunpack.c.h.b16 %v1667
    %v6342 = vunpack.c.l.b16 %v1668
    %v6343 = vunpack.c.h.b16 %v1668
    %v6344 = vunpack.c.l.b16 %v1669
    %v6345 = vunpack.c.h.b16 %v1669
    %v6346 = vunpack.c.l.b16 %v1670
    %v6347 = vunpack.c.h.b16 %v1670
    %v6348 = vunpack.c.l.b16 %v1671
    %v6349 = vunpack.c.h.b16 %v1671
    %v6350 = vunpack.c.l.b16 %v1672
    %v6351 = vunpack.c.h.b16 %v1672
    %v6352 = vunpack.c.l.b16 %v1673
    %v6353 = vunpack.c.h.b16 %v1673
    %v6354 = vunpack.c.l.b16 %v1674
    %v6355 = vunpack.c.h.b16 %v1674
    %v6356 = vunpack.c.l.b16 %v1675
    %v6357 = vunpack.c.h.b16 %v1675
    %v6358 = vunpack.c.l.b16 %v1676
    %v6359 = vunpack.c.h.b16 %v1676
    %v6360 = vunpack.c.l.b16 %v1677
    %v6361 = vunpack.c.h.b16 %v1677
    %v6362 = vunpack.c.l.b16 %v1678
    %v6363 = vunpack.c.h.b16 %v1678
    %v6364 = vunpack.c.l.b16 %v1679
    %v6365 = vunpack.c.h.b16 %v1679
    %v6366 = vunpack.c.l.b16 %v1680
    %v6367 = vunpack.c.h.b16 %v1680
    %v6368 = vunpack.c.l.b16 %v1681
    %v6369 = vunpack.c.h.b16 %v1681
    %v6370 = vunpack.c.l.b16 %v1682
    %v6371 = vunpack.c.h.b16 %v1682
    %v6372 = vunpack.c.l.b16 %v1683
    %v6373 = vunpack.c.h.b16 %v1683
    %v6374 = vunpack.c.l.b16 %v1684
    %v6375 = vunpack.c.h.b16 %v1684
    %v6376 = vunpack.c.l.b16 %v1685
    %v6377 = vunpack.c.h.b16 %v1685
    %v6378 = vunpack.c.l.b16 %v1686
    %v6379 = vunpack.c.h.b16 %v1686
    %v6380 = vunpack.c.l.b16 %v1687
    %v6381 = vunpack.c.h.b16 %v1687
    %v6382 = vunpack.c.l.b16 %v1688
    %v6383 = vunpack.c.h.b16 %v1688
    %v6384 = vunpack.c.l.b16 %v1689
    %v6385 = vunpack.c.h.b16 %v1689
    %v6386 = vunpack.c.l.b16 %v1690
    %v6387 = vunpack.c.h.b16 %v1690
    %v6388 = vunpack.c.l.b16 %v1691
    %v6389 = vunpack.c.h.b16 %v1691
    %v6390 = vunpack.c.l.b16 %v1692
    %v6391 = vunpack.c.h.b16 %v1692
    %v6392 = vunpack.c.l.b16 %v1693
    %v6393 = vunpack.c.h.b16 %v1693
    %v6394 = vunpack.c.l.b16 %v1694
    %v6395 = vunpack.c.h.b16 %v1694
    %v6396 = vunpack.c.l.b16 %v1695
    %v6397 = vunpack.c.h.b16 %v1695
    %v6398 = vunpack.c.l.b16 %v1696
    %v6399 = vunpack.c.h.b16 %v1696
    %v6400 = vunpack.c.l.b16 %v1697
    %v6401 = vunpack.c.h.b16 %v1697
    %v6402 = vunpack.c.l.b16 %v1698
    %v6403 = vunpack.c.h.b16 %v1698
    %v6404 = vunpack.c.l.b16 %v1699
    %v6405 = vunpack.c.h.b16 %v1699
    %v6406 = vunpack.c.l.b16 %v1700
    %v6407 = vunpack.c.h.b16 %v1700
    %v6408 = vunpack.c.l.b16 %v1701
    %v6409 = vunpack.c.h.b16 %v1701
    %v6410 = vunpack.c.l.b16 %v1702
    %v6411 = vunpack.c.h.b16 %v1702
    %v6412 = vunpack.c.l.b16 %v1703
    %v6413 = vunpack.c.h.b16 %v1703
    %v6414 = vunpack.c.l.b16 %v1704
    %v6415 = vunpack.c.h.b16 %v1704
    %v6416 = vunpack.c.l.b16 %v1705
    %v6417 = vunpack.c.h.b16 %v1705
    %v6418 = vunpack.c.l.b16 %v1706
    %v6419 = vunpack.c.h.b16 %v1706
    %v6420 = vunpack.c.l.b16 %v1707
    %v6421 = vunpack.c.h.b16 %v1707
    %v6422 = vunpack.c.l.b16 %v1708
    %v6423 = vunpack.c.h.b16 %v1708
    %v6424 = vunpack.c.l.b16 %v1709
    %v6425 = vunpack.c.h.b16 %v1709
    %v6426 = vunpack.c.l.b16 %v1710
    %v6427 = vunpack.c.h.b16 %v1710
    %v6428 = vunpack.c.l.b16 %v1711
    %v6429 = vunpack.c.h.b16 %v1711
    %v6430 = vunpack.c.l.b16 %v1712
    %v6431 = vunpack.c.h.b16 %v1712
    %v6432 = vunpack.c.l.b16 %v1713
    %v6433 = vunpack.c.h.b16 %v1713
    %v6434 = vunpack.c.l.b16 %v1714
    %v6435 = vunpack.c.h.b16 %v1714
    %v6436 = vunpack.c.l.b16 %v1715
    %v6437 = vunpack.c.h.b16 %v1715
    %v6438 = vunpack.c.l.b16 %v1716
    %v6439 = vunpack.c.h.b16 %v1716
    %v6440 = vunpack.c.l.b16 %v1717
    %v6441 = vunpack.c.h.b16 %v1717
    %v6442 = vunpack.c.l.b16 %v1718
    %v6443 = vunpack.c.h.b16 %v1718
    %v6444 = vunpack.c.l.b16 %v1719
    %v6445 = vunpack.c.h.b16 %v1719
    %v6446 = vunpack.c.l.b16 %v1720
    %v6447 = vunpack.c.h.b16 %v1720
    %v6448 = vunpack.c.l.b16 %v1721
    %v6449 = vunpack.c.h.b16 %v1721
    %v6450 = vunpack.c.l.b16 %v1722
    %v6451 = vunpack.c.h.b16 %v1722
    %v6452 = vunpack.c.l.b16 %v1723
    %v6453 = vunpack.c.h.b16 %v1723
    %v6454 = vunpack.c.l.b16 %v1724
    %v6455 = vunpack.c.h.b16 %v1724
    %v6456 = vunpack.c.l.b16 %v1725
    %v6457 = vunpack.c.h.b16 %v1725
    %v6458 = vunpack.c.l.b16 %v1726
    %v6459 = vunpack.c.h.b16 %v1726
    %v6460 = vunpack.c.l.b16 %v1727
    %v6461 = vunpack.c.h.b16 %v1727
    %v6462 = vpack.c.b16 %v3398, %v3390
    %v6463 = vpack.c.b16 %v3399, %v3391
    %v6464 = vpack.c.b16 %v3400, %v3392
    %v6465 = vpack.c.b16 %v3401, %v3393
    %v6466 = vpack.c.b16 %v3402, %v3394
    %v6467 = vpack.c.b16 %v3403, %v3395
    %v6468 = vpack.c.b16 %v3404, %v3396
    %v6469 = vpack.c.b16 %v3405, %v3397
    %v6470 = vpack.c.b16 %v3414, %v3406
    %v6471 = vpack.c.b16 %v3415, %v3407
    %v6472 = vpack.c.b16 %v3416, %v3408
    %v6473 = vpack.c.b16 %v3417, %v3409
    %v6474 = vpack.c.b16 %v3418, %v3410
    %v6475 = vpack.c.b16 %v3419, %v3411
    %v6476 = vpack.c.b16 %v3420, %v3412
    %v6477 = vpack.c.b16 %v3421, %v3413
    %v6478 = vpack.c.b16 %v3430, %v3422
    %v6479 = vpack.c.b16 %v3431, %v3423
    %v6480 = vpack.c.b16 %v3432, %v3424
    %v6481 = vpack.c.b16 %v3433, %v3425
    %v6482 = vpack.c.b16 %v3434, %v3426
    %v6483 = vpack.c.b16 %v3435, %v3427
    %v6484 = vpack.c.b16 %v3436, %v3428
    %v6485 = vpack.c.b16 %v3437, %v3429
    %v6486 = vpack.c.b16 %v3446, %v3438
    %v6487 = vpack.c.b16 %v3447, %v3439
    %v6488 = vpack.c.b16 %v3448, %v3440
    %v6489 = vpack.c.b16 %v3449, %v3441
    %v6490 = vpack.c.b16 %v3450, %v3442
    %v6491 = vpack.c.b16 %v3451, %v3443
    %v6492 = vpack.c.b16 %v3452, %v3444
    %v6493 = vpack.c.b16 %v3453, %v3445
    %v6494 = vpack.c.b16 %v3462, %v3454
    %v6495 = vpack.c.b16 %v3463, %v3455
    %v6496 = vpack.c.b16 %v3464, %v3456
    %v6497 = vpack.c.b16 %v3465, %v3457
    %v6498 = vpack.c.b16 %v3466, %v3458
    %v6499 = vpack.c.b16 %v3467, %v3459
    %v6500 = vpack.c.b16 %v3468, %v3460
    %v6501 = vpack.c.b16 %v3469, %v3461
    %v6502 = vpack.c.b16 %v3478, %v3470
    %v6503 = vpack.c.b16 %v3479, %v3471
    %v6504 = vpack.c.b16 %v3480, %v3472
    %v6505 = vpack.c.b16 %v3481, %v3473
    %v6506 = vpack.c.b16 %v3482, %v3474
    %v6507 = vpack.c.b16 %v3483, %v3475
    %v6508 = vpack.c.b16 %v3484, %v3476
    %v6509 = vpack.c.b16 %v3485, %v3477
    %v6510 = vpack.c.b16 %v3494, %v3486
    %v6511 = vpack.c.b16 %v3495, %v3487
    %v6512 = vpack.c.b16 %v3496, %v3488
    %v6513 = vpack.c.b16 %v3497, %v3489
    %v6514 = vpack.c.b16 %v3498, %v3490
    %v6515 = vpack.c.b16 %v3499, %v3491
    %v6516 = vpack.c.b16 %v3500, %v3492
    %v6517 = vpack.c.b16 %v3501, %v3493
    %v6518 = vpack.c.b16 %v3510, %v3502
    %v6519 = vpack.c.b16 %v3511, %v3503
    %v6520 = vpack.c.b16 %v3512, %v3504
    %v6521 = vpack.c.b16 %v3513, %v3505
    %v6522 = vpack.c.b16 %v3514, %v3506
    %v6523 = vpack.c.b16 %v3515, %v3507
    %v6524 = vpack.c.b16 %v3516, %v3508
    %v6525 = vpack.c.b16 %v3517, %v3509
    %v6526 = vpack.c.b16 %v3526, %v3518
    %v6527 = vpack.c.b16 %v3527, %v3519
    %v6528 = vpack.c.b16 %v3528, %v3520
    %v6529 = vpack.c.b16 %v3529, %v3521
    %v6530 = vpack.c.b16 %v3530, %v3522
    %v6531 = vpack.c.b16 %v3531, %v3523
    %v6532 = vpack.c.b16 %v3532, %v3524
    %v6533 = vpack.c.b16 %v3533, %v3525
    %v6534 = vpack.c.b16 %v3542, %v3534
    %v6535 = vpack.c.b16 %v3543, %v3535
    %v6536 = vpack.c.b16 %v3544, %v3536
    %v6537 = vpack.c.b16 %v3545, %v3537
    %v6538 = vpack.c.b16 %v3546, %v3538
    %v6539 = vpack.c.b16 %v3547, %v3539
    %v6540 = vpack.c.b16 %v3548, %v3540
    %v6541 = vpack.c.b16 %v3549, %v3541
    %v6542 = vpack.c.b16 %v3558, %v3550
    %v6543 = vpack.c.b16 %v3559, %v3551
    %v6544 = vpack.c.b16 %v3560, %v3552
    %v6545 = vpack.c.b16 %v3561, %v3553
    %v6546 = vpack.c.b16 %v3562, %v3554
    %v6547 = vpack.c.b16 %v3563, %v3555
    %v6548 = vpack.c.b16 %v3564, %v3556
    %v6549 = vpack.c.b16 %v3565, %v3557
    %v6550 = vpack.c.b16 %v3574, %v3566
    %v6551 = vpack.c.b16 %v3575, %v3567
    %v6552 = vpack.c.b16 %v3576, %v3568
    %v6553 = vpack.c.b16 %v3577, %v3569
    %v6554 = vpack.c.b16 %v3578, %v3570
    %v6555 = vpack.c.b16 %v3579, %v3571
    %v6556 = vpack.c.b16 %v3580, %v3572
    %v6557 = vpack.c.b16 %v3581, %v3573
    %v6558 = vpack.c.b16 %v3590, %v3582
    %v6559 = vpack.c.b16 %v3591, %v3583
    %v6560 = vpack.c.b16 %v3592, %v3584
    %v6561 = vpack.c.b16 %v3593, %v3585
    %v6562 = vpack.c.b16 %v3594, %v3586
    %v6563 = vpack.c.b16 %v3595, %v3587
    %v6564 = vpack.c.b16 %v3596, %v3588
    %v6565 = vpack.c.b16 %v3597, %v3589
    %v6566 = vpack.c.b16 %v3606, %v3598
    %v6567 = vpack.c.b16 %v3607, %v3599
    %v6568 = vpack.c.b16 %v3608, %v3600
    %v6569 = vpack.c.b16 %v3609, %v3601
    %v6570 = vpack.c.b16 %v3610, %v3602
    %v6571 = vpack.c.b16 %v3611, %v3603
    %v6572 = vpack.c.b16 %v3612, %v3604
    %v6573 = vpack.c.b16 %v3613, %v3605
    %v6574 = vpack.c.b16 %v3622, %v3614
    %v6575 = vpack.c.b16 %v3623, %v3615
    %v6576 = vpack.c.b16 %v3624, %v3616
    %v6577 = vpack.c.b16 %v3625, %v3617
    %v6578 = vpack.c.b16 %v3626, %v3618
    %v6579 = vpack.c.b16 %v3627, %v3619
    %v6580 = vpack.c.b16 %v3628, %v3620
    %v6581 = vpack.c.b16 %v3629, %v3621
    %v6582 = vpack.c.b16 %v3638, %v3630
    %v6583 = vpack.c.b16 %v3639, %v3631
    %v6584 = vpack.c.b16 %v3640, %v3632
    %v6585 = vpack.c.b16 %v3641, %v3633
    %v6586 = vpack.c.b16 %v3642, %v3634
    %v6587 = vpack.c.b16 %v3643, %v3635
    %v6588 = vpack.c.b16 %v3644, %v3636
    %v6589 = vpack.c.b16 %v3645, %v3637
    %v6590 = vpack.c.b16 %v3654, %v3646
    %v6591 = vpack.c.b16 %v3655, %v3647
    %v6592 = vpack.c.b16 %v3656, %v3648
    %v6593 = vpack.c.b16 %v3657, %v3649
    %v6594 = vpack.c.b16 %v3658, %v3650
    %v6595 = vpack.c.b16 %v3659, %v3651
    %v6596 = vpack.c.b16 %v3660, %v3652
    %v6597 = vpack.c.b16 %v3661, %v3653
    %v6598 = vpack.c.b16 %v3670, %v3662
    %v6599 = vpack.c.b16 %v3671, %v3663
    %v6600 = vpack.c.b16 %v3672, %v3664
    %v6601 = vpack.c.b16 %v3673, %v3665
    %v6602 = vpack.c.b16 %v3674, %v3666
    %v6603 = vpack.c.b16 %v3675, %v3667
    %v6604 = vpack.c.b16 %v3676, %v3668
    %v6605 = vpack.c.b16 %v3677, %v3669
    %v6606 = vpack.c.b16 %v3686, %v3678
    %v6607 = vpack.c.b16 %v3687, %v3679
    %v6608 = vpack.c.b16 %v3688, %v3680
    %v6609 = vpack.c.b16 %v3689, %v3681
    %v6610 = vpack.c.b16 %v3690, %v3682
    %v6611 = vpack.c.b16 %v3691, %v3683
    %v6612 = vpack.c.b16 %v3692, %v3684
    %v6613 = vpack.c.b16 %v3693, %v3685
    %v6614 = vpack.c.b16 %v3702, %v3694
    %v6615 = vpack.c.b16 %v3703, %v3695
    %v6616 = vpack.c.b16 %v3704, %v3696
    %v6617 = vpack.c.b16 %v3705, %v3697
    %v6618 = vpack.c.b16 %v3706, %v3698
    %v6619 = vpack.c.b16 %v3707, %v3699
    %v6620 = vpack.c.b16 %v3708, %v3700
    %v6621 = vpack.c.b16 %v3709, %v3701
    %v6622 = vpack.c.b16 %v3718, %v3710
    %v6623 = vpack.c.b16 %v3719, %v3711
    %v6624 = vpack.c.b16 %v3720, %v3712
    %v6625 = vpack.c.b16 %v3721, %v3713
    %v6626 = vpack.c.b16 %v3722, %v3714
    %v6627 = vpack.c.b16 %v3723, %v3715
    %v6628 = vpack.c.b16 %v3724, %v3716
    %v6629 = vpack.c.b16 %v3725, %v3717
    %v6630 = vpack.c.b16 %v3734, %v3726
    %v6631 = vpack.c.b16 %v3735, %v3727
    %v6632 = vpack.c.b16 %v3736, %v3728
    %v6633 = vpack.c.b16 %v3737, %v3729
    %v6634 = vpack.c.b16 %v3738, %v3730
    %v6635 = vpack.c.b16 %v3739, %v3731
    %v6636 = vpack.c.b16 %v3740, %v3732
    %v6637 = vpack.c.b16 %v3741, %v3733
    %v6638 = vpack.c.b16 %v3750, %v3742
    %v6639 = vpack.c.b16 %v3751, %v3743
    %v6640 = vpack.c.b16 %v3752, %v3744
    %v6641 = vpack.c.b16 %v3753, %v3745
    %v6642 = vpack.c.b16 %v3754, %v3746
    %v6643 = vpack.c.b16 %v3755, %v3747
    %v6644 = vpack.c.b16 %v3756, %v3748
    %v6645 = vpack.c.b16 %v3757, %v3749
    %v6646 = vpack.c.b16 %v3766, %v3758
    %v6647 = vpack.c.b16 %v3767, %v3759
    %v6648 = vpack.c.b16 %v3768, %v3760
    %v6649 = vpack.c.b16 %v3769, %v3761
    %v6650 = vpack.c.b16 %v3770, %v3762
    %v6651 = vpack.c.b16 %v3771, %v3763
    %v6652 = vpack.c.b16 %v3772, %v3764
    %v6653 = vpack.c.b16 %v3773, %v3765
    %v6654 = vpack.c.b16 %v3782, %v3774
    %v6655 = vpack.c.b16 %v3783, %v3775
    %v6656 = vpack.c.b16 %v3784, %v3776
    %v6657 = vpack.c.b16 %v3785, %v3777
    %v6658 = vpack.c.b16 %v3786, %v3778
    %v6659 = vpack.c.b16 %v3787, %v3779
    %v6660 = vpack.c.b16 %v3788, %v3780
    %v6661 = vpack.c.b16 %v3789, %v3781
    %v6662 = vpack.c.b16 %v3798, %v3790
    %v6663 = vpack.c.b16 %v3799, %v3791
    %v6664 = vpack.c.b16 %v3800, %v3792
    %v6665 = vpack.c.b16 %v3801, %v3793
    %v6666 = vpack.c.b16 %v3802, %v3794
    %v6667 = vpack.c.b16 %v3803, %v3795
    %v6668 = vpack.c.b16 %v3804, %v3796
    %v6669 = vpack.c.b16 %v3805, %v3797
    %v6670 = vpack.c.b16 %v3814, %v3806
    %v6671 = vpack.c.b16 %v3815, %v3807
    %v6672 = vpack.c.b16 %v3816, %v3808
    %v6673 = vpack.c.b16 %v3817, %v3809
    %v6674 = vpack.c.b16 %v3818, %v3810
    %v6675 = vpack.c.b16 %v3819, %v3811
    %v6676 = vpack.c.b16 %v3820, %v3812
    %v6677 = vpack.c.b16 %v3821, %v3813
    %v6678 = vpack.c.b16 %v3830, %v3822
    %v6679 = vpack.c.b16 %v3831, %v3823
    %v6680 = vpack.c.b16 %v3832, %v3824
    %v6681 = vpack.c.b16 %v3833, %v3825
    %v6682 = vpack.c.b16 %v3834, %v3826
    %v6683 = vpack.c.b16 %v3835, %v3827
    %v6684 = vpack.c.b16 %v3836, %v3828
    %v6685 = vpack.c.b16 %v3837, %v3829
    %v6686 = vpack.c.b16 %v3846, %v3838
    %v6687 = vpack.c.b16 %v3847, %v3839
    %v6688 = vpack.c.b16 %v3848, %v3840
    %v6689 = vpack.c.b16 %v3849, %v3841
    %v6690 = vpack.c.b16 %v3850, %v3842
    %v6691 = vpack.c.b16 %v3851, %v3843
    %v6692 = vpack.c.b16 %v3852, %v3844
    %v6693 = vpack.c.b16 %v3853, %v3845
    %v6694 = vpack.c.b16 %v3862, %v3854
    %v6695 = vpack.c.b16 %v3863, %v3855
    %v6696 = vpack.c.b16 %v3864, %v3856
    %v6697 = vpack.c.b16 %v3865, %v3857
    %v6698 = vpack.c.b16 %v3866, %v3858
    %v6699 = vpack.c.b16 %v3867, %v3859
    %v6700 = vpack.c.b16 %v3868, %v3860
    %v6701 = vpack.c.b16 %v3869, %v3861
    %v6702 = vpack.c.b16 %v3878, %v3870
    %v6703 = vpack.c.b16 %v3879, %v3871
    %v6704 = vpack.c.b16 %v3880, %v3872
    %v6705 = vpack.c.b16 %v3881, %v3873
    %v6706 = vpack.c.b16 %v3882, %v3874
    %v6707 = vpack.c.b16 %v3883, %v3875
    %v6708 = vpack.c.b16 %v3884, %v3876
    %v6709 = vpack.c.b16 %v3885, %v3877
    %v6710 = vpack.c.b16 %v3894, %v3886
    %v6711 = vpack.c.b16 %v3895, %v3887
    %v6712 = vpack.c.b16 %v3896, %v3888
    %v6713 = vpack.c.b16 %v3897, %v3889
    %v6714 = vpack.c.b16 %v3898, %v3890
    %v6715 = vpack.c.b16 %v3899, %v3891
    %v6716 = vpack.c.b16 %v3900, %v3892
    %v6717 = vpack.c.b16 %v3901, %v3893
    %v6718 = vpack.c.b16 %v3910, %v3902
    %v6719 = vpack.c.b16 %v3911, %v3903
    %v6720 = vpack.c.b16 %v3912, %v3904
    %v6721 = vpack.c.b16 %v3913, %v3905
    %v6722 = vpack.c.b16 %v3914, %v3906
    %v6723 = vpack.c.b16 %v3915, %v3907
    %v6724 = vpack.c.b16 %v3916, %v3908
    %v6725 = vpack.c.b16 %v3917, %v3909
    %v6726 = vpack.c.b16 %v3926, %v3918
    %v6727 = vpack.c.b16 %v3927, %v3919
    %v6728 = vpack.c.b16 %v3928, %v3920
    %v6729 = vpack.c.b16 %v3929, %v3921
    %v6730 = vpack.c.b16 %v3930, %v3922
    %v6731 = vpack.c.b16 %v3931, %v3923
    %v6732 = vpack.c.b16 %v3932, %v3924
    %v6733 = vpack.c.b16 %v3933, %v3925
    %v6734 = vpack.c.b16 %v3942, %v3934
    %v6735 = vpack.c.b16 %v3943, %v3935
    %v6736 = vpack.c.b16 %v3944, %v3936
    %v6737 = vpack.c.b16 %v3945, %v3937
    %v6738 = vpack.c.b16 %v3946, %v3938
    %v6739 = vpack.c.b16 %v3947, %v3939
    %v6740 = vpack.c.b16 %v3948, %v3940
    %v6741 = vpack.c.b16 %v3949, %v3941
    %v6742 = vpack.c.b16 %v3958, %v3950
    %v6743 = vpack.c.b16 %v3959, %v3951
    %v6744 = vpack.c.b16 %v3960, %v3952
    %v6745 = vpack.c.b16 %v3961, %v3953
    %v6746 = vpack.c.b16 %v3962, %v3954
    %v6747 = vpack.c.b16 %v3963, %v3955
    %v6748 = vpack.c.b16 %v3964, %v3956
    %v6749 = vpack.c.b16 %v3965, %v3957
    %v6750 = vpack.c.b16 %v3974, %v3966
    %v6751 = vpack.c.b16 %v3975, %v3967
    %v6752 = vpack.c.b16 %v3976, %v3968
    %v6753 = vpack.c.b16 %v3977, %v3969
    %v6754 = vpack.c.b16 %v3978, %v3970
    %v6755 = vpack.c.b16 %v3979, %v3971
    %v6756 = vpack.c.b16 %v3980, %v3972
    %v6757 = vpack.c.b16 %v3981, %v3973
    %v6758 = vpack.c.b16 %v3990, %v3982
    %v6759 = vpack.c.b16 %v3991, %v3983
    %v6760 = vpack.c.b16 %v3992, %v3984
    %v6761 = vpack.c.b16 %v3993, %v3985
    %v6762 = vpack.c.b16 %v3994, %v3986
    %v6763 = vpack.c.b16 %v3995, %v3987
    %v6764 = vpack.c.b16 %v3996, %v3988
    %v6765 = vpack.c.b16 %v3997, %v3989
    %v6766 = vpack.c.b16 %v4006, %v3998
    %v6767 = vpack.c.b16 %v4007, %v3999
    %v6768 = vpack.c.b16 %v4008, %v4000
    %v6769 = vpack.c.b16 %v4009, %v4001
    %v6770 = vpack.c.b16 %v4010, %v4002
    %v6771 = vpack.c.b16 %v4011, %v4003
    %v6772 = vpack.c.b16 %v4012, %v4004
    %v6773 = vpack.c.b16 %v4013, %v4005
    %v6774 = vpack.c.b16 %v4022, %v4014
    %v6775 = vpack.c.b16 %v4023, %v4015
    %v6776 = vpack.c.b16 %v4024, %v4016
    %v6777 = vpack.c.b16 %v4025, %v4017
    %v6778 = vpack.c.b16 %v4026, %v4018
    %v6779 = vpack.c.b16 %v4027, %v4019
    %v6780 = vpack.c.b16 %v4028, %v4020
    %v6781 = vpack.c.b16 %v4029, %v4021
    %v6782 = vpack.c.b16 %v4038, %v4030
    %v6783 = vpack.c.b16 %v4039, %v4031
    %v6784 = vpack.c.b16 %v4040, %v4032
    %v6785 = vpack.c.b16 %v4041, %v4033
    %v6786 = vpack.c.b16 %v4042, %v4034
    %v6787 = vpack.c.b16 %v4043, %v4035
    %v6788 = vpack.c.b16 %v4044, %v4036
    %v6789 = vpack.c.b16 %v4045, %v4037
    %v6790 = vpack.c.b16 %v4054, %v4046
    %v6791 = vpack.c.b16 %v4055, %v4047
    %v6792 = vpack.c.b16 %v4056, %v4048
    %v6793 = vpack.c.b16 %v4057, %v4049
    %v6794 = vpack.c.b16 %v4058, %v4050
    %v6795 = vpack.c.b16 %v4059, %v4051
    %v6796 = vpack.c.b16 %v4060, %v4052
    %v6797 = vpack.c.b16 %v4061, %v4053
    %v6798 = vpack.c.b16 %v4070, %v4062
    %v6799 = vpack.c.b16 %v4071, %v4063
    %v6800 = vpack.c.b16 %v4072, %v4064
    %v6801 = vpack.c.b16 %v4073, %v4065
    %v6802 = vpack.c.b16 %v4074, %v4066
    %v6803 = vpack.c.b16 %v4075, %v4067
    %v6804 = vpack.c.b16 %v4076, %v4068
    %v6805 = vpack.c.b16 %v4077, %v4069
    %v6806 = vpack.c.b16 %v4086, %v4078
    %v6807 = vpack.c.b16 %v4087, %v4079
    %v6808 = vpack.c.b16 %v4088, %v4080
    %v6809 = vpack.c.b16 %v4089, %v4081
    %v6810 = vpack.c.b16 %v4090, %v4082
    %v6811 = vpack.c.b16 %v4091, %v4083
    %v6812 = vpack.c.b16 %v4092, %v4084
    %v6813 = vpack.c.b16 %v4093, %v4085
    %v6814 = vpack.c.b16 %v4102, %v4094
    %v6815 = vpack.c.b16 %v4103, %v4095
    %v6816 = vpack.c.b16 %v4104, %v4096
    %v6817 = vpack.c.b16 %v4105, %v4097
    %v6818 = vpack.c.b16 %v4106, %v4098
    %v6819 = vpack.c.b16 %v4107, %v4099
    %v6820 = vpack.c.b16 %v4108, %v4100
    %v6821 = vpack.c.b16 %v4109, %v4101
    %v6822 = vpack.c.b16 %v4118, %v4110
    %v6823 = vpack.c.b16 %v4119, %v4111
    %v6824 = vpack.c.b16 %v4120, %v4112
    %v6825 = vpack.c.b16 %v4121, %v4113
    %v6826 = vpack.c.b16 %v4122, %v4114
    %v6827 = vpack.c.b16 %v4123, %v4115
    %v6828 = vpack.c.b16 %v4124, %v4116
    %v6829 = vpack.c.b16 %v4125, %v4117
    %v6830 = vpack.c.b16 %v4134, %v4126
    %v6831 = vpack.c.b16 %v4135, %v4127
    %v6832 = vpack.c.b16 %v4136, %v4128
    %v6833 = vpack.c.b16 %v4137, %v4129
    %v6834 = vpack.c.b16 %v4138, %v4130
    %v6835 = vpack.c.b16 %v4139, %v4131
    %v6836 = vpack.c.b16 %v4140, %v4132
    %v6837 = vpack.c.b16 %v4141, %v4133
    %v6838 = vpack.c.b16 %v4150, %v4142
    %v6839 = vpack.c.b16 %v4151, %v4143
    %v6840 = vpack.c.b16 %v4152, %v4144
    %v6841 = vpack.c.b16 %v4153, %v4145
    %v6842 = vpack.c.b16 %v4154, %v4146
    %v6843 = vpack.c.b16 %v4155, %v4147
    %v6844 = vpack.c.b16 %v4156, %v4148
    %v6845 = vpack.c.b16 %v4157, %v4149
    %v6846 = vpack.c.b16 %v4166, %v4158
    %v6847 = vpack.c.b16 %v4167, %v4159
    %v6848 = vpack.c.b16 %v4168, %v4160
    %v6849 = vpack.c.b16 %v4169, %v4161
    %v6850 = vpack.c.b16 %v4170, %v4162
    %v6851 = vpack.c.b16 %v4171, %v4163
    %v6852 = vpack.c.b16 %v4172, %v4164
    %v6853 = vpack.c.b16 %v4173, %v4165
    %v6854 = vpack.c.b16 %v4182, %v4174
    %v6855 = vpack.c.b16 %v4183, %v4175
    %v6856 = vpack.c.b16 %v4184, %v4176
    %v6857 = vpack.c.b16 %v4185, %v4177
    %v6858 = vpack.c.b16 %v4186, %v4178
    %v6859 = vpack.c.b16 %v4187, %v4179
    %v6860 = vpack.c.b16 %v4188, %v4180
    %v6861 = vpack.c.b16 %v4189, %v4181
    %v6862 = vpack.c.b16 %v4198, %v4190
    %v6863 = vpack.c.b16 %v4199, %v4191
    %v6864 = vpack.c.b16 %v4200, %v4192
    %v6865 = vpack.c.b16 %v4201, %v4193
    %v6866 = vpack.c.b16 %v4202, %v4194
    %v6867 = vpack.c.b16 %v4203, %v4195
    %v6868 = vpack.c.b16 %v4204, %v4196
    %v6869 = vpack.c.b16 %v4205, %v4197
    %v6870 = vpack.c.b16 %v4214, %v4206
    %v6871 = vpack.c.b16 %v4215, %v4207
    %v6872 = vpack.c.b16 %v4216, %v4208
    %v6873 = vpack.c.b16 %v4217, %v4209
    %v6874 = vpack.c.b16 %v4218, %v4210
    %v6875 = vpack.c.b16 %v4219, %v4211
    %v6876 = vpack.c.b16 %v4220, %v4212
    %v6877 = vpack.c.b16 %v4221, %v4213
    %v6878 = vpack.c.b16 %v4230, %v4222
    %v6879 = vpack.c.b16 %v4231, %v4223
    %v6880 = vpack.c.b16 %v4232, %v4224
    %v6881 = vpack.c.b16 %v4233, %v4225
    %v6882 = vpack.c.b16 %v4234, %v4226
    %v6883 = vpack.c.b16 %v4235, %v4227
    %v6884 = vpack.c.b16 %v4236, %v4228
    %v6885 = vpack.c.b16 %v4237, %v4229
    %v6886 = vpack.c.b16 %v4246, %v4238
    %v6887 = vpack.c.b16 %v4247, %v4239
    %v6888 = vpack.c.b16 %v4248, %v4240
    %v6889 = vpack.c.b16 %v4249, %v4241
    %v6890 = vpack.c.b16 %v4250, %v4242
    %v6891 = vpack.c.b16 %v4251, %v4243
    %v6892 = vpack.c.b16 %v4252, %v4244
    %v6893 = vpack.c.b16 %v4253, %v4245
    %v6894 = vpack.c.b16 %v4262, %v4254
    %v6895 = vpack.c.b16 %v4263, %v4255
    %v6896 = vpack.c.b16 %v4264, %v4256
    %v6897 = vpack.c.b16 %v4265, %v4257
    %v6898 = vpack.c.b16 %v4266, %v4258
    %v6899 = vpack.c.b16 %v4267, %v4259
    %v6900 = vpack.c.b16 %v4268, %v4260
    %v6901 = vpack.c.b16 %v4269, %v4261
    %v6902 = vpack.c.b16 %v4278, %v4270
    %v6903 = vpack.c.b16 %v4279, %v4271
    %v6904 = vpack.c.b16 %v4280, %v4272
    %v6905 = vpack.c.b16 %v4281, %v4273
    %v6906 = vpack.c.b16 %v4282, %v4274
    %v6907 = vpack.c.b16 %v4283, %v4275
    %v6908 = vpack.c.b16 %v4284, %v4276
    %v6909 = vpack.c.b16 %v4285, %v4277
    %v6910 = vpack.c.b16 %v4294, %v4286
    %v6911 = vpack.c.b16 %v4295, %v4287
    %v6912 = vpack.c.b16 %v4296, %v4288
    %v6913 = vpack.c.b16 %v4297, %v4289
    %v6914 = vpack.c.b16 %v4298, %v4290
    %v6915 = vpack.c.b16 %v4299, %v4291
    %v6916 = vpack.c.b16 %v4300, %v4292
    %v6917 = vpack.c.b16 %v4301, %v4293
    %v6918 = vpack.c.b16 %v4310, %v4302
    %v6919 = vpack.c.b16 %v4311, %v4303
    %v6920 = vpack.c.b16 %v4312, %v4304
    %v6921 = vpack.c.b16 %v4313, %v4305
    %v6922 = vpack.c.b16 %v4314, %v4306
    %v6923 = vpack.c.b16 %v4315, %v4307
    %v6924 = vpack.c.b16 %v4316, %v4308
    %v6925 = vpack.c.b16 %v4317, %v4309
    %v6926 = vpack.c.b16 %v4326, %v4318
    %v6927 = vpack.c.b16 %v4327, %v4319
    %v6928 = vpack.c.b16 %v4328, %v4320
    %v6929 = vpack.c.b16 %v4329, %v4321
    %v6930 = vpack.c.b16 %v4330, %v4322
    %v6931 = vpack.c.b16 %v4331, %v4323
    %v6932 = vpack.c.b16 %v4332, %v4324
    %v6933 = vpack.c.b16 %v4333, %v4325
    %v6934 = vpack.c.b16 %v4342, %v4334
    %v6935 = vpack.c.b16 %v4343, %v4335
    %v6936 = vpack.c.b16 %v4344, %v4336
    %v6937 = vpack.c.b16 %v4345, %v4337
    %v6938 = vpack.c.b16 %v4346, %v4338
    %v6939 = vpack.c.b16 %v4347, %v4339
    %v6940 = vpack.c.b16 %v4348, %v4340
    %v6941 = vpack.c.b16 %v4349, %v4341
    %v6942 = vpack.c.b16 %v4358, %v4350
    %v6943 = vpack.c.b16 %v4359, %v4351
    %v6944 = vpack.c.b16 %v4360, %v4352
    %v6945 = vpack.c.b16 %v4361, %v4353
    %v6946 = vpack.c.b16 %v4362, %v4354
    %v6947 = vpack.c.b16 %v4363, %v4355
    %v6948 = vpack.c.b16 %v4364, %v4356
    %v6949 = vpack.c.b16 %v4365, %v4357
    %v6950 = vpack.c.b16 %v4374, %v4366
    %v6951 = vpack.c.b16 %v4375, %v4367
    %v6952 = vpack.c.b16 %v4376, %v4368
    %v6953 = vpack.c.b16 %v4377, %v4369
    %v6954 = vpack.c.b16 %v4378, %v4370
    %v6955 = vpack.c.b16 %v4379, %v4371
    %v6956 = vpack.c.b16 %v4380, %v4372
    %v6957 = vpack.c.b16 %v4381, %v4373
    %v6958 = vpack.c.b16 %v4390, %v4382
    %v6959 = vpack.c.b16 %v4391, %v4383
    %v6960 = vpack.c.b16 %v4392, %v4384
    %v6961 = vpack.c.b16 %v4393, %v4385
    %v6962 = vpack.c.b16 %v4394, %v4386
    %v6963 = vpack.c.b16 %v4395, %v4387
    %v6964 = vpack.c.b16 %v4396, %v4388
    %v6965 = vpack.c.b16 %v4397, %v4389
    %v6966 = vpack.c.b16 %v4406, %v4398
    %v6967 = vpack.c.b16 %v4407, %v4399
    %v6968 = vpack.c.b16 %v4408, %v4400
    %v6969 = vpack.c.b16 %v4409, %v4401
    %v6970 = vpack.c.b16 %v4410, %v4402
    %v6971 = vpack.c.b16 %v4411, %v4403
    %v6972 = vpack.c.b16 %v4412, %v4404
    %v6973 = vpack.c.b16 %v4413, %v4405
    %v6974 = vpack.c.b16 %v4422, %v4414
    %v6975 = vpack.c.b16 %v4423, %v4415
    %v6976 = vpack.c.b16 %v4424, %v4416
    %v6977 = vpack.c.b16 %v4425, %v4417
    %v6978 = vpack.c.b16 %v4426, %v4418
    %v6979 = vpack.c.b16 %v4427, %v4419
    %v6980 = vpack.c.b16 %v4428, %v4420
    %v6981 = vpack.c.b16 %v4429, %v4421
    %v6982 = vpack.c.b16 %v4438, %v4430
    %v6983 = vpack.c.b16 %v4439, %v4431
    %v6984 = vpack.c.b16 %v4440, %v4432
    %v6985 = vpack.c.b16 %v4441, %v4433
    %v6986 = vpack.c.b16 %v4442, %v4434
    %v6987 = vpack.c.b16 %v4443, %v4435
    %v6988 = vpack.c.b16 %v4444, %v4436
    %v6989 = vpack.c.b16 %v4445, %v4437
    %v6990 = vpack.c.b16 %v4454, %v4446
    %v6991 = vpack.c.b16 %v4455, %v4447
    %v6992 = vpack.c.b16 %v4456, %v4448
    %v6993 = vpack.c.b16 %v4457, %v4449
    %v6994 = vpack.c.b16 %v4458, %v4450
    %v6995 = vpack.c.b16 %v4459, %v4451
    %v6996 = vpack.c.b16 %v4460, %v4452
    %v6997 = vpack.c.b16 %v4461, %v4453
    %v6998 = vpack.c.b16 %v4470, %v4462
    %v6999 = vpack.c.b16 %v4471, %v4463
    %v7000 = vpack.c.b16 %v4472, %v4464
    %v7001 = vpack.c.b16 %v4473, %v4465
    %v7002 = vpack.c.b16 %v4474, %v4466
    %v7003 = vpack.c.b16 %v4475, %v4467
    %v7004 = vpack.c.b16 %v4476, %v4468
    %v7005 = vpack.c.b16 %v4477, %v4469
    %v7006 = vpack.c.b16 %v4486, %v4478
    %v7007 = vpack.c.b16 %v4487, %v4479
    %v7008 = vpack.c.b16 %v4488, %v4480
    %v7009 = vpack.c.b16 %v4489, %v4481
    %v7010 = vpack.c.b16 %v4490, %v4482
    %v7011 = vpack.c.b16 %v4491, %v4483
    %v7012 = vpack.c.b16 %v4492, %v4484
    %v7013 = vpack.c.b16 %v4493, %v4485
    %v7014 = vpack.c.b16 %v4502, %v4494
    %v7015 = vpack.c.b16 %v4503, %v4495
    %v7016 = vpack.c.b16 %v4504, %v4496
    %v7017 = vpack.c.b16 %v4505, %v4497
    %v7018 = vpack.c.b16 %v4506, %v4498
    %v7019 = vpack.c.b16 %v4507, %v4499
    %v7020 = vpack.c.b16 %v4508, %v4500
    %v7021 = vpack.c.b16 %v4509, %v4501
    %v7022 = vpack.c.b16 %v4518, %v4510
    %v7023 = vpack.c.b16 %v4519, %v4511
    %v7024 = vpack.c.b16 %v4520, %v4512
    %v7025 = vpack.c.b16 %v4521, %v4513
    %v7026 = vpack.c.b16 %v4522, %v4514
    %v7027 = vpack.c.b16 %v4523, %v4515
    %v7028 = vpack.c.b16 %v4524, %v4516
    %v7029 = vpack.c.b16 %v4525, %v4517
    %v7030 = vpack.c.b16 %v4534, %v4526
    %v7031 = vpack.c.b16 %v4535, %v4527
    %v7032 = vpack.c.b16 %v4536, %v4528
    %v7033 = vpack.c.b16 %v4537, %v4529
    %v7034 = vpack.c.b16 %v4538, %v4530
    %v7035 = vpack.c.b16 %v4539, %v4531
    %v7036 = vpack.c.b16 %v4540, %v4532
    %v7037 = vpack.c.b16 %v4541, %v4533
    %v7038 = vpack.c.b16 %v4550, %v4542
    %v7039 = vpack.c.b16 %v4551, %v4543
    %v7040 = vpack.c.b16 %v4552, %v4544
    %v7041 = vpack.c.b16 %v4553, %v4545
    %v7042 = vpack.c.b16 %v4554, %v4546
    %v7043 = vpack.c.b16 %v4555, %v4547
    %v7044 = vpack.c.b16 %v4556, %v4548
    %v7045 = vpack.c.b16 %v4557, %v4549
    %v7046 = vpack.c.b16 %v4566, %v4558
    %v7047 = vpack.c.b16 %v4567, %v4559
    %v7048 = vpack.c.b16 %v4568, %v4560
    %v7049 = vpack.c.b16 %v4569, %v4561
    %v7050 = vpack.c.b16 %v4570, %v4562
    %v7051 = vpack.c.b16 %v4571, %v4563
    %v7052 = vpack.c.b16 %v4572, %v4564
    %v7053 = vpack.c.b16 %v4573, %v4565
    %v7054 = vpack.c.b16 %v4582, %v4574
    %v7055 = vpack.c.b16 %v4583, %v4575
    %v7056 = vpack.c.b16 %v4584, %v4576
    %v7057 = vpack.c.b16 %v4585, %v4577
    %v7058 = vpack.c.b16 %v4586, %v4578
    %v7059 = vpack.c.b16 %v4587, %v4579
    %v7060 = vpack.c.b16 %v4588, %v4580
    %v7061 = vpack.c.b16 %v4589, %v4581
    %v7062 = vpack.c.b16 %v4598, %v4590
    %v7063 = vpack.c.b16 %v4599, %v4591
    %v7064 = vpack.c.b16 %v4600, %v4592
    %v7065 = vpack.c.b16 %v4601, %v4593
    %v7066 = vpack.c.b16 %v4602, %v4594
    %v7067 = vpack.c.b16 %v4603, %v4595
    %v7068 = vpack.c.b16 %v4604, %v4596
    %v7069 = vpack.c.b16 %v4605, %v4597
    %v7070 = vpack.c.b16 %v4614, %v4606
    %v7071 = vpack.c.b16 %v4615, %v4607
    %v7072 = vpack.c.b16 %v4616, %v4608
    %v7073 = vpack.c.b16 %v4617, %v4609
    %v7074 = vpack.c.b16 %v4618, %v4610
    %v7075 = vpack.c.b16 %v4619, %v4611
    %v7076 = vpack.c.b16 %v4620, %v4612
    %v7077 = vpack.c.b16 %v4621, %v4613
    %v7078 = vpack.c.b16 %v4630, %v4622
    %v7079 = vpack.c.b16 %v4631, %v4623
    %v7080 = vpack.c.b16 %v4632, %v4624
    %v7081 = vpack.c.b16 %v4633, %v4625
    %v7082 = vpack.c.b16 %v4634, %v4626
    %v7083 = vpack.c.b16 %v4635, %v4627
    %v7084 = vpack.c.b16 %v4636, %v4628
    %v7085 = vpack.c.b16 %v4637, %v4629
    %v7086 = vpack.c.b16 %v4646, %v4638
    %v7087 = vpack.c.b16 %v4647, %v4639
    %v7088 = vpack.c.b16 %v4648, %v4640
    %v7089 = vpack.c.b16 %v4649, %v4641
    %v7090 = vpack.c.b16 %v4650, %v4642
    %v7091 = vpack.c.b16 %v4651, %v4643
    %v7092 = vpack.c.b16 %v4652, %v4644
    %v7093 = vpack.c.b16 %v4653, %v4645
    %v7094 = vpack.c.b16 %v4662, %v4654
    %v7095 = vpack.c.b16 %v4663, %v4655
    %v7096 = vpack.c.b16 %v4664, %v4656
    %v7097 = vpack.c.b16 %v4665, %v4657
    %v7098 = vpack.c.b16 %v4666, %v4658
    %v7099 = vpack.c.b16 %v4667, %v4659
    %v7100 = vpack.c.b16 %v4668, %v4660
    %v7101 = vpack.c.b16 %v4669, %v4661
    %v7102 = vpack.c.b16 %v4678, %v4670
    %v7103 = vpack.c.b16 %v4679, %v4671
    %v7104 = vpack.c.b16 %v4680, %v4672
    %v7105 = vpack.c.b16 %v4681, %v4673
    %v7106 = vpack.c.b16 %v4682, %v4674
    %v7107 = vpack.c.b16 %v4683, %v4675
    %v7108 = vpack.c.b16 %v4684, %v4676
    %v7109 = vpack.c.b16 %v4685, %v4677
    %v7110 = vpack.c.b16 %v4694, %v4686
    %v7111 = vpack.c.b16 %v4695, %v4687
    %v7112 = vpack.c.b16 %v4696, %v4688
    %v7113 = vpack.c.b16 %v4697, %v4689
    %v7114 = vpack.c.b16 %v4698, %v4690
    %v7115 = vpack.c.b16 %v4699, %v4691
    %v7116 = vpack.c.b16 %v4700, %v4692
    %v7117 = vpack.c.b16 %v4701, %v4693
    %v7118 = vpack.c.b16 %v4710, %v4702
    %v7119 = vpack.c.b16 %v4711, %v4703
    %v7120 = vpack.c.b16 %v4712, %v4704
    %v7121 = vpack.c.b16 %v4713, %v4705
    %v7122 = vpack.c.b16 %v4714, %v4706
    %v7123 = vpack.c.b16 %v4715, %v4707
    %v7124 = vpack.c.b16 %v4716, %v4708
    %v7125 = vpack.c.b16 %v4717, %v4709
    %v7126 = vpack.c.b16 %v4726, %v4718
    %v7127 = vpack.c.b16 %v4727, %v4719
    %v7128 = vpack.c.b16 %v4728, %v4720
    %v7129 = vpack.c.b16 %v4729, %v4721
    %v7130 = vpack.c.b16 %v4730, %v4722
    %v7131 = vpack.c.b16 %v4731, %v4723
    %v7132 = vpack.c.b16 %v4732, %v4724
    %v7133 = vpack.c.b16 %v4733, %v4725
    %v7134 = vpack.c.b16 %v4742, %v4734
    %v7135 = vpack.c.b16 %v4743, %v4735
    %v7136 = vpack.c.b16 %v4744, %v4736
    %v7137 = vpack.c.b16 %v4745, %v4737
    %v7138 = vpack.c.b16 %v4746, %v4738
    %v7139 = vpack.c.b16 %v4747, %v4739
    %v7140 = vpack.c.b16 %v4748, %v4740
    %v7141 = vpack.c.b16 %v4749, %v4741
    %v7142 = vpack.c.b16 %v4758, %v4750
    %v7143 = vpack.c.b16 %v4759, %v4751
    %v7144 = vpack.c.b16 %v4760, %v4752
    %v7145 = vpack.c.b16 %v4761, %v4753
    %v7146 = vpack.c.b16 %v4762, %v4754
    %v7147 = vpack.c.b16 %v4763, %v4755
    %v7148 = vpack.c.b16 %v4764, %v4756
    %v7149 = vpack.c.b16 %v4765, %v4757
    %v7150 = vpack.c.b16 %v4774, %v4766
    %v7151 = vpack.c.b16 %v4775, %v4767
    %v7152 = vpack.c.b16 %v4776, %v4768
    %v7153 = vpack.c.b16 %v4777, %v4769
    %v7154 = vpack.c.b16 %v4778, %v4770
    %v7155 = vpack.c.b16 %v4779, %v4771
    %v7156 = vpack.c.b16 %v4780, %v4772
    %v7157 = vpack.c.b16 %v4781, %v4773
    %v7158 = vpack.c.b16 %v4790, %v4782
    %v7159 = vpack.c.b16 %v4791, %v4783
    %v7160 = vpack.c.b16 %v4792, %v4784
    %v7161 = vpack.c.b16 %v4793, %v4785
    %v7162 = vpack.c.b16 %v4794, %v4786
    %v7163 = vpack.c.b16 %v4795, %v4787
    %v7164 = vpack.c.b16 %v4796, %v4788
    %v7165 = vpack.c.b16 %v4797, %v4789
    %v7166 = vpack.c.b16 %v4806, %v4798
    %v7167 = vpack.c.b16 %v4807, %v4799
    %v7168 = vpack.c.b16 %v4808, %v4800
    %v7169 = vpack.c.b16 %v4809, %v4801
    %v7170 = vpack.c.b16 %v4810, %v4802
    %v7171 = vpack.c.b16 %v4811, %v4803
    %v7172 = vpack.c.b16 %v4812, %v4804
    %v7173 = vpack.c.b16 %v4813, %v4805
    %v7174 = vpack.c.b16 %v4822, %v4814
    %v7175 = vpack.c.b16 %v4823, %v4815
    %v7176 = vpack.c.b16 %v4824, %v4816
    %v7177 = vpack.c.b16 %v4825, %v4817
    %v7178 = vpack.c.b16 %v4826, %v4818
    %v7179 = vpack.c.b16 %v4827, %v4819
    %v7180 = vpack.c.b16 %v4828, %v4820
    %v7181 = vpack.c.b16 %v4829, %v4821
    %v7182 = vpack.c.b16 %v4838, %v4830
    %v7183 = vpack.c.b16 %v4839, %v4831
    %v7184 = vpack.c.b16 %v4840, %v4832
    %v7185 = vpack.c.b16 %v4841, %v4833
    %v7186 = vpack.c.b16 %v4842, %v4834
    %v7187 = vpack.c.b16 %v4843, %v4835
    %v7188 = vpack.c.b16 %v4844, %v4836
    %v7189 = vpack.c.b16 %v4845, %v4837
    %v7190 = vpack.c.b16 %v4854, %v4846
    %v7191 = vpack.c.b16 %v4855, %v4847
    %v7192 = vpack.c.b16 %v4856, %v4848
    %v7193 = vpack.c.b16 %v4857, %v4849
    %v7194 = vpack.c.b16 %v4858, %v4850
    %v7195 = vpack.c.b16 %v4859, %v4851
    %v7196 = vpack.c.b16 %v4860, %v4852
    %v7197 = vpack.c.b16 %v4861, %v4853
    %v7198 = vpack.c.b16 %v4870, %v4862
    %v7199 = vpack.c.b16 %v4871, %v4863
    %v7200 = vpack.c.b16 %v4872, %v4864
    %v7201 = vpack.c.b16 %v4873, %v4865
    %v7202 = vpack.c.b16 %v4874, %v4866
    %v7203 = vpack.c.b16 %v4875, %v4867
    %v7204 = vpack.c.b16 %v4876, %v4868
    %v7205 = vpack.c.b16 %v4877, %v4869
    %v7206 = vpack.c.b16 %v4886, %v4878
    %v7207 = vpack.c.b16 %v4887, %v4879
    %v7208 = vpack.c.b16 %v4888, %v4880
    %v7209 = vpack.c.b16 %v4889, %v4881
    %v7210 = vpack.c.b16 %v4890, %v4882
    %v7211 = vpack.c.b16 %v4891, %v4883
    %v7212 = vpack.c.b16 %v4892, %v4884
    %v7213 = vpack.c.b16 %v4893, %v4885
    %v7214 = vpack.c.b16 %v4902, %v4894
    %v7215 = vpack.c.b16 %v4903, %v4895
    %v7216 = vpack.c.b16 %v4904, %v4896
    %v7217 = vpack.c.b16 %v4905, %v4897
    %v7218 = vpack.c.b16 %v4906, %v4898
    %v7219 = vpack.c.b16 %v4907, %v4899
    %v7220 = vpack.c.b16 %v4908, %v4900
    %v7221 = vpack.c.b16 %v4909, %v4901
    %v7222 = vpack.c.b16 %v4918, %v4910
    %v7223 = vpack.c.b16 %v4919, %v4911
    %v7224 = vpack.c.b16 %v4920, %v4912
    %v7225 = vpack.c.b16 %v4921, %v4913
    %v7226 = vpack.c.b16 %v4922, %v4914
    %v7227 = vpack.c.b16 %v4923, %v4915
    %v7228 = vpack.c.b16 %v4924, %v4916
    %v7229 = vpack.c.b16 %v4925, %v4917
    %v7230 = vpack.c.b16 %v4934, %v4926
    %v7231 = vpack.c.b16 %v4935, %v4927
    %v7232 = vpack.c.b16 %v4936, %v4928
    %v7233 = vpack.c.b16 %v4937, %v4929
    %v7234 = vpack.c.b16 %v4938, %v4930
    %v7235 = vpack.c.b16 %v4939, %v4931
    %v7236 = vpack.c.b16 %v4940, %v4932
    %v7237 = vpack.c.b16 %v4941, %v4933
    %v7238 = vpack.c.b16 %v4950, %v4942
    %v7239 = vpack.c.b16 %v4951, %v4943
    %v7240 = vpack.c.b16 %v4952, %v4944
    %v7241 = vpack.c.b16 %v4953, %v4945
    %v7242 = vpack.c.b16 %v4954, %v4946
    %v7243 = vpack.c.b16 %v4955, %v4947
    %v7244 = vpack.c.b16 %v4956, %v4948
    %v7245 = vpack.c.b16 %v4957, %v4949
    %v7246 = vpack.c.b16 %v4966, %v4958
    %v7247 = vpack.c.b16 %v4967, %v4959
    %v7248 = vpack.c.b16 %v4968, %v4960
    %v7249 = vpack.c.b16 %v4969, %v4961
    %v7250 = vpack.c.b16 %v4970, %v4962
    %v7251 = vpack.c.b16 %v4971, %v4963
    %v7252 = vpack.c.b16 %v4972, %v4964
    %v7253 = vpack.c.b16 %v4973, %v4965
    %v7254 = vpack.c.b16 %v4982, %v4974
    %v7255 = vpack.c.b16 %v4983, %v4975
    %v7256 = vpack.c.b16 %v4984, %v4976
    %v7257 = vpack.c.b16 %v4985, %v4977
    %v7258 = vpack.c.b16 %v4986, %v4978
    %v7259 = vpack.c.b16 %v4987, %v4979
    %v7260 = vpack.c.b16 %v4988, %v4980
    %v7261 = vpack.c.b16 %v4989, %v4981
    %v7262 = vpack.c.b16 %v4998, %v4990
    %v7263 = vpack.c.b16 %v4999, %v4991
    %v7264 = vpack.c.b16 %v5000, %v4992
    %v7265 = vpack.c.b16 %v5001, %v4993
    %v7266 = vpack.c.b16 %v5002, %v4994
    %v7267 = vpack.c.b16 %v5003, %v4995
    %v7268 = vpack.c.b16 %v5004, %v4996
    %v7269 = vpack.c.b16 %v5005, %v4997
    %v7270 = vpack.c.b16 %v5014, %v5006
    %v7271 = vpack.c.b16 %v5015, %v5007
    %v7272 = vpack.c.b16 %v5016, %v5008
    %v7273 = vpack.c.b16 %v5017, %v5009
    %v7274 = vpack.c.b16 %v5018, %v5010
    %v7275 = vpack.c.b16 %v5019, %v5011
    %v7276 = vpack.c.b16 %v5020, %v5012
    %v7277 = vpack.c.b16 %v5021, %v5013
    %v7278 = vpack.c.b16 %v5030, %v5022
    %v7279 = vpack.c.b16 %v5031, %v5023
    %v7280 = vpack.c.b16 %v5032, %v5024
    %v7281 = vpack.c.b16 %v5033, %v5025
    %v7282 = vpack.c.b16 %v5034, %v5026
    %v7283 = vpack.c.b16 %v5035, %v5027
    %v7284 = vpack.c.b16 %v5036, %v5028
    %v7285 = vpack.c.b16 %v5037, %v5029
    %v7286 = vpack.c.b16 %v5046, %v5038
    %v7287 = vpack.c.b16 %v5047, %v5039
    %v7288 = vpack.c.b16 %v5048, %v5040
    %v7289 = vpack.c.b16 %v5049, %v5041
    %v7290 = vpack.c.b16 %v5050, %v5042
    %v7291 = vpack.c.b16 %v5051, %v5043
    %v7292 = vpack.c.b16 %v5052, %v5044
    %v7293 = vpack.c.b16 %v5053, %v5045
    %v7294 = vpack.c.b16 %v5062, %v5054
    %v7295 = vpack.c.b16 %v5063, %v5055
    %v7296 = vpack.c.b16 %v5064, %v5056
    %v7297 = vpack.c.b16 %v5065, %v5057
    %v7298 = vpack.c.b16 %v5066, %v5058
    %v7299 = vpack.c.b16 %v5067, %v5059
    %v7300 = vpack.c.b16 %v5068, %v5060
    %v7301 = vpack.c.b16 %v5069, %v5061
    %v7302 = vpack.c.b16 %v5078, %v5070
    %v7303 = vpack.c.b16 %v5079, %v5071
    %v7304 = vpack.c.b16 %v5080, %v5072
    %v7305 = vpack.c.b16 %v5081, %v5073
    %v7306 = vpack.c.b16 %v5082, %v5074
    %v7307 = vpack.c.b16 %v5083, %v5075
    %v7308 = vpack.c.b16 %v5084, %v5076
    %v7309 = vpack.c.b16 %v5085, %v5077
    %v7310 = vpack.c.b16 %v5094, %v5086
    %v7311 = vpack.c.b16 %v5095, %v5087
    %v7312 = vpack.c.b16 %v5096, %v5088
    %v7313 = vpack.c.b16 %v5097, %v5089
    %v7314 = vpack.c.b16 %v5098, %v5090
    %v7315 = vpack.c.b16 %v5099, %v5091
    %v7316 = vpack.c.b16 %v5100, %v5092
    %v7317 = vpack.c.b16 %v5101, %v5093
    %v7318 = vpack.c.b16 %v5110, %v5102
    %v7319 = vpack.c.b16 %v5111, %v5103
    %v7320 = vpack.c.b16 %v5112, %v5104
    %v7321 = vpack.c.b16 %v5113, %v5105
    %v7322 = vpack.c.b16 %v5114, %v5106
    %v7323 = vpack.c.b16 %v5115, %v5107
    %v7324 = vpack.c.b16 %v5116, %v5108
    %v7325 = vpack.c.b16 %v5117, %v5109
    %v7326 = vpack.c.b16 %v5126, %v5118
    %v7327 = vpack.c.b16 %v5127, %v5119
    %v7328 = vpack.c.b16 %v5128, %v5120
    %v7329 = vpack.c.b16 %v5129, %v5121
    %v7330 = vpack.c.b16 %v5130, %v5122
    %v7331 = vpack.c.b16 %v5131, %v5123
    %v7332 = vpack.c.b16 %v5132, %v5124
    %v7333 = vpack.c.b16 %v5133, %v5125
    %v7334 = vpack.c.b16 %v5142, %v5134
    %v7335 = vpack.c.b16 %v5143, %v5135
    %v7336 = vpack.c.b16 %v5144, %v5136
    %v7337 = vpack.c.b16 %v5145, %v5137
    %v7338 = vpack.c.b16 %v5146, %v5138
    %v7339 = vpack.c.b16 %v5147, %v5139
    %v7340 = vpack.c.b16 %v5148, %v5140
    %v7341 = vpack.c.b16 %v5149, %v5141
    %v7342 = vpack.c.b16 %v5158, %v5150
    %v7343 = vpack.c.b16 %v5159, %v5151
    %v7344 = vpack.c.b16 %v5160, %v5152
    %v7345 = vpack.c.b16 %v5161, %v5153
    %v7346 = vpack.c.b16 %v5162, %v5154
    %v7347 = vpack.c.b16 %v5163, %v5155
    %v7348 = vpack.c.b16 %v5164, %v5156
    %v7349 = vpack.c.b16 %v5165, %v5157
    %v7350 = vpack.c.b16 %v5174, %v5166
    %v7351 = vpack.c.b16 %v5175, %v5167
    %v7352 = vpack.c.b16 %v5176, %v5168
    %v7353 = vpack.c.b16 %v5177, %v5169
    %v7354 = vpack.c.b16 %v5178, %v5170
    %v7355 = vpack.c.b16 %v5179, %v5171
    %v7356 = vpack.c.b16 %v5180, %v5172
    %v7357 = vpack.c.b16 %v5181, %v5173
    %v7358 = vpack.c.b16 %v5190, %v5182
    %v7359 = vpack.c.b16 %v5191, %v5183
    %v7360 = vpack.c.b16 %v5192, %v5184
    %v7361 = vpack.c.b16 %v5193, %v5185
    %v7362 = vpack.c.b16 %v5194, %v5186
    %v7363 = vpack.c.b16 %v5195, %v5187
    %v7364 = vpack.c.b16 %v5196, %v5188
    %v7365 = vpack.c.b16 %v5197, %v5189
    %v7366 = vpack.c.b16 %v5206, %v5198
    %v7367 = vpack.c.b16 %v5207, %v5199
    %v7368 = vpack.c.b16 %v5208, %v5200
    %v7369 = vpack.c.b16 %v5209, %v5201
    %v7370 = vpack.c.b16 %v5210, %v5202
    %v7371 = vpack.c.b16 %v5211, %v5203
    %v7372 = vpack.c.b16 %v5212, %v5204
    %v7373 = vpack.c.b16 %v5213, %v5205
    %v7374 = vpack.c.b16 %v5222, %v5214
    %v7375 = vpack.c.b16 %v5223, %v5215
    %v7376 = vpack.c.b16 %v5224, %v5216
    %v7377 = vpack.c.b16 %v5225, %v5217
    %v7378 = vpack.c.b16 %v5226, %v5218
    %v7379 = vpack.c.b16 %v5227, %v5219
    %v7380 = vpack.c.b16 %v5228, %v5220
    %v7381 = vpack.c.b16 %v5229, %v5221
    %v7382 = vpack.c.b16 %v5238, %v5230
    %v7383 = vpack.c.b16 %v5239, %v5231
    %v7384 = vpack.c.b16 %v5240, %v5232
    %v7385 = vpack.c.b16 %v5241, %v5233
    %v7386 = vpack.c.b16 %v5242, %v5234
    %v7387 = vpack.c.b16 %v5243, %v5235
    %v7388 = vpack.c.b16 %v5244, %v5236
    %v7389 = vpack.c.b16 %v5245, %v5237
    %v7390 = vpack.c.b16 %v5254, %v5246
    %v7391 = vpack.c.b16 %v5255, %v5247
    %v7392 = vpack.c.b16 %v5256, %v5248
    %v7393 = vpack.c.b16 %v5257, %v5249
    %v7394 = vpack.c.b16 %v5258, %v5250
    %v7395 = vpack.c.b16 %v5259, %v5251
    %v7396 = vpack.c.b16 %v5260, %v5252
    %v7397 = vpack.c.b16 %v5261, %v5253
    %v7398 = vpack.c.b16 %v5270, %v5262
    %v7399 = vpack.c.b16 %v5271, %v5263
    %v7400 = vpack.c.b16 %v5272, %v5264
    %v7401 = vpack.c.b16 %v5273, %v5265
    %v7402 = vpack.c.b16 %v5274, %v5266
    %v7403 = vpack.c.b16 %v5275, %v5267
    %v7404 = vpack.c.b16 %v5276, %v5268
    %v7405 = vpack.c.b16 %v5277, %v5269
    %v7406 = vpack.c.b16 %v5286, %v5278
    %v7407 = vpack.c.b16 %v5287, %v5279
    %v7408 = vpack.c.b16 %v5288, %v5280
    %v7409 = vpack.c.b16 %v5289, %v5281
    %v7410 = vpack.c.b16 %v5290, %v5282
    %v7411 = vpack.c.b16 %v5291, %v5283
    %v7412 = vpack.c.b16 %v5292, %v5284
    %v7413 = vpack.c.b16 %v5293, %v5285
    %v7414 = vpack.c.b16 %v5302, %v5294
    %v7415 = vpack.c.b16 %v5303, %v5295
    %v7416 = vpack.c.b16 %v5304, %v5296
    %v7417 = vpack.c.b16 %v5305, %v5297
    %v7418 = vpack.c.b16 %v5306, %v5298
    %v7419 = vpack.c.b16 %v5307, %v5299
    %v7420 = vpack.c.b16 %v5308, %v5300
    %v7421 = vpack.c.b16 %v5309, %v5301
    %v7422 = vpack.c.b16 %v5318, %v5310
    %v7423 = vpack.c.b16 %v5319, %v5311
    %v7424 = vpack.c.b16 %v5320, %v5312
    %v7425 = vpack.c.b16 %v5321, %v5313
    %v7426 = vpack.c.b16 %v5322, %v5314
    %v7427 = vpack.c.b16 %v5323, %v5315
    %v7428 = vpack.c.b16 %v5324, %v5316
    %v7429 = vpack.c.b16 %v5325, %v5317
    %v7430 = vpack.c.b16 %v5334, %v5326
    %v7431 = vpack.c.b16 %v5335, %v5327
    %v7432 = vpack.c.b16 %v5336, %v5328
    %v7433 = vpack.c.b16 %v5337, %v5329
    %v7434 = vpack.c.b16 %v5338, %v5330
    %v7435 = vpack.c.b16 %v5339, %v5331
    %v7436 = vpack.c.b16 %v5340, %v5332
    %v7437 = vpack.c.b16 %v5341, %v5333
    %v7438 = vpack.c.b16 %v5350, %v5342
    %v7439 = vpack.c.b16 %v5351, %v5343
    %v7440 = vpack.c.b16 %v5352, %v5344
    %v7441 = vpack.c.b16 %v5353, %v5345
    %v7442 = vpack.c.b16 %v5354, %v5346
    %v7443 = vpack.c.b16 %v5355, %v5347
    %v7444 = vpack.c.b16 %v5356, %v5348
    %v7445 = vpack.c.b16 %v5357, %v5349
    %v7446 = vpack.c.b16 %v5366, %v5358
    %v7447 = vpack.c.b16 %v5367, %v5359
    %v7448 = vpack.c.b16 %v5368, %v5360
    %v7449 = vpack.c.b16 %v5369, %v5361
    %v7450 = vpack.c.b16 %v5370, %v5362
    %v7451 = vpack.c.b16 %v5371, %v5363
    %v7452 = vpack.c.b16 %v5372, %v5364
    %v7453 = vpack.c.b16 %v5373, %v5365
    %v7454 = vpack.c.b16 %v5382, %v5374
    %v7455 = vpack.c.b16 %v5383, %v5375
    %v7456 = vpack.c.b16 %v5384, %v5376
    %v7457 = vpack.c.b16 %v5385, %v5377
    %v7458 = vpack.c.b16 %v5386, %v5378
    %v7459 = vpack.c.b16 %v5387, %v5379
    %v7460 = vpack.c.b16 %v5388, %v5380
    %v7461 = vpack.c.b16 %v5389, %v5381
    %v7462 = vpack.c.b16 %v5398, %v5390
    %v7463 = vpack.c.b16 %v5399, %v5391
    %v7464 = vpack.c.b16 %v5400, %v5392
    %v7465 = vpack.c.b16 %v5401, %v5393
    %v7466 = vpack.c.b16 %v5402, %v5394
    %v7467 = vpack.c.b16 %v5403, %v5395
    %v7468 = vpack.c.b16 %v5404, %v5396
    %v7469 = vpack.c.b16 %v5405, %v5397
    %v7470 = vpack.c.b16 %v5414, %v5406
    %v7471 = vpack.c.b16 %v5415, %v5407
    %v7472 = vpack.c.b16 %v5416, %v5408
    %v7473 = vpack.c.b16 %v5417, %v5409
    %v7474 = vpack.c.b16 %v5418, %v5410
    %v7475 = vpack.c.b16 %v5419, %v5411
    %v7476 = vpack.c.b16 %v5420, %v5412
    %v7477 = vpack.c.b16 %v5421, %v5413
    %v7478 = vpack.c.b16 %v5430, %v5422
    %v7479 = vpack.c.b16 %v5431, %v5423
    %v7480 = vpack.c.b16 %v5432, %v5424
    %v7481 = vpack.c.b16 %v5433, %v5425
    %v7482 = vpack.c.b16 %v5434, %v5426
    %v7483 = vpack.c.b16 %v5435, %v5427
    %v7484 = vpack.c.b16 %v5436, %v5428
    %v7485 = vpack.c.b16 %v5437, %v5429
    %v7486 = vpack.c.b16 %v5446, %v5438
    %v7487 = vpack.c.b16 %v5447, %v5439
    %v7488 = vpack.c.b16 %v5448, %v5440
    %v7489 = vpack.c.b16 %v5449, %v5441
    %v7490 = vpack.c.b16 %v5450, %v5442
    %v7491 = vpack.c.b16 %v5451, %v5443
    %v7492 = vpack.c.b16 %v5452, %v5444
    %v7493 = vpack.c.b16 %v5453, %v5445
    %v7494 = vpack.c.b16 %v5462, %v5454
    %v7495 = vpack.c.b16 %v5463, %v5455
    %v7496 = vpack.c.b16 %v5464, %v5456
    %v7497 = vpack.c.b16 %v5465, %v5457
    %v7498 = vpack.c.b16 %v5466, %v5458
    %v7499 = vpack.c.b16 %v5467, %v5459
    %v7500 = vpack.c.b16 %v5468, %v5460
    %v7501 = vpack.c.b16 %v5469, %v5461
    %v7502 = vpack.c.b16 %v5478, %v5470
    %v7503 = vpack.c.b16 %v5479, %v5471
    %v7504 = vpack.c.b16 %v5480, %v5472
    %v7505 = vpack.c.b16 %v5481, %v5473
    %v7506 = vpack.c.b16 %v5482, %v5474
    %v7507 = vpack.c.b16 %v5483, %v5475
    %v7508 = vpack.c.b16 %v5484, %v5476
    %v7509 = vpack.c.b16 %v5485, %v5477
    %v7510 = vpack.c.b16 %v5494, %v5486
    %v7511 = vpack.c.b16 %v5495, %v5487
    %v7512 = vpack.c.b16 %v5496, %v5488
    %v7513 = vpack.c.b16 %v5497, %v5489
    %v7514 = vpack.c.b16 %v5498, %v5490
    %v7515 = vpack.c.b16 %v5499, %v5491
    %v7516 = vpack.c.b16 %v5500, %v5492
    %v7517 = vpack.c.b16 %v5501, %v5493
    %v7518 = vpack.c.b16 %v5510, %v5502
    %v7519 = vpack.c.b16 %v5511, %v5503
    %v7520 = vpack.c.b16 %v5512, %v5504
    %v7521 = vpack.c.b16 %v5513, %v5505
    %v7522 = vpack.c.b16 %v5514, %v5506
    %v7523 = vpack.c.b16 %v5515, %v5507
    %v7524 = vpack.c.b16 %v5516, %v5508
    %v7525 = vpack.c.b16 %v5517, %v5509
    %v7526 = vpack.c.b16 %v5526, %v5518
    %v7527 = vpack.c.b16 %v5527, %v5519
    %v7528 = vpack.c.b16 %v5528, %v5520
    %v7529 = vpack.c.b16 %v5529, %v5521
    %v7530 = vpack.c.b16 %v5530, %v5522
    %v7531 = vpack.c.b16 %v5531, %v5523
    %v7532 = vpack.c.b16 %v5532, %v5524
    %v7533 = vpack.c.b16 %v5533, %v5525
    %v7534 = vpack.c.b16 %v5542, %v5534
    %v7535 = vpack.c.b16 %v5543, %v5535
    %v7536 = vpack.c.b16 %v5544, %v5536
    %v7537 = vpack.c.b16 %v5545, %v5537
    %v7538 = vpack.c.b16 %v5546, %v5538
    %v7539 = vpack.c.b16 %v5547, %v5539
    %v7540 = vpack.c.b16 %v5548, %v5540
    %v7541 = vpack.c.b16 %v5549, %v5541
    %v7542 = vpack.c.b16 %v5558, %v5550
    %v7543 = vpack.c.b16 %v5559, %v5551
    %v7544 = vpack.c.b16 %v5560, %v5552
    %v7545 = vpack.c.b16 %v5561, %v5553
    %v7546 = vpack.c.b16 %v5562, %v5554
    %v7547 = vpack.c.b16 %v5563, %v5555
    %v7548 = vpack.c.b16 %v5564, %v5556
    %v7549 = vpack.c.b16 %v5565, %v5557
    %v7550 = vpack.c.b16 %v5574, %v5566
    %v7551 = vpack.c.b16 %v5575, %v5567
    %v7552 = vpack.c.b16 %v5576, %v5568
    %v7553 = vpack.c.b16 %v5577, %v5569
    %v7554 = vpack.c.b16 %v5578, %v5570
    %v7555 = vpack.c.b16 %v5579, %v5571
    %v7556 = vpack.c.b16 %v5580, %v5572
    %v7557 = vpack.c.b16 %v5581, %v5573
    %v7558 = vpack.c.b16 %v5590, %v5582
    %v7559 = vpack.c.b16 %v5591, %v5583
    %v7560 = vpack.c.b16 %v5592, %v5584
    %v7561 = vpack.c.b16 %v5593, %v5585
    %v7562 = vpack.c.b16 %v5594, %v5586
    %v7563 = vpack.c.b16 %v5595, %v5587
    %v7564 = vpack.c.b16 %v5596, %v5588
    %v7565 = vpack.c.b16 %v5597, %v5589
    %v7566 = vpack.c.b16 %v5606, %v5598
    %v7567 = vpack.c.b16 %v5607, %v5599
    %v7568 = vpack.c.b16 %v5608, %v5600
    %v7569 = vpack.c.b16 %v5609, %v5601
    %v7570 = vpack.c.b16 %v5610, %v5602
    %v7571 = vpack.c.b16 %v5611, %v5603
    %v7572 = vpack.c.b16 %v5612, %v5604
    %v7573 = vpack.c.b16 %v5613, %v5605
    %v7574 = vpack.c.b16 %v5622, %v5614
    %v7575 = vpack.c.b16 %v5623, %v5615
    %v7576 = vpack.c.b16 %v5624, %v5616
    %v7577 = vpack.c.b16 %v5625, %v5617
    %v7578 = vpack.c.b16 %v5626, %v5618
    %v7579 = vpack.c.b16 %v5627, %v5619
    %v7580 = vpack.c.b16 %v5628, %v5620
    %v7581 = vpack.c.b16 %v5629, %v5621
    %v7582 = vpack.c.b16 %v5638, %v5630
    %v7583 = vpack.c.b16 %v5639, %v5631
    %v7584 = vpack.c.b16 %v5640, %v5632
    %v7585 = vpack.c.b16 %v5641, %v5633
    %v7586 = vpack.c.b16 %v5642, %v5634
    %v7587 = vpack.c.b16 %v5643, %v5635
    %v7588 = vpack.c.b16 %v5644, %v5636
    %v7589 = vpack.c.b16 %v5645, %v5637
    %v7590 = vpack.c.b16 %v5654, %v5646
    %v7591 = vpack.c.b16 %v5655, %v5647
    %v7592 = vpack.c.b16 %v5656, %v5648
    %v7593 = vpack.c.b16 %v5657, %v5649
    %v7594 = vpack.c.b16 %v5658, %v5650
    %v7595 = vpack.c.b16 %v5659, %v5651
    %v7596 = vpack.c.b16 %v5660, %v5652
    %v7597 = vpack.c.b16 %v5661, %v5653
    %v7598 = vpack.c.b16 %v5670, %v5662
    %v7599 = vpack.c.b16 %v5671, %v5663
    %v7600 = vpack.c.b16 %v5672, %v5664
    %v7601 = vpack.c.b16 %v5673, %v5665
    %v7602 = vpack.c.b16 %v5674, %v5666
    %v7603 = vpack.c.b16 %v5675, %v5667
    %v7604 = vpack.c.b16 %v5676, %v5668
    %v7605 = vpack.c.b16 %v5677, %v5669
    %v7606 = vpack.c.b16 %v5686, %v5678
    %v7607 = vpack.c.b16 %v5687, %v5679
    %v7608 = vpack.c.b16 %v5688, %v5680
    %v7609 = vpack.c.b16 %v5689, %v5681
    %v7610 = vpack.c.b16 %v5690, %v5682
    %v7611 = vpack.c.b16 %v5691, %v5683
    %v7612 = vpack.c.b16 %v5692, %v5684
    %v7613 = vpack.c.b16 %v5693, %v5685
    %v7614 = vpack.c.b16 %v5702, %v5694
    %v7615 = vpack.c.b16 %v5703, %v5695
    %v7616 = vpack.c.b16 %v5704, %v5696
    %v7617 = vpack.c.b16 %v5705, %v5697
    %v7618 = vpack.c.b16 %v5706, %v5698
    %v7619 = vpack.c.b16 %v5707, %v5699
    %v7620 = vpack.c.b16 %v5708, %v5700
    %v7621 = vpack.c.b16 %v5709, %v5701
    %v7622 = vpack.c.b16 %v5718, %v5710
    %v7623 = vpack.c.b16 %v5719, %v5711
    %v7624 = vpack.c.b16 %v5720, %v5712
    %v7625 = vpack.c.b16 %v5721, %v5713
    %v7626 = vpack.c.b16 %v5722, %v5714
    %v7627 = vpack.c.b16 %v5723, %v5715
    %v7628 = vpack.c.b16 %v5724, %v5716
    %v7629 = vpack.c.b16 %v5725, %v5717
    %v7630 = vpack.c.b16 %v5734, %v5726
    %v7631 = vpack.c.b16 %v5735, %v5727
    %v7632 = vpack.c.b16 %v5736, %v5728
    %v7633 = vpack.c.b16 %v5737, %v5729
    %v7634 = vpack.c.b16 %v5738, %v5730
    %v7635 = vpack.c.b16 %v5739, %v5731
    %v7636 = vpack.c.b16 %v5740, %v5732
    %v7637 = vpack.c.b16 %v5741, %v5733
    %v7638 = vpack.c.b16 %v5750, %v5742
    %v7639 = vpack.c.b16 %v5751, %v5743
    %v7640 = vpack.c.b16 %v5752, %v5744
    %v7641 = vpack.c.b16 %v5753, %v5745
    %v7642 = vpack.c.b16 %v5754, %v5746
    %v7643 = vpack.c.b16 %v5755, %v5747
    %v7644 = vpack.c.b16 %v5756, %v5748
    %v7645 = vpack.c.b16 %v5757, %v5749
    %v7646 = vpack.c.b16 %v5766, %v5758
    %v7647 = vpack.c.b16 %v5767, %v5759
    %v7648 = vpack.c.b16 %v5768, %v5760
    %v7649 = vpack.c.b16 %v5769, %v5761
    %v7650 = vpack.c.b16 %v5770, %v5762
    %v7651 = vpack.c.b16 %v5771, %v5763
    %v7652 = vpack.c.b16 %v5772, %v5764
    %v7653 = vpack.c.b16 %v5773, %v5765
    %v7654 = vpack.c.b16 %v5782, %v5774
    %v7655 = vpack.c.b16 %v5783, %v5775
    %v7656 = vpack.c.b16 %v5784, %v5776
    %v7657 = vpack.c.b16 %v5785, %v5777
    %v7658 = vpack.c.b16 %v5786, %v5778
    %v7659 = vpack.c.b16 %v5787, %v5779
    %v7660 = vpack.c.b16 %v5788, %v5780
    %v7661 = vpack.c.b16 %v5789, %v5781
    %v7662 = vpack.c.b16 %v5798, %v5790
    %v7663 = vpack.c.b16 %v5799, %v5791
    %v7664 = vpack.c.b16 %v5800, %v5792
    %v7665 = vpack.c.b16 %v5801, %v5793
    %v7666 = vpack.c.b16 %v5802, %v5794
    %v7667 = vpack.c.b16 %v5803, %v5795
    %v7668 = vpack.c.b16 %v5804, %v5796
    %v7669 = vpack.c.b16 %v5805, %v5797
    %v7670 = vpack.c.b16 %v5814, %v5806
    %v7671 = vpack.c.b16 %v5815, %v5807
    %v7672 = vpack.c.b16 %v5816, %v5808
    %v7673 = vpack.c.b16 %v5817, %v5809
    %v7674 = vpack.c.b16 %v5818, %v5810
    %v7675 = vpack.c.b16 %v5819, %v5811
    %v7676 = vpack.c.b16 %v5820, %v5812
    %v7677 = vpack.c.b16 %v5821, %v5813
    %v7678 = vpack.c.b16 %v5830, %v5822
    %v7679 = vpack.c.b16 %v5831, %v5823
    %v7680 = vpack.c.b16 %v5832, %v5824
    %v7681 = vpack.c.b16 %v5833, %v5825
    %v7682 = vpack.c.b16 %v5834, %v5826
    %v7683 = vpack.c.b16 %v5835, %v5827
    %v7684 = vpack.c.b16 %v5836, %v5828
    %v7685 = vpack.c.b16 %v5837, %v5829
    %v7686 = vpack.c.b16 %v5846, %v5838
    %v7687 = vpack.c.b16 %v5847, %v5839
    %v7688 = vpack.c.b16 %v5848, %v5840
    %v7689 = vpack.c.b16 %v5849, %v5841
    %v7690 = vpack.c.b16 %v5850, %v5842
    %v7691 = vpack.c.b16 %v5851, %v5843
    %v7692 = vpack.c.b16 %v5852, %v5844
    %v7693 = vpack.c.b16 %v5853, %v5845
    %v7694 = vpack.c.b16 %v5862, %v5854
    %v7695 = vpack.c.b16 %v5863, %v5855
    %v7696 = vpack.c.b16 %v5864, %v5856
    %v7697 = vpack.c.b16 %v5865, %v5857
    %v7698 = vpack.c.b16 %v5866, %v5858
    %v7699 = vpack.c.b16 %v5867, %v5859
    %v7700 = vpack.c.b16 %v5868, %v5860
    %v7701 = vpack.c.b16 %v5869, %v5861
    %v7702 = vpack.c.b16 %v5878, %v5870
    %v7703 = vpack.c.b16 %v5879, %v5871
    %v7704 = vpack.c.b16 %v5880, %v5872
    %v7705 = vpack.c.b16 %v5881, %v5873
    %v7706 = vpack.c.b16 %v5882, %v5874
    %v7707 = vpack.c.b16 %v5883, %v5875
    %v7708 = vpack.c.b16 %v5884, %v5876
    %v7709 = vpack.c.b16 %v5885, %v5877
    %v7710 = vpack.c.b16 %v5894, %v5886
    %v7711 = vpack.c.b16 %v5895, %v5887
    %v7712 = vpack.c.b16 %v5896, %v5888
    %v7713 = vpack.c.b16 %v5897, %v5889
    %v7714 = vpack.c.b16 %v5898, %v5890
    %v7715 = vpack.c.b16 %v5899, %v5891
    %v7716 = vpack.c.b16 %v5900, %v5892
    %v7717 = vpack.c.b16 %v5901, %v5893
    %v7718 = vpack.c.b16 %v5910, %v5902
    %v7719 = vpack.c.b16 %v5911, %v5903
    %v7720 = vpack.c.b16 %v5912, %v5904
    %v7721 = vpack.c.b16 %v5913, %v5905
    %v7722 = vpack.c.b16 %v5914, %v5906
    %v7723 = vpack.c.b16 %v5915, %v5907
    %v7724 = vpack.c.b16 %v5916, %v5908
    %v7725 = vpack.c.b16 %v5917, %v5909
    %v7726 = vpack.c.b16 %v5926, %v5918
    %v7727 = vpack.c.b16 %v5927, %v5919
    %v7728 = vpack.c.b16 %v5928, %v5920
    %v7729 = vpack.c.b16 %v5929, %v5921
    %v7730 = vpack.c.b16 %v5930, %v5922
    %v7731 = vpack.c.b16 %v5931, %v5923
    %v7732 = vpack.c.b16 %v5932, %v5924
    %v7733 = vpack.c.b16 %v5933, %v5925
    %v7734 = vpack.c.b16 %v5942, %v5934
    %v7735 = vpack.c.b16 %v5943, %v5935
    %v7736 = vpack.c.b16 %v5944, %v5936
    %v7737 = vpack.c.b16 %v5945, %v5937
    %v7738 = vpack.c.b16 %v5946, %v5938
    %v7739 = vpack.c.b16 %v5947, %v5939
    %v7740 = vpack.c.b16 %v5948, %v5940
    %v7741 = vpack.c.b16 %v5949, %v5941
    %v7742 = vpack.c.b16 %v5958, %v5950
    %v7743 = vpack.c.b16 %v5959, %v5951
    %v7744 = vpack.c.b16 %v5960, %v5952
    %v7745 = vpack.c.b16 %v5961, %v5953
    %v7746 = vpack.c.b16 %v5962, %v5954
    %v7747 = vpack.c.b16 %v5963, %v5955
    %v7748 = vpack.c.b16 %v5964, %v5956
    %v7749 = vpack.c.b16 %v5965, %v5957
    %v7750 = vpack.c.b16 %v5974, %v5966
    %v7751 = vpack.c.b16 %v5975, %v5967
    %v7752 = vpack.c.b16 %v5976, %v5968
    %v7753 = vpack.c.b16 %v5977, %v5969
    %v7754 = vpack.c.b16 %v5978, %v5970
    %v7755 = vpack.c.b16 %v5979, %v5971
    %v7756 = vpack.c.b16 %v5980, %v5972
    %v7757 = vpack.c.b16 %v5981, %v5973
    %v7758 = vpack.c.b16 %v5990, %v5982
    %v7759 = vpack.c.b16 %v5991, %v5983
    %v7760 = vpack.c.b16 %v5992, %v5984
    %v7761 = vpack.c.b16 %v5993, %v5985
    %v7762 = vpack.c.b16 %v5994, %v5986
    %v7763 = vpack.c.b16 %v5995, %v5987
    %v7764 = vpack.c.b16 %v5996, %v5988
    %v7765 = vpack.c.b16 %v5997, %v5989
    %v7766 = vpack.c.b16 %v6006, %v5998
    %v7767 = vpack.c.b16 %v6007, %v5999
    %v7768 = vpack.c.b16 %v6008, %v6000
    %v7769 = vpack.c.b16 %v6009, %v6001
    %v7770 = vpack.c.b16 %v6010, %v6002
    %v7771 = vpack.c.b16 %v6011, %v6003
    %v7772 = vpack.c.b16 %v6012, %v6004
    %v7773 = vpack.c.b16 %v6013, %v6005
    %v7774 = vpack.c.b16 %v6022, %v6014
    %v7775 = vpack.c.b16 %v6023, %v6015
    %v7776 = vpack.c.b16 %v6024, %v6016
    %v7777 = vpack.c.b16 %v6025, %v6017
    %v7778 = vpack.c.b16 %v6026, %v6018
    %v7779 = vpack.c.b16 %v6027, %v6019
    %v7780 = vpack.c.b16 %v6028, %v6020
    %v7781 = vpack.c.b16 %v6029, %v6021
    %v7782 = vpack.c.b16 %v6038, %v6030
    %v7783 = vpack.c.b16 %v6039, %v6031
    %v7784 = vpack.c.b16 %v6040, %v6032
    %v7785 = vpack.c.b16 %v6041, %v6033
    %v7786 = vpack.c.b16 %v6042, %v6034
    %v7787 = vpack.c.b16 %v6043, %v6035
    %v7788 = vpack.c.b16 %v6044, %v6036
    %v7789 = vpack.c.b16 %v6045, %v6037
    %v7790 = vpack.c.b16 %v6054, %v6046
    %v7791 = vpack.c.b16 %v6055, %v6047
    %v7792 = vpack.c.b16 %v6056, %v6048
    %v7793 = vpack.c.b16 %v6057, %v6049
    %v7794 = vpack.c.b16 %v6058, %v6050
    %v7795 = vpack.c.b16 %v6059, %v6051
    %v7796 = vpack.c.b16 %v6060, %v6052
    %v7797 = vpack.c.b16 %v6061, %v6053
    %v7798 = vpack.c.b16 %v6070, %v6062
    %v7799 = vpack.c.b16 %v6071, %v6063
    %v7800 = vpack.c.b16 %v6072, %v6064
    %v7801 = vpack.c.b16 %v6073, %v6065
    %v7802 = vpack.c.b16 %v6074, %v6066
    %v7803 = vpack.c.b16 %v6075, %v6067
    %v7804 = vpack.c.b16 %v6076, %v6068
    %v7805 = vpack.c.b16 %v6077, %v6069
    %v7806 = vpack.c.b16 %v6086, %v6078
    %v7807 = vpack.c.b16 %v6087, %v6079
    %v7808 = vpack.c.b16 %v6088, %v6080
    %v7809 = vpack.c.b16 %v6089, %v6081
    %v7810 = vpack.c.b16 %v6090, %v6082
    %v7811 = vpack.c.b16 %v6091, %v6083
    %v7812 = vpack.c.b16 %v6092, %v6084
    %v7813 = vpack.c.b16 %v6093, %v6085
    %v7814 = vpack.c.b16 %v6102, %v6094
    %v7815 = vpack.c.b16 %v6103, %v6095
    %v7816 = vpack.c.b16 %v6104, %v6096
    %v7817 = vpack.c.b16 %v6105, %v6097
    %v7818 = vpack.c.b16 %v6106, %v6098
    %v7819 = vpack.c.b16 %v6107, %v6099
    %v7820 = vpack.c.b16 %v6108, %v6100
    %v7821 = vpack.c.b16 %v6109, %v6101
    %v7822 = vpack.c.b16 %v6118, %v6110
    %v7823 = vpack.c.b16 %v6119, %v6111
    %v7824 = vpack.c.b16 %v6120, %v6112
    %v7825 = vpack.c.b16 %v6121, %v6113
    %v7826 = vpack.c.b16 %v6122, %v6114
    %v7827 = vpack.c.b16 %v6123, %v6115
    %v7828 = vpack.c.b16 %v6124, %v6116
    %v7829 = vpack.c.b16 %v6125, %v6117
    %v7830 = vpack.c.b16 %v6134, %v6126
    %v7831 = vpack.c.b16 %v6135, %v6127
    %v7832 = vpack.c.b16 %v6136, %v6128
    %v7833 = vpack.c.b16 %v6137, %v6129
    %v7834 = vpack.c.b16 %v6138, %v6130
    %v7835 = vpack.c.b16 %v6139, %v6131
    %v7836 = vpack.c.b16 %v6140, %v6132
    %v7837 = vpack.c.b16 %v6141, %v6133
    %v7838 = vpack.c.b16 %v6150, %v6142
    %v7839 = vpack.c.b16 %v6151, %v6143
    %v7840 = vpack.c.b16 %v6152, %v6144
    %v7841 = vpack.c.b16 %v6153, %v6145
    %v7842 = vpack.c.b16 %v6154, %v6146
    %v7843 = vpack.c.b16 %v6155, %v6147
    %v7844 = vpack.c.b16 %v6156, %v6148
    %v7845 = vpack.c.b16 %v6157, %v6149
    %v7846 = vpack.c.b16 %v6166, %v6158
    %v7847 = vpack.c.b16 %v6167, %v6159
    %v7848 = vpack.c.b16 %v6168, %v6160
    %v7849 = vpack.c.b16 %v6169, %v6161
    %v7850 = vpack.c.b16 %v6170, %v6162
    %v7851 = vpack.c.b16 %v6171, %v6163
    %v7852 = vpack.c.b16 %v6172, %v6164
    %v7853 = vpack.c.b16 %v6173, %v6165
    %v7854 = vpack.c.b16 %v6182, %v6174
    %v7855 = vpack.c.b16 %v6183, %v6175
    %v7856 = vpack.c.b16 %v6184, %v6176
    %v7857 = vpack.c.b16 %v6185, %v6177
    %v7858 = vpack.c.b16 %v6186, %v6178
    %v7859 = vpack.c.b16 %v6187, %v6179
    %v7860 = vpack.c.b16 %v6188, %v6180
    %v7861 = vpack.c.b16 %v6189, %v6181
    %v7862 = vpack.c.b16 %v6198, %v6190
    %v7863 = vpack.c.b16 %v6199, %v6191
    %v7864 = vpack.c.b16 %v6200, %v6192
    %v7865 = vpack.c.b16 %v6201, %v6193
    %v7866 = vpack.c.b16 %v6202, %v6194
    %v7867 = vpack.c.b16 %v6203, %v6195
    %v7868 = vpack.c.b16 %v6204, %v6196
    %v7869 = vpack.c.b16 %v6205, %v6197
    %v7870 = vpack.c.b16 %v6214, %v6206
    %v7871 = vpack.c.b16 %v6215, %v6207
    %v7872 = vpack.c.b16 %v6216, %v6208
    %v7873 = vpack.c.b16 %v6217, %v6209
    %v7874 = vpack.c.b16 %v6218, %v6210
    %v7875 = vpack.c.b16 %v6219, %v6211
    %v7876 = vpack.c.b16 %v6220, %v6212
    %v7877 = vpack.c.b16 %v6221, %v6213
    %v7878 = vpack.c.b16 %v6230, %v6222
    %v7879 = vpack.c.b16 %v6231, %v6223
    %v7880 = vpack.c.b16 %v6232, %v6224
    %v7881 = vpack.c.b16 %v6233, %v6225
    %v7882 = vpack.c.b16 %v6234, %v6226
    %v7883 = vpack.c.b16 %v6235, %v6227
    %v7884 = vpack.c.b16 %v6236, %v6228
    %v7885 = vpack.c.b16 %v6237, %v6229
    %v7886 = vpack.c.b16 %v6246, %v6238
    %v7887 = vpack.c.b16 %v6247, %v6239
    %v7888 = vpack.c.b16 %v6248, %v6240
    %v7889 = vpack.c.b16 %v6249, %v6241
    %v7890 = vpack.c.b16 %v6250, %v6242
    %v7891 = vpack.c.b16 %v6251, %v6243
    %v7892 = vpack.c.b16 %v6252, %v6244
    %v7893 = vpack.c.b16 %v6253, %v6245
    %v7894 = vpack.c.b16 %v6262, %v6254
    %v7895 = vpack.c.b16 %v6263, %v6255
    %v7896 = vpack.c.b16 %v6264, %v6256
    %v7897 = vpack.c.b16 %v6265, %v6257
    %v7898 = vpack.c.b16 %v6266, %v6258
    %v7899 = vpack.c.b16 %v6267, %v6259
    %v7900 = vpack.c.b16 %v6268, %v6260
    %v7901 = vpack.c.b16 %v6269, %v6261
    %v7902 = vpack.c.b16 %v6278, %v6270
    %v7903 = vpack.c.b16 %v6279, %v6271
    %v7904 = vpack.c.b16 %v6280, %v6272
    %v7905 = vpack.c.b16 %v6281, %v6273
    %v7906 = vpack.c.b16 %v6282, %v6274
    %v7907 = vpack.c.b16 %v6283, %v6275
    %v7908 = vpack.c.b16 %v6284, %v6276
    %v7909 = vpack.c.b16 %v6285, %v6277
    %v7910 = vpack.c.b16 %v6294, %v6286
    %v7911 = vpack.c.b16 %v6295, %v6287
    %v7912 = vpack.c.b16 %v6296, %v6288
    %v7913 = vpack.c.b16 %v6297, %v6289
    %v7914 = vpack.c.b16 %v6298, %v6290
    %v7915 = vpack.c.b16 %v6299, %v6291
    %v7916 = vpack.c.b16 %v6300, %v6292
    %v7917 = vpack.c.b16 %v6301, %v6293
    %v7918 = vpack.c.b16 %v6310, %v6302
    %v7919 = vpack.c.b16 %v6311, %v6303
    %v7920 = vpack.c.b16 %v6312, %v6304
    %v7921 = vpack.c.b16 %v6313, %v6305
    %v7922 = vpack.c.b16 %v6314, %v6306
    %v7923 = vpack.c.b16 %v6315, %v6307
    %v7924 = vpack.c.b16 %v6316, %v6308
    %v7925 = vpack.c.b16 %v6317, %v6309
    %v7926 = vpack.c.b16 %v6326, %v6318
    %v7927 = vpack.c.b16 %v6327, %v6319
    %v7928 = vpack.c.b16 %v6328, %v6320
    %v7929 = vpack.c.b16 %v6329, %v6321
    %v7930 = vpack.c.b16 %v6330, %v6322
    %v7931 = vpack.c.b16 %v6331, %v6323
    %v7932 = vpack.c.b16 %v6332, %v6324
    %v7933 = vpack.c.b16 %v6333, %v6325
    %v7934 = vpack.c.b16 %v6342, %v6334
    %v7935 = vpack.c.b16 %v6343, %v6335
    %v7936 = vpack.c.b16 %v6344, %v6336
    %v7937 = vpack.c.b16 %v6345, %v6337
    %v7938 = vpack.c.b16 %v6346, %v6338
    %v7939 = vpack.c.b16 %v6347, %v6339
    %v7940 = vpack.c.b16 %v6348, %v6340
    %v7941 = vpack.c.b16 %v6349, %v6341
    %v7942 = vpack.c.b16 %v6358, %v6350
    %v7943 = vpack.c.b16 %v6359, %v6351
    %v7944 = vpack.c.b16 %v6360, %v6352
    %v7945 = vpack.c.b16 %v6361, %v6353
    %v7946 = vpack.c.b16 %v6362, %v6354
    %v7947 = vpack.c.b16 %v6363, %v6355
    %v7948 = vpack.c.b16 %v6364, %v6356
    %v7949 = vpack.c.b16 %v6365, %v6357
    %v7950 = vpack.c.b16 %v6374, %v6366
    %v7951 = vpack.c.b16 %v6375, %v6367
    %v7952 = vpack.c.b16 %v6376, %v6368
    %v7953 = vpack.c.b16 %v6377, %v6369
    %v7954 = vpack.c.b16 %v6378, %v6370
    %v7955 = vpack.c.b16 %v6379, %v6371
    %v7956 = vpack.c.b16 %v6380, %v6372
    %v7957 = vpack.c.b16 %v6381, %v6373
    %v7958 = vpack.c.b16 %v6390, %v6382
    %v7959 = vpack.c.b16 %v6391, %v6383
    %v7960 = vpack.c.b16 %v6392, %v6384
    %v7961 = vpack.c.b16 %v6393, %v6385
    %v7962 = vpack.c.b16 %v6394, %v6386
    %v7963 = vpack.c.b16 %v6395, %v6387
    %v7964 = vpack.c.b16 %v6396, %v6388
    %v7965 = vpack.c.b16 %v6397, %v6389
    %v7966 = vpack.c.b16 %v6406, %v6398
    %v7967 = vpack.c.b16 %v6407, %v6399
    %v7968 = vpack.c.b16 %v6408, %v6400
    %v7969 = vpack.c.b16 %v6409, %v6401
    %v7970 = vpack.c.b16 %v6410, %v6402
    %v7971 = vpack.c.b16 %v6411, %v6403
    %v7972 = vpack.c.b16 %v6412, %v6404
    %v7973 = vpack.c.b16 %v6413, %v6405
    %v7974 = vpack.c.b16 %v6422, %v6414
    %v7975 = vpack.c.b16 %v6423, %v6415
    %v7976 = vpack.c.b16 %v6424, %v6416
    %v7977 = vpack.c.b16 %v6425, %v6417
    %v7978 = vpack.c.b16 %v6426, %v6418
    %v7979 = vpack.c.b16 %v6427, %v6419
    %v7980 = vpack.c.b16 %v6428, %v6420
    %v7981 = vpack.c.b16 %v6429, %v6421
    %v7982 = vpack.c.b16 %v6438, %v6430
    %v7983 = vpack.c.b16 %v6439, %v6431
    %v7984 = vpack.c.b16 %v6440, %v6432
    %v7985 = vpack.c.b16 %v6441, %v6433
    %v7986 = vpack.c.b16 %v6442, %v6434
    %v7987 = vpack.c.b16 %v6443, %v6435
    %v7988 = vpack.c.b16 %v6444, %v6436
    %v7989 = vpack.c.b16 %v6445, %v6437
    %v7990 = vpack.c.b16 %v6454, %v6446
    %v7991 = vpack.c.b16 %v6455, %v6447
    %v7992 = vpack.c.b16 %v6456, %v6448
    %v7993 = vpack.c.b16 %v6457, %v6449
    %v7994 = vpack.c.b16 %v6458, %v6450
    %v7995 = vpack.c.b16 %v6459, %v6451
    %v7996 = vpack.c.b16 %v6460, %v6452
    %v7997 = vpack.c.b16 %v6461, %v6453
    %9534 = vmatprep.subr.bf16.mxu0 %v6519
    %9535 = vmatpush1.bf16.msra.mxu0 %v6518
    %9536 = vmatprep.subr.bf16.mxu0 %v6511
    %9537 = vmatpush1.bf16.msra.mxu0 %v6510
    %9538 = vmatprep.subr.bf16.mxu0 %v6503
    %9539 = vmatpush1.bf16.msra.mxu0 %v6502
    %9540 = vmatprep.subr.bf16.mxu0 %v6495
    %9541 = vmatpush1.bf16.msra.mxu0 %v6494
    %9542 = vmatprep.subr.bf16.mxu0 %v6487
    %9543 = vmatpush1.bf16.msra.mxu0 %v6486
    %9544 = vmatprep.subr.bf16.mxu0 %v6479
    %9545 = vmatpush1.bf16.msra.mxu0 %v6478
    %9546 = vmatprep.subr.bf16.mxu0 %v6471
    %9547 = vmatpush1.bf16.msra.mxu0 %v6470
    %9548 = vmatprep.subr.bf16.mxu0 %v6463
    %9549 = vmatpush1.bf16.msra.mxu0 %v6462
    %9550 = vmatprep.subr.bf16.mxu0 %v6583
    %9551 = vmatpush2.bf16.msra.mxu0 %v6582
    %9552 = vmatprep.subr.bf16.mxu0 %v6575
    %9553 = vmatpush2.bf16.msra.mxu0 %v6574
    %9554 = vmatprep.subr.bf16.mxu0 %v6567
    %9555 = vmatpush2.bf16.msra.mxu0 %v6566
    %9556 = vmatprep.subr.bf16.mxu0 %v6559
    %9557 = vmatpush2.bf16.msra.mxu0 %v6558
    %9558 = vmatprep.subr.bf16.mxu0 %v6551
    %9559 = vmatpush2.bf16.msra.mxu0 %v6550
    %9560 = vmatprep.subr.bf16.mxu0 %v6543
    %9561 = vmatpush2.bf16.msra.mxu0 %v6542
    %9562 = vmatprep.subr.bf16.mxu0 %v6535
    %9563 = vmatpush2.bf16.msra.mxu0 %v6534
    %9564 = vmatprep.subr.bf16.mxu0 %v6527
    %9565 = vmatpush2.bf16.msra.mxu0 %v6526
    %9566 = vmatprep.mubr.bf16.mxu0 %v1807
    %9567 = vmatmul.mubr.bf16.gmra.mxu0 %v1806
    %v9568 = vpop.f32.mrf.mxu0
    %v9569 = vadd.f32 %v1733, %v9568
    %v9570 = vpop.f32.mrf.mxu0
    %v9571 = vadd.f32 %v1737, %v9570
    %v9572 = vpop.f32.mrf.mxu0
    %v9573 = vpop.f32.mrf.mxu0
    %9574 = vdwg.mxu0
    %9575 = vmatprep.subr.bf16.mxu0 %v6647
    %9576 = vmatpush1.bf16.msra.mxu0 %v6646
    %9577 = vmatprep.subr.bf16.mxu0 %v6639
    %9578 = vmatpush1.bf16.msra.mxu0 %v6638
    %9579 = vmatprep.subr.bf16.mxu0 %v6631
    %9580 = vmatpush1.bf16.msra.mxu0 %v6630
    %9581 = vmatprep.subr.bf16.mxu0 %v6623
    %9582 = vmatpush1.bf16.msra.mxu0 %v6622
    %9583 = vmatprep.subr.bf16.mxu0 %v6615
    %9584 = vmatpush1.bf16.msra.mxu0 %v6614
    %9585 = vmatprep.subr.bf16.mxu0 %v6607
    %9586 = vmatpush1.bf16.msra.mxu0 %v6606
    %9587 = vmatprep.subr.bf16.mxu0 %v6599
    %9588 = vmatpush1.bf16.msra.mxu0 %v6598
    %9589 = vmatprep.subr.bf16.mxu0 %v6591
    %9590 = vmatpush1.bf16.msra.mxu0 %v6590
    %9591 = vmatprep.subr.bf16.mxu0 %v6711
    %9592 = vmatpush2.bf16.msra.mxu0 %v6710
    %9593 = vmatprep.subr.bf16.mxu0 %v6703
    %9594 = vmatpush2.bf16.msra.mxu0 %v6702
    %9595 = vmatprep.subr.bf16.mxu0 %v6695
    %9596 = vmatpush2.bf16.msra.mxu0 %v6694
    %9597 = vmatprep.subr.bf16.mxu0 %v6687
    %9598 = vmatpush2.bf16.msra.mxu0 %v6686
    %9599 = vmatprep.subr.bf16.mxu0 %v6679
    %9600 = vmatpush2.bf16.msra.mxu0 %v6678
    %9601 = vmatprep.subr.bf16.mxu0 %v6671
    %9602 = vmatpush2.bf16.msra.mxu0 %v6670
    %9603 = vmatprep.subr.bf16.mxu0 %v6663
    %9604 = vmatpush2.bf16.msra.mxu0 %v6662
    %9605 = vmatprep.subr.bf16.mxu0 %v6655
    %9606 = vmatpush2.bf16.msra.mxu0 %v6654
    %9607 = vmatprep.mubr.bf16.mxu0 %v1809
    %9608 = vmatmul.mubr.bf16.gmra.mxu0 %v1808
    %v9609 = vpop.f32.mrf.mxu0
    %v9610 = vadd.f32 %v9569, %v9609
    %v9611 = vpop.f32.mrf.mxu0
    %v9612 = vadd.f32 %v9571, %v9611
    %v9613 = vpop.f32.mrf.mxu0
    %v9614 = vpop.f32.mrf.mxu0
    %9615 = vdwg.mxu0
    %9616 = vmatprep.subr.bf16.mxu0 %v6775
    %9617 = vmatpush1.bf16.msra.mxu0 %v6774
    %9618 = vmatprep.subr.bf16.mxu0 %v6767
    %9619 = vmatpush1.bf16.msra.mxu0 %v6766
    %9620 = vmatprep.subr.bf16.mxu0 %v6759
    %9621 = vmatpush1.bf16.msra.mxu0 %v6758
    %9622 = vmatprep.subr.bf16.mxu0 %v6751
    %9623 = vmatpush1.bf16.msra.mxu0 %v6750
    %9624 = vmatprep.subr.bf16.mxu0 %v6743
    %9625 = vmatpush1.bf16.msra.mxu0 %v6742
    %9626 = vmatprep.subr.bf16.mxu0 %v6735
    %9627 = vmatpush1.bf16.msra.mxu0 %v6734
    %9628 = vmatprep.subr.bf16.mxu0 %v6727
    %9629 = vmatpush1.bf16.msra.mxu0 %v6726
    %9630 = vmatprep.subr.bf16.mxu0 %v6719
    %9631 = vmatpush1.bf16.msra.mxu0 %v6718
    %9632 = vmatprep.subr.bf16.mxu0 %v6839
    %9633 = vmatpush2.bf16.msra.mxu0 %v6838
    %9634 = vmatprep.subr.bf16.mxu0 %v6831
    %9635 = vmatpush2.bf16.msra.mxu0 %v6830
    %9636 = vmatprep.subr.bf16.mxu0 %v6823
    %9637 = vmatpush2.bf16.msra.mxu0 %v6822
    %9638 = vmatprep.subr.bf16.mxu0 %v6815
    %9639 = vmatpush2.bf16.msra.mxu0 %v6814
    %9640 = vmatprep.subr.bf16.mxu0 %v6807
    %9641 = vmatpush2.bf16.msra.mxu0 %v6806
    %9642 = vmatprep.subr.bf16.mxu0 %v6799
    %9643 = vmatpush2.bf16.msra.mxu0 %v6798
    %9644 = vmatprep.subr.bf16.mxu0 %v6791
    %9645 = vmatpush2.bf16.msra.mxu0 %v6790
    %9646 = vmatprep.subr.bf16.mxu0 %v6783
    %9647 = vmatpush2.bf16.msra.mxu0 %v6782
    %9648 = vmatprep.mubr.bf16.mxu0 %v1811
    %9649 = vmatmul.mubr.bf16.gmra.mxu0 %v1810
    %v9650 = vpop.f32.mrf.mxu0
    %v9651 = vadd.f32 %v9610, %v9650
    %v9652 = vpop.f32.mrf.mxu0
    %v9653 = vadd.f32 %v9612, %v9652
    %v9654 = vpop.f32.mrf.mxu0
    %v9655 = vpop.f32.mrf.mxu0
    %9656 = vdwg.mxu0
    %9657 = vmatprep.subr.bf16.mxu0 %v6903
    %9658 = vmatpush1.bf16.msra.mxu0 %v6902
    %9659 = vmatprep.subr.bf16.mxu0 %v6895
    %9660 = vmatpush1.bf16.msra.mxu0 %v6894
    %9661 = vmatprep.subr.bf16.mxu0 %v6887
    %9662 = vmatpush1.bf16.msra.mxu0 %v6886
    %9663 = vmatprep.subr.bf16.mxu0 %v6879
    %9664 = vmatpush1.bf16.msra.mxu0 %v6878
    %9665 = vmatprep.subr.bf16.mxu0 %v6871
    %9666 = vmatpush1.bf16.msra.mxu0 %v6870
    %9667 = vmatprep.subr.bf16.mxu0 %v6863
    %9668 = vmatpush1.bf16.msra.mxu0 %v6862
    %9669 = vmatprep.subr.bf16.mxu0 %v6855
    %9670 = vmatpush1.bf16.msra.mxu0 %v6854
    %9671 = vmatprep.subr.bf16.mxu0 %v6847
    %9672 = vmatpush1.bf16.msra.mxu0 %v6846
    %9673 = vmatprep.subr.bf16.mxu0 %v6967
    %9674 = vmatpush2.bf16.msra.mxu0 %v6966
    %9675 = vmatprep.subr.bf16.mxu0 %v6959
    %9676 = vmatpush2.bf16.msra.mxu0 %v6958
    %9677 = vmatprep.subr.bf16.mxu0 %v6951
    %9678 = vmatpush2.bf16.msra.mxu0 %v6950
    %9679 = vmatprep.subr.bf16.mxu0 %v6943
    %9680 = vmatpush2.bf16.msra.mxu0 %v6942
    %9681 = vmatprep.subr.bf16.mxu0 %v6935
    %9682 = vmatpush2.bf16.msra.mxu0 %v6934
    %9683 = vmatprep.subr.bf16.mxu0 %v6927
    %9684 = vmatpush2.bf16.msra.mxu0 %v6926
    %9685 = vmatprep.subr.bf16.mxu0 %v6919
    %9686 = vmatpush2.bf16.msra.mxu0 %v6918
    %9687 = vmatprep.subr.bf16.mxu0 %v6911
    %9688 = vmatpush2.bf16.msra.mxu0 %v6910
    %9689 = vmatprep.mubr.bf16.mxu0 %v1813
    %9690 = vmatmul.mubr.bf16.gmra.mxu0 %v1812
    %v9691 = vpop.f32.mrf.mxu0
    %v9692 = vadd.f32 %v9651, %v9691
    %v9693 = vpop.f32.mrf.mxu0
    %v9694 = vadd.f32 %v9653, %v9693
    %v9695 = vpop.f32.mrf.mxu0
    %v9696 = vpop.f32.mrf.mxu0
    %9697 = vdwg.mxu0
    %9698 = vmatprep.subr.bf16.mxu0 %v7031
    %9699 = vmatpush1.bf16.msra.mxu0 %v7030
    %9700 = vmatprep.subr.bf16.mxu0 %v7023
    %9701 = vmatpush1.bf16.msra.mxu0 %v7022
    %9702 = vmatprep.subr.bf16.mxu0 %v7015
    %9703 = vmatpush1.bf16.msra.mxu0 %v7014
    %9704 = vmatprep.subr.bf16.mxu0 %v7007
    %9705 = vmatpush1.bf16.msra.mxu0 %v7006
    %9706 = vmatprep.subr.bf16.mxu0 %v6999
    %9707 = vmatpush1.bf16.msra.mxu0 %v6998
    %9708 = vmatprep.subr.bf16.mxu0 %v6991
    %9709 = vmatpush1.bf16.msra.mxu0 %v6990
    %9710 = vmatprep.subr.bf16.mxu0 %v6983
    %9711 = vmatpush1.bf16.msra.mxu0 %v6982
    %9712 = vmatprep.subr.bf16.mxu0 %v6975
    %9713 = vmatpush1.bf16.msra.mxu0 %v6974
    %9714 = vmatprep.subr.bf16.mxu0 %v7095
    %9715 = vmatpush2.bf16.msra.mxu0 %v7094
    %9716 = vmatprep.subr.bf16.mxu0 %v7087
    %9717 = vmatpush2.bf16.msra.mxu0 %v7086
    %9718 = vmatprep.subr.bf16.mxu0 %v7079
    %9719 = vmatpush2.bf16.msra.mxu0 %v7078
    %9720 = vmatprep.subr.bf16.mxu0 %v7071
    %9721 = vmatpush2.bf16.msra.mxu0 %v7070
    %9722 = vmatprep.subr.bf16.mxu0 %v7063
    %9723 = vmatpush2.bf16.msra.mxu0 %v7062
    %9724 = vmatprep.subr.bf16.mxu0 %v7055
    %9725 = vmatpush2.bf16.msra.mxu0 %v7054
    %9726 = vmatprep.subr.bf16.mxu0 %v7047
    %9727 = vmatpush2.bf16.msra.mxu0 %v7046
    %9728 = vmatprep.subr.bf16.mxu0 %v7039
    %9729 = vmatpush2.bf16.msra.mxu0 %v7038
    %9730 = vmatprep.mubr.bf16.mxu0 %v1815
    %9731 = vmatmul.mubr.bf16.gmra.mxu0 %v1814
    %v9732 = vpop.f32.mrf.mxu0
    %v9733 = vadd.f32 %v9692, %v9732
    %v9734 = vpop.f32.mrf.mxu0
    %v9735 = vadd.f32 %v9694, %v9734
    %v9736 = vpop.f32.mrf.mxu0
    %v9737 = vpop.f32.mrf.mxu0
    %9738 = vdwg.mxu0
    %9739 = vmatprep.subr.bf16.mxu0 %v7159
    %9740 = vmatpush1.bf16.msra.mxu0 %v7158
    %9741 = vmatprep.subr.bf16.mxu0 %v7151
    %9742 = vmatpush1.bf16.msra.mxu0 %v7150
    %9743 = vmatprep.subr.bf16.mxu0 %v7143
    %9744 = vmatpush1.bf16.msra.mxu0 %v7142
    %9745 = vmatprep.subr.bf16.mxu0 %v7135
    %9746 = vmatpush1.bf16.msra.mxu0 %v7134
    %9747 = vmatprep.subr.bf16.mxu0 %v7127
    %9748 = vmatpush1.bf16.msra.mxu0 %v7126
    %9749 = vmatprep.subr.bf16.mxu0 %v7119
    %9750 = vmatpush1.bf16.msra.mxu0 %v7118
    %9751 = vmatprep.subr.bf16.mxu0 %v7111
    %9752 = vmatpush1.bf16.msra.mxu0 %v7110
    %9753 = vmatprep.subr.bf16.mxu0 %v7103
    %9754 = vmatpush1.bf16.msra.mxu0 %v7102
    %9755 = vmatprep.subr.bf16.mxu0 %v7223
    %9756 = vmatpush2.bf16.msra.mxu0 %v7222
    %9757 = vmatprep.subr.bf16.mxu0 %v7215
    %9758 = vmatpush2.bf16.msra.mxu0 %v7214
    %9759 = vmatprep.subr.bf16.mxu0 %v7207
    %9760 = vmatpush2.bf16.msra.mxu0 %v7206
    %9761 = vmatprep.subr.bf16.mxu0 %v7199
    %9762 = vmatpush2.bf16.msra.mxu0 %v7198
    %9763 = vmatprep.subr.bf16.mxu0 %v7191
    %9764 = vmatpush2.bf16.msra.mxu0 %v7190
    %9765 = vmatprep.subr.bf16.mxu0 %v7183
    %9766 = vmatpush2.bf16.msra.mxu0 %v7182
    %9767 = vmatprep.subr.bf16.mxu0 %v7175
    %9768 = vmatpush2.bf16.msra.mxu0 %v7174
    %9769 = vmatprep.subr.bf16.mxu0 %v7167
    %9770 = vmatpush2.bf16.msra.mxu0 %v7166
    %9771 = vmatprep.mubr.bf16.mxu0 %v1817
    %9772 = vmatmul.mubr.bf16.gmra.mxu0 %v1816
    %v9773 = vpop.f32.mrf.mxu0
    %v9774 = vadd.f32 %v9733, %v9773
    %v9775 = vpop.f32.mrf.mxu0
    %v9776 = vadd.f32 %v9735, %v9775
    %v9777 = vpop.f32.mrf.mxu0
    %v9778 = vpop.f32.mrf.mxu0
    %9779 = vdwg.mxu0
    %9780 = vmatprep.subr.bf16.mxu0 %v7287
    %9781 = vmatpush1.bf16.msra.mxu0 %v7286
    %9782 = vmatprep.subr.bf16.mxu0 %v7279
    %9783 = vmatpush1.bf16.msra.mxu0 %v7278
    %9784 = vmatprep.subr.bf16.mxu0 %v7271
    %9785 = vmatpush1.bf16.msra.mxu0 %v7270
    %9786 = vmatprep.subr.bf16.mxu0 %v7263
    %9787 = vmatpush1.bf16.msra.mxu0 %v7262
    %9788 = vmatprep.subr.bf16.mxu0 %v7255
    %9789 = vmatpush1.bf16.msra.mxu0 %v7254
    %9790 = vmatprep.subr.bf16.mxu0 %v7247
    %9791 = vmatpush1.bf16.msra.mxu0 %v7246
    %9792 = vmatprep.subr.bf16.mxu0 %v7239
    %9793 = vmatpush1.bf16.msra.mxu0 %v7238
    %9794 = vmatprep.subr.bf16.mxu0 %v7231
    %9795 = vmatpush1.bf16.msra.mxu0 %v7230
    %9796 = vmatprep.subr.bf16.mxu0 %v7351
    %9797 = vmatpush2.bf16.msra.mxu0 %v7350
    %9798 = vmatprep.subr.bf16.mxu0 %v7343
    %9799 = vmatpush2.bf16.msra.mxu0 %v7342
    %9800 = vmatprep.subr.bf16.mxu0 %v7335
    %9801 = vmatpush2.bf16.msra.mxu0 %v7334
    %9802 = vmatprep.subr.bf16.mxu0 %v7327
    %9803 = vmatpush2.bf16.msra.mxu0 %v7326
    %9804 = vmatprep.subr.bf16.mxu0 %v7319
    %9805 = vmatpush2.bf16.msra.mxu0 %v7318
    %9806 = vmatprep.subr.bf16.mxu0 %v7311
    %9807 = vmatpush2.bf16.msra.mxu0 %v7310
    %9808 = vmatprep.subr.bf16.mxu0 %v7303
    %9809 = vmatpush2.bf16.msra.mxu0 %v7302
    %9810 = vmatprep.subr.bf16.mxu0 %v7295
    %9811 = vmatpush2.bf16.msra.mxu0 %v7294
    %9812 = vmatprep.mubr.bf16.mxu0 %v1819
    %9813 = vmatmul.mubr.bf16.gmra.mxu0 %v1818
    %v9814 = vpop.f32.mrf.mxu0
    %v9815 = vadd.f32 %v9774, %v9814
    %v9816 = vpop.f32.mrf.mxu0
    %v9817 = vadd.f32 %v9776, %v9816
    %v9818 = vpop.f32.mrf.mxu0
    %v9819 = vpop.f32.mrf.mxu0
    %9820 = vdwg.mxu0
    %9821 = vmatprep.subr.bf16.mxu0 %v7415
    %9822 = vmatpush1.bf16.msra.mxu0 %v7414
    %9823 = vmatprep.subr.bf16.mxu0 %v7407
    %9824 = vmatpush1.bf16.msra.mxu0 %v7406
    %9825 = vmatprep.subr.bf16.mxu0 %v7399
    %9826 = vmatpush1.bf16.msra.mxu0 %v7398
    %9827 = vmatprep.subr.bf16.mxu0 %v7391
    %9828 = vmatpush1.bf16.msra.mxu0 %v7390
    %9829 = vmatprep.subr.bf16.mxu0 %v7383
    %9830 = vmatpush1.bf16.msra.mxu0 %v7382
    %9831 = vmatprep.subr.bf16.mxu0 %v7375
    %9832 = vmatpush1.bf16.msra.mxu0 %v7374
    %9833 = vmatprep.subr.bf16.mxu0 %v7367
    %9834 = vmatpush1.bf16.msra.mxu0 %v7366
    %9835 = vmatprep.subr.bf16.mxu0 %v7359
    %9836 = vmatpush1.bf16.msra.mxu0 %v7358
    %9837 = vmatprep.subr.bf16.mxu0 %v7479
    %9838 = vmatpush2.bf16.msra.mxu0 %v7478
    %9839 = vmatprep.subr.bf16.mxu0 %v7471
    %9840 = vmatpush2.bf16.msra.mxu0 %v7470
    %9841 = vmatprep.subr.bf16.mxu0 %v7463
    %9842 = vmatpush2.bf16.msra.mxu0 %v7462
    %9843 = vmatprep.subr.bf16.mxu0 %v7455
    %9844 = vmatpush2.bf16.msra.mxu0 %v7454
    %9845 = vmatprep.subr.bf16.mxu0 %v7447
    %9846 = vmatpush2.bf16.msra.mxu0 %v7446
    %9847 = vmatprep.subr.bf16.mxu0 %v7439
    %9848 = vmatpush2.bf16.msra.mxu0 %v7438
    %9849 = vmatprep.subr.bf16.mxu0 %v7431
    %9850 = vmatpush2.bf16.msra.mxu0 %v7430
    %9851 = vmatprep.subr.bf16.mxu0 %v7423
    %9852 = vmatpush2.bf16.msra.mxu0 %v7422
    %9853 = vmatprep.mubr.bf16.mxu0 %v1821
    %9854 = vmatmul.mubr.bf16.gmra.mxu0 %v1820
    %v9855 = vpop.f32.mrf.mxu0
    %v9856 = vadd.f32 %v9815, %v9855
    %v9857 = vpop.f32.mrf.mxu0
    %v9858 = vadd.f32 %v9817, %v9857
    %v9859 = vpop.f32.mrf.mxu0
    %v9860 = vpop.f32.mrf.mxu0
    %9861 = vdwg.mxu0
    %9862 = vmatprep.subr.bf16.mxu0 %v7543
    %9863 = vmatpush1.bf16.msra.mxu0 %v7542
    %9864 = vmatprep.subr.bf16.mxu0 %v7535
    %9865 = vmatpush1.bf16.msra.mxu0 %v7534
    %9866 = vmatprep.subr.bf16.mxu0 %v7527
    %9867 = vmatpush1.bf16.msra.mxu0 %v7526
    %9868 = vmatprep.subr.bf16.mxu0 %v7519
    %9869 = vmatpush1.bf16.msra.mxu0 %v7518
    %9870 = vmatprep.subr.bf16.mxu0 %v7511
    %9871 = vmatpush1.bf16.msra.mxu0 %v7510
    %9872 = vmatprep.subr.bf16.mxu0 %v7503
    %9873 = vmatpush1.bf16.msra.mxu0 %v7502
    %9874 = vmatprep.subr.bf16.mxu0 %v7495
    %9875 = vmatpush1.bf16.msra.mxu0 %v7494
    %9876 = vmatprep.subr.bf16.mxu0 %v7487
    %9877 = vmatpush1.bf16.msra.mxu0 %v7486
    %9878 = vmatprep.subr.bf16.mxu0 %v7607
    %9879 = vmatpush2.bf16.msra.mxu0 %v7606
    %9880 = vmatprep.subr.bf16.mxu0 %v7599
    %9881 = vmatpush2.bf16.msra.mxu0 %v7598
    %9882 = vmatprep.subr.bf16.mxu0 %v7591
    %9883 = vmatpush2.bf16.msra.mxu0 %v7590
    %9884 = vmatprep.subr.bf16.mxu0 %v7583
    %9885 = vmatpush2.bf16.msra.mxu0 %v7582
    %9886 = vmatprep.subr.bf16.mxu0 %v7575
    %9887 = vmatpush2.bf16.msra.mxu0 %v7574
    %9888 = vmatprep.subr.bf16.mxu0 %v7567
    %9889 = vmatpush2.bf16.msra.mxu0 %v7566
    %9890 = vmatprep.subr.bf16.mxu0 %v7559
    %9891 = vmatpush2.bf16.msra.mxu0 %v7558
    %9892 = vmatprep.subr.bf16.mxu0 %v7551
    %9893 = vmatpush2.bf16.msra.mxu0 %v7550
    %9894 = vmatprep.mubr.bf16.mxu0 %v1823
    %9895 = vmatmul.mubr.bf16.gmra.mxu0 %v1822
    %v9896 = vpop.f32.mrf.mxu0
    %v9897 = vadd.f32 %v9856, %v9896
    %v9898 = vpop.f32.mrf.mxu0
    %v9899 = vadd.f32 %v9858, %v9898
    %v9900 = vpop.f32.mrf.mxu0
    %v9901 = vpop.f32.mrf.mxu0
    %9902 = vdwg.mxu0
    %9903 = vmatprep.subr.bf16.mxu0 %v7671
    %9904 = vmatpush1.bf16.msra.mxu0 %v7670
    %9905 = vmatprep.subr.bf16.mxu0 %v7663
    %9906 = vmatpush1.bf16.msra.mxu0 %v7662
    %9907 = vmatprep.subr.bf16.mxu0 %v7655
    %9908 = vmatpush1.bf16.msra.mxu0 %v7654
    %9909 = vmatprep.subr.bf16.mxu0 %v7647
    %9910 = vmatpush1.bf16.msra.mxu0 %v7646
    %9911 = vmatprep.subr.bf16.mxu0 %v7639
    %9912 = vmatpush1.bf16.msra.mxu0 %v7638
    %9913 = vmatprep.subr.bf16.mxu0 %v7631
    %9914 = vmatpush1.bf16.msra.mxu0 %v7630
    %9915 = vmatprep.subr.bf16.mxu0 %v7623
    %9916 = vmatpush1.bf16.msra.mxu0 %v7622
    %9917 = vmatprep.subr.bf16.mxu0 %v7615
    %9918 = vmatpush1.bf16.msra.mxu0 %v7614
    %9919 = vmatprep.subr.bf16.mxu0 %v7735
    %9920 = vmatpush2.bf16.msra.mxu0 %v7734
    %9921 = vmatprep.subr.bf16.mxu0 %v7727
    %9922 = vmatpush2.bf16.msra.mxu0 %v7726
    %9923 = vmatprep.subr.bf16.mxu0 %v7719
    %9924 = vmatpush2.bf16.msra.mxu0 %v7718
    %9925 = vmatprep.subr.bf16.mxu0 %v7711
    %9926 = vmatpush2.bf16.msra.mxu0 %v7710
    %9927 = vmatprep.subr.bf16.mxu0 %v7703
    %9928 = vmatpush2.bf16.msra.mxu0 %v7702
    %9929 = vmatprep.subr.bf16.mxu0 %v7695
    %9930 = vmatpush2.bf16.msra.mxu0 %v7694
    %9931 = vmatprep.subr.bf16.mxu0 %v7687
    %9932 = vmatpush2.bf16.msra.mxu0 %v7686
    %9933 = vmatprep.subr.bf16.mxu0 %v7679
    %9934 = vmatpush2.bf16.msra.mxu0 %v7678
    %9935 = vmatprep.mubr.bf16.mxu0 %v1825
    %9936 = vmatmul.mubr.bf16.gmra.mxu0 %v1824
    %v9937 = vpop.f32.mrf.mxu0
    %v9938 = vadd.f32 %v9897, %v9937
    %v9939 = vpop.f32.mrf.mxu0
    %v9940 = vadd.f32 %v9899, %v9939
    %v9941 = vpop.f32.mrf.mxu0
    %v9942 = vpop.f32.mrf.mxu0
    %9943 = vdwg.mxu0
    %9944 = vmatprep.subr.bf16.mxu0 %v7799
    %9945 = vmatpush1.bf16.msra.mxu0 %v7798
    %9946 = vmatprep.subr.bf16.mxu0 %v7791
    %9947 = vmatpush1.bf16.msra.mxu0 %v7790
    %9948 = vmatprep.subr.bf16.mxu0 %v7783
    %9949 = vmatpush1.bf16.msra.mxu0 %v7782
    %9950 = vmatprep.subr.bf16.mxu0 %v7775
    %9951 = vmatpush1.bf16.msra.mxu0 %v7774
    %9952 = vmatprep.subr.bf16.mxu0 %v7767
    %9953 = vmatpush1.bf16.msra.mxu0 %v7766
    %9954 = vmatprep.subr.bf16.mxu0 %v7759
    %9955 = vmatpush1.bf16.msra.mxu0 %v7758
    %9956 = vmatprep.subr.bf16.mxu0 %v7751
    %9957 = vmatpush1.bf16.msra.mxu0 %v7750
    %9958 = vmatprep.subr.bf16.mxu0 %v7743
    %9959 = vmatpush1.bf16.msra.mxu0 %v7742
    %9960 = vmatprep.subr.bf16.mxu0 %v7863
    %9961 = vmatpush2.bf16.msra.mxu0 %v7862
    %9962 = vmatprep.subr.bf16.mxu0 %v7855
    %9963 = vmatpush2.bf16.msra.mxu0 %v7854
    %9964 = vmatprep.subr.bf16.mxu0 %v7847
    %9965 = vmatpush2.bf16.msra.mxu0 %v7846
    %9966 = vmatprep.subr.bf16.mxu0 %v7839
    %9967 = vmatpush2.bf16.msra.mxu0 %v7838
    %9968 = vmatprep.subr.bf16.mxu0 %v7831
    %9969 = vmatpush2.bf16.msra.mxu0 %v7830
    %9970 = vmatprep.subr.bf16.mxu0 %v7823
    %9971 = vmatpush2.bf16.msra.mxu0 %v7822
    %9972 = vmatprep.subr.bf16.mxu0 %v7815
    %9973 = vmatpush2.bf16.msra.mxu0 %v7814
    %9974 = vmatprep.subr.bf16.mxu0 %v7807
    %9975 = vmatpush2.bf16.msra.mxu0 %v7806
    %9976 = vmatprep.mubr.bf16.mxu0 %v1827
    %9977 = vmatmul.mubr.bf16.gmra.mxu0 %v1826
    %v9978 = vpop.f32.mrf.mxu0
    %v9979 = vadd.f32 %v9938, %v9978
    %v9980 = vpop.f32.mrf.mxu0
    %v9981 = vadd.f32 %v9940, %v9980
    %v9982 = vpop.f32.mrf.mxu0
    %v9983 = vpop.f32.mrf.mxu0
    %9984 = vdwg.mxu0
    %9985 = vmatprep.subr.bf16.mxu0 %v7927
    %9986 = vmatpush1.bf16.msra.mxu0 %v7926
    %9987 = vmatprep.subr.bf16.mxu0 %v7919
    %9988 = vmatpush1.bf16.msra.mxu0 %v7918
    %9989 = vmatprep.subr.bf16.mxu0 %v7911
    %9990 = vmatpush1.bf16.msra.mxu0 %v7910
    %9991 = vmatprep.subr.bf16.mxu0 %v7903
    %9992 = vmatpush1.bf16.msra.mxu0 %v7902
    %9993 = vmatprep.subr.bf16.mxu0 %v7895
    %9994 = vmatpush1.bf16.msra.mxu0 %v7894
    %9995 = vmatprep.subr.bf16.mxu0 %v7887
    %9996 = vmatpush1.bf16.msra.mxu0 %v7886
    %9997 = vmatprep.subr.bf16.mxu0 %v7879
    %9998 = vmatpush1.bf16.msra.mxu0 %v7878
    %9999 = vmatprep.subr.bf16.mxu0 %v7871
    %10000 = vmatpush1.bf16.msra.mxu0 %v7870
    %10001 = vmatprep.subr.bf16.mxu0 %v7991
    %10002 = vmatpush2.bf16.msra.mxu0 %v7990
    %10003 = vmatprep.subr.bf16.mxu0 %v7983
    %10004 = vmatpush2.bf16.msra.mxu0 %v7982
    %10005 = vmatprep.subr.bf16.mxu0 %v7975
    %10006 = vmatpush2.bf16.msra.mxu0 %v7974
    %10007 = vmatprep.subr.bf16.mxu0 %v7967
    %10008 = vmatpush2.bf16.msra.mxu0 %v7966
    %10009 = vmatprep.subr.bf16.mxu0 %v7959
    %10010 = vmatpush2.bf16.msra.mxu0 %v7958
    %10011 = vmatprep.subr.bf16.mxu0 %v7951
    %10012 = vmatpush2.bf16.msra.mxu0 %v7950
    %10013 = vmatprep.subr.bf16.mxu0 %v7943
    %10014 = vmatpush2.bf16.msra.mxu0 %v7942
    %10015 = vmatprep.subr.bf16.mxu0 %v7935
    %10016 = vmatpush2.bf16.msra.mxu0 %v7934
    %10017 = vmatprep.mubr.bf16.mxu0 %v1829
    %10018 = vmatmul.mubr.bf16.gmra.mxu0 %v1828
    %v10019 = vpop.f32.mrf.mxu0
    %v10020 = vadd.f32 %v9979, %v10019
    %v10021 = vpop.f32.mrf.mxu0
    %v10022 = vadd.f32 %v9981, %v10021
    %v10023 = vpop.f32.mrf.mxu0
    %v10024 = vpop.f32.mrf.mxu0
    %10025 = vdwg.mxu0
    %10026 = vmatprep.subr.bf16.mxu0 %v6521
    %10027 = vmatpush1.bf16.msra.mxu0 %v6520
    %10028 = vmatprep.subr.bf16.mxu0 %v6513
    %10029 = vmatpush1.bf16.msra.mxu0 %v6512
    %10030 = vmatprep.subr.bf16.mxu0 %v6505
    %10031 = vmatpush1.bf16.msra.mxu0 %v6504
    %10032 = vmatprep.subr.bf16.mxu0 %v6497
    %10033 = vmatpush1.bf16.msra.mxu0 %v6496
    %10034 = vmatprep.subr.bf16.mxu0 %v6489
    %10035 = vmatpush1.bf16.msra.mxu0 %v6488
    %10036 = vmatprep.subr.bf16.mxu0 %v6481
    %10037 = vmatpush1.bf16.msra.mxu0 %v6480
    %10038 = vmatprep.subr.bf16.mxu0 %v6473
    %10039 = vmatpush1.bf16.msra.mxu0 %v6472
    %10040 = vmatprep.subr.bf16.mxu0 %v6465
    %10041 = vmatpush1.bf16.msra.mxu0 %v6464
    %10042 = vmatprep.subr.bf16.mxu0 %v6585
    %10043 = vmatpush2.bf16.msra.mxu0 %v6584
    %10044 = vmatprep.subr.bf16.mxu0 %v6577
    %10045 = vmatpush2.bf16.msra.mxu0 %v6576
    %10046 = vmatprep.subr.bf16.mxu0 %v6569
    %10047 = vmatpush2.bf16.msra.mxu0 %v6568
    %10048 = vmatprep.subr.bf16.mxu0 %v6561
    %10049 = vmatpush2.bf16.msra.mxu0 %v6560
    %10050 = vmatprep.subr.bf16.mxu0 %v6553
    %10051 = vmatpush2.bf16.msra.mxu0 %v6552
    %10052 = vmatprep.subr.bf16.mxu0 %v6545
    %10053 = vmatpush2.bf16.msra.mxu0 %v6544
    %10054 = vmatprep.subr.bf16.mxu0 %v6537
    %10055 = vmatpush2.bf16.msra.mxu0 %v6536
    %10056 = vmatprep.subr.bf16.mxu0 %v6529
    %10057 = vmatpush2.bf16.msra.mxu0 %v6528
    %10058 = vmatprep.mubr.bf16.mxu0 %v1807
    %10059 = vmatmul.mubr.bf16.gmra.mxu0 %v1806
    %v10060 = vpop.f32.mrf.mxu0
    %v10061 = vadd.f32 %v1741, %v10060
    %v10062 = vpop.f32.mrf.mxu0
    %v10063 = vadd.f32 %v1745, %v10062
    %v10064 = vpop.f32.mrf.mxu0
    %v10065 = vpop.f32.mrf.mxu0
    %10066 = vdwg.mxu0
    %10067 = vmatprep.subr.bf16.mxu0 %v6649
    %10068 = vmatpush1.bf16.msra.mxu0 %v6648
    %10069 = vmatprep.subr.bf16.mxu0 %v6641
    %10070 = vmatpush1.bf16.msra.mxu0 %v6640
    %10071 = vmatprep.subr.bf16.mxu0 %v6633
    %10072 = vmatpush1.bf16.msra.mxu0 %v6632
    %10073 = vmatprep.subr.bf16.mxu0 %v6625
    %10074 = vmatpush1.bf16.msra.mxu0 %v6624
    %10075 = vmatprep.subr.bf16.mxu0 %v6617
    %10076 = vmatpush1.bf16.msra.mxu0 %v6616
    %10077 = vmatprep.subr.bf16.mxu0 %v6609
    %10078 = vmatpush1.bf16.msra.mxu0 %v6608
    %10079 = vmatprep.subr.bf16.mxu0 %v6601
    %10080 = vmatpush1.bf16.msra.mxu0 %v6600
    %10081 = vmatprep.subr.bf16.mxu0 %v6593
    %10082 = vmatpush1.bf16.msra.mxu0 %v6592
    %10083 = vmatprep.subr.bf16.mxu0 %v6713
    %10084 = vmatpush2.bf16.msra.mxu0 %v6712
    %10085 = vmatprep.subr.bf16.mxu0 %v6705
    %10086 = vmatpush2.bf16.msra.mxu0 %v6704
    %10087 = vmatprep.subr.bf16.mxu0 %v6697
    %10088 = vmatpush2.bf16.msra.mxu0 %v6696
    %10089 = vmatprep.subr.bf16.mxu0 %v6689
    %10090 = vmatpush2.bf16.msra.mxu0 %v6688
    %10091 = vmatprep.subr.bf16.mxu0 %v6681
    %10092 = vmatpush2.bf16.msra.mxu0 %v6680
    %10093 = vmatprep.subr.bf16.mxu0 %v6673
    %10094 = vmatpush2.bf16.msra.mxu0 %v6672
    %10095 = vmatprep.subr.bf16.mxu0 %v6665
    %10096 = vmatpush2.bf16.msra.mxu0 %v6664
    %10097 = vmatprep.subr.bf16.mxu0 %v6657
    %10098 = vmatpush2.bf16.msra.mxu0 %v6656
    %10099 = vmatprep.mubr.bf16.mxu0 %v1809
    %10100 = vmatmul.mubr.bf16.gmra.mxu0 %v1808
    %v10101 = vpop.f32.mrf.mxu0
    %v10102 = vadd.f32 %v10061, %v10101
    %v10103 = vpop.f32.mrf.mxu0
    %v10104 = vadd.f32 %v10063, %v10103
    %v10105 = vpop.f32.mrf.mxu0
    %v10106 = vpop.f32.mrf.mxu0
    %10107 = vdwg.mxu0
    %10108 = vmatprep.subr.bf16.mxu0 %v6777
    %10109 = vmatpush1.bf16.msra.mxu0 %v6776
    %10110 = vmatprep.subr.bf16.mxu0 %v6769
    %10111 = vmatpush1.bf16.msra.mxu0 %v6768
    %10112 = vmatprep.subr.bf16.mxu0 %v6761
    %10113 = vmatpush1.bf16.msra.mxu0 %v6760
    %10114 = vmatprep.subr.bf16.mxu0 %v6753
    %10115 = vmatpush1.bf16.msra.mxu0 %v6752
    %10116 = vmatprep.subr.bf16.mxu0 %v6745
    %10117 = vmatpush1.bf16.msra.mxu0 %v6744
    %10118 = vmatprep.subr.bf16.mxu0 %v6737
    %10119 = vmatpush1.bf16.msra.mxu0 %v6736
    %10120 = vmatprep.subr.bf16.mxu0 %v6729
    %10121 = vmatpush1.bf16.msra.mxu0 %v6728
    %10122 = vmatprep.subr.bf16.mxu0 %v6721
    %10123 = vmatpush1.bf16.msra.mxu0 %v6720
    %10124 = vmatprep.subr.bf16.mxu0 %v6841
    %10125 = vmatpush2.bf16.msra.mxu0 %v6840
    %10126 = vmatprep.subr.bf16.mxu0 %v6833
    %10127 = vmatpush2.bf16.msra.mxu0 %v6832
    %10128 = vmatprep.subr.bf16.mxu0 %v6825
    %10129 = vmatpush2.bf16.msra.mxu0 %v6824
    %10130 = vmatprep.subr.bf16.mxu0 %v6817
    %10131 = vmatpush2.bf16.msra.mxu0 %v6816
    %10132 = vmatprep.subr.bf16.mxu0 %v6809
    %10133 = vmatpush2.bf16.msra.mxu0 %v6808
    %10134 = vmatprep.subr.bf16.mxu0 %v6801
    %10135 = vmatpush2.bf16.msra.mxu0 %v6800
    %10136 = vmatprep.subr.bf16.mxu0 %v6793
    %10137 = vmatpush2.bf16.msra.mxu0 %v6792
    %10138 = vmatprep.subr.bf16.mxu0 %v6785
    %10139 = vmatpush2.bf16.msra.mxu0 %v6784
    %10140 = vmatprep.mubr.bf16.mxu0 %v1811
    %10141 = vmatmul.mubr.bf16.gmra.mxu0 %v1810
    %v10142 = vpop.f32.mrf.mxu0
    %v10143 = vadd.f32 %v10102, %v10142
    %v10144 = vpop.f32.mrf.mxu0
    %v10145 = vadd.f32 %v10104, %v10144
    %v10146 = vpop.f32.mrf.mxu0
    %v10147 = vpop.f32.mrf.mxu0
    %10148 = vdwg.mxu0
    %10149 = vmatprep.subr.bf16.mxu0 %v6905
    %10150 = vmatpush1.bf16.msra.mxu0 %v6904
    %10151 = vmatprep.subr.bf16.mxu0 %v6897
    %10152 = vmatpush1.bf16.msra.mxu0 %v6896
    %10153 = vmatprep.subr.bf16.mxu0 %v6889
    %10154 = vmatpush1.bf16.msra.mxu0 %v6888
    %10155 = vmatprep.subr.bf16.mxu0 %v6881
    %10156 = vmatpush1.bf16.msra.mxu0 %v6880
    %10157 = vmatprep.subr.bf16.mxu0 %v6873
    %10158 = vmatpush1.bf16.msra.mxu0 %v6872
    %10159 = vmatprep.subr.bf16.mxu0 %v6865
    %10160 = vmatpush1.bf16.msra.mxu0 %v6864
    %10161 = vmatprep.subr.bf16.mxu0 %v6857
    %10162 = vmatpush1.bf16.msra.mxu0 %v6856
    %10163 = vmatprep.subr.bf16.mxu0 %v6849
    %10164 = vmatpush1.bf16.msra.mxu0 %v6848
    %10165 = vmatprep.subr.bf16.mxu0 %v6969
    %10166 = vmatpush2.bf16.msra.mxu0 %v6968
    %10167 = vmatprep.subr.bf16.mxu0 %v6961
    %10168 = vmatpush2.bf16.msra.mxu0 %v6960
    %10169 = vmatprep.subr.bf16.mxu0 %v6953
    %10170 = vmatpush2.bf16.msra.mxu0 %v6952
    %10171 = vmatprep.subr.bf16.mxu0 %v6945
    %10172 = vmatpush2.bf16.msra.mxu0 %v6944
    %10173 = vmatprep.subr.bf16.mxu0 %v6937
    %10174 = vmatpush2.bf16.msra.mxu0 %v6936
    %10175 = vmatprep.subr.bf16.mxu0 %v6929
    %10176 = vmatpush2.bf16.msra.mxu0 %v6928
    %10177 = vmatprep.subr.bf16.mxu0 %v6921
    %10178 = vmatpush2.bf16.msra.mxu0 %v6920
    %10179 = vmatprep.subr.bf16.mxu0 %v6913
    %10180 = vmatpush2.bf16.msra.mxu0 %v6912
    %10181 = vmatprep.mubr.bf16.mxu0 %v1813
    %10182 = vmatmul.mubr.bf16.gmra.mxu0 %v1812
    %v10183 = vpop.f32.mrf.mxu0
    %v10184 = vadd.f32 %v10143, %v10183
    %v10185 = vpop.f32.mrf.mxu0
    %v10186 = vadd.f32 %v10145, %v10185
    %v10187 = vpop.f32.mrf.mxu0
    %v10188 = vpop.f32.mrf.mxu0
    %10189 = vdwg.mxu0
    %10190 = vmatprep.subr.bf16.mxu0 %v7033
    %10191 = vmatpush1.bf16.msra.mxu0 %v7032
    %10192 = vmatprep.subr.bf16.mxu0 %v7025
    %10193 = vmatpush1.bf16.msra.mxu0 %v7024
    %10194 = vmatprep.subr.bf16.mxu0 %v7017
    %10195 = vmatpush1.bf16.msra.mxu0 %v7016
    %10196 = vmatprep.subr.bf16.mxu0 %v7009
    %10197 = vmatpush1.bf16.msra.mxu0 %v7008
    %10198 = vmatprep.subr.bf16.mxu0 %v7001
    %10199 = vmatpush1.bf16.msra.mxu0 %v7000
    %10200 = vmatprep.subr.bf16.mxu0 %v6993
    %10201 = vmatpush1.bf16.msra.mxu0 %v6992
    %10202 = vmatprep.subr.bf16.mxu0 %v6985
    %10203 = vmatpush1.bf16.msra.mxu0 %v6984
    %10204 = vmatprep.subr.bf16.mxu0 %v6977
    %10205 = vmatpush1.bf16.msra.mxu0 %v6976
    %10206 = vmatprep.subr.bf16.mxu0 %v7097
    %10207 = vmatpush2.bf16.msra.mxu0 %v7096
    %10208 = vmatprep.subr.bf16.mxu0 %v7089
    %10209 = vmatpush2.bf16.msra.mxu0 %v7088
    %10210 = vmatprep.subr.bf16.mxu0 %v7081
    %10211 = vmatpush2.bf16.msra.mxu0 %v7080
    %10212 = vmatprep.subr.bf16.mxu0 %v7073
    %10213 = vmatpush2.bf16.msra.mxu0 %v7072
    %10214 = vmatprep.subr.bf16.mxu0 %v7065
    %10215 = vmatpush2.bf16.msra.mxu0 %v7064
    %10216 = vmatprep.subr.bf16.mxu0 %v7057
    %10217 = vmatpush2.bf16.msra.mxu0 %v7056
    %10218 = vmatprep.subr.bf16.mxu0 %v7049
    %10219 = vmatpush2.bf16.msra.mxu0 %v7048
    %10220 = vmatprep.subr.bf16.mxu0 %v7041
    %10221 = vmatpush2.bf16.msra.mxu0 %v7040
    %10222 = vmatprep.mubr.bf16.mxu0 %v1815
    %10223 = vmatmul.mubr.bf16.gmra.mxu0 %v1814
    %v10224 = vpop.f32.mrf.mxu0
    %v10225 = vadd.f32 %v10184, %v10224
    %v10226 = vpop.f32.mrf.mxu0
    %v10227 = vadd.f32 %v10186, %v10226
    %v10228 = vpop.f32.mrf.mxu0
    %v10229 = vpop.f32.mrf.mxu0
    %10230 = vdwg.mxu0
    %10231 = vmatprep.subr.bf16.mxu0 %v7161
    %10232 = vmatpush1.bf16.msra.mxu0 %v7160
    %10233 = vmatprep.subr.bf16.mxu0 %v7153
    %10234 = vmatpush1.bf16.msra.mxu0 %v7152
    %10235 = vmatprep.subr.bf16.mxu0 %v7145
    %10236 = vmatpush1.bf16.msra.mxu0 %v7144
    %10237 = vmatprep.subr.bf16.mxu0 %v7137
    %10238 = vmatpush1.bf16.msra.mxu0 %v7136
    %10239 = vmatprep.subr.bf16.mxu0 %v7129
    %10240 = vmatpush1.bf16.msra.mxu0 %v7128
    %10241 = vmatprep.subr.bf16.mxu0 %v7121
    %10242 = vmatpush1.bf16.msra.mxu0 %v7120
    %10243 = vmatprep.subr.bf16.mxu0 %v7113
    %10244 = vmatpush1.bf16.msra.mxu0 %v7112
    %10245 = vmatprep.subr.bf16.mxu0 %v7105
    %10246 = vmatpush1.bf16.msra.mxu0 %v7104
    %10247 = vmatprep.subr.bf16.mxu0 %v7225
    %10248 = vmatpush2.bf16.msra.mxu0 %v7224
    %10249 = vmatprep.subr.bf16.mxu0 %v7217
    %10250 = vmatpush2.bf16.msra.mxu0 %v7216
    %10251 = vmatprep.subr.bf16.mxu0 %v7209
    %10252 = vmatpush2.bf16.msra.mxu0 %v7208
    %10253 = vmatprep.subr.bf16.mxu0 %v7201
    %10254 = vmatpush2.bf16.msra.mxu0 %v7200
    %10255 = vmatprep.subr.bf16.mxu0 %v7193
    %10256 = vmatpush2.bf16.msra.mxu0 %v7192
    %10257 = vmatprep.subr.bf16.mxu0 %v7185
    %10258 = vmatpush2.bf16.msra.mxu0 %v7184
    %10259 = vmatprep.subr.bf16.mxu0 %v7177
    %10260 = vmatpush2.bf16.msra.mxu0 %v7176
    %10261 = vmatprep.subr.bf16.mxu0 %v7169
    %10262 = vmatpush2.bf16.msra.mxu0 %v7168
    %10263 = vmatprep.mubr.bf16.mxu0 %v1817
    %10264 = vmatmul.mubr.bf16.gmra.mxu0 %v1816
    %v10265 = vpop.f32.mrf.mxu0
    %v10266 = vadd.f32 %v10225, %v10265
    %v10267 = vpop.f32.mrf.mxu0
    %v10268 = vadd.f32 %v10227, %v10267
    %v10269 = vpop.f32.mrf.mxu0
    %v10270 = vpop.f32.mrf.mxu0
    %10271 = vdwg.mxu0
    %10272 = vmatprep.subr.bf16.mxu0 %v7289
    %10273 = vmatpush1.bf16.msra.mxu0 %v7288
    %10274 = vmatprep.subr.bf16.mxu0 %v7281
    %10275 = vmatpush1.bf16.msra.mxu0 %v7280
    %10276 = vmatprep.subr.bf16.mxu0 %v7273
    %10277 = vmatpush1.bf16.msra.mxu0 %v7272
    %10278 = vmatprep.subr.bf16.mxu0 %v7265
    %10279 = vmatpush1.bf16.msra.mxu0 %v7264
    %10280 = vmatprep.subr.bf16.mxu0 %v7257
    %10281 = vmatpush1.bf16.msra.mxu0 %v7256
    %10282 = vmatprep.subr.bf16.mxu0 %v7249
    %10283 = vmatpush1.bf16.msra.mxu0 %v7248
    %10284 = vmatprep.subr.bf16.mxu0 %v7241
    %10285 = vmatpush1.bf16.msra.mxu0 %v7240
    %10286 = vmatprep.subr.bf16.mxu0 %v7233
    %10287 = vmatpush1.bf16.msra.mxu0 %v7232
    %10288 = vmatprep.subr.bf16.mxu0 %v7353
    %10289 = vmatpush2.bf16.msra.mxu0 %v7352
    %10290 = vmatprep.subr.bf16.mxu0 %v7345
    %10291 = vmatpush2.bf16.msra.mxu0 %v7344
    %10292 = vmatprep.subr.bf16.mxu0 %v7337
    %10293 = vmatpush2.bf16.msra.mxu0 %v7336
    %10294 = vmatprep.subr.bf16.mxu0 %v7329
    %10295 = vmatpush2.bf16.msra.mxu0 %v7328
    %10296 = vmatprep.subr.bf16.mxu0 %v7321
    %10297 = vmatpush2.bf16.msra.mxu0 %v7320
    %10298 = vmatprep.subr.bf16.mxu0 %v7313
    %10299 = vmatpush2.bf16.msra.mxu0 %v7312
    %10300 = vmatprep.subr.bf16.mxu0 %v7305
    %10301 = vmatpush2.bf16.msra.mxu0 %v7304
    %10302 = vmatprep.subr.bf16.mxu0 %v7297
    %10303 = vmatpush2.bf16.msra.mxu0 %v7296
    %10304 = vmatprep.mubr.bf16.mxu0 %v1819
    %10305 = vmatmul.mubr.bf16.gmra.mxu0 %v1818
    %v10306 = vpop.f32.mrf.mxu0
    %v10307 = vadd.f32 %v10266, %v10306
    %v10308 = vpop.f32.mrf.mxu0
    %v10309 = vadd.f32 %v10268, %v10308
    %v10310 = vpop.f32.mrf.mxu0
    %v10311 = vpop.f32.mrf.mxu0
    %10312 = vdwg.mxu0
    %10313 = vmatprep.subr.bf16.mxu0 %v7417
    %10314 = vmatpush1.bf16.msra.mxu0 %v7416
    %10315 = vmatprep.subr.bf16.mxu0 %v7409
    %10316 = vmatpush1.bf16.msra.mxu0 %v7408
    %10317 = vmatprep.subr.bf16.mxu0 %v7401
    %10318 = vmatpush1.bf16.msra.mxu0 %v7400
    %10319 = vmatprep.subr.bf16.mxu0 %v7393
    %10320 = vmatpush1.bf16.msra.mxu0 %v7392
    %10321 = vmatprep.subr.bf16.mxu0 %v7385
    %10322 = vmatpush1.bf16.msra.mxu0 %v7384
    %10323 = vmatprep.subr.bf16.mxu0 %v7377
    %10324 = vmatpush1.bf16.msra.mxu0 %v7376
    %10325 = vmatprep.subr.bf16.mxu0 %v7369
    %10326 = vmatpush1.bf16.msra.mxu0 %v7368
    %10327 = vmatprep.subr.bf16.mxu0 %v7361
    %10328 = vmatpush1.bf16.msra.mxu0 %v7360
    %10329 = vmatprep.subr.bf16.mxu0 %v7481
    %10330 = vmatpush2.bf16.msra.mxu0 %v7480
    %10331 = vmatprep.subr.bf16.mxu0 %v7473
    %10332 = vmatpush2.bf16.msra.mxu0 %v7472
    %10333 = vmatprep.subr.bf16.mxu0 %v7465
    %10334 = vmatpush2.bf16.msra.mxu0 %v7464
    %10335 = vmatprep.subr.bf16.mxu0 %v7457
    %10336 = vmatpush2.bf16.msra.mxu0 %v7456
    %10337 = vmatprep.subr.bf16.mxu0 %v7449
    %10338 = vmatpush2.bf16.msra.mxu0 %v7448
    %10339 = vmatprep.subr.bf16.mxu0 %v7441
    %10340 = vmatpush2.bf16.msra.mxu0 %v7440
    %10341 = vmatprep.subr.bf16.mxu0 %v7433
    %10342 = vmatpush2.bf16.msra.mxu0 %v7432
    %10343 = vmatprep.subr.bf16.mxu0 %v7425
    %10344 = vmatpush2.bf16.msra.mxu0 %v7424
    %10345 = vmatprep.mubr.bf16.mxu0 %v1821
    %10346 = vmatmul.mubr.bf16.gmra.mxu0 %v1820
    %v10347 = vpop.f32.mrf.mxu0
    %v10348 = vadd.f32 %v10307, %v10347
    %v10349 = vpop.f32.mrf.mxu0
    %v10350 = vadd.f32 %v10309, %v10349
    %v10351 = vpop.f32.mrf.mxu0
    %v10352 = vpop.f32.mrf.mxu0
    %10353 = vdwg.mxu0
    %10354 = vmatprep.subr.bf16.mxu0 %v7545
    %10355 = vmatpush1.bf16.msra.mxu0 %v7544
    %10356 = vmatprep.subr.bf16.mxu0 %v7537
    %10357 = vmatpush1.bf16.msra.mxu0 %v7536
    %10358 = vmatprep.subr.bf16.mxu0 %v7529
    %10359 = vmatpush1.bf16.msra.mxu0 %v7528
    %10360 = vmatprep.subr.bf16.mxu0 %v7521
    %10361 = vmatpush1.bf16.msra.mxu0 %v7520
    %10362 = vmatprep.subr.bf16.mxu0 %v7513
    %10363 = vmatpush1.bf16.msra.mxu0 %v7512
    %10364 = vmatprep.subr.bf16.mxu0 %v7505
    %10365 = vmatpush1.bf16.msra.mxu0 %v7504
    %10366 = vmatprep.subr.bf16.mxu0 %v7497
    %10367 = vmatpush1.bf16.msra.mxu0 %v7496
    %10368 = vmatprep.subr.bf16.mxu0 %v7489
    %10369 = vmatpush1.bf16.msra.mxu0 %v7488
    %10370 = vmatprep.subr.bf16.mxu0 %v7609
    %10371 = vmatpush2.bf16.msra.mxu0 %v7608
    %10372 = vmatprep.subr.bf16.mxu0 %v7601
    %10373 = vmatpush2.bf16.msra.mxu0 %v7600
    %10374 = vmatprep.subr.bf16.mxu0 %v7593
    %10375 = vmatpush2.bf16.msra.mxu0 %v7592
    %10376 = vmatprep.subr.bf16.mxu0 %v7585
    %10377 = vmatpush2.bf16.msra.mxu0 %v7584
    %10378 = vmatprep.subr.bf16.mxu0 %v7577
    %10379 = vmatpush2.bf16.msra.mxu0 %v7576
    %10380 = vmatprep.subr.bf16.mxu0 %v7569
    %10381 = vmatpush2.bf16.msra.mxu0 %v7568
    %10382 = vmatprep.subr.bf16.mxu0 %v7561
    %10383 = vmatpush2.bf16.msra.mxu0 %v7560
    %10384 = vmatprep.subr.bf16.mxu0 %v7553
    %10385 = vmatpush2.bf16.msra.mxu0 %v7552
    %10386 = vmatprep.mubr.bf16.mxu0 %v1823
    %10387 = vmatmul.mubr.bf16.gmra.mxu0 %v1822
    %v10388 = vpop.f32.mrf.mxu0
    %v10389 = vadd.f32 %v10348, %v10388
    %v10390 = vpop.f32.mrf.mxu0
    %v10391 = vadd.f32 %v10350, %v10390
    %v10392 = vpop.f32.mrf.mxu0
    %v10393 = vpop.f32.mrf.mxu0
    %10394 = vdwg.mxu0
    %10395 = vmatprep.subr.bf16.mxu0 %v7673
    %10396 = vmatpush1.bf16.msra.mxu0 %v7672
    %10397 = vmatprep.subr.bf16.mxu0 %v7665
    %10398 = vmatpush1.bf16.msra.mxu0 %v7664
    %10399 = vmatprep.subr.bf16.mxu0 %v7657
    %10400 = vmatpush1.bf16.msra.mxu0 %v7656
    %10401 = vmatprep.subr.bf16.mxu0 %v7649
    %10402 = vmatpush1.bf16.msra.mxu0 %v7648
    %10403 = vmatprep.subr.bf16.mxu0 %v7641
    %10404 = vmatpush1.bf16.msra.mxu0 %v7640
    %10405 = vmatprep.subr.bf16.mxu0 %v7633
    %10406 = vmatpush1.bf16.msra.mxu0 %v7632
    %10407 = vmatprep.subr.bf16.mxu0 %v7625
    %10408 = vmatpush1.bf16.msra.mxu0 %v7624
    %10409 = vmatprep.subr.bf16.mxu0 %v7617
    %10410 = vmatpush1.bf16.msra.mxu0 %v7616
    %10411 = vmatprep.subr.bf16.mxu0 %v7737
    %10412 = vmatpush2.bf16.msra.mxu0 %v7736
    %10413 = vmatprep.subr.bf16.mxu0 %v7729
    %10414 = vmatpush2.bf16.msra.mxu0 %v7728
    %10415 = vmatprep.subr.bf16.mxu0 %v7721
    %10416 = vmatpush2.bf16.msra.mxu0 %v7720
    %10417 = vmatprep.subr.bf16.mxu0 %v7713
    %10418 = vmatpush2.bf16.msra.mxu0 %v7712
    %10419 = vmatprep.subr.bf16.mxu0 %v7705
    %10420 = vmatpush2.bf16.msra.mxu0 %v7704
    %10421 = vmatprep.subr.bf16.mxu0 %v7697
    %10422 = vmatpush2.bf16.msra.mxu0 %v7696
    %10423 = vmatprep.subr.bf16.mxu0 %v7689
    %10424 = vmatpush2.bf16.msra.mxu0 %v7688
    %10425 = vmatprep.subr.bf16.mxu0 %v7681
    %10426 = vmatpush2.bf16.msra.mxu0 %v7680
    %10427 = vmatprep.mubr.bf16.mxu0 %v1825
    %10428 = vmatmul.mubr.bf16.gmra.mxu0 %v1824
    %v10429 = vpop.f32.mrf.mxu0
    %v10430 = vadd.f32 %v10389, %v10429
    %v10431 = vpop.f32.mrf.mxu0
    %v10432 = vadd.f32 %v10391, %v10431
    %v10433 = vpop.f32.mrf.mxu0
    %v10434 = vpop.f32.mrf.mxu0
    %10435 = vdwg.mxu0
    %10436 = vmatprep.subr.bf16.mxu0 %v7801
    %10437 = vmatpush1.bf16.msra.mxu0 %v7800
    %10438 = vmatprep.subr.bf16.mxu0 %v7793
    %10439 = vmatpush1.bf16.msra.mxu0 %v7792
    %10440 = vmatprep.subr.bf16.mxu0 %v7785
    %10441 = vmatpush1.bf16.msra.mxu0 %v7784
    %10442 = vmatprep.subr.bf16.mxu0 %v7777
    %10443 = vmatpush1.bf16.msra.mxu0 %v7776
    %10444 = vmatprep.subr.bf16.mxu0 %v7769
    %10445 = vmatpush1.bf16.msra.mxu0 %v7768
    %10446 = vmatprep.subr.bf16.mxu0 %v7761
    %10447 = vmatpush1.bf16.msra.mxu0 %v7760
    %10448 = vmatprep.subr.bf16.mxu0 %v7753
    %10449 = vmatpush1.bf16.msra.mxu0 %v7752
    %10450 = vmatprep.subr.bf16.mxu0 %v7745
    %10451 = vmatpush1.bf16.msra.mxu0 %v7744
    %10452 = vmatprep.subr.bf16.mxu0 %v7865
    %10453 = vmatpush2.bf16.msra.mxu0 %v7864
    %10454 = vmatprep.subr.bf16.mxu0 %v7857
    %10455 = vmatpush2.bf16.msra.mxu0 %v7856
    %10456 = vmatprep.subr.bf16.mxu0 %v7849
    %10457 = vmatpush2.bf16.msra.mxu0 %v7848
    %10458 = vmatprep.subr.bf16.mxu0 %v7841
    %10459 = vmatpush2.bf16.msra.mxu0 %v7840
    %10460 = vmatprep.subr.bf16.mxu0 %v7833
    %10461 = vmatpush2.bf16.msra.mxu0 %v7832
    %10462 = vmatprep.subr.bf16.mxu0 %v7825
    %10463 = vmatpush2.bf16.msra.mxu0 %v7824
    %10464 = vmatprep.subr.bf16.mxu0 %v7817
    %10465 = vmatpush2.bf16.msra.mxu0 %v7816
    %10466 = vmatprep.subr.bf16.mxu0 %v7809
    %10467 = vmatpush2.bf16.msra.mxu0 %v7808
    %10468 = vmatprep.mubr.bf16.mxu0 %v1827
    %10469 = vmatmul.mubr.bf16.gmra.mxu0 %v1826
    %v10470 = vpop.f32.mrf.mxu0
    %v10471 = vadd.f32 %v10430, %v10470
    %v10472 = vpop.f32.mrf.mxu0
    %v10473 = vadd.f32 %v10432, %v10472
    %v10474 = vpop.f32.mrf.mxu0
    %v10475 = vpop.f32.mrf.mxu0
    %10476 = vdwg.mxu0
    %10477 = vmatprep.subr.bf16.mxu0 %v7929
    %10478 = vmatpush1.bf16.msra.mxu0 %v7928
    %10479 = vmatprep.subr.bf16.mxu0 %v7921
    %10480 = vmatpush1.bf16.msra.mxu0 %v7920
    %10481 = vmatprep.subr.bf16.mxu0 %v7913
    %10482 = vmatpush1.bf16.msra.mxu0 %v7912
    %10483 = vmatprep.subr.bf16.mxu0 %v7905
    %10484 = vmatpush1.bf16.msra.mxu0 %v7904
    %10485 = vmatprep.subr.bf16.mxu0 %v7897
    %10486 = vmatpush1.bf16.msra.mxu0 %v7896
    %10487 = vmatprep.subr.bf16.mxu0 %v7889
    %10488 = vmatpush1.bf16.msra.mxu0 %v7888
    %10489 = vmatprep.subr.bf16.mxu0 %v7881
    %10490 = vmatpush1.bf16.msra.mxu0 %v7880
    %10491 = vmatprep.subr.bf16.mxu0 %v7873
    %10492 = vmatpush1.bf16.msra.mxu0 %v7872
    %10493 = vmatprep.subr.bf16.mxu0 %v7993
    %10494 = vmatpush2.bf16.msra.mxu0 %v7992
    %10495 = vmatprep.subr.bf16.mxu0 %v7985
    %10496 = vmatpush2.bf16.msra.mxu0 %v7984
    %10497 = vmatprep.subr.bf16.mxu0 %v7977
    %10498 = vmatpush2.bf16.msra.mxu0 %v7976
    %10499 = vmatprep.subr.bf16.mxu0 %v7969
    %10500 = vmatpush2.bf16.msra.mxu0 %v7968
    %10501 = vmatprep.subr.bf16.mxu0 %v7961
    %10502 = vmatpush2.bf16.msra.mxu0 %v7960
    %10503 = vmatprep.subr.bf16.mxu0 %v7953
    %10504 = vmatpush2.bf16.msra.mxu0 %v7952
    %10505 = vmatprep.subr.bf16.mxu0 %v7945
    %10506 = vmatpush2.bf16.msra.mxu0 %v7944
    %10507 = vmatprep.subr.bf16.mxu0 %v7937
    %10508 = vmatpush2.bf16.msra.mxu0 %v7936
    %10509 = vmatprep.mubr.bf16.mxu0 %v1829
    %10510 = vmatmul.mubr.bf16.gmra.mxu0 %v1828
    %v10511 = vpop.f32.mrf.mxu0
    %v10512 = vadd.f32 %v10471, %v10511
    %v10513 = vpop.f32.mrf.mxu0
    %v10514 = vadd.f32 %v10473, %v10513
    %v10515 = vpop.f32.mrf.mxu0
    %v10516 = vpop.f32.mrf.mxu0
    %10517 = vdwg.mxu0
    %10518 = vmatprep.subr.bf16.mxu0 %v6523
    %10519 = vmatpush1.bf16.msra.mxu0 %v6522
    %10520 = vmatprep.subr.bf16.mxu0 %v6515
    %10521 = vmatpush1.bf16.msra.mxu0 %v6514
    %10522 = vmatprep.subr.bf16.mxu0 %v6507
    %10523 = vmatpush1.bf16.msra.mxu0 %v6506
    %10524 = vmatprep.subr.bf16.mxu0 %v6499
    %10525 = vmatpush1.bf16.msra.mxu0 %v6498
    %10526 = vmatprep.subr.bf16.mxu0 %v6491
    %10527 = vmatpush1.bf16.msra.mxu0 %v6490
    %10528 = vmatprep.subr.bf16.mxu0 %v6483
    %10529 = vmatpush1.bf16.msra.mxu0 %v6482
    %10530 = vmatprep.subr.bf16.mxu0 %v6475
    %10531 = vmatpush1.bf16.msra.mxu0 %v6474
    %10532 = vmatprep.subr.bf16.mxu0 %v6467
    %10533 = vmatpush1.bf16.msra.mxu0 %v6466
    %10534 = vmatprep.subr.bf16.mxu0 %v6587
    %10535 = vmatpush2.bf16.msra.mxu0 %v6586
    %10536 = vmatprep.subr.bf16.mxu0 %v6579
    %10537 = vmatpush2.bf16.msra.mxu0 %v6578
    %10538 = vmatprep.subr.bf16.mxu0 %v6571
    %10539 = vmatpush2.bf16.msra.mxu0 %v6570
    %10540 = vmatprep.subr.bf16.mxu0 %v6563
    %10541 = vmatpush2.bf16.msra.mxu0 %v6562
    %10542 = vmatprep.subr.bf16.mxu0 %v6555
    %10543 = vmatpush2.bf16.msra.mxu0 %v6554
    %10544 = vmatprep.subr.bf16.mxu0 %v6547
    %10545 = vmatpush2.bf16.msra.mxu0 %v6546
    %10546 = vmatprep.subr.bf16.mxu0 %v6539
    %10547 = vmatpush2.bf16.msra.mxu0 %v6538
    %10548 = vmatprep.subr.bf16.mxu0 %v6531
    %10549 = vmatpush2.bf16.msra.mxu0 %v6530
    %10550 = vmatprep.mubr.bf16.mxu0 %v1807
    %10551 = vmatmul.mubr.bf16.gmra.mxu0 %v1806
    %v10552 = vpop.f32.mrf.mxu0
    %v10553 = vadd.f32 %v1749, %v10552
    %v10554 = vpop.f32.mrf.mxu0
    %v10555 = vadd.f32 %v1753, %v10554
    %v10556 = vpop.f32.mrf.mxu0
    %v10557 = vpop.f32.mrf.mxu0
    %10558 = vdwg.mxu0
    %10559 = vmatprep.subr.bf16.mxu0 %v6651
    %10560 = vmatpush1.bf16.msra.mxu0 %v6650
    %10561 = vmatprep.subr.bf16.mxu0 %v6643
    %10562 = vmatpush1.bf16.msra.mxu0 %v6642
    %10563 = vmatprep.subr.bf16.mxu0 %v6635
    %10564 = vmatpush1.bf16.msra.mxu0 %v6634
    %10565 = vmatprep.subr.bf16.mxu0 %v6627
    %10566 = vmatpush1.bf16.msra.mxu0 %v6626
    %10567 = vmatprep.subr.bf16.mxu0 %v6619
    %10568 = vmatpush1.bf16.msra.mxu0 %v6618
    %10569 = vmatprep.subr.bf16.mxu0 %v6611
    %10570 = vmatpush1.bf16.msra.mxu0 %v6610
    %10571 = vmatprep.subr.bf16.mxu0 %v6603
    %10572 = vmatpush1.bf16.msra.mxu0 %v6602
    %10573 = vmatprep.subr.bf16.mxu0 %v6595
    %10574 = vmatpush1.bf16.msra.mxu0 %v6594
    %10575 = vmatprep.subr.bf16.mxu0 %v6715
    %10576 = vmatpush2.bf16.msra.mxu0 %v6714
    %10577 = vmatprep.subr.bf16.mxu0 %v6707
    %10578 = vmatpush2.bf16.msra.mxu0 %v6706
    %10579 = vmatprep.subr.bf16.mxu0 %v6699
    %10580 = vmatpush2.bf16.msra.mxu0 %v6698
    %10581 = vmatprep.subr.bf16.mxu0 %v6691
    %10582 = vmatpush2.bf16.msra.mxu0 %v6690
    %10583 = vmatprep.subr.bf16.mxu0 %v6683
    %10584 = vmatpush2.bf16.msra.mxu0 %v6682
    %10585 = vmatprep.subr.bf16.mxu0 %v6675
    %10586 = vmatpush2.bf16.msra.mxu0 %v6674
    %10587 = vmatprep.subr.bf16.mxu0 %v6667
    %10588 = vmatpush2.bf16.msra.mxu0 %v6666
    %10589 = vmatprep.subr.bf16.mxu0 %v6659
    %10590 = vmatpush2.bf16.msra.mxu0 %v6658
    %10591 = vmatprep.mubr.bf16.mxu0 %v1809
    %10592 = vmatmul.mubr.bf16.gmra.mxu0 %v1808
    %v10593 = vpop.f32.mrf.mxu0
    %v10594 = vadd.f32 %v10553, %v10593
    %v10595 = vpop.f32.mrf.mxu0
    %v10596 = vadd.f32 %v10555, %v10595
    %v10597 = vpop.f32.mrf.mxu0
    %v10598 = vpop.f32.mrf.mxu0
    %10599 = vdwg.mxu0
    %10600 = vmatprep.subr.bf16.mxu0 %v6779
    %10601 = vmatpush1.bf16.msra.mxu0 %v6778
    %10602 = vmatprep.subr.bf16.mxu0 %v6771
    %10603 = vmatpush1.bf16.msra.mxu0 %v6770
    %10604 = vmatprep.subr.bf16.mxu0 %v6763
    %10605 = vmatpush1.bf16.msra.mxu0 %v6762
    %10606 = vmatprep.subr.bf16.mxu0 %v6755
    %10607 = vmatpush1.bf16.msra.mxu0 %v6754
    %10608 = vmatprep.subr.bf16.mxu0 %v6747
    %10609 = vmatpush1.bf16.msra.mxu0 %v6746
    %10610 = vmatprep.subr.bf16.mxu0 %v6739
    %10611 = vmatpush1.bf16.msra.mxu0 %v6738
    %10612 = vmatprep.subr.bf16.mxu0 %v6731
    %10613 = vmatpush1.bf16.msra.mxu0 %v6730
    %10614 = vmatprep.subr.bf16.mxu0 %v6723
    %10615 = vmatpush1.bf16.msra.mxu0 %v6722
    %10616 = vmatprep.subr.bf16.mxu0 %v6843
    %10617 = vmatpush2.bf16.msra.mxu0 %v6842
    %10618 = vmatprep.subr.bf16.mxu0 %v6835
    %10619 = vmatpush2.bf16.msra.mxu0 %v6834
    %10620 = vmatprep.subr.bf16.mxu0 %v6827
    %10621 = vmatpush2.bf16.msra.mxu0 %v6826
    %10622 = vmatprep.subr.bf16.mxu0 %v6819
    %10623 = vmatpush2.bf16.msra.mxu0 %v6818
    %10624 = vmatprep.subr.bf16.mxu0 %v6811
    %10625 = vmatpush2.bf16.msra.mxu0 %v6810
    %10626 = vmatprep.subr.bf16.mxu0 %v6803
    %10627 = vmatpush2.bf16.msra.mxu0 %v6802
    %10628 = vmatprep.subr.bf16.mxu0 %v6795
    %10629 = vmatpush2.bf16.msra.mxu0 %v6794
    %10630 = vmatprep.subr.bf16.mxu0 %v6787
    %10631 = vmatpush2.bf16.msra.mxu0 %v6786
    %10632 = vmatprep.mubr.bf16.mxu0 %v1811
    %10633 = vmatmul.mubr.bf16.gmra.mxu0 %v1810
    %v10634 = vpop.f32.mrf.mxu0
    %v10635 = vadd.f32 %v10594, %v10634
    %v10636 = vpop.f32.mrf.mxu0
    %v10637 = vadd.f32 %v10596, %v10636
    %v10638 = vpop.f32.mrf.mxu0
    %v10639 = vpop.f32.mrf.mxu0
    %10640 = vdwg.mxu0
    %10641 = vmatprep.subr.bf16.mxu0 %v6907
    %10642 = vmatpush1.bf16.msra.mxu0 %v6906
    %10643 = vmatprep.subr.bf16.mxu0 %v6899
    %10644 = vmatpush1.bf16.msra.mxu0 %v6898
    %10645 = vmatprep.subr.bf16.mxu0 %v6891
    %10646 = vmatpush1.bf16.msra.mxu0 %v6890
    %10647 = vmatprep.subr.bf16.mxu0 %v6883
    %10648 = vmatpush1.bf16.msra.mxu0 %v6882
    %10649 = vmatprep.subr.bf16.mxu0 %v6875
    %10650 = vmatpush1.bf16.msra.mxu0 %v6874
    %10651 = vmatprep.subr.bf16.mxu0 %v6867
    %10652 = vmatpush1.bf16.msra.mxu0 %v6866
    %10653 = vmatprep.subr.bf16.mxu0 %v6859
    %10654 = vmatpush1.bf16.msra.mxu0 %v6858
    %10655 = vmatprep.subr.bf16.mxu0 %v6851
    %10656 = vmatpush1.bf16.msra.mxu0 %v6850
    %10657 = vmatprep.subr.bf16.mxu0 %v6971
    %10658 = vmatpush2.bf16.msra.mxu0 %v6970
    %10659 = vmatprep.subr.bf16.mxu0 %v6963
    %10660 = vmatpush2.bf16.msra.mxu0 %v6962
    %10661 = vmatprep.subr.bf16.mxu0 %v6955
    %10662 = vmatpush2.bf16.msra.mxu0 %v6954
    %10663 = vmatprep.subr.bf16.mxu0 %v6947
    %10664 = vmatpush2.bf16.msra.mxu0 %v6946
    %10665 = vmatprep.subr.bf16.mxu0 %v6939
    %10666 = vmatpush2.bf16.msra.mxu0 %v6938
    %10667 = vmatprep.subr.bf16.mxu0 %v6931
    %10668 = vmatpush2.bf16.msra.mxu0 %v6930
    %10669 = vmatprep.subr.bf16.mxu0 %v6923
    %10670 = vmatpush2.bf16.msra.mxu0 %v6922
    %10671 = vmatprep.subr.bf16.mxu0 %v6915
    %10672 = vmatpush2.bf16.msra.mxu0 %v6914
    %10673 = vmatprep.mubr.bf16.mxu0 %v1813
    %10674 = vmatmul.mubr.bf16.gmra.mxu0 %v1812
    %v10675 = vpop.f32.mrf.mxu0
    %v10676 = vadd.f32 %v10635, %v10675
    %v10677 = vpop.f32.mrf.mxu0
    %v10678 = vadd.f32 %v10637, %v10677
    %v10679 = vpop.f32.mrf.mxu0
    %v10680 = vpop.f32.mrf.mxu0
    %10681 = vdwg.mxu0
    %10682 = vmatprep.subr.bf16.mxu0 %v7035
    %10683 = vmatpush1.bf16.msra.mxu0 %v7034
    %10684 = vmatprep.subr.bf16.mxu0 %v7027
    %10685 = vmatpush1.bf16.msra.mxu0 %v7026
    %10686 = vmatprep.subr.bf16.mxu0 %v7019
    %10687 = vmatpush1.bf16.msra.mxu0 %v7018
    %10688 = vmatprep.subr.bf16.mxu0 %v7011
    %10689 = vmatpush1.bf16.msra.mxu0 %v7010
    %10690 = vmatprep.subr.bf16.mxu0 %v7003
    %10691 = vmatpush1.bf16.msra.mxu0 %v7002
    %10692 = vmatprep.subr.bf16.mxu0 %v6995
    %10693 = vmatpush1.bf16.msra.mxu0 %v6994
    %10694 = vmatprep.subr.bf16.mxu0 %v6987
    %10695 = vmatpush1.bf16.msra.mxu0 %v6986
    %10696 = vmatprep.subr.bf16.mxu0 %v6979
    %10697 = vmatpush1.bf16.msra.mxu0 %v6978
    %10698 = vmatprep.subr.bf16.mxu0 %v7099
    %10699 = vmatpush2.bf16.msra.mxu0 %v7098
    %10700 = vmatprep.subr.bf16.mxu0 %v7091
    %10701 = vmatpush2.bf16.msra.mxu0 %v7090
    %10702 = vmatprep.subr.bf16.mxu0 %v7083
    %10703 = vmatpush2.bf16.msra.mxu0 %v7082
    %10704 = vmatprep.subr.bf16.mxu0 %v7075
    %10705 = vmatpush2.bf16.msra.mxu0 %v7074
    %10706 = vmatprep.subr.bf16.mxu0 %v7067
    %10707 = vmatpush2.bf16.msra.mxu0 %v7066
    %10708 = vmatprep.subr.bf16.mxu0 %v7059
    %10709 = vmatpush2.bf16.msra.mxu0 %v7058
    %10710 = vmatprep.subr.bf16.mxu0 %v7051
    %10711 = vmatpush2.bf16.msra.mxu0 %v7050
    %10712 = vmatprep.subr.bf16.mxu0 %v7043
    %10713 = vmatpush2.bf16.msra.mxu0 %v7042
    %10714 = vmatprep.mubr.bf16.mxu0 %v1815
    %10715 = vmatmul.mubr.bf16.gmra.mxu0 %v1814
    %v10716 = vpop.f32.mrf.mxu0
    %v10717 = vadd.f32 %v10676, %v10716
    %v10718 = vpop.f32.mrf.mxu0
    %v10719 = vadd.f32 %v10678, %v10718
    %v10720 = vpop.f32.mrf.mxu0
    %v10721 = vpop.f32.mrf.mxu0
    %10722 = vdwg.mxu0
    %10723 = vmatprep.subr.bf16.mxu0 %v7163
    %10724 = vmatpush1.bf16.msra.mxu0 %v7162
    %10725 = vmatprep.subr.bf16.mxu0 %v7155
    %10726 = vmatpush1.bf16.msra.mxu0 %v7154
    %10727 = vmatprep.subr.bf16.mxu0 %v7147
    %10728 = vmatpush1.bf16.msra.mxu0 %v7146
    %10729 = vmatprep.subr.bf16.mxu0 %v7139
    %10730 = vmatpush1.bf16.msra.mxu0 %v7138
    %10731 = vmatprep.subr.bf16.mxu0 %v7131
    %10732 = vmatpush1.bf16.msra.mxu0 %v7130
    %10733 = vmatprep.subr.bf16.mxu0 %v7123
    %10734 = vmatpush1.bf16.msra.mxu0 %v7122
    %10735 = vmatprep.subr.bf16.mxu0 %v7115
    %10736 = vmatpush1.bf16.msra.mxu0 %v7114
    %10737 = vmatprep.subr.bf16.mxu0 %v7107
    %10738 = vmatpush1.bf16.msra.mxu0 %v7106
    %10739 = vmatprep.subr.bf16.mxu0 %v7227
    %10740 = vmatpush2.bf16.msra.mxu0 %v7226
    %10741 = vmatprep.subr.bf16.mxu0 %v7219
    %10742 = vmatpush2.bf16.msra.mxu0 %v7218
    %10743 = vmatprep.subr.bf16.mxu0 %v7211
    %10744 = vmatpush2.bf16.msra.mxu0 %v7210
    %10745 = vmatprep.subr.bf16.mxu0 %v7203
    %10746 = vmatpush2.bf16.msra.mxu0 %v7202
    %10747 = vmatprep.subr.bf16.mxu0 %v7195
    %10748 = vmatpush2.bf16.msra.mxu0 %v7194
    %10749 = vmatprep.subr.bf16.mxu0 %v7187
    %10750 = vmatpush2.bf16.msra.mxu0 %v7186
    %10751 = vmatprep.subr.bf16.mxu0 %v7179
    %10752 = vmatpush2.bf16.msra.mxu0 %v7178
    %10753 = vmatprep.subr.bf16.mxu0 %v7171
    %10754 = vmatpush2.bf16.msra.mxu0 %v7170
    %10755 = vmatprep.mubr.bf16.mxu0 %v1817
    %10756 = vmatmul.mubr.bf16.gmra.mxu0 %v1816
    %v10757 = vpop.f32.mrf.mxu0
    %v10758 = vadd.f32 %v10717, %v10757
    %v10759 = vpop.f32.mrf.mxu0
    %v10760 = vadd.f32 %v10719, %v10759
    %v10761 = vpop.f32.mrf.mxu0
    %v10762 = vpop.f32.mrf.mxu0
    %10763 = vdwg.mxu0
    %10764 = vmatprep.subr.bf16.mxu0 %v7291
    %10765 = vmatpush1.bf16.msra.mxu0 %v7290
    %10766 = vmatprep.subr.bf16.mxu0 %v7283
    %10767 = vmatpush1.bf16.msra.mxu0 %v7282
    %10768 = vmatprep.subr.bf16.mxu0 %v7275
    %10769 = vmatpush1.bf16.msra.mxu0 %v7274
    %10770 = vmatprep.subr.bf16.mxu0 %v7267
    %10771 = vmatpush1.bf16.msra.mxu0 %v7266
    %10772 = vmatprep.subr.bf16.mxu0 %v7259
    %10773 = vmatpush1.bf16.msra.mxu0 %v7258
    %10774 = vmatprep.subr.bf16.mxu0 %v7251
    %10775 = vmatpush1.bf16.msra.mxu0 %v7250
    %10776 = vmatprep.subr.bf16.mxu0 %v7243
    %10777 = vmatpush1.bf16.msra.mxu0 %v7242
    %10778 = vmatprep.subr.bf16.mxu0 %v7235
    %10779 = vmatpush1.bf16.msra.mxu0 %v7234
    %10780 = vmatprep.subr.bf16.mxu0 %v7355
    %10781 = vmatpush2.bf16.msra.mxu0 %v7354
    %10782 = vmatprep.subr.bf16.mxu0 %v7347
    %10783 = vmatpush2.bf16.msra.mxu0 %v7346
    %10784 = vmatprep.subr.bf16.mxu0 %v7339
    %10785 = vmatpush2.bf16.msra.mxu0 %v7338
    %10786 = vmatprep.subr.bf16.mxu0 %v7331
    %10787 = vmatpush2.bf16.msra.mxu0 %v7330
    %10788 = vmatprep.subr.bf16.mxu0 %v7323
    %10789 = vmatpush2.bf16.msra.mxu0 %v7322
    %10790 = vmatprep.subr.bf16.mxu0 %v7315
    %10791 = vmatpush2.bf16.msra.mxu0 %v7314
    %10792 = vmatprep.subr.bf16.mxu0 %v7307
    %10793 = vmatpush2.bf16.msra.mxu0 %v7306
    %10794 = vmatprep.subr.bf16.mxu0 %v7299
    %10795 = vmatpush2.bf16.msra.mxu0 %v7298
    %10796 = vmatprep.mubr.bf16.mxu0 %v1819
    %10797 = vmatmul.mubr.bf16.gmra.mxu0 %v1818
    %v10798 = vpop.f32.mrf.mxu0
    %v10799 = vadd.f32 %v10758, %v10798
    %v10800 = vpop.f32.mrf.mxu0
    %v10801 = vadd.f32 %v10760, %v10800
    %v10802 = vpop.f32.mrf.mxu0
    %v10803 = vpop.f32.mrf.mxu0
    %10804 = vdwg.mxu0
    %10805 = vmatprep.subr.bf16.mxu0 %v7419
    %10806 = vmatpush1.bf16.msra.mxu0 %v7418
    %10807 = vmatprep.subr.bf16.mxu0 %v7411
    %10808 = vmatpush1.bf16.msra.mxu0 %v7410
    %10809 = vmatprep.subr.bf16.mxu0 %v7403
    %10810 = vmatpush1.bf16.msra.mxu0 %v7402
    %10811 = vmatprep.subr.bf16.mxu0 %v7395
    %10812 = vmatpush1.bf16.msra.mxu0 %v7394
    %10813 = vmatprep.subr.bf16.mxu0 %v7387
    %10814 = vmatpush1.bf16.msra.mxu0 %v7386
    %10815 = vmatprep.subr.bf16.mxu0 %v7379
    %10816 = vmatpush1.bf16.msra.mxu0 %v7378
    %10817 = vmatprep.subr.bf16.mxu0 %v7371
    %10818 = vmatpush1.bf16.msra.mxu0 %v7370
    %10819 = vmatprep.subr.bf16.mxu0 %v7363
    %10820 = vmatpush1.bf16.msra.mxu0 %v7362
    %10821 = vmatprep.subr.bf16.mxu0 %v7483
    %10822 = vmatpush2.bf16.msra.mxu0 %v7482
    %10823 = vmatprep.subr.bf16.mxu0 %v7475
    %10824 = vmatpush2.bf16.msra.mxu0 %v7474
    %10825 = vmatprep.subr.bf16.mxu0 %v7467
    %10826 = vmatpush2.bf16.msra.mxu0 %v7466
    %10827 = vmatprep.subr.bf16.mxu0 %v7459
    %10828 = vmatpush2.bf16.msra.mxu0 %v7458
    %10829 = vmatprep.subr.bf16.mxu0 %v7451
    %10830 = vmatpush2.bf16.msra.mxu0 %v7450
    %10831 = vmatprep.subr.bf16.mxu0 %v7443
    %10832 = vmatpush2.bf16.msra.mxu0 %v7442
    %10833 = vmatprep.subr.bf16.mxu0 %v7435
    %10834 = vmatpush2.bf16.msra.mxu0 %v7434
    %10835 = vmatprep.subr.bf16.mxu0 %v7427
    %10836 = vmatpush2.bf16.msra.mxu0 %v7426
    %10837 = vmatprep.mubr.bf16.mxu0 %v1821
    %10838 = vmatmul.mubr.bf16.gmra.mxu0 %v1820
    %v10839 = vpop.f32.mrf.mxu0
    %v10840 = vadd.f32 %v10799, %v10839
    %v10841 = vpop.f32.mrf.mxu0
    %v10842 = vadd.f32 %v10801, %v10841
    %v10843 = vpop.f32.mrf.mxu0
    %v10844 = vpop.f32.mrf.mxu0
    %10845 = vdwg.mxu0
    %10846 = vmatprep.subr.bf16.mxu0 %v7547
    %10847 = vmatpush1.bf16.msra.mxu0 %v7546
    %10848 = vmatprep.subr.bf16.mxu0 %v7539
    %10849 = vmatpush1.bf16.msra.mxu0 %v7538
    %10850 = vmatprep.subr.bf16.mxu0 %v7531
    %10851 = vmatpush1.bf16.msra.mxu0 %v7530
    %10852 = vmatprep.subr.bf16.mxu0 %v7523
    %10853 = vmatpush1.bf16.msra.mxu0 %v7522
    %10854 = vmatprep.subr.bf16.mxu0 %v7515
    %10855 = vmatpush1.bf16.msra.mxu0 %v7514
    %10856 = vmatprep.subr.bf16.mxu0 %v7507
    %10857 = vmatpush1.bf16.msra.mxu0 %v7506
    %10858 = vmatprep.subr.bf16.mxu0 %v7499
    %10859 = vmatpush1.bf16.msra.mxu0 %v7498
    %10860 = vmatprep.subr.bf16.mxu0 %v7491
    %10861 = vmatpush1.bf16.msra.mxu0 %v7490
    %10862 = vmatprep.subr.bf16.mxu0 %v7611
    %10863 = vmatpush2.bf16.msra.mxu0 %v7610
    %10864 = vmatprep.subr.bf16.mxu0 %v7603
    %10865 = vmatpush2.bf16.msra.mxu0 %v7602
    %10866 = vmatprep.subr.bf16.mxu0 %v7595
    %10867 = vmatpush2.bf16.msra.mxu0 %v7594
    %10868 = vmatprep.subr.bf16.mxu0 %v7587
    %10869 = vmatpush2.bf16.msra.mxu0 %v7586
    %10870 = vmatprep.subr.bf16.mxu0 %v7579
    %10871 = vmatpush2.bf16.msra.mxu0 %v7578
    %10872 = vmatprep.subr.bf16.mxu0 %v7571
    %10873 = vmatpush2.bf16.msra.mxu0 %v7570
    %10874 = vmatprep.subr.bf16.mxu0 %v7563
    %10875 = vmatpush2.bf16.msra.mxu0 %v7562
    %10876 = vmatprep.subr.bf16.mxu0 %v7555
    %10877 = vmatpush2.bf16.msra.mxu0 %v7554
    %10878 = vmatprep.mubr.bf16.mxu0 %v1823
    %10879 = vmatmul.mubr.bf16.gmra.mxu0 %v1822
    %v10880 = vpop.f32.mrf.mxu0
    %v10881 = vadd.f32 %v10840, %v10880
    %v10882 = vpop.f32.mrf.mxu0
    %v10883 = vadd.f32 %v10842, %v10882
    %v10884 = vpop.f32.mrf.mxu0
    %v10885 = vpop.f32.mrf.mxu0
    %10886 = vdwg.mxu0
    %10887 = vmatprep.subr.bf16.mxu0 %v7675
    %10888 = vmatpush1.bf16.msra.mxu0 %v7674
    %10889 = vmatprep.subr.bf16.mxu0 %v7667
    %10890 = vmatpush1.bf16.msra.mxu0 %v7666
    %10891 = vmatprep.subr.bf16.mxu0 %v7659
    %10892 = vmatpush1.bf16.msra.mxu0 %v7658
    %10893 = vmatprep.subr.bf16.mxu0 %v7651
    %10894 = vmatpush1.bf16.msra.mxu0 %v7650
    %10895 = vmatprep.subr.bf16.mxu0 %v7643
    %10896 = vmatpush1.bf16.msra.mxu0 %v7642
    %10897 = vmatprep.subr.bf16.mxu0 %v7635
    %10898 = vmatpush1.bf16.msra.mxu0 %v7634
    %10899 = vmatprep.subr.bf16.mxu0 %v7627
    %10900 = vmatpush1.bf16.msra.mxu0 %v7626
    %10901 = vmatprep.subr.bf16.mxu0 %v7619
    %10902 = vmatpush1.bf16.msra.mxu0 %v7618
    %10903 = vmatprep.subr.bf16.mxu0 %v7739
    %10904 = vmatpush2.bf16.msra.mxu0 %v7738
    %10905 = vmatprep.subr.bf16.mxu0 %v7731
    %10906 = vmatpush2.bf16.msra.mxu0 %v7730
    %10907 = vmatprep.subr.bf16.mxu0 %v7723
    %10908 = vmatpush2.bf16.msra.mxu0 %v7722
    %10909 = vmatprep.subr.bf16.mxu0 %v7715
    %10910 = vmatpush2.bf16.msra.mxu0 %v7714
    %10911 = vmatprep.subr.bf16.mxu0 %v7707
    %10912 = vmatpush2.bf16.msra.mxu0 %v7706
    %10913 = vmatprep.subr.bf16.mxu0 %v7699
    %10914 = vmatpush2.bf16.msra.mxu0 %v7698
    %10915 = vmatprep.subr.bf16.mxu0 %v7691
    %10916 = vmatpush2.bf16.msra.mxu0 %v7690
    %10917 = vmatprep.subr.bf16.mxu0 %v7683
    %10918 = vmatpush2.bf16.msra.mxu0 %v7682
    %10919 = vmatprep.mubr.bf16.mxu0 %v1825
    %10920 = vmatmul.mubr.bf16.gmra.mxu0 %v1824
    %v10921 = vpop.f32.mrf.mxu0
    %v10922 = vadd.f32 %v10881, %v10921
    %v10923 = vpop.f32.mrf.mxu0
    %v10924 = vadd.f32 %v10883, %v10923
    %v10925 = vpop.f32.mrf.mxu0
    %v10926 = vpop.f32.mrf.mxu0
    %10927 = vdwg.mxu0
    %10928 = vmatprep.subr.bf16.mxu0 %v7803
    %10929 = vmatpush1.bf16.msra.mxu0 %v7802
    %10930 = vmatprep.subr.bf16.mxu0 %v7795
    %10931 = vmatpush1.bf16.msra.mxu0 %v7794
    %10932 = vmatprep.subr.bf16.mxu0 %v7787
    %10933 = vmatpush1.bf16.msra.mxu0 %v7786
    %10934 = vmatprep.subr.bf16.mxu0 %v7779
    %10935 = vmatpush1.bf16.msra.mxu0 %v7778
    %10936 = vmatprep.subr.bf16.mxu0 %v7771
    %10937 = vmatpush1.bf16.msra.mxu0 %v7770
    %10938 = vmatprep.subr.bf16.mxu0 %v7763
    %10939 = vmatpush1.bf16.msra.mxu0 %v7762
    %10940 = vmatprep.subr.bf16.mxu0 %v7755
    %10941 = vmatpush1.bf16.msra.mxu0 %v7754
    %10942 = vmatprep.subr.bf16.mxu0 %v7747
    %10943 = vmatpush1.bf16.msra.mxu0 %v7746
    %10944 = vmatprep.subr.bf16.mxu0 %v7867
    %10945 = vmatpush2.bf16.msra.mxu0 %v7866
    %10946 = vmatprep.subr.bf16.mxu0 %v7859
    %10947 = vmatpush2.bf16.msra.mxu0 %v7858
    %10948 = vmatprep.subr.bf16.mxu0 %v7851
    %10949 = vmatpush2.bf16.msra.mxu0 %v7850
    %10950 = vmatprep.subr.bf16.mxu0 %v7843
    %10951 = vmatpush2.bf16.msra.mxu0 %v7842
    %10952 = vmatprep.subr.bf16.mxu0 %v7835
    %10953 = vmatpush2.bf16.msra.mxu0 %v7834
    %10954 = vmatprep.subr.bf16.mxu0 %v7827
    %10955 = vmatpush2.bf16.msra.mxu0 %v7826
    %10956 = vmatprep.subr.bf16.mxu0 %v7819
    %10957 = vmatpush2.bf16.msra.mxu0 %v7818
    %10958 = vmatprep.subr.bf16.mxu0 %v7811
    %10959 = vmatpush2.bf16.msra.mxu0 %v7810
    %10960 = vmatprep.mubr.bf16.mxu0 %v1827
    %10961 = vmatmul.mubr.bf16.gmra.mxu0 %v1826
    %v10962 = vpop.f32.mrf.mxu0
    %v10963 = vadd.f32 %v10922, %v10962
    %v10964 = vpop.f32.mrf.mxu0
    %v10965 = vadd.f32 %v10924, %v10964
    %v10966 = vpop.f32.mrf.mxu0
    %v10967 = vpop.f32.mrf.mxu0
    %10968 = vdwg.mxu0
    %10969 = vmatprep.subr.bf16.mxu0 %v7931
    %10970 = vmatpush1.bf16.msra.mxu0 %v7930
    %10971 = vmatprep.subr.bf16.mxu0 %v7923
    %10972 = vmatpush1.bf16.msra.mxu0 %v7922
    %10973 = vmatprep.subr.bf16.mxu0 %v7915
    %10974 = vmatpush1.bf16.msra.mxu0 %v7914
    %10975 = vmatprep.subr.bf16.mxu0 %v7907
    %10976 = vmatpush1.bf16.msra.mxu0 %v7906
    %10977 = vmatprep.subr.bf16.mxu0 %v7899
    %10978 = vmatpush1.bf16.msra.mxu0 %v7898
    %10979 = vmatprep.subr.bf16.mxu0 %v7891
    %10980 = vmatpush1.bf16.msra.mxu0 %v7890
    %10981 = vmatprep.subr.bf16.mxu0 %v7883
    %10982 = vmatpush1.bf16.msra.mxu0 %v7882
    %10983 = vmatprep.subr.bf16.mxu0 %v7875
    %10984 = vmatpush1.bf16.msra.mxu0 %v7874
    %10985 = vmatprep.subr.bf16.mxu0 %v7995
    %10986 = vmatpush2.bf16.msra.mxu0 %v7994
    %10987 = vmatprep.subr.bf16.mxu0 %v7987
    %10988 = vmatpush2.bf16.msra.mxu0 %v7986
    %10989 = vmatprep.subr.bf16.mxu0 %v7979
    %10990 = vmatpush2.bf16.msra.mxu0 %v7978
    %10991 = vmatprep.subr.bf16.mxu0 %v7971
    %10992 = vmatpush2.bf16.msra.mxu0 %v7970
    %10993 = vmatprep.subr.bf16.mxu0 %v7963
    %10994 = vmatpush2.bf16.msra.mxu0 %v7962
    %10995 = vmatprep.subr.bf16.mxu0 %v7955
    %10996 = vmatpush2.bf16.msra.mxu0 %v7954
    %10997 = vmatprep.subr.bf16.mxu0 %v7947
    %10998 = vmatpush2.bf16.msra.mxu0 %v7946
    %10999 = vmatprep.subr.bf16.mxu0 %v7939
    %11000 = vmatpush2.bf16.msra.mxu0 %v7938
    %11001 = vmatprep.mubr.bf16.mxu0 %v1829
    %11002 = vmatmul.mubr.bf16.gmra.mxu0 %v1828
    %v11003 = vpop.f32.mrf.mxu0
    %v11004 = vadd.f32 %v10963, %v11003
    %v11005 = vpop.f32.mrf.mxu0
    %v11006 = vadd.f32 %v10965, %v11005
    %v11007 = vpop.f32.mrf.mxu0
    %v11008 = vpop.f32.mrf.mxu0
    %11009 = vdwg.mxu0
    %11010 = vmatprep.subr.bf16.mxu0 %v6525
    %11011 = vmatpush1.bf16.msra.mxu0 %v6524
    %11012 = vmatprep.subr.bf16.mxu0 %v6517
    %11013 = vmatpush1.bf16.msra.mxu0 %v6516
    %11014 = vmatprep.subr.bf16.mxu0 %v6509
    %11015 = vmatpush1.bf16.msra.mxu0 %v6508
    %11016 = vmatprep.subr.bf16.mxu0 %v6501
    %11017 = vmatpush1.bf16.msra.mxu0 %v6500
    %11018 = vmatprep.subr.bf16.mxu0 %v6493
    %11019 = vmatpush1.bf16.msra.mxu0 %v6492
    %11020 = vmatprep.subr.bf16.mxu0 %v6485
    %11021 = vmatpush1.bf16.msra.mxu0 %v6484
    %11022 = vmatprep.subr.bf16.mxu0 %v6477
    %11023 = vmatpush1.bf16.msra.mxu0 %v6476
    %11024 = vmatprep.subr.bf16.mxu0 %v6469
    %11025 = vmatpush1.bf16.msra.mxu0 %v6468
    %11026 = vmatprep.subr.bf16.mxu0 %v6589
    %11027 = vmatpush2.bf16.msra.mxu0 %v6588
    %11028 = vmatprep.subr.bf16.mxu0 %v6581
    %11029 = vmatpush2.bf16.msra.mxu0 %v6580
    %11030 = vmatprep.subr.bf16.mxu0 %v6573
    %11031 = vmatpush2.bf16.msra.mxu0 %v6572
    %11032 = vmatprep.subr.bf16.mxu0 %v6565
    %11033 = vmatpush2.bf16.msra.mxu0 %v6564
    %11034 = vmatprep.subr.bf16.mxu0 %v6557
    %11035 = vmatpush2.bf16.msra.mxu0 %v6556
    %11036 = vmatprep.subr.bf16.mxu0 %v6549
    %11037 = vmatpush2.bf16.msra.mxu0 %v6548
    %11038 = vmatprep.subr.bf16.mxu0 %v6541
    %11039 = vmatpush2.bf16.msra.mxu0 %v6540
    %11040 = vmatprep.subr.bf16.mxu0 %v6533
    %11041 = vmatpush2.bf16.msra.mxu0 %v6532
    %11042 = vmatprep.mubr.bf16.mxu0 %v1807
    %11043 = vmatmul.mubr.bf16.gmra.mxu0 %v1806
    %v11044 = vpop.f32.mrf.mxu0
    %v11045 = vadd.f32 %v1757, %v11044
    %v11046 = vpop.f32.mrf.mxu0
    %v11047 = vadd.f32 %v1761, %v11046
    %v11048 = vpop.f32.mrf.mxu0
    %v11049 = vpop.f32.mrf.mxu0
    %11050 = vdwg.mxu0
    %11051 = vmatprep.subr.bf16.mxu0 %v6653
    %11052 = vmatpush1.bf16.msra.mxu0 %v6652
    %11053 = vmatprep.subr.bf16.mxu0 %v6645
    %11054 = vmatpush1.bf16.msra.mxu0 %v6644
    %11055 = vmatprep.subr.bf16.mxu0 %v6637
    %11056 = vmatpush1.bf16.msra.mxu0 %v6636
    %11057 = vmatprep.subr.bf16.mxu0 %v6629
    %11058 = vmatpush1.bf16.msra.mxu0 %v6628
    %11059 = vmatprep.subr.bf16.mxu0 %v6621
    %11060 = vmatpush1.bf16.msra.mxu0 %v6620
    %11061 = vmatprep.subr.bf16.mxu0 %v6613
    %11062 = vmatpush1.bf16.msra.mxu0 %v6612
    %11063 = vmatprep.subr.bf16.mxu0 %v6605
    %11064 = vmatpush1.bf16.msra.mxu0 %v6604
    %11065 = vmatprep.subr.bf16.mxu0 %v6597
    %11066 = vmatpush1.bf16.msra.mxu0 %v6596
    %11067 = vmatprep.subr.bf16.mxu0 %v6717
    %11068 = vmatpush2.bf16.msra.mxu0 %v6716
    %11069 = vmatprep.subr.bf16.mxu0 %v6709
    %11070 = vmatpush2.bf16.msra.mxu0 %v6708
    %11071 = vmatprep.subr.bf16.mxu0 %v6701
    %11072 = vmatpush2.bf16.msra.mxu0 %v6700
    %11073 = vmatprep.subr.bf16.mxu0 %v6693
    %11074 = vmatpush2.bf16.msra.mxu0 %v6692
    %11075 = vmatprep.subr.bf16.mxu0 %v6685
    %11076 = vmatpush2.bf16.msra.mxu0 %v6684
    %11077 = vmatprep.subr.bf16.mxu0 %v6677
    %11078 = vmatpush2.bf16.msra.mxu0 %v6676
    %11079 = vmatprep.subr.bf16.mxu0 %v6669
    %11080 = vmatpush2.bf16.msra.mxu0 %v6668
    %11081 = vmatprep.subr.bf16.mxu0 %v6661
    %11082 = vmatpush2.bf16.msra.mxu0 %v6660
    %11083 = vmatprep.mubr.bf16.mxu0 %v1809
    %11084 = vmatmul.mubr.bf16.gmra.mxu0 %v1808
    %v11085 = vpop.f32.mrf.mxu0
    %v11086 = vadd.f32 %v11045, %v11085
    %v11087 = vpop.f32.mrf.mxu0
    %v11088 = vadd.f32 %v11047, %v11087
    %v11089 = vpop.f32.mrf.mxu0
    %v11090 = vpop.f32.mrf.mxu0
    %11091 = vdwg.mxu0
    %11092 = vmatprep.subr.bf16.mxu0 %v6781
    %11093 = vmatpush1.bf16.msra.mxu0 %v6780
    %11094 = vmatprep.subr.bf16.mxu0 %v6773
    %11095 = vmatpush1.bf16.msra.mxu0 %v6772
    %11096 = vmatprep.subr.bf16.mxu0 %v6765
    %11097 = vmatpush1.bf16.msra.mxu0 %v6764
    %11098 = vmatprep.subr.bf16.mxu0 %v6757
    %11099 = vmatpush1.bf16.msra.mxu0 %v6756
    %11100 = vmatprep.subr.bf16.mxu0 %v6749
    %11101 = vmatpush1.bf16.msra.mxu0 %v6748
    %11102 = vmatprep.subr.bf16.mxu0 %v6741
    %11103 = vmatpush1.bf16.msra.mxu0 %v6740
    %11104 = vmatprep.subr.bf16.mxu0 %v6733
    %11105 = vmatpush1.bf16.msra.mxu0 %v6732
    %11106 = vmatprep.subr.bf16.mxu0 %v6725
    %11107 = vmatpush1.bf16.msra.mxu0 %v6724
    %11108 = vmatprep.subr.bf16.mxu0 %v6845
    %11109 = vmatpush2.bf16.msra.mxu0 %v6844
    %11110 = vmatprep.subr.bf16.mxu0 %v6837
    %11111 = vmatpush2.bf16.msra.mxu0 %v6836
    %11112 = vmatprep.subr.bf16.mxu0 %v6829
    %11113 = vmatpush2.bf16.msra.mxu0 %v6828
    %11114 = vmatprep.subr.bf16.mxu0 %v6821
    %11115 = vmatpush2.bf16.msra.mxu0 %v6820
    %11116 = vmatprep.subr.bf16.mxu0 %v6813
    %11117 = vmatpush2.bf16.msra.mxu0 %v6812
    %11118 = vmatprep.subr.bf16.mxu0 %v6805
    %11119 = vmatpush2.bf16.msra.mxu0 %v6804
    %11120 = vmatprep.subr.bf16.mxu0 %v6797
    %11121 = vmatpush2.bf16.msra.mxu0 %v6796
    %11122 = vmatprep.subr.bf16.mxu0 %v6789
    %11123 = vmatpush2.bf16.msra.mxu0 %v6788
    %11124 = vmatprep.mubr.bf16.mxu0 %v1811
    %11125 = vmatmul.mubr.bf16.gmra.mxu0 %v1810
    %v11126 = vpop.f32.mrf.mxu0
    %v11127 = vadd.f32 %v11086, %v11126
    %v11128 = vpop.f32.mrf.mxu0
    %v11129 = vadd.f32 %v11088, %v11128
    %v11130 = vpop.f32.mrf.mxu0
    %v11131 = vpop.f32.mrf.mxu0
    %11132 = vdwg.mxu0
    %11133 = vmatprep.subr.bf16.mxu0 %v6909
    %11134 = vmatpush1.bf16.msra.mxu0 %v6908
    %11135 = vmatprep.subr.bf16.mxu0 %v6901
    %11136 = vmatpush1.bf16.msra.mxu0 %v6900
    %11137 = vmatprep.subr.bf16.mxu0 %v6893
    %11138 = vmatpush1.bf16.msra.mxu0 %v6892
    %11139 = vmatprep.subr.bf16.mxu0 %v6885
    %11140 = vmatpush1.bf16.msra.mxu0 %v6884
    %11141 = vmatprep.subr.bf16.mxu0 %v6877
    %11142 = vmatpush1.bf16.msra.mxu0 %v6876
    %11143 = vmatprep.subr.bf16.mxu0 %v6869
    %11144 = vmatpush1.bf16.msra.mxu0 %v6868
    %11145 = vmatprep.subr.bf16.mxu0 %v6861
    %11146 = vmatpush1.bf16.msra.mxu0 %v6860
    %11147 = vmatprep.subr.bf16.mxu0 %v6853
    %11148 = vmatpush1.bf16.msra.mxu0 %v6852
    %11149 = vmatprep.subr.bf16.mxu0 %v6973
    %11150 = vmatpush2.bf16.msra.mxu0 %v6972
    %11151 = vmatprep.subr.bf16.mxu0 %v6965
    %11152 = vmatpush2.bf16.msra.mxu0 %v6964
    %11153 = vmatprep.subr.bf16.mxu0 %v6957
    %11154 = vmatpush2.bf16.msra.mxu0 %v6956
    %11155 = vmatprep.subr.bf16.mxu0 %v6949
    %11156 = vmatpush2.bf16.msra.mxu0 %v6948
    %11157 = vmatprep.subr.bf16.mxu0 %v6941
    %11158 = vmatpush2.bf16.msra.mxu0 %v6940
    %11159 = vmatprep.subr.bf16.mxu0 %v6933
    %11160 = vmatpush2.bf16.msra.mxu0 %v6932
    %11161 = vmatprep.subr.bf16.mxu0 %v6925
    %11162 = vmatpush2.bf16.msra.mxu0 %v6924
    %11163 = vmatprep.subr.bf16.mxu0 %v6917
    %11164 = vmatpush2.bf16.msra.mxu0 %v6916
    %11165 = vmatprep.mubr.bf16.mxu0 %v1813
    %11166 = vmatmul.mubr.bf16.gmra.mxu0 %v1812
    %v11167 = vpop.f32.mrf.mxu0
    %v11168 = vadd.f32 %v11127, %v11167
    %v11169 = vpop.f32.mrf.mxu0
    %v11170 = vadd.f32 %v11129, %v11169
    %v11171 = vpop.f32.mrf.mxu0
    %v11172 = vpop.f32.mrf.mxu0
    %11173 = vdwg.mxu0
    %11174 = vmatprep.subr.bf16.mxu0 %v7037
    %11175 = vmatpush1.bf16.msra.mxu0 %v7036
    %11176 = vmatprep.subr.bf16.mxu0 %v7029
    %11177 = vmatpush1.bf16.msra.mxu0 %v7028
    %11178 = vmatprep.subr.bf16.mxu0 %v7021
    %11179 = vmatpush1.bf16.msra.mxu0 %v7020
    %11180 = vmatprep.subr.bf16.mxu0 %v7013
    %11181 = vmatpush1.bf16.msra.mxu0 %v7012
    %11182 = vmatprep.subr.bf16.mxu0 %v7005
    %11183 = vmatpush1.bf16.msra.mxu0 %v7004
    %11184 = vmatprep.subr.bf16.mxu0 %v6997
    %11185 = vmatpush1.bf16.msra.mxu0 %v6996
    %11186 = vmatprep.subr.bf16.mxu0 %v6989
    %11187 = vmatpush1.bf16.msra.mxu0 %v6988
    %11188 = vmatprep.subr.bf16.mxu0 %v6981
    %11189 = vmatpush1.bf16.msra.mxu0 %v6980
    %11190 = vmatprep.subr.bf16.mxu0 %v7101
    %11191 = vmatpush2.bf16.msra.mxu0 %v7100
    %11192 = vmatprep.subr.bf16.mxu0 %v7093
    %11193 = vmatpush2.bf16.msra.mxu0 %v7092
    %11194 = vmatprep.subr.bf16.mxu0 %v7085
    %11195 = vmatpush2.bf16.msra.mxu0 %v7084
    %11196 = vmatprep.subr.bf16.mxu0 %v7077
    %11197 = vmatpush2.bf16.msra.mxu0 %v7076
    %11198 = vmatprep.subr.bf16.mxu0 %v7069
    %11199 = vmatpush2.bf16.msra.mxu0 %v7068
    %11200 = vmatprep.subr.bf16.mxu0 %v7061
    %11201 = vmatpush2.bf16.msra.mxu0 %v7060
    %11202 = vmatprep.subr.bf16.mxu0 %v7053
    %11203 = vmatpush2.bf16.msra.mxu0 %v7052
    %11204 = vmatprep.subr.bf16.mxu0 %v7045
    %11205 = vmatpush2.bf16.msra.mxu0 %v7044
    %11206 = vmatprep.mubr.bf16.mxu0 %v1815
    %11207 = vmatmul.mubr.bf16.gmra.mxu0 %v1814
    %v11208 = vpop.f32.mrf.mxu0
    %v11209 = vadd.f32 %v11168, %v11208
    %v11210 = vpop.f32.mrf.mxu0
    %v11211 = vadd.f32 %v11170, %v11210
    %v11212 = vpop.f32.mrf.mxu0
    %v11213 = vpop.f32.mrf.mxu0
    %11214 = vdwg.mxu0
    %11215 = vmatprep.subr.bf16.mxu0 %v7165
    %11216 = vmatpush1.bf16.msra.mxu0 %v7164
    %11217 = vmatprep.subr.bf16.mxu0 %v7157
    %11218 = vmatpush1.bf16.msra.mxu0 %v7156
    %11219 = vmatprep.subr.bf16.mxu0 %v7149
    %11220 = vmatpush1.bf16.msra.mxu0 %v7148
    %11221 = vmatprep.subr.bf16.mxu0 %v7141
    %11222 = vmatpush1.bf16.msra.mxu0 %v7140
    %11223 = vmatprep.subr.bf16.mxu0 %v7133
    %11224 = vmatpush1.bf16.msra.mxu0 %v7132
    %11225 = vmatprep.subr.bf16.mxu0 %v7125
    %11226 = vmatpush1.bf16.msra.mxu0 %v7124
    %11227 = vmatprep.subr.bf16.mxu0 %v7117
    %11228 = vmatpush1.bf16.msra.mxu0 %v7116
    %11229 = vmatprep.subr.bf16.mxu0 %v7109
    %11230 = vmatpush1.bf16.msra.mxu0 %v7108
    %11231 = vmatprep.subr.bf16.mxu0 %v7229
    %11232 = vmatpush2.bf16.msra.mxu0 %v7228
    %11233 = vmatprep.subr.bf16.mxu0 %v7221
    %11234 = vmatpush2.bf16.msra.mxu0 %v7220
    %11235 = vmatprep.subr.bf16.mxu0 %v7213
    %11236 = vmatpush2.bf16.msra.mxu0 %v7212
    %11237 = vmatprep.subr.bf16.mxu0 %v7205
    %11238 = vmatpush2.bf16.msra.mxu0 %v7204
    %11239 = vmatprep.subr.bf16.mxu0 %v7197
    %11240 = vmatpush2.bf16.msra.mxu0 %v7196
    %11241 = vmatprep.subr.bf16.mxu0 %v7189
    %11242 = vmatpush2.bf16.msra.mxu0 %v7188
    %11243 = vmatprep.subr.bf16.mxu0 %v7181
    %11244 = vmatpush2.bf16.msra.mxu0 %v7180
    %11245 = vmatprep.subr.bf16.mxu0 %v7173
    %11246 = vmatpush2.bf16.msra.mxu0 %v7172
    %11247 = vmatprep.mubr.bf16.mxu0 %v1817
    %11248 = vmatmul.mubr.bf16.gmra.mxu0 %v1816
    %v11249 = vpop.f32.mrf.mxu0
    %v11250 = vadd.f32 %v11209, %v11249
    %v11251 = vpop.f32.mrf.mxu0
    %v11252 = vadd.f32 %v11211, %v11251
    %v11253 = vpop.f32.mrf.mxu0
    %v11254 = vpop.f32.mrf.mxu0
    %11255 = vdwg.mxu0
    %11256 = vmatprep.subr.bf16.mxu0 %v7293
    %11257 = vmatpush1.bf16.msra.mxu0 %v7292
    %11258 = vmatprep.subr.bf16.mxu0 %v7285
    %11259 = vmatpush1.bf16.msra.mxu0 %v7284
    %11260 = vmatprep.subr.bf16.mxu0 %v7277
    %11261 = vmatpush1.bf16.msra.mxu0 %v7276
    %11262 = vmatprep.subr.bf16.mxu0 %v7269
    %11263 = vmatpush1.bf16.msra.mxu0 %v7268
    %11264 = vmatprep.subr.bf16.mxu0 %v7261
    %11265 = vmatpush1.bf16.msra.mxu0 %v7260
    %11266 = vmatprep.subr.bf16.mxu0 %v7253
    %11267 = vmatpush1.bf16.msra.mxu0 %v7252
    %11268 = vmatprep.subr.bf16.mxu0 %v7245
    %11269 = vmatpush1.bf16.msra.mxu0 %v7244
    %11270 = vmatprep.subr.bf16.mxu0 %v7237
    %11271 = vmatpush1.bf16.msra.mxu0 %v7236
    %11272 = vmatprep.subr.bf16.mxu0 %v7357
    %11273 = vmatpush2.bf16.msra.mxu0 %v7356
    %11274 = vmatprep.subr.bf16.mxu0 %v7349
    %11275 = vmatpush2.bf16.msra.mxu0 %v7348
    %11276 = vmatprep.subr.bf16.mxu0 %v7341
    %11277 = vmatpush2.bf16.msra.mxu0 %v7340
    %11278 = vmatprep.subr.bf16.mxu0 %v7333
    %11279 = vmatpush2.bf16.msra.mxu0 %v7332
    %11280 = vmatprep.subr.bf16.mxu0 %v7325
    %11281 = vmatpush2.bf16.msra.mxu0 %v7324
    %11282 = vmatprep.subr.bf16.mxu0 %v7317
    %11283 = vmatpush2.bf16.msra.mxu0 %v7316
    %11284 = vmatprep.subr.bf16.mxu0 %v7309
    %11285 = vmatpush2.bf16.msra.mxu0 %v7308
    %11286 = vmatprep.subr.bf16.mxu0 %v7301
    %11287 = vmatpush2.bf16.msra.mxu0 %v7300
    %11288 = vmatprep.mubr.bf16.mxu0 %v1819
    %11289 = vmatmul.mubr.bf16.gmra.mxu0 %v1818
    %v11290 = vpop.f32.mrf.mxu0
    %v11291 = vadd.f32 %v11250, %v11290
    %v11292 = vpop.f32.mrf.mxu0
    %v11293 = vadd.f32 %v11252, %v11292
    %v11294 = vpop.f32.mrf.mxu0
    %v11295 = vpop.f32.mrf.mxu0
    %11296 = vdwg.mxu0
    %11297 = vmatprep.subr.bf16.mxu0 %v7421
    %11298 = vmatpush1.bf16.msra.mxu0 %v7420
    %11299 = vmatprep.subr.bf16.mxu0 %v7413
    %11300 = vmatpush1.bf16.msra.mxu0 %v7412
    %11301 = vmatprep.subr.bf16.mxu0 %v7405
    %11302 = vmatpush1.bf16.msra.mxu0 %v7404
    %11303 = vmatprep.subr.bf16.mxu0 %v7397
    %11304 = vmatpush1.bf16.msra.mxu0 %v7396
    %11305 = vmatprep.subr.bf16.mxu0 %v7389
    %11306 = vmatpush1.bf16.msra.mxu0 %v7388
    %11307 = vmatprep.subr.bf16.mxu0 %v7381
    %11308 = vmatpush1.bf16.msra.mxu0 %v7380
    %11309 = vmatprep.subr.bf16.mxu0 %v7373
    %11310 = vmatpush1.bf16.msra.mxu0 %v7372
    %11311 = vmatprep.subr.bf16.mxu0 %v7365
    %11312 = vmatpush1.bf16.msra.mxu0 %v7364
    %11313 = vmatprep.subr.bf16.mxu0 %v7485
    %11314 = vmatpush2.bf16.msra.mxu0 %v7484
    %11315 = vmatprep.subr.bf16.mxu0 %v7477
    %11316 = vmatpush2.bf16.msra.mxu0 %v7476
    %11317 = vmatprep.subr.bf16.mxu0 %v7469
    %11318 = vmatpush2.bf16.msra.mxu0 %v7468
    %11319 = vmatprep.subr.bf16.mxu0 %v7461
    %11320 = vmatpush2.bf16.msra.mxu0 %v7460
    %11321 = vmatprep.subr.bf16.mxu0 %v7453
    %11322 = vmatpush2.bf16.msra.mxu0 %v7452
    %11323 = vmatprep.subr.bf16.mxu0 %v7445
    %11324 = vmatpush2.bf16.msra.mxu0 %v7444
    %11325 = vmatprep.subr.bf16.mxu0 %v7437
    %11326 = vmatpush2.bf16.msra.mxu0 %v7436
    %11327 = vmatprep.subr.bf16.mxu0 %v7429
    %11328 = vmatpush2.bf16.msra.mxu0 %v7428
    %11329 = vmatprep.mubr.bf16.mxu0 %v1821
    %11330 = vmatmul.mubr.bf16.gmra.mxu0 %v1820
    %v11331 = vpop.f32.mrf.mxu0
    %v11332 = vadd.f32 %v11291, %v11331
    %v11333 = vpop.f32.mrf.mxu0
    %v11334 = vadd.f32 %v11293, %v11333
    %v11335 = vpop.f32.mrf.mxu0
    %v11336 = vpop.f32.mrf.mxu0
    %11337 = vdwg.mxu0
    %11338 = vmatprep.subr.bf16.mxu0 %v7549
    %11339 = vmatpush1.bf16.msra.mxu0 %v7548
    %11340 = vmatprep.subr.bf16.mxu0 %v7541
    %11341 = vmatpush1.bf16.msra.mxu0 %v7540
    %11342 = vmatprep.subr.bf16.mxu0 %v7533
    %11343 = vmatpush1.bf16.msra.mxu0 %v7532
    %11344 = vmatprep.subr.bf16.mxu0 %v7525
    %11345 = vmatpush1.bf16.msra.mxu0 %v7524
    %11346 = vmatprep.subr.bf16.mxu0 %v7517
    %11347 = vmatpush1.bf16.msra.mxu0 %v7516
    %11348 = vmatprep.subr.bf16.mxu0 %v7509
    %11349 = vmatpush1.bf16.msra.mxu0 %v7508
    %11350 = vmatprep.subr.bf16.mxu0 %v7501
    %11351 = vmatpush1.bf16.msra.mxu0 %v7500
    %11352 = vmatprep.subr.bf16.mxu0 %v7493
    %11353 = vmatpush1.bf16.msra.mxu0 %v7492
    %11354 = vmatprep.subr.bf16.mxu0 %v7613
    %11355 = vmatpush2.bf16.msra.mxu0 %v7612
    %11356 = vmatprep.subr.bf16.mxu0 %v7605
    %11357 = vmatpush2.bf16.msra.mxu0 %v7604
    %11358 = vmatprep.subr.bf16.mxu0 %v7597
    %11359 = vmatpush2.bf16.msra.mxu0 %v7596
    %11360 = vmatprep.subr.bf16.mxu0 %v7589
    %11361 = vmatpush2.bf16.msra.mxu0 %v7588
    %11362 = vmatprep.subr.bf16.mxu0 %v7581
    %11363 = vmatpush2.bf16.msra.mxu0 %v7580
    %11364 = vmatprep.subr.bf16.mxu0 %v7573
    %11365 = vmatpush2.bf16.msra.mxu0 %v7572
    %11366 = vmatprep.subr.bf16.mxu0 %v7565
    %11367 = vmatpush2.bf16.msra.mxu0 %v7564
    %11368 = vmatprep.subr.bf16.mxu0 %v7557
    %11369 = vmatpush2.bf16.msra.mxu0 %v7556
    %11370 = vmatprep.mubr.bf16.mxu0 %v1823
    %11371 = vmatmul.mubr.bf16.gmra.mxu0 %v1822
    %v11372 = vpop.f32.mrf.mxu0
    %v11373 = vadd.f32 %v11332, %v11372
    %v11374 = vpop.f32.mrf.mxu0
    %v11375 = vadd.f32 %v11334, %v11374
    %v11376 = vpop.f32.mrf.mxu0
    %v11377 = vpop.f32.mrf.mxu0
    %11378 = vdwg.mxu0
    %11379 = vmatprep.subr.bf16.mxu0 %v7677
    %11380 = vmatpush1.bf16.msra.mxu0 %v7676
    %11381 = vmatprep.subr.bf16.mxu0 %v7669
    %11382 = vmatpush1.bf16.msra.mxu0 %v7668
    %11383 = vmatprep.subr.bf16.mxu0 %v7661
    %11384 = vmatpush1.bf16.msra.mxu0 %v7660
    %11385 = vmatprep.subr.bf16.mxu0 %v7653
    %11386 = vmatpush1.bf16.msra.mxu0 %v7652
    %11387 = vmatprep.subr.bf16.mxu0 %v7645
    %11388 = vmatpush1.bf16.msra.mxu0 %v7644
    %11389 = vmatprep.subr.bf16.mxu0 %v7637
    %11390 = vmatpush1.bf16.msra.mxu0 %v7636
    %11391 = vmatprep.subr.bf16.mxu0 %v7629
    %11392 = vmatpush1.bf16.msra.mxu0 %v7628
    %11393 = vmatprep.subr.bf16.mxu0 %v7621
    %11394 = vmatpush1.bf16.msra.mxu0 %v7620
    %11395 = vmatprep.subr.bf16.mxu0 %v7741
    %11396 = vmatpush2.bf16.msra.mxu0 %v7740
    %11397 = vmatprep.subr.bf16.mxu0 %v7733
    %11398 = vmatpush2.bf16.msra.mxu0 %v7732
    %11399 = vmatprep.subr.bf16.mxu0 %v7725
    %11400 = vmatpush2.bf16.msra.mxu0 %v7724
    %11401 = vmatprep.subr.bf16.mxu0 %v7717
    %11402 = vmatpush2.bf16.msra.mxu0 %v7716
    %11403 = vmatprep.subr.bf16.mxu0 %v7709
    %11404 = vmatpush2.bf16.msra.mxu0 %v7708
    %11405 = vmatprep.subr.bf16.mxu0 %v7701
    %11406 = vmatpush2.bf16.msra.mxu0 %v7700
    %11407 = vmatprep.subr.bf16.mxu0 %v7693
    %11408 = vmatpush2.bf16.msra.mxu0 %v7692
    %11409 = vmatprep.subr.bf16.mxu0 %v7685
    %11410 = vmatpush2.bf16.msra.mxu0 %v7684
    %11411 = vmatprep.mubr.bf16.mxu0 %v1825
    %11412 = vmatmul.mubr.bf16.gmra.mxu0 %v1824
    %v11413 = vpop.f32.mrf.mxu0
    %v11414 = vadd.f32 %v11373, %v11413
    %v11415 = vpop.f32.mrf.mxu0
    %v11416 = vadd.f32 %v11375, %v11415
    %v11417 = vpop.f32.mrf.mxu0
    %v11418 = vpop.f32.mrf.mxu0
    %11419 = vdwg.mxu0
    %11420 = vmatprep.subr.bf16.mxu0 %v7805
    %11421 = vmatpush1.bf16.msra.mxu0 %v7804
    %11422 = vmatprep.subr.bf16.mxu0 %v7797
    %11423 = vmatpush1.bf16.msra.mxu0 %v7796
    %11424 = vmatprep.subr.bf16.mxu0 %v7789
    %11425 = vmatpush1.bf16.msra.mxu0 %v7788
    %11426 = vmatprep.subr.bf16.mxu0 %v7781
    %11427 = vmatpush1.bf16.msra.mxu0 %v7780
    %11428 = vmatprep.subr.bf16.mxu0 %v7773
    %11429 = vmatpush1.bf16.msra.mxu0 %v7772
    %11430 = vmatprep.subr.bf16.mxu0 %v7765
    %11431 = vmatpush1.bf16.msra.mxu0 %v7764
    %11432 = vmatprep.subr.bf16.mxu0 %v7757
    %11433 = vmatpush1.bf16.msra.mxu0 %v7756
    %11434 = vmatprep.subr.bf16.mxu0 %v7749
    %11435 = vmatpush1.bf16.msra.mxu0 %v7748
    %11436 = vmatprep.subr.bf16.mxu0 %v7869
    %11437 = vmatpush2.bf16.msra.mxu0 %v7868
    %11438 = vmatprep.subr.bf16.mxu0 %v7861
    %11439 = vmatpush2.bf16.msra.mxu0 %v7860
    %11440 = vmatprep.subr.bf16.mxu0 %v7853
    %11441 = vmatpush2.bf16.msra.mxu0 %v7852
    %11442 = vmatprep.subr.bf16.mxu0 %v7845
    %11443 = vmatpush2.bf16.msra.mxu0 %v7844
    %11444 = vmatprep.subr.bf16.mxu0 %v7837
    %11445 = vmatpush2.bf16.msra.mxu0 %v7836
    %11446 = vmatprep.subr.bf16.mxu0 %v7829
    %11447 = vmatpush2.bf16.msra.mxu0 %v7828
    %11448 = vmatprep.subr.bf16.mxu0 %v7821
    %11449 = vmatpush2.bf16.msra.mxu0 %v7820
    %11450 = vmatprep.subr.bf16.mxu0 %v7813
    %11451 = vmatpush2.bf16.msra.mxu0 %v7812
    %11452 = vmatprep.mubr.bf16.mxu0 %v1827
    %11453 = vmatmul.mubr.bf16.gmra.mxu0 %v1826
    %v11454 = vpop.f32.mrf.mxu0
    %v11455 = vadd.f32 %v11414, %v11454
    %v11456 = vpop.f32.mrf.mxu0
    %v11457 = vadd.f32 %v11416, %v11456
    %v11458 = vpop.f32.mrf.mxu0
    %v11459 = vpop.f32.mrf.mxu0
    %11460 = vdwg.mxu0
    %11461 = vmatprep.subr.bf16.mxu0 %v7933
    %11462 = vmatpush1.bf16.msra.mxu0 %v7932
    %11463 = vmatprep.subr.bf16.mxu0 %v7925
    %11464 = vmatpush1.bf16.msra.mxu0 %v7924
    %11465 = vmatprep.subr.bf16.mxu0 %v7917
    %11466 = vmatpush1.bf16.msra.mxu0 %v7916
    %11467 = vmatprep.subr.bf16.mxu0 %v7909
    %11468 = vmatpush1.bf16.msra.mxu0 %v7908
    %11469 = vmatprep.subr.bf16.mxu0 %v7901
    %11470 = vmatpush1.bf16.msra.mxu0 %v7900
    %11471 = vmatprep.subr.bf16.mxu0 %v7893
    %11472 = vmatpush1.bf16.msra.mxu0 %v7892
    %11473 = vmatprep.subr.bf16.mxu0 %v7885
    %11474 = vmatpush1.bf16.msra.mxu0 %v7884
    %11475 = vmatprep.subr.bf16.mxu0 %v7877
    %11476 = vmatpush1.bf16.msra.mxu0 %v7876
    %11477 = vmatprep.subr.bf16.mxu0 %v7997
    %11478 = vmatpush2.bf16.msra.mxu0 %v7996
    %11479 = vmatprep.subr.bf16.mxu0 %v7989
    %11480 = vmatpush2.bf16.msra.mxu0 %v7988
    %11481 = vmatprep.subr.bf16.mxu0 %v7981
    %11482 = vmatpush2.bf16.msra.mxu0 %v7980
    %11483 = vmatprep.subr.bf16.mxu0 %v7973
    %11484 = vmatpush2.bf16.msra.mxu0 %v7972
    %11485 = vmatprep.subr.bf16.mxu0 %v7965
    %11486 = vmatpush2.bf16.msra.mxu0 %v7964
    %11487 = vmatprep.subr.bf16.mxu0 %v7957
    %11488 = vmatpush2.bf16.msra.mxu0 %v7956
    %11489 = vmatprep.subr.bf16.mxu0 %v7949
    %11490 = vmatpush2.bf16.msra.mxu0 %v7948
    %11491 = vmatprep.subr.bf16.mxu0 %v7941
    %11492 = vmatpush2.bf16.msra.mxu0 %v7940
    %11493 = vmatprep.mubr.bf16.mxu0 %v1829
    %11494 = vmatmul.mubr.bf16.gmra.mxu0 %v1828
    %v11495 = vpop.f32.mrf.mxu0
    %v11496 = vadd.f32 %v11455, %v11495
    %v11497 = vpop.f32.mrf.mxu0
    %v11498 = vadd.f32 %v11457, %v11497
    %v11499 = vpop.f32.mrf.mxu0
    %v11500 = vpop.f32.mrf.mxu0
    %11501 = vdwg.mxu0
    %v11502 = vmax.f32 %v10020, 0.0
    %v11503 = vmax.f32 %v10022, 0.0
    %v11504 = vmax.f32 %v10512, 0.0
    %v11505 = vmax.f32 %v10514, 0.0
    %v11506 = vmax.f32 %v11004, 0.0
    %v11507 = vmax.f32 %v11006, 0.0
    %v11508 = vmax.f32 %v11496, 0.0
    %v11509 = vmax.f32 %v11498, 0.0
    %v11510 = vpack.c.bf16 %v11502, %v11502
    %v11511 = vpack.c.bf16 %v11503, %v11503
    %v11512 = vpack.c.bf16 %v11504, %v11504
    %v11513 = vpack.c.bf16 %v11505, %v11505
    %v11514 = vpack.c.bf16 %v11506, %v11506
    %v11515 = vpack.c.bf16 %v11507, %v11507
    %v11516 = vpack.c.bf16 %v11508, %v11508
    %v11517 = vpack.c.bf16 %v11509, %v11509
    %v11518 = vld [vmem:[#allocation8] sm:$0xff]
    %v11519 = vld [vmem:[#allocation8 + $0x8] sm:$0xff]
    %v11520 = vld [vmem:[#allocation8 + $0x10] sm:$0xff]
    %v11521 = vld [vmem:[#allocation8 + $0x18] sm:$0xff]
    %v11522 = vld [vmem:[#allocation8 + $0x20] sm:$0xff]
    %v11523 = vld [vmem:[#allocation8 + $0x28] sm:$0xff]
    %v11524 = vld [vmem:[#allocation8 + $0x30] sm:$0xff]
    %v11525 = vld [vmem:[#allocation8 + $0x38] sm:$0xff]
    %v11526 = vld [vmem:[#allocation8 + $0x40] sm:$0xff]
    %v11527 = vld [vmem:[#allocation8 + $0x48] sm:$0xff]
    %v11528 = vld [vmem:[#allocation8 + $0x50] sm:$0xff]
    %v11529 = vld [vmem:[#allocation8 + $0x58] sm:$0xff]
    %v11530 = vld [vmem:[#allocation8 + $0x60] sm:$0xff]
    %v11531 = vld [vmem:[#allocation8 + $0x68] sm:$0xff]
    %v11532 = vld [vmem:[#allocation8 + $0x70] sm:$0xff]
    %v11533 = vld [vmem:[#allocation8 + $0x78] sm:$0xff]
    %v11534 = vld [vmem:[#allocation8 + $0x80] sm:$0xff]
    %v11535 = vld [vmem:[#allocation8 + $0x88] sm:$0xff]
    %v11536 = vld [vmem:[#allocation8 + $0x90] sm:$0xff]
    %v11537 = vld [vmem:[#allocation8 + $0x98] sm:$0xff]
    %v11538 = vld [vmem:[#allocation8 + $0xa0] sm:$0xff]
    %v11539 = vld [vmem:[#allocation8 + $0xa8] sm:$0xff]
    %v11540 = vld [vmem:[#allocation8 + $0xb0] sm:$0xff]
    %v11541 = vld [vmem:[#allocation8 + $0xb8] sm:$0xff]
    %v11542 = vld [vmem:[#allocation8 + $0xc0] sm:$0xff]
    %v11543 = vld [vmem:[#allocation8 + $0xc8] sm:$0xff]
    %v11544 = vld [vmem:[#allocation8 + $0xd0] sm:$0xff]
    %v11545 = vld [vmem:[#allocation8 + $0xd8] sm:$0xff]
    %v11546 = vld [vmem:[#allocation8 + $0xe0] sm:$0xff]
    %v11547 = vld [vmem:[#allocation8 + $0xe8] sm:$0xff]
    %v11548 = vld [vmem:[#allocation8 + $0xf0] sm:$0xff]
    %v11549 = vld [vmem:[#allocation8 + $0xf8] sm:$0xff]
    %v11550 = vld [vmem:[#allocation8 + $0x100] sm:$0xff]
    %v11551 = vld [vmem:[#allocation8 + $0x108] sm:$0xff]
    %v11552 = vld [vmem:[#allocation8 + $0x110] sm:$0xff]
    %v11553 = vld [vmem:[#allocation8 + $0x118] sm:$0xff]
    %v11554 = vld [vmem:[#allocation8 + $0x120] sm:$0xff]
    %v11555 = vld [vmem:[#allocation8 + $0x128] sm:$0xff]
    %v11556 = vld [vmem:[#allocation8 + $0x130] sm:$0xff]
    %v11557 = vld [vmem:[#allocation8 + $0x138] sm:$0xff]
    %v11558 = vld [vmem:[#allocation8 + $0x140] sm:$0xff]
    %v11559 = vld [vmem:[#allocation8 + $0x148] sm:$0xff]
    %v11560 = vld [vmem:[#allocation8 + $0x150] sm:$0xff]
    %v11561 = vld [vmem:[#allocation8 + $0x158] sm:$0xff]
    %v11562 = vld [vmem:[#allocation8 + $0x160] sm:$0xff]
    %v11563 = vld [vmem:[#allocation8 + $0x168] sm:$0xff]
    %v11564 = vld [vmem:[#allocation8 + $0x170] sm:$0xff]
    %v11565 = vld [vmem:[#allocation8 + $0x178] sm:$0xff]
    %v11566 = vld [vmem:[#allocation8 + $0x180] sm:$0xff]
    %v11567 = vld [vmem:[#allocation8 + $0x188] sm:$0xff]
    %v11568 = vld [vmem:[#allocation8 + $0x190] sm:$0xff]
    %v11569 = vld [vmem:[#allocation8 + $0x198] sm:$0xff]
    %v11570 = vld [vmem:[#allocation8 + $0x1a0] sm:$0xff]
    %v11571 = vld [vmem:[#allocation8 + $0x1a8] sm:$0xff]
    %v11572 = vld [vmem:[#allocation8 + $0x1b0] sm:$0xff]
    %v11573 = vld [vmem:[#allocation8 + $0x1b8] sm:$0xff]
    %v11574 = vld [vmem:[#allocation8 + $0x1c0] sm:$0xff]
    %v11575 = vld [vmem:[#allocation8 + $0x1c8] sm:$0xff]
    %v11576 = vld [vmem:[#allocation8 + $0x1d0] sm:$0xff]
    %v11577 = vld [vmem:[#allocation8 + $0x1d8] sm:$0xff]
    %v11578 = vld [vmem:[#allocation8 + $0x1e0] sm:$0xff]
    %v11579 = vld [vmem:[#allocation8 + $0x1e8] sm:$0xff]
    %v11580 = vld [vmem:[#allocation8 + $0x1f0] sm:$0xff]
    %v11581 = vld [vmem:[#allocation8 + $0x1f8] sm:$0xff]
    %v11582 = vld [vmem:[#allocation8 + $0x200] sm:$0xff]
    %v11583 = vld [vmem:[#allocation8 + $0x208] sm:$0xff]
    %v11584 = vld [vmem:[#allocation8 + $0x210] sm:$0xff]
    %v11585 = vld [vmem:[#allocation8 + $0x218] sm:$0xff]
    %v11586 = vld [vmem:[#allocation8 + $0x220] sm:$0xff]
    %v11587 = vld [vmem:[#allocation8 + $0x228] sm:$0xff]
    %v11588 = vld [vmem:[#allocation8 + $0x230] sm:$0xff]
    %v11589 = vld [vmem:[#allocation8 + $0x238] sm:$0xff]
    %v11590 = vld [vmem:[#allocation8 + $0x240] sm:$0xff]
    %v11591 = vld [vmem:[#allocation8 + $0x248] sm:$0xff]
    %v11592 = vld [vmem:[#allocation8 + $0x250] sm:$0xff]
    %v11593 = vld [vmem:[#allocation8 + $0x258] sm:$0xff]
    %v11594 = vld [vmem:[#allocation8 + $0x260] sm:$0xff]
    %v11595 = vld [vmem:[#allocation8 + $0x268] sm:$0xff]
    %v11596 = vld [vmem:[#allocation8 + $0x270] sm:$0xff]
    %v11597 = vld [vmem:[#allocation8 + $0x278] sm:$0xff]
    %v11598 = vld [vmem:[#allocation8 + $0x280] sm:$0xff]
    %v11599 = vld [vmem:[#allocation8 + $0x288] sm:$0xff]
    %v11600 = vld [vmem:[#allocation8 + $0x290] sm:$0xff]
    %v11601 = vld [vmem:[#allocation8 + $0x298] sm:$0xff]
    %v11602 = vld [vmem:[#allocation8 + $0x2a0] sm:$0xff]
    %v11603 = vld [vmem:[#allocation8 + $0x2a8] sm:$0xff]
    %v11604 = vld [vmem:[#allocation8 + $0x2b0] sm:$0xff]
    %v11605 = vld [vmem:[#allocation8 + $0x2b8] sm:$0xff]
    %v11606 = vld [vmem:[#allocation8 + $0x2c0] sm:$0xff]
    %v11607 = vld [vmem:[#allocation8 + $0x2c8] sm:$0xff]
    %v11608 = vld [vmem:[#allocation8 + $0x2d0] sm:$0xff]
    %v11609 = vld [vmem:[#allocation8 + $0x2d8] sm:$0xff]
    %v11610 = vld [vmem:[#allocation8 + $0x2e0] sm:$0xff]
    %v11611 = vld [vmem:[#allocation8 + $0x2e8] sm:$0xff]
    %v11612 = vld [vmem:[#allocation8 + $0x2f0] sm:$0xff]
    %v11613 = vld [vmem:[#allocation8 + $0x2f8] sm:$0xff]
    %v11614 = vld [vmem:[#allocation8 + $0x300] sm:$0xff]
    %v11615 = vld [vmem:[#allocation8 + $0x308] sm:$0xff]
    %v11616 = vld [vmem:[#allocation8 + $0x310] sm:$0xff]
    %v11617 = vld [vmem:[#allocation8 + $0x318] sm:$0xff]
    %v11618 = vld [vmem:[#allocation8 + $0x320] sm:$0xff]
    %v11619 = vld [vmem:[#allocation8 + $0x328] sm:$0xff]
    %v11620 = vld [vmem:[#allocation8 + $0x330] sm:$0xff]
    %v11621 = vld [vmem:[#allocation8 + $0x338] sm:$0xff]
    %v11622 = vld [vmem:[#allocation8 + $0x340] sm:$0xff]
    %v11623 = vld [vmem:[#allocation8 + $0x348] sm:$0xff]
    %v11624 = vld [vmem:[#allocation8 + $0x350] sm:$0xff]
    %v11625 = vld [vmem:[#allocation8 + $0x358] sm:$0xff]
    %v11626 = vld [vmem:[#allocation8 + $0x360] sm:$0xff]
    %v11627 = vld [vmem:[#allocation8 + $0x368] sm:$0xff]
    %v11628 = vld [vmem:[#allocation8 + $0x370] sm:$0xff]
    %v11629 = vld [vmem:[#allocation8 + $0x378] sm:$0xff]
    %v11630 = vld [vmem:[#allocation8 + $0x380] sm:$0xff]
    %v11631 = vld [vmem:[#allocation8 + $0x388] sm:$0xff]
    %v11632 = vld [vmem:[#allocation8 + $0x390] sm:$0xff]
    %v11633 = vld [vmem:[#allocation8 + $0x398] sm:$0xff]
    %v11634 = vld [vmem:[#allocation8 + $0x3a0] sm:$0xff]
    %v11635 = vld [vmem:[#allocation8 + $0x3a8] sm:$0xff]
    %v11636 = vld [vmem:[#allocation8 + $0x3b0] sm:$0xff]
    %v11637 = vld [vmem:[#allocation8 + $0x3b8] sm:$0xff]
    %v11638 = vld [vmem:[#allocation8 + $0x3c0] sm:$0xff]
    %v11639 = vld [vmem:[#allocation8 + $0x3c8] sm:$0xff]
    %v11640 = vld [vmem:[#allocation8 + $0x3d0] sm:$0xff]
    %v11641 = vld [vmem:[#allocation8 + $0x3d8] sm:$0xff]
    %v11642 = vld [vmem:[#allocation8 + $0x3e0] sm:$0xff]
    %v11643 = vld [vmem:[#allocation8 + $0x3e8] sm:$0xff]
    %v11644 = vld [vmem:[#allocation8 + $0x3f0] sm:$0xff]
    %v11645 = vld [vmem:[#allocation8 + $0x3f8] sm:$0xff]
    %v11646 = vld [vmem:[#allocation8 + $0x400] sm:$0xff]
    %v11647 = vld [vmem:[#allocation8 + $0x408] sm:$0xff]
    %v11648 = vld [vmem:[#allocation8 + $0x410] sm:$0xff]
    %v11649 = vld [vmem:[#allocation8 + $0x418] sm:$0xff]
    %v11650 = vld [vmem:[#allocation8 + $0x420] sm:$0xff]
    %v11651 = vld [vmem:[#allocation8 + $0x428] sm:$0xff]
    %v11652 = vld [vmem:[#allocation8 + $0x430] sm:$0xff]
    %v11653 = vld [vmem:[#allocation8 + $0x438] sm:$0xff]
    %v11654 = vld [vmem:[#allocation8 + $0x440] sm:$0xff]
    %v11655 = vld [vmem:[#allocation8 + $0x448] sm:$0xff]
    %v11656 = vld [vmem:[#allocation8 + $0x450] sm:$0xff]
    %v11657 = vld [vmem:[#allocation8 + $0x458] sm:$0xff]
    %v11658 = vld [vmem:[#allocation8 + $0x460] sm:$0xff]
    %v11659 = vld [vmem:[#allocation8 + $0x468] sm:$0xff]
    %v11660 = vld [vmem:[#allocation8 + $0x470] sm:$0xff]
    %v11661 = vld [vmem:[#allocation8 + $0x478] sm:$0xff]
    %v11662 = vld [vmem:[#allocation8 + $0x480] sm:$0xff]
    %v11663 = vld [vmem:[#allocation8 + $0x488] sm:$0xff]
    %v11664 = vld [vmem:[#allocation8 + $0x490] sm:$0xff]
    %v11665 = vld [vmem:[#allocation8 + $0x498] sm:$0xff]
    %v11666 = vld [vmem:[#allocation8 + $0x4a0] sm:$0xff]
    %v11667 = vld [vmem:[#allocation8 + $0x4a8] sm:$0xff]
    %v11668 = vld [vmem:[#allocation8 + $0x4b0] sm:$0xff]
    %v11669 = vld [vmem:[#allocation8 + $0x4b8] sm:$0xff]
    %v11670 = vld [vmem:[#allocation8 + $0x4c0] sm:$0xff]
    %v11671 = vld [vmem:[#allocation8 + $0x4c8] sm:$0xff]
    %v11672 = vld [vmem:[#allocation8 + $0x4d0] sm:$0xff]
    %v11673 = vld [vmem:[#allocation8 + $0x4d8] sm:$0xff]
    %v11674 = vld [vmem:[#allocation8 + $0x4e0] sm:$0xff]
    %v11675 = vld [vmem:[#allocation8 + $0x4e8] sm:$0xff]
    %v11676 = vld [vmem:[#allocation8 + $0x4f0] sm:$0xff]
    %v11677 = vld [vmem:[#allocation8 + $0x4f8] sm:$0xff]
    %v11678 = vld [vmem:[#allocation8 + $0x500] sm:$0xff]
    %v11679 = vld [vmem:[#allocation8 + $0x508] sm:$0xff]
    %v11680 = vld [vmem:[#allocation8 + $0x510] sm:$0xff]
    %v11681 = vld [vmem:[#allocation8 + $0x518] sm:$0xff]
    %v11682 = vld [vmem:[#allocation8 + $0x520] sm:$0xff]
    %v11683 = vld [vmem:[#allocation8 + $0x528] sm:$0xff]
    %v11684 = vld [vmem:[#allocation8 + $0x530] sm:$0xff]
    %v11685 = vld [vmem:[#allocation8 + $0x538] sm:$0xff]
    %v11686 = vld [vmem:[#allocation8 + $0x540] sm:$0xff]
    %v11687 = vld [vmem:[#allocation8 + $0x548] sm:$0xff]
    %v11688 = vld [vmem:[#allocation8 + $0x550] sm:$0xff]
    %v11689 = vld [vmem:[#allocation8 + $0x558] sm:$0xff]
    %v11690 = vld [vmem:[#allocation8 + $0x560] sm:$0xff]
    %v11691 = vld [vmem:[#allocation8 + $0x568] sm:$0xff]
    %v11692 = vld [vmem:[#allocation8 + $0x570] sm:$0xff]
    %v11693 = vld [vmem:[#allocation8 + $0x578] sm:$0xff]
    %v11694 = vld [vmem:[#allocation8 + $0x580] sm:$0xff]
    %v11695 = vld [vmem:[#allocation8 + $0x588] sm:$0xff]
    %v11696 = vld [vmem:[#allocation8 + $0x590] sm:$0xff]
    %v11697 = vld [vmem:[#allocation8 + $0x598] sm:$0xff]
    %v11698 = vld [vmem:[#allocation8 + $0x5a0] sm:$0xff]
    %v11699 = vld [vmem:[#allocation8 + $0x5a8] sm:$0xff]
    %v11700 = vld [vmem:[#allocation8 + $0x5b0] sm:$0xff]
    %v11701 = vld [vmem:[#allocation8 + $0x5b8] sm:$0xff]
    %v11702 = vld [vmem:[#allocation8 + $0x5c0] sm:$0xff]
    %v11703 = vld [vmem:[#allocation8 + $0x5c8] sm:$0xff]
    %v11704 = vld [vmem:[#allocation8 + $0x5d0] sm:$0xff]
    %v11705 = vld [vmem:[#allocation8 + $0x5d8] sm:$0xff]
    %v11706 = vld [vmem:[#allocation8 + $0x5e0] sm:$0xff]
    %v11707 = vld [vmem:[#allocation8 + $0x5e8] sm:$0xff]
    %v11708 = vld [vmem:[#allocation8 + $0x5f0] sm:$0xff]
    %v11709 = vld [vmem:[#allocation8 + $0x5f8] sm:$0xff]
    %v11710 = vld [vmem:[#allocation8 + $0x600] sm:$0xff]
    %v11711 = vld [vmem:[#allocation8 + $0x608] sm:$0xff]
    %v11712 = vld [vmem:[#allocation8 + $0x610] sm:$0xff]
    %v11713 = vld [vmem:[#allocation8 + $0x618] sm:$0xff]
    %v11714 = vld [vmem:[#allocation8 + $0x620] sm:$0xff]
    %v11715 = vld [vmem:[#allocation8 + $0x628] sm:$0xff]
    %v11716 = vld [vmem:[#allocation8 + $0x630] sm:$0xff]
    %v11717 = vld [vmem:[#allocation8 + $0x638] sm:$0xff]
    %v11718 = vld [vmem:[#allocation8 + $0x640] sm:$0xff]
    %v11719 = vld [vmem:[#allocation8 + $0x648] sm:$0xff]
    %v11720 = vld [vmem:[#allocation8 + $0x650] sm:$0xff]
    %v11721 = vld [vmem:[#allocation8 + $0x658] sm:$0xff]
    %v11722 = vld [vmem:[#allocation8 + $0x660] sm:$0xff]
    %v11723 = vld [vmem:[#allocation8 + $0x668] sm:$0xff]
    %v11724 = vld [vmem:[#allocation8 + $0x670] sm:$0xff]
    %v11725 = vld [vmem:[#allocation8 + $0x678] sm:$0xff]
    %v11726 = vld [vmem:[#allocation8 + $0x680] sm:$0xff]
    %v11727 = vld [vmem:[#allocation8 + $0x688] sm:$0xff]
    %v11728 = vld [vmem:[#allocation8 + $0x690] sm:$0xff]
    %v11729 = vld [vmem:[#allocation8 + $0x698] sm:$0xff]
    %v11730 = vld [vmem:[#allocation8 + $0x6a0] sm:$0xff]
    %v11731 = vld [vmem:[#allocation8 + $0x6a8] sm:$0xff]
    %v11732 = vld [vmem:[#allocation8 + $0x6b0] sm:$0xff]
    %v11733 = vld [vmem:[#allocation8 + $0x6b8] sm:$0xff]
    %v11734 = vld [vmem:[#allocation8 + $0x6c0] sm:$0xff]
    %v11735 = vld [vmem:[#allocation8 + $0x6c8] sm:$0xff]
    %v11736 = vld [vmem:[#allocation8 + $0x6d0] sm:$0xff]
    %v11737 = vld [vmem:[#allocation8 + $0x6d8] sm:$0xff]
    %v11738 = vld [vmem:[#allocation8 + $0x6e0] sm:$0xff]
    %v11739 = vld [vmem:[#allocation8 + $0x6e8] sm:$0xff]
    %v11740 = vld [vmem:[#allocation8 + $0x6f0] sm:$0xff]
    %v11741 = vld [vmem:[#allocation8 + $0x6f8] sm:$0xff]
    %v11742 = vld [vmem:[#allocation8 + $0x700] sm:$0xff]
    %v11743 = vld [vmem:[#allocation8 + $0x708] sm:$0xff]
    %v11744 = vld [vmem:[#allocation8 + $0x710] sm:$0xff]
    %v11745 = vld [vmem:[#allocation8 + $0x718] sm:$0xff]
    %v11746 = vld [vmem:[#allocation8 + $0x720] sm:$0xff]
    %v11747 = vld [vmem:[#allocation8 + $0x728] sm:$0xff]
    %v11748 = vld [vmem:[#allocation8 + $0x730] sm:$0xff]
    %v11749 = vld [vmem:[#allocation8 + $0x738] sm:$0xff]
    %v11750 = vld [vmem:[#allocation8 + $0x740] sm:$0xff]
    %v11751 = vld [vmem:[#allocation8 + $0x748] sm:$0xff]
    %v11752 = vld [vmem:[#allocation8 + $0x750] sm:$0xff]
    %v11753 = vld [vmem:[#allocation8 + $0x758] sm:$0xff]
    %v11754 = vld [vmem:[#allocation8 + $0x760] sm:$0xff]
    %v11755 = vld [vmem:[#allocation8 + $0x768] sm:$0xff]
    %v11756 = vld [vmem:[#allocation8 + $0x770] sm:$0xff]
    %v11757 = vld [vmem:[#allocation8 + $0x778] sm:$0xff]
    %v11758 = vld [vmem:[#allocation8 + $0x780] sm:$0xff]
    %v11759 = vld [vmem:[#allocation8 + $0x788] sm:$0xff]
    %v11760 = vld [vmem:[#allocation8 + $0x790] sm:$0xff]
    %v11761 = vld [vmem:[#allocation8 + $0x798] sm:$0xff]
    %v11762 = vld [vmem:[#allocation8 + $0x7a0] sm:$0xff]
    %v11763 = vld [vmem:[#allocation8 + $0x7a8] sm:$0xff]
    %v11764 = vld [vmem:[#allocation8 + $0x7b0] sm:$0xff]
    %v11765 = vld [vmem:[#allocation8 + $0x7b8] sm:$0xff]
    %v11766 = vld [vmem:[#allocation8 + $0x7c0] sm:$0xff]
    %v11767 = vld [vmem:[#allocation8 + $0x7c8] sm:$0xff]
    %v11768 = vld [vmem:[#allocation8 + $0x7d0] sm:$0xff]
    %v11769 = vld [vmem:[#allocation8 + $0x7d8] sm:$0xff]
    %v11770 = vld [vmem:[#allocation8 + $0x7e0] sm:$0xff]
    %v11771 = vld [vmem:[#allocation8 + $0x7e8] sm:$0xff]
    %v11772 = vld [vmem:[#allocation8 + $0x7f0] sm:$0xff]
    %v11773 = vld [vmem:[#allocation8 + $0x7f8] sm:$0xff]
    %v11774 = vld [vmem:[#allocation10] sm:$0xf]
    %v11776 = vlaneseq
    %v11777 = vshrl.u32 %v11776, 7
    %v11778 = vsub.s32 0, %v11777
    %v11779 = vrot.slane %v11774, %v11778
    %v11780 = vlaneseq
    %v11781 = vshrl.u32 %v11780, 7
    %v11782 = vsub.s32 1, %v11781
    %v11783 = vrot.slane %v11774, %v11782
    %v11784 = vlaneseq
    %v11785 = vshrl.u32 %v11784, 7
    %v11786 = vsub.s32 2, %v11785
    %v11787 = vrot.slane %v11774, %v11786
    %v11788 = vlaneseq
    %v11789 = vshrl.u32 %v11788, 7
    %v11790 = vsub.s32 3, %v11789
    %v11791 = vrot.slane %v11774, %v11790
    %v12052 = vunpack.c.l.b16 %v11518
    %v12053 = vunpack.c.h.b16 %v11518
    %v12054 = vunpack.c.l.b16 %v11519
    %v12055 = vunpack.c.h.b16 %v11519
    %v12056 = vunpack.c.l.b16 %v11520
    %v12057 = vunpack.c.h.b16 %v11520
    %v12058 = vunpack.c.l.b16 %v11521
    %v12059 = vunpack.c.h.b16 %v11521
    %v12060 = vunpack.c.l.b16 %v11522
    %v12061 = vunpack.c.h.b16 %v11522
    %v12062 = vunpack.c.l.b16 %v11523
    %v12063 = vunpack.c.h.b16 %v11523
    %v12064 = vunpack.c.l.b16 %v11524
    %v12065 = vunpack.c.h.b16 %v11524
    %v12066 = vunpack.c.l.b16 %v11525
    %v12067 = vunpack.c.h.b16 %v11525
    %v12068 = vunpack.c.l.b16 %v11526
    %v12069 = vunpack.c.h.b16 %v11526
    %v12070 = vunpack.c.l.b16 %v11527
    %v12071 = vunpack.c.h.b16 %v11527
    %v12072 = vunpack.c.l.b16 %v11528
    %v12073 = vunpack.c.h.b16 %v11528
    %v12074 = vunpack.c.l.b16 %v11529
    %v12075 = vunpack.c.h.b16 %v11529
    %v12076 = vunpack.c.l.b16 %v11530
    %v12077 = vunpack.c.h.b16 %v11530
    %v12078 = vunpack.c.l.b16 %v11531
    %v12079 = vunpack.c.h.b16 %v11531
    %v12080 = vunpack.c.l.b16 %v11532
    %v12081 = vunpack.c.h.b16 %v11532
    %v12082 = vunpack.c.l.b16 %v11533
    %v12083 = vunpack.c.h.b16 %v11533
    %v12084 = vunpack.c.l.b16 %v11534
    %v12085 = vunpack.c.h.b16 %v11534
    %v12086 = vunpack.c.l.b16 %v11535
    %v12087 = vunpack.c.h.b16 %v11535
    %v12088 = vunpack.c.l.b16 %v11536
    %v12089 = vunpack.c.h.b16 %v11536
    %v12090 = vunpack.c.l.b16 %v11537
    %v12091 = vunpack.c.h.b16 %v11537
    %v12092 = vunpack.c.l.b16 %v11538
    %v12093 = vunpack.c.h.b16 %v11538
    %v12094 = vunpack.c.l.b16 %v11539
    %v12095 = vunpack.c.h.b16 %v11539
    %v12096 = vunpack.c.l.b16 %v11540
    %v12097 = vunpack.c.h.b16 %v11540
    %v12098 = vunpack.c.l.b16 %v11541
    %v12099 = vunpack.c.h.b16 %v11541
    %v12100 = vunpack.c.l.b16 %v11542
    %v12101 = vunpack.c.h.b16 %v11542
    %v12102 = vunpack.c.l.b16 %v11543
    %v12103 = vunpack.c.h.b16 %v11543
    %v12104 = vunpack.c.l.b16 %v11544
    %v12105 = vunpack.c.h.b16 %v11544
    %v12106 = vunpack.c.l.b16 %v11545
    %v12107 = vunpack.c.h.b16 %v11545
    %v12108 = vunpack.c.l.b16 %v11546
    %v12109 = vunpack.c.h.b16 %v11546
    %v12110 = vunpack.c.l.b16 %v11547
    %v12111 = vunpack.c.h.b16 %v11547
    %v12112 = vunpack.c.l.b16 %v11548
    %v12113 = vunpack.c.h.b16 %v11548
    %v12114 = vunpack.c.l.b16 %v11549
    %v12115 = vunpack.c.h.b16 %v11549
    %v12116 = vunpack.c.l.b16 %v11550
    %v12117 = vunpack.c.h.b16 %v11550
    %v12118 = vunpack.c.l.b16 %v11551
    %v12119 = vunpack.c.h.b16 %v11551
    %v12120 = vunpack.c.l.b16 %v11552
    %v12121 = vunpack.c.h.b16 %v11552
    %v12122 = vunpack.c.l.b16 %v11553
    %v12123 = vunpack.c.h.b16 %v11553
    %v12124 = vunpack.c.l.b16 %v11554
    %v12125 = vunpack.c.h.b16 %v11554
    %v12126 = vunpack.c.l.b16 %v11555
    %v12127 = vunpack.c.h.b16 %v11555
    %v12128 = vunpack.c.l.b16 %v11556
    %v12129 = vunpack.c.h.b16 %v11556
    %v12130 = vunpack.c.l.b16 %v11557
    %v12131 = vunpack.c.h.b16 %v11557
    %v12132 = vunpack.c.l.b16 %v11558
    %v12133 = vunpack.c.h.b16 %v11558
    %v12134 = vunpack.c.l.b16 %v11559
    %v12135 = vunpack.c.h.b16 %v11559
    %v12136 = vunpack.c.l.b16 %v11560
    %v12137 = vunpack.c.h.b16 %v11560
    %v12138 = vunpack.c.l.b16 %v11561
    %v12139 = vunpack.c.h.b16 %v11561
    %v12140 = vunpack.c.l.b16 %v11562
    %v12141 = vunpack.c.h.b16 %v11562
    %v12142 = vunpack.c.l.b16 %v11563
    %v12143 = vunpack.c.h.b16 %v11563
    %v12144 = vunpack.c.l.b16 %v11564
    %v12145 = vunpack.c.h.b16 %v11564
    %v12146 = vunpack.c.l.b16 %v11565
    %v12147 = vunpack.c.h.b16 %v11565
    %v12148 = vunpack.c.l.b16 %v11566
    %v12149 = vunpack.c.h.b16 %v11566
    %v12150 = vunpack.c.l.b16 %v11567
    %v12151 = vunpack.c.h.b16 %v11567
    %v12152 = vunpack.c.l.b16 %v11568
    %v12153 = vunpack.c.h.b16 %v11568
    %v12154 = vunpack.c.l.b16 %v11569
    %v12155 = vunpack.c.h.b16 %v11569
    %v12156 = vunpack.c.l.b16 %v11570
    %v12157 = vunpack.c.h.b16 %v11570
    %v12158 = vunpack.c.l.b16 %v11571
    %v12159 = vunpack.c.h.b16 %v11571
    %v12160 = vunpack.c.l.b16 %v11572
    %v12161 = vunpack.c.h.b16 %v11572
    %v12162 = vunpack.c.l.b16 %v11573
    %v12163 = vunpack.c.h.b16 %v11573
    %v12164 = vunpack.c.l.b16 %v11574
    %v12165 = vunpack.c.h.b16 %v11574
    %v12166 = vunpack.c.l.b16 %v11575
    %v12167 = vunpack.c.h.b16 %v11575
    %v12168 = vunpack.c.l.b16 %v11576
    %v12169 = vunpack.c.h.b16 %v11576
    %v12170 = vunpack.c.l.b16 %v11577
    %v12171 = vunpack.c.h.b16 %v11577
    %v12172 = vunpack.c.l.b16 %v11578
    %v12173 = vunpack.c.h.b16 %v11578
    %v12174 = vunpack.c.l.b16 %v11579
    %v12175 = vunpack.c.h.b16 %v11579
    %v12176 = vunpack.c.l.b16 %v11580
    %v12177 = vunpack.c.h.b16 %v11580
    %v12178 = vunpack.c.l.b16 %v11581
    %v12179 = vunpack.c.h.b16 %v11581
    %v12180 = vunpack.c.l.b16 %v11582
    %v12181 = vunpack.c.h.b16 %v11582
    %v12182 = vunpack.c.l.b16 %v11583
    %v12183 = vunpack.c.h.b16 %v11583
    %v12184 = vunpack.c.l.b16 %v11584
    %v12185 = vunpack.c.h.b16 %v11584
    %v12186 = vunpack.c.l.b16 %v11585
    %v12187 = vunpack.c.h.b16 %v11585
    %v12188 = vunpack.c.l.b16 %v11586
    %v12189 = vunpack.c.h.b16 %v11586
    %v12190 = vunpack.c.l.b16 %v11587
    %v12191 = vunpack.c.h.b16 %v11587
    %v12192 = vunpack.c.l.b16 %v11588
    %v12193 = vunpack.c.h.b16 %v11588
    %v12194 = vunpack.c.l.b16 %v11589
    %v12195 = vunpack.c.h.b16 %v11589
    %v12196 = vunpack.c.l.b16 %v11590
    %v12197 = vunpack.c.h.b16 %v11590
    %v12198 = vunpack.c.l.b16 %v11591
    %v12199 = vunpack.c.h.b16 %v11591
    %v12200 = vunpack.c.l.b16 %v11592
    %v12201 = vunpack.c.h.b16 %v11592
    %v12202 = vunpack.c.l.b16 %v11593
    %v12203 = vunpack.c.h.b16 %v11593
    %v12204 = vunpack.c.l.b16 %v11594
    %v12205 = vunpack.c.h.b16 %v11594
    %v12206 = vunpack.c.l.b16 %v11595
    %v12207 = vunpack.c.h.b16 %v11595
    %v12208 = vunpack.c.l.b16 %v11596
    %v12209 = vunpack.c.h.b16 %v11596
    %v12210 = vunpack.c.l.b16 %v11597
    %v12211 = vunpack.c.h.b16 %v11597
    %v12212 = vunpack.c.l.b16 %v11598
    %v12213 = vunpack.c.h.b16 %v11598
    %v12214 = vunpack.c.l.b16 %v11599
    %v12215 = vunpack.c.h.b16 %v11599
    %v12216 = vunpack.c.l.b16 %v11600
    %v12217 = vunpack.c.h.b16 %v11600
    %v12218 = vunpack.c.l.b16 %v11601
    %v12219 = vunpack.c.h.b16 %v11601
    %v12220 = vunpack.c.l.b16 %v11602
    %v12221 = vunpack.c.h.b16 %v11602
    %v12222 = vunpack.c.l.b16 %v11603
    %v12223 = vunpack.c.h.b16 %v11603
    %v12224 = vunpack.c.l.b16 %v11604
    %v12225 = vunpack.c.h.b16 %v11604
    %v12226 = vunpack.c.l.b16 %v11605
    %v12227 = vunpack.c.h.b16 %v11605
    %v12228 = vunpack.c.l.b16 %v11606
    %v12229 = vunpack.c.h.b16 %v11606
    %v12230 = vunpack.c.l.b16 %v11607
    %v12231 = vunpack.c.h.b16 %v11607
    %v12232 = vunpack.c.l.b16 %v11608
    %v12233 = vunpack.c.h.b16 %v11608
    %v12234 = vunpack.c.l.b16 %v11609
    %v12235 = vunpack.c.h.b16 %v11609
    %v12236 = vunpack.c.l.b16 %v11610
    %v12237 = vunpack.c.h.b16 %v11610
    %v12238 = vunpack.c.l.b16 %v11611
    %v12239 = vunpack.c.h.b16 %v11611
    %v12240 = vunpack.c.l.b16 %v11612
    %v12241 = vunpack.c.h.b16 %v11612
    %v12242 = vunpack.c.l.b16 %v11613
    %v12243 = vunpack.c.h.b16 %v11613
    %v12244 = vunpack.c.l.b16 %v11614
    %v12245 = vunpack.c.h.b16 %v11614
    %v12246 = vunpack.c.l.b16 %v11615
    %v12247 = vunpack.c.h.b16 %v11615
    %v12248 = vunpack.c.l.b16 %v11616
    %v12249 = vunpack.c.h.b16 %v11616
    %v12250 = vunpack.c.l.b16 %v11617
    %v12251 = vunpack.c.h.b16 %v11617
    %v12252 = vunpack.c.l.b16 %v11618
    %v12253 = vunpack.c.h.b16 %v11618
    %v12254 = vunpack.c.l.b16 %v11619
    %v12255 = vunpack.c.h.b16 %v11619
    %v12256 = vunpack.c.l.b16 %v11620
    %v12257 = vunpack.c.h.b16 %v11620
    %v12258 = vunpack.c.l.b16 %v11621
    %v12259 = vunpack.c.h.b16 %v11621
    %v12260 = vunpack.c.l.b16 %v11622
    %v12261 = vunpack.c.h.b16 %v11622
    %v12262 = vunpack.c.l.b16 %v11623
    %v12263 = vunpack.c.h.b16 %v11623
    %v12264 = vunpack.c.l.b16 %v11624
    %v12265 = vunpack.c.h.b16 %v11624
    %v12266 = vunpack.c.l.b16 %v11625
    %v12267 = vunpack.c.h.b16 %v11625
    %v12268 = vunpack.c.l.b16 %v11626
    %v12269 = vunpack.c.h.b16 %v11626
    %v12270 = vunpack.c.l.b16 %v11627
    %v12271 = vunpack.c.h.b16 %v11627
    %v12272 = vunpack.c.l.b16 %v11628
    %v12273 = vunpack.c.h.b16 %v11628
    %v12274 = vunpack.c.l.b16 %v11629
    %v12275 = vunpack.c.h.b16 %v11629
    %v12276 = vunpack.c.l.b16 %v11630
    %v12277 = vunpack.c.h.b16 %v11630
    %v12278 = vunpack.c.l.b16 %v11631
    %v12279 = vunpack.c.h.b16 %v11631
    %v12280 = vunpack.c.l.b16 %v11632
    %v12281 = vunpack.c.h.b16 %v11632
    %v12282 = vunpack.c.l.b16 %v11633
    %v12283 = vunpack.c.h.b16 %v11633
    %v12284 = vunpack.c.l.b16 %v11634
    %v12285 = vunpack.c.h.b16 %v11634
    %v12286 = vunpack.c.l.b16 %v11635
    %v12287 = vunpack.c.h.b16 %v11635
    %v12288 = vunpack.c.l.b16 %v11636
    %v12289 = vunpack.c.h.b16 %v11636
    %v12290 = vunpack.c.l.b16 %v11637
    %v12291 = vunpack.c.h.b16 %v11637
    %v12292 = vunpack.c.l.b16 %v11638
    %v12293 = vunpack.c.h.b16 %v11638
    %v12294 = vunpack.c.l.b16 %v11639
    %v12295 = vunpack.c.h.b16 %v11639
    %v12296 = vunpack.c.l.b16 %v11640
    %v12297 = vunpack.c.h.b16 %v11640
    %v12298 = vunpack.c.l.b16 %v11641
    %v12299 = vunpack.c.h.b16 %v11641
    %v12300 = vunpack.c.l.b16 %v11642
    %v12301 = vunpack.c.h.b16 %v11642
    %v12302 = vunpack.c.l.b16 %v11643
    %v12303 = vunpack.c.h.b16 %v11643
    %v12304 = vunpack.c.l.b16 %v11644
    %v12305 = vunpack.c.h.b16 %v11644
    %v12306 = vunpack.c.l.b16 %v11645
    %v12307 = vunpack.c.h.b16 %v11645
    %v12308 = vunpack.c.l.b16 %v11646
    %v12309 = vunpack.c.h.b16 %v11646
    %v12310 = vunpack.c.l.b16 %v11647
    %v12311 = vunpack.c.h.b16 %v11647
    %v12312 = vunpack.c.l.b16 %v11648
    %v12313 = vunpack.c.h.b16 %v11648
    %v12314 = vunpack.c.l.b16 %v11649
    %v12315 = vunpack.c.h.b16 %v11649
    %v12316 = vunpack.c.l.b16 %v11650
    %v12317 = vunpack.c.h.b16 %v11650
    %v12318 = vunpack.c.l.b16 %v11651
    %v12319 = vunpack.c.h.b16 %v11651
    %v12320 = vunpack.c.l.b16 %v11652
    %v12321 = vunpack.c.h.b16 %v11652
    %v12322 = vunpack.c.l.b16 %v11653
    %v12323 = vunpack.c.h.b16 %v11653
    %v12324 = vunpack.c.l.b16 %v11654
    %v12325 = vunpack.c.h.b16 %v11654
    %v12326 = vunpack.c.l.b16 %v11655
    %v12327 = vunpack.c.h.b16 %v11655
    %v12328 = vunpack.c.l.b16 %v11656
    %v12329 = vunpack.c.h.b16 %v11656
    %v12330 = vunpack.c.l.b16 %v11657
    %v12331 = vunpack.c.h.b16 %v11657
    %v12332 = vunpack.c.l.b16 %v11658
    %v12333 = vunpack.c.h.b16 %v11658
    %v12334 = vunpack.c.l.b16 %v11659
    %v12335 = vunpack.c.h.b16 %v11659
    %v12336 = vunpack.c.l.b16 %v11660
    %v12337 = vunpack.c.h.b16 %v11660
    %v12338 = vunpack.c.l.b16 %v11661
    %v12339 = vunpack.c.h.b16 %v11661
    %v12340 = vunpack.c.l.b16 %v11662
    %v12341 = vunpack.c.h.b16 %v11662
    %v12342 = vunpack.c.l.b16 %v11663
    %v12343 = vunpack.c.h.b16 %v11663
    %v12344 = vunpack.c.l.b16 %v11664
    %v12345 = vunpack.c.h.b16 %v11664
    %v12346 = vunpack.c.l.b16 %v11665
    %v12347 = vunpack.c.h.b16 %v11665
    %v12348 = vunpack.c.l.b16 %v11666
    %v12349 = vunpack.c.h.b16 %v11666
    %v12350 = vunpack.c.l.b16 %v11667
    %v12351 = vunpack.c.h.b16 %v11667
    %v12352 = vunpack.c.l.b16 %v11668
    %v12353 = vunpack.c.h.b16 %v11668
    %v12354 = vunpack.c.l.b16 %v11669
    %v12355 = vunpack.c.h.b16 %v11669
    %v12356 = vunpack.c.l.b16 %v11670
    %v12357 = vunpack.c.h.b16 %v11670
    %v12358 = vunpack.c.l.b16 %v11671
    %v12359 = vunpack.c.h.b16 %v11671
    %v12360 = vunpack.c.l.b16 %v11672
    %v12361 = vunpack.c.h.b16 %v11672
    %v12362 = vunpack.c.l.b16 %v11673
    %v12363 = vunpack.c.h.b16 %v11673
    %v12364 = vunpack.c.l.b16 %v11674
    %v12365 = vunpack.c.h.b16 %v11674
    %v12366 = vunpack.c.l.b16 %v11675
    %v12367 = vunpack.c.h.b16 %v11675
    %v12368 = vunpack.c.l.b16 %v11676
    %v12369 = vunpack.c.h.b16 %v11676
    %v12370 = vunpack.c.l.b16 %v11677
    %v12371 = vunpack.c.h.b16 %v11677
    %v12372 = vunpack.c.l.b16 %v11678
    %v12373 = vunpack.c.h.b16 %v11678
    %v12374 = vunpack.c.l.b16 %v11679
    %v12375 = vunpack.c.h.b16 %v11679
    %v12376 = vunpack.c.l.b16 %v11680
    %v12377 = vunpack.c.h.b16 %v11680
    %v12378 = vunpack.c.l.b16 %v11681
    %v12379 = vunpack.c.h.b16 %v11681
    %v12380 = vunpack.c.l.b16 %v11682
    %v12381 = vunpack.c.h.b16 %v11682
    %v12382 = vunpack.c.l.b16 %v11683
    %v12383 = vunpack.c.h.b16 %v11683
    %v12384 = vunpack.c.l.b16 %v11684
    %v12385 = vunpack.c.h.b16 %v11684
    %v12386 = vunpack.c.l.b16 %v11685
    %v12387 = vunpack.c.h.b16 %v11685
    %v12388 = vunpack.c.l.b16 %v11686
    %v12389 = vunpack.c.h.b16 %v11686
    %v12390 = vunpack.c.l.b16 %v11687
    %v12391 = vunpack.c.h.b16 %v11687
    %v12392 = vunpack.c.l.b16 %v11688
    %v12393 = vunpack.c.h.b16 %v11688
    %v12394 = vunpack.c.l.b16 %v11689
    %v12395 = vunpack.c.h.b16 %v11689
    %v12396 = vunpack.c.l.b16 %v11690
    %v12397 = vunpack.c.h.b16 %v11690
    %v12398 = vunpack.c.l.b16 %v11691
    %v12399 = vunpack.c.h.b16 %v11691
    %v12400 = vunpack.c.l.b16 %v11692
    %v12401 = vunpack.c.h.b16 %v11692
    %v12402 = vunpack.c.l.b16 %v11693
    %v12403 = vunpack.c.h.b16 %v11693
    %v12404 = vunpack.c.l.b16 %v11694
    %v12405 = vunpack.c.h.b16 %v11694
    %v12406 = vunpack.c.l.b16 %v11695
    %v12407 = vunpack.c.h.b16 %v11695
    %v12408 = vunpack.c.l.b16 %v11696
    %v12409 = vunpack.c.h.b16 %v11696
    %v12410 = vunpack.c.l.b16 %v11697
    %v12411 = vunpack.c.h.b16 %v11697
    %v12412 = vunpack.c.l.b16 %v11698
    %v12413 = vunpack.c.h.b16 %v11698
    %v12414 = vunpack.c.l.b16 %v11699
    %v12415 = vunpack.c.h.b16 %v11699
    %v12416 = vunpack.c.l.b16 %v11700
    %v12417 = vunpack.c.h.b16 %v11700
    %v12418 = vunpack.c.l.b16 %v11701
    %v12419 = vunpack.c.h.b16 %v11701
    %v12420 = vunpack.c.l.b16 %v11702
    %v12421 = vunpack.c.h.b16 %v11702
    %v12422 = vunpack.c.l.b16 %v11703
    %v12423 = vunpack.c.h.b16 %v11703
    %v12424 = vunpack.c.l.b16 %v11704
    %v12425 = vunpack.c.h.b16 %v11704
    %v12426 = vunpack.c.l.b16 %v11705
    %v12427 = vunpack.c.h.b16 %v11705
    %v12428 = vunpack.c.l.b16 %v11706
    %v12429 = vunpack.c.h.b16 %v11706
    %v12430 = vunpack.c.l.b16 %v11707
    %v12431 = vunpack.c.h.b16 %v11707
    %v12432 = vunpack.c.l.b16 %v11708
    %v12433 = vunpack.c.h.b16 %v11708
    %v12434 = vunpack.c.l.b16 %v11709
    %v12435 = vunpack.c.h.b16 %v11709
    %v12436 = vunpack.c.l.b16 %v11710
    %v12437 = vunpack.c.h.b16 %v11710
    %v12438 = vunpack.c.l.b16 %v11711
    %v12439 = vunpack.c.h.b16 %v11711
    %v12440 = vunpack.c.l.b16 %v11712
    %v12441 = vunpack.c.h.b16 %v11712
    %v12442 = vunpack.c.l.b16 %v11713
    %v12443 = vunpack.c.h.b16 %v11713
    %v12444 = vunpack.c.l.b16 %v11714
    %v12445 = vunpack.c.h.b16 %v11714
    %v12446 = vunpack.c.l.b16 %v11715
    %v12447 = vunpack.c.h.b16 %v11715
    %v12448 = vunpack.c.l.b16 %v11716
    %v12449 = vunpack.c.h.b16 %v11716
    %v12450 = vunpack.c.l.b16 %v11717
    %v12451 = vunpack.c.h.b16 %v11717
    %v12452 = vunpack.c.l.b16 %v11718
    %v12453 = vunpack.c.h.b16 %v11718
    %v12454 = vunpack.c.l.b16 %v11719
    %v12455 = vunpack.c.h.b16 %v11719
    %v12456 = vunpack.c.l.b16 %v11720
    %v12457 = vunpack.c.h.b16 %v11720
    %v12458 = vunpack.c.l.b16 %v11721
    %v12459 = vunpack.c.h.b16 %v11721
    %v12460 = vunpack.c.l.b16 %v11722
    %v12461 = vunpack.c.h.b16 %v11722
    %v12462 = vunpack.c.l.b16 %v11723
    %v12463 = vunpack.c.h.b16 %v11723
    %v12464 = vunpack.c.l.b16 %v11724
    %v12465 = vunpack.c.h.b16 %v11724
    %v12466 = vunpack.c.l.b16 %v11725
    %v12467 = vunpack.c.h.b16 %v11725
    %v12468 = vunpack.c.l.b16 %v11726
    %v12469 = vunpack.c.h.b16 %v11726
    %v12470 = vunpack.c.l.b16 %v11727
    %v12471 = vunpack.c.h.b16 %v11727
    %v12472 = vunpack.c.l.b16 %v11728
    %v12473 = vunpack.c.h.b16 %v11728
    %v12474 = vunpack.c.l.b16 %v11729
    %v12475 = vunpack.c.h.b16 %v11729
    %v12476 = vunpack.c.l.b16 %v11730
    %v12477 = vunpack.c.h.b16 %v11730
    %v12478 = vunpack.c.l.b16 %v11731
    %v12479 = vunpack.c.h.b16 %v11731
    %v12480 = vunpack.c.l.b16 %v11732
    %v12481 = vunpack.c.h.b16 %v11732
    %v12482 = vunpack.c.l.b16 %v11733
    %v12483 = vunpack.c.h.b16 %v11733
    %v12484 = vunpack.c.l.b16 %v11734
    %v12485 = vunpack.c.h.b16 %v11734
    %v12486 = vunpack.c.l.b16 %v11735
    %v12487 = vunpack.c.h.b16 %v11735
    %v12488 = vunpack.c.l.b16 %v11736
    %v12489 = vunpack.c.h.b16 %v11736
    %v12490 = vunpack.c.l.b16 %v11737
    %v12491 = vunpack.c.h.b16 %v11737
    %v12492 = vunpack.c.l.b16 %v11738
    %v12493 = vunpack.c.h.b16 %v11738
    %v12494 = vunpack.c.l.b16 %v11739
    %v12495 = vunpack.c.h.b16 %v11739
    %v12496 = vunpack.c.l.b16 %v11740
    %v12497 = vunpack.c.h.b16 %v11740
    %v12498 = vunpack.c.l.b16 %v11741
    %v12499 = vunpack.c.h.b16 %v11741
    %v12500 = vunpack.c.l.b16 %v11742
    %v12501 = vunpack.c.h.b16 %v11742
    %v12502 = vunpack.c.l.b16 %v11743
    %v12503 = vunpack.c.h.b16 %v11743
    %v12504 = vunpack.c.l.b16 %v11744
    %v12505 = vunpack.c.h.b16 %v11744
    %v12506 = vunpack.c.l.b16 %v11745
    %v12507 = vunpack.c.h.b16 %v11745
    %v12508 = vunpack.c.l.b16 %v11746
    %v12509 = vunpack.c.h.b16 %v11746
    %v12510 = vunpack.c.l.b16 %v11747
    %v12511 = vunpack.c.h.b16 %v11747
    %v12512 = vunpack.c.l.b16 %v11748
    %v12513 = vunpack.c.h.b16 %v11748
    %v12514 = vunpack.c.l.b16 %v11749
    %v12515 = vunpack.c.h.b16 %v11749
    %v12516 = vunpack.c.l.b16 %v11750
    %v12517 = vunpack.c.h.b16 %v11750
    %v12518 = vunpack.c.l.b16 %v11751
    %v12519 = vunpack.c.h.b16 %v11751
    %v12520 = vunpack.c.l.b16 %v11752
    %v12521 = vunpack.c.h.b16 %v11752
    %v12522 = vunpack.c.l.b16 %v11753
    %v12523 = vunpack.c.h.b16 %v11753
    %v12524 = vunpack.c.l.b16 %v11754
    %v12525 = vunpack.c.h.b16 %v11754
    %v12526 = vunpack.c.l.b16 %v11755
    %v12527 = vunpack.c.h.b16 %v11755
    %v12528 = vunpack.c.l.b16 %v11756
    %v12529 = vunpack.c.h.b16 %v11756
    %v12530 = vunpack.c.l.b16 %v11757
    %v12531 = vunpack.c.h.b16 %v11757
    %v12532 = vunpack.c.l.b16 %v11758
    %v12533 = vunpack.c.h.b16 %v11758
    %v12534 = vunpack.c.l.b16 %v11759
    %v12535 = vunpack.c.h.b16 %v11759
    %v12536 = vunpack.c.l.b16 %v11760
    %v12537 = vunpack.c.h.b16 %v11760
    %v12538 = vunpack.c.l.b16 %v11761
    %v12539 = vunpack.c.h.b16 %v11761
    %v12540 = vunpack.c.l.b16 %v11762
    %v12541 = vunpack.c.h.b16 %v11762
    %v12542 = vunpack.c.l.b16 %v11763
    %v12543 = vunpack.c.h.b16 %v11763
    %v12544 = vunpack.c.l.b16 %v11764
    %v12545 = vunpack.c.h.b16 %v11764
    %v12546 = vunpack.c.l.b16 %v11765
    %v12547 = vunpack.c.h.b16 %v11765
    %v12548 = vunpack.c.l.b16 %v11766
    %v12549 = vunpack.c.h.b16 %v11766
    %v12550 = vunpack.c.l.b16 %v11767
    %v12551 = vunpack.c.h.b16 %v11767
    %v12552 = vunpack.c.l.b16 %v11768
    %v12553 = vunpack.c.h.b16 %v11768
    %v12554 = vunpack.c.l.b16 %v11769
    %v12555 = vunpack.c.h.b16 %v11769
    %v12556 = vunpack.c.l.b16 %v11770
    %v12557 = vunpack.c.h.b16 %v11770
    %v12558 = vunpack.c.l.b16 %v11771
    %v12559 = vunpack.c.h.b16 %v11771
    %v12560 = vunpack.c.l.b16 %v11772
    %v12561 = vunpack.c.h.b16 %v11772
    %v12562 = vunpack.c.l.b16 %v11773
    %v12563 = vunpack.c.h.b16 %v11773
    %v12564 = vpack.c.b16 %v12056, %v12052
    %v12565 = vpack.c.b16 %v12057, %v12053
    %v12566 = vpack.c.b16 %v12058, %v12054
    %v12567 = vpack.c.b16 %v12059, %v12055
    %v12568 = vpack.c.b16 %v12064, %v12060
    %v12569 = vpack.c.b16 %v12065, %v12061
    %v12570 = vpack.c.b16 %v12066, %v12062
    %v12571 = vpack.c.b16 %v12067, %v12063
    %v12572 = vpack.c.b16 %v12072, %v12068
    %v12573 = vpack.c.b16 %v12073, %v12069
    %v12574 = vpack.c.b16 %v12074, %v12070
    %v12575 = vpack.c.b16 %v12075, %v12071
    %v12576 = vpack.c.b16 %v12080, %v12076
    %v12577 = vpack.c.b16 %v12081, %v12077
    %v12578 = vpack.c.b16 %v12082, %v12078
    %v12579 = vpack.c.b16 %v12083, %v12079
    %v12580 = vpack.c.b16 %v12088, %v12084
    %v12581 = vpack.c.b16 %v12089, %v12085
    %v12582 = vpack.c.b16 %v12090, %v12086
    %v12583 = vpack.c.b16 %v12091, %v12087
    %v12584 = vpack.c.b16 %v12096, %v12092
    %v12585 = vpack.c.b16 %v12097, %v12093
    %v12586 = vpack.c.b16 %v12098, %v12094
    %v12587 = vpack.c.b16 %v12099, %v12095
    %v12588 = vpack.c.b16 %v12104, %v12100
    %v12589 = vpack.c.b16 %v12105, %v12101
    %v12590 = vpack.c.b16 %v12106, %v12102
    %v12591 = vpack.c.b16 %v12107, %v12103
    %v12592 = vpack.c.b16 %v12112, %v12108
    %v12593 = vpack.c.b16 %v12113, %v12109
    %v12594 = vpack.c.b16 %v12114, %v12110
    %v12595 = vpack.c.b16 %v12115, %v12111
    %v12596 = vpack.c.b16 %v12120, %v12116
    %v12597 = vpack.c.b16 %v12121, %v12117
    %v12598 = vpack.c.b16 %v12122, %v12118
    %v12599 = vpack.c.b16 %v12123, %v12119
    %v12600 = vpack.c.b16 %v12128, %v12124
    %v12601 = vpack.c.b16 %v12129, %v12125
    %v12602 = vpack.c.b16 %v12130, %v12126
    %v12603 = vpack.c.b16 %v12131, %v12127
    %v12604 = vpack.c.b16 %v12136, %v12132
    %v12605 = vpack.c.b16 %v12137, %v12133
    %v12606 = vpack.c.b16 %v12138, %v12134
    %v12607 = vpack.c.b16 %v12139, %v12135
    %v12608 = vpack.c.b16 %v12144, %v12140
    %v12609 = vpack.c.b16 %v12145, %v12141
    %v12610 = vpack.c.b16 %v12146, %v12142
    %v12611 = vpack.c.b16 %v12147, %v12143
    %v12612 = vpack.c.b16 %v12152, %v12148
    %v12613 = vpack.c.b16 %v12153, %v12149
    %v12614 = vpack.c.b16 %v12154, %v12150
    %v12615 = vpack.c.b16 %v12155, %v12151
    %v12616 = vpack.c.b16 %v12160, %v12156
    %v12617 = vpack.c.b16 %v12161, %v12157
    %v12618 = vpack.c.b16 %v12162, %v12158
    %v12619 = vpack.c.b16 %v12163, %v12159
    %v12620 = vpack.c.b16 %v12168, %v12164
    %v12621 = vpack.c.b16 %v12169, %v12165
    %v12622 = vpack.c.b16 %v12170, %v12166
    %v12623 = vpack.c.b16 %v12171, %v12167
    %v12624 = vpack.c.b16 %v12176, %v12172
    %v12625 = vpack.c.b16 %v12177, %v12173
    %v12626 = vpack.c.b16 %v12178, %v12174
    %v12627 = vpack.c.b16 %v12179, %v12175
    %v12628 = vpack.c.b16 %v12184, %v12180
    %v12629 = vpack.c.b16 %v12185, %v12181
    %v12630 = vpack.c.b16 %v12186, %v12182
    %v12631 = vpack.c.b16 %v12187, %v12183
    %v12632 = vpack.c.b16 %v12192, %v12188
    %v12633 = vpack.c.b16 %v12193, %v12189
    %v12634 = vpack.c.b16 %v12194, %v12190
    %v12635 = vpack.c.b16 %v12195, %v12191
    %v12636 = vpack.c.b16 %v12200, %v12196
    %v12637 = vpack.c.b16 %v12201, %v12197
    %v12638 = vpack.c.b16 %v12202, %v12198
    %v12639 = vpack.c.b16 %v12203, %v12199
    %v12640 = vpack.c.b16 %v12208, %v12204
    %v12641 = vpack.c.b16 %v12209, %v12205
    %v12642 = vpack.c.b16 %v12210, %v12206
    %v12643 = vpack.c.b16 %v12211, %v12207
    %v12644 = vpack.c.b16 %v12216, %v12212
    %v12645 = vpack.c.b16 %v12217, %v12213
    %v12646 = vpack.c.b16 %v12218, %v12214
    %v12647 = vpack.c.b16 %v12219, %v12215
    %v12648 = vpack.c.b16 %v12224, %v12220
    %v12649 = vpack.c.b16 %v12225, %v12221
    %v12650 = vpack.c.b16 %v12226, %v12222
    %v12651 = vpack.c.b16 %v12227, %v12223
    %v12652 = vpack.c.b16 %v12232, %v12228
    %v12653 = vpack.c.b16 %v12233, %v12229
    %v12654 = vpack.c.b16 %v12234, %v12230
    %v12655 = vpack.c.b16 %v12235, %v12231
    %v12656 = vpack.c.b16 %v12240, %v12236
    %v12657 = vpack.c.b16 %v12241, %v12237
    %v12658 = vpack.c.b16 %v12242, %v12238
    %v12659 = vpack.c.b16 %v12243, %v12239
    %v12660 = vpack.c.b16 %v12248, %v12244
    %v12661 = vpack.c.b16 %v12249, %v12245
    %v12662 = vpack.c.b16 %v12250, %v12246
    %v12663 = vpack.c.b16 %v12251, %v12247
    %v12664 = vpack.c.b16 %v12256, %v12252
    %v12665 = vpack.c.b16 %v12257, %v12253
    %v12666 = vpack.c.b16 %v12258, %v12254
    %v12667 = vpack.c.b16 %v12259, %v12255
    %v12668 = vpack.c.b16 %v12264, %v12260
    %v12669 = vpack.c.b16 %v12265, %v12261
    %v12670 = vpack.c.b16 %v12266, %v12262
    %v12671 = vpack.c.b16 %v12267, %v12263
    %v12672 = vpack.c.b16 %v12272, %v12268
    %v12673 = vpack.c.b16 %v12273, %v12269
    %v12674 = vpack.c.b16 %v12274, %v12270
    %v12675 = vpack.c.b16 %v12275, %v12271
    %v12676 = vpack.c.b16 %v12280, %v12276
    %v12677 = vpack.c.b16 %v12281, %v12277
    %v12678 = vpack.c.b16 %v12282, %v12278
    %v12679 = vpack.c.b16 %v12283, %v12279
    %v12680 = vpack.c.b16 %v12288, %v12284
    %v12681 = vpack.c.b16 %v12289, %v12285
    %v12682 = vpack.c.b16 %v12290, %v12286
    %v12683 = vpack.c.b16 %v12291, %v12287
    %v12684 = vpack.c.b16 %v12296, %v12292
    %v12685 = vpack.c.b16 %v12297, %v12293
    %v12686 = vpack.c.b16 %v12298, %v12294
    %v12687 = vpack.c.b16 %v12299, %v12295
    %v12688 = vpack.c.b16 %v12304, %v12300
    %v12689 = vpack.c.b16 %v12305, %v12301
    %v12690 = vpack.c.b16 %v12306, %v12302
    %v12691 = vpack.c.b16 %v12307, %v12303
    %v12692 = vpack.c.b16 %v12312, %v12308
    %v12693 = vpack.c.b16 %v12313, %v12309
    %v12694 = vpack.c.b16 %v12314, %v12310
    %v12695 = vpack.c.b16 %v12315, %v12311
    %v12696 = vpack.c.b16 %v12320, %v12316
    %v12697 = vpack.c.b16 %v12321, %v12317
    %v12698 = vpack.c.b16 %v12322, %v12318
    %v12699 = vpack.c.b16 %v12323, %v12319
    %v12700 = vpack.c.b16 %v12328, %v12324
    %v12701 = vpack.c.b16 %v12329, %v12325
    %v12702 = vpack.c.b16 %v12330, %v12326
    %v12703 = vpack.c.b16 %v12331, %v12327
    %v12704 = vpack.c.b16 %v12336, %v12332
    %v12705 = vpack.c.b16 %v12337, %v12333
    %v12706 = vpack.c.b16 %v12338, %v12334
    %v12707 = vpack.c.b16 %v12339, %v12335
    %v12708 = vpack.c.b16 %v12344, %v12340
    %v12709 = vpack.c.b16 %v12345, %v12341
    %v12710 = vpack.c.b16 %v12346, %v12342
    %v12711 = vpack.c.b16 %v12347, %v12343
    %v12712 = vpack.c.b16 %v12352, %v12348
    %v12713 = vpack.c.b16 %v12353, %v12349
    %v12714 = vpack.c.b16 %v12354, %v12350
    %v12715 = vpack.c.b16 %v12355, %v12351
    %v12716 = vpack.c.b16 %v12360, %v12356
    %v12717 = vpack.c.b16 %v12361, %v12357
    %v12718 = vpack.c.b16 %v12362, %v12358
    %v12719 = vpack.c.b16 %v12363, %v12359
    %v12720 = vpack.c.b16 %v12368, %v12364
    %v12721 = vpack.c.b16 %v12369, %v12365
    %v12722 = vpack.c.b16 %v12370, %v12366
    %v12723 = vpack.c.b16 %v12371, %v12367
    %v12724 = vpack.c.b16 %v12376, %v12372
    %v12725 = vpack.c.b16 %v12377, %v12373
    %v12726 = vpack.c.b16 %v12378, %v12374
    %v12727 = vpack.c.b16 %v12379, %v12375
    %v12728 = vpack.c.b16 %v12384, %v12380
    %v12729 = vpack.c.b16 %v12385, %v12381
    %v12730 = vpack.c.b16 %v12386, %v12382
    %v12731 = vpack.c.b16 %v12387, %v12383
    %v12732 = vpack.c.b16 %v12392, %v12388
    %v12733 = vpack.c.b16 %v12393, %v12389
    %v12734 = vpack.c.b16 %v12394, %v12390
    %v12735 = vpack.c.b16 %v12395, %v12391
    %v12736 = vpack.c.b16 %v12400, %v12396
    %v12737 = vpack.c.b16 %v12401, %v12397
    %v12738 = vpack.c.b16 %v12402, %v12398
    %v12739 = vpack.c.b16 %v12403, %v12399
    %v12740 = vpack.c.b16 %v12408, %v12404
    %v12741 = vpack.c.b16 %v12409, %v12405
    %v12742 = vpack.c.b16 %v12410, %v12406
    %v12743 = vpack.c.b16 %v12411, %v12407
    %v12744 = vpack.c.b16 %v12416, %v12412
    %v12745 = vpack.c.b16 %v12417, %v12413
    %v12746 = vpack.c.b16 %v12418, %v12414
    %v12747 = vpack.c.b16 %v12419, %v12415
    %v12748 = vpack.c.b16 %v12424, %v12420
    %v12749 = vpack.c.b16 %v12425, %v12421
    %v12750 = vpack.c.b16 %v12426, %v12422
    %v12751 = vpack.c.b16 %v12427, %v12423
    %v12752 = vpack.c.b16 %v12432, %v12428
    %v12753 = vpack.c.b16 %v12433, %v12429
    %v12754 = vpack.c.b16 %v12434, %v12430
    %v12755 = vpack.c.b16 %v12435, %v12431
    %v12756 = vpack.c.b16 %v12440, %v12436
    %v12757 = vpack.c.b16 %v12441, %v12437
    %v12758 = vpack.c.b16 %v12442, %v12438
    %v12759 = vpack.c.b16 %v12443, %v12439
    %v12760 = vpack.c.b16 %v12448, %v12444
    %v12761 = vpack.c.b16 %v12449, %v12445
    %v12762 = vpack.c.b16 %v12450, %v12446
    %v12763 = vpack.c.b16 %v12451, %v12447
    %v12764 = vpack.c.b16 %v12456, %v12452
    %v12765 = vpack.c.b16 %v12457, %v12453
    %v12766 = vpack.c.b16 %v12458, %v12454
    %v12767 = vpack.c.b16 %v12459, %v12455
    %v12768 = vpack.c.b16 %v12464, %v12460
    %v12769 = vpack.c.b16 %v12465, %v12461
    %v12770 = vpack.c.b16 %v12466, %v12462
    %v12771 = vpack.c.b16 %v12467, %v12463
    %v12772 = vpack.c.b16 %v12472, %v12468
    %v12773 = vpack.c.b16 %v12473, %v12469
    %v12774 = vpack.c.b16 %v12474, %v12470
    %v12775 = vpack.c.b16 %v12475, %v12471
    %v12776 = vpack.c.b16 %v12480, %v12476
    %v12777 = vpack.c.b16 %v12481, %v12477
    %v12778 = vpack.c.b16 %v12482, %v12478
    %v12779 = vpack.c.b16 %v12483, %v12479
    %v12780 = vpack.c.b16 %v12488, %v12484
    %v12781 = vpack.c.b16 %v12489, %v12485
    %v12782 = vpack.c.b16 %v12490, %v12486
    %v12783 = vpack.c.b16 %v12491, %v12487
    %v12784 = vpack.c.b16 %v12496, %v12492
    %v12785 = vpack.c.b16 %v12497, %v12493
    %v12786 = vpack.c.b16 %v12498, %v12494
    %v12787 = vpack.c.b16 %v12499, %v12495
    %v12788 = vpack.c.b16 %v12504, %v12500
    %v12789 = vpack.c.b16 %v12505, %v12501
    %v12790 = vpack.c.b16 %v12506, %v12502
    %v12791 = vpack.c.b16 %v12507, %v12503
    %v12792 = vpack.c.b16 %v12512, %v12508
    %v12793 = vpack.c.b16 %v12513, %v12509
    %v12794 = vpack.c.b16 %v12514, %v12510
    %v12795 = vpack.c.b16 %v12515, %v12511
    %v12796 = vpack.c.b16 %v12520, %v12516
    %v12797 = vpack.c.b16 %v12521, %v12517
    %v12798 = vpack.c.b16 %v12522, %v12518
    %v12799 = vpack.c.b16 %v12523, %v12519
    %v12800 = vpack.c.b16 %v12528, %v12524
    %v12801 = vpack.c.b16 %v12529, %v12525
    %v12802 = vpack.c.b16 %v12530, %v12526
    %v12803 = vpack.c.b16 %v12531, %v12527
    %v12804 = vpack.c.b16 %v12536, %v12532
    %v12805 = vpack.c.b16 %v12537, %v12533
    %v12806 = vpack.c.b16 %v12538, %v12534
    %v12807 = vpack.c.b16 %v12539, %v12535
    %v12808 = vpack.c.b16 %v12544, %v12540
    %v12809 = vpack.c.b16 %v12545, %v12541
    %v12810 = vpack.c.b16 %v12546, %v12542
    %v12811 = vpack.c.b16 %v12547, %v12543
    %v12812 = vpack.c.b16 %v12552, %v12548
    %v12813 = vpack.c.b16 %v12553, %v12549
    %v12814 = vpack.c.b16 %v12554, %v12550
    %v12815 = vpack.c.b16 %v12555, %v12551
    %v12816 = vpack.c.b16 %v12560, %v12556
    %v12817 = vpack.c.b16 %v12561, %v12557
    %v12818 = vpack.c.b16 %v12562, %v12558
    %v12819 = vpack.c.b16 %v12563, %v12559
    %13076 = vmatprep.subr.bf16.mxu0 %v12593
    %13077 = vmatpush1.bf16.msra.mxu0 %v12592
    %13078 = vmatprep.subr.bf16.mxu0 %v12589
    %13079 = vmatpush1.bf16.msra.mxu0 %v12588
    %13080 = vmatprep.subr.bf16.mxu0 %v12585
    %13081 = vmatpush1.bf16.msra.mxu0 %v12584
    %13082 = vmatprep.subr.bf16.mxu0 %v12581
    %13083 = vmatpush1.bf16.msra.mxu0 %v12580
    %13084 = vmatprep.subr.bf16.mxu0 %v12577
    %13085 = vmatpush1.bf16.msra.mxu0 %v12576
    %13086 = vmatprep.subr.bf16.mxu0 %v12573
    %13087 = vmatpush1.bf16.msra.mxu0 %v12572
    %13088 = vmatprep.subr.bf16.mxu0 %v12569
    %13089 = vmatpush1.bf16.msra.mxu0 %v12568
    %13090 = vmatprep.subr.bf16.mxu0 %v12565
    %13091 = vmatpush1.bf16.msra.mxu0 %v12564
    %13092 = vmatprep.subr.bf16.mxu0 %v12625
    %13093 = vmatpush2.bf16.msra.mxu0 %v12624
    %13094 = vmatprep.subr.bf16.mxu0 %v12621
    %13095 = vmatpush2.bf16.msra.mxu0 %v12620
    %13096 = vmatprep.subr.bf16.mxu0 %v12617
    %13097 = vmatpush2.bf16.msra.mxu0 %v12616
    %13098 = vmatprep.subr.bf16.mxu0 %v12613
    %13099 = vmatpush2.bf16.msra.mxu0 %v12612
    %13100 = vmatprep.subr.bf16.mxu0 %v12609
    %13101 = vmatpush2.bf16.msra.mxu0 %v12608
    %13102 = vmatprep.subr.bf16.mxu0 %v12605
    %13103 = vmatpush2.bf16.msra.mxu0 %v12604
    %13104 = vmatprep.subr.bf16.mxu0 %v12601
    %13105 = vmatpush2.bf16.msra.mxu0 %v12600
    %13106 = vmatprep.subr.bf16.mxu0 %v12597
    %13107 = vmatpush2.bf16.msra.mxu0 %v12596
    %13108 = vmatprep.mubr.bf16.mxu0 %v11511
    %13109 = vmatmul.mubr.bf16.gmra.mxu0 %v11510
    %v13110 = vpop.f32.mrf.mxu0
    %v13111 = vadd.f32 %v11779, %v13110
    %v13112 = vpop.f32.mrf.mxu0
    %v13113 = vadd.f32 %v11783, %v13112
    %v13114 = vpop.f32.mrf.mxu0
    %v13115 = vpop.f32.mrf.mxu0
    %13116 = vdwg.mxu0
    %13117 = vmatprep.subr.bf16.mxu0 %v12657
    %13118 = vmatpush1.bf16.msra.mxu0 %v12656
    %13119 = vmatprep.subr.bf16.mxu0 %v12653
    %13120 = vmatpush1.bf16.msra.mxu0 %v12652
    %13121 = vmatprep.subr.bf16.mxu0 %v12649
    %13122 = vmatpush1.bf16.msra.mxu0 %v12648
    %13123 = vmatprep.subr.bf16.mxu0 %v12645
    %13124 = vmatpush1.bf16.msra.mxu0 %v12644
    %13125 = vmatprep.subr.bf16.mxu0 %v12641
    %13126 = vmatpush1.bf16.msra.mxu0 %v12640
    %13127 = vmatprep.subr.bf16.mxu0 %v12637
    %13128 = vmatpush1.bf16.msra.mxu0 %v12636
    %13129 = vmatprep.subr.bf16.mxu0 %v12633
    %13130 = vmatpush1.bf16.msra.mxu0 %v12632
    %13131 = vmatprep.subr.bf16.mxu0 %v12629
    %13132 = vmatpush1.bf16.msra.mxu0 %v12628
    %13133 = vmatprep.subr.bf16.mxu0 %v12689
    %13134 = vmatpush2.bf16.msra.mxu0 %v12688
    %13135 = vmatprep.subr.bf16.mxu0 %v12685
    %13136 = vmatpush2.bf16.msra.mxu0 %v12684
    %13137 = vmatprep.subr.bf16.mxu0 %v12681
    %13138 = vmatpush2.bf16.msra.mxu0 %v12680
    %13139 = vmatprep.subr.bf16.mxu0 %v12677
    %13140 = vmatpush2.bf16.msra.mxu0 %v12676
    %13141 = vmatprep.subr.bf16.mxu0 %v12673
    %13142 = vmatpush2.bf16.msra.mxu0 %v12672
    %13143 = vmatprep.subr.bf16.mxu0 %v12669
    %13144 = vmatpush2.bf16.msra.mxu0 %v12668
    %13145 = vmatprep.subr.bf16.mxu0 %v12665
    %13146 = vmatpush2.bf16.msra.mxu0 %v12664
    %13147 = vmatprep.subr.bf16.mxu0 %v12661
    %13148 = vmatpush2.bf16.msra.mxu0 %v12660
    %13149 = vmatprep.mubr.bf16.mxu0 %v11513
    %13150 = vmatmul.mubr.bf16.gmra.mxu0 %v11512
    %v13151 = vpop.f32.mrf.mxu0
    %v13152 = vadd.f32 %v13111, %v13151
    %v13153 = vpop.f32.mrf.mxu0
    %v13154 = vadd.f32 %v13113, %v13153
    %v13155 = vpop.f32.mrf.mxu0
    %v13156 = vpop.f32.mrf.mxu0
    %13157 = vdwg.mxu0
    %13158 = vmatprep.subr.bf16.mxu0 %v12721
    %13159 = vmatpush1.bf16.msra.mxu0 %v12720
    %13160 = vmatprep.subr.bf16.mxu0 %v12717
    %13161 = vmatpush1.bf16.msra.mxu0 %v12716
    %13162 = vmatprep.subr.bf16.mxu0 %v12713
    %13163 = vmatpush1.bf16.msra.mxu0 %v12712
    %13164 = vmatprep.subr.bf16.mxu0 %v12709
    %13165 = vmatpush1.bf16.msra.mxu0 %v12708
    %13166 = vmatprep.subr.bf16.mxu0 %v12705
    %13167 = vmatpush1.bf16.msra.mxu0 %v12704
    %13168 = vmatprep.subr.bf16.mxu0 %v12701
    %13169 = vmatpush1.bf16.msra.mxu0 %v12700
    %13170 = vmatprep.subr.bf16.mxu0 %v12697
    %13171 = vmatpush1.bf16.msra.mxu0 %v12696
    %13172 = vmatprep.subr.bf16.mxu0 %v12693
    %13173 = vmatpush1.bf16.msra.mxu0 %v12692
    %13174 = vmatprep.subr.bf16.mxu0 %v12753
    %13175 = vmatpush2.bf16.msra.mxu0 %v12752
    %13176 = vmatprep.subr.bf16.mxu0 %v12749
    %13177 = vmatpush2.bf16.msra.mxu0 %v12748
    %13178 = vmatprep.subr.bf16.mxu0 %v12745
    %13179 = vmatpush2.bf16.msra.mxu0 %v12744
    %13180 = vmatprep.subr.bf16.mxu0 %v12741
    %13181 = vmatpush2.bf16.msra.mxu0 %v12740
    %13182 = vmatprep.subr.bf16.mxu0 %v12737
    %13183 = vmatpush2.bf16.msra.mxu0 %v12736
    %13184 = vmatprep.subr.bf16.mxu0 %v12733
    %13185 = vmatpush2.bf16.msra.mxu0 %v12732
    %13186 = vmatprep.subr.bf16.mxu0 %v12729
    %13187 = vmatpush2.bf16.msra.mxu0 %v12728
    %13188 = vmatprep.subr.bf16.mxu0 %v12725
    %13189 = vmatpush2.bf16.msra.mxu0 %v12724
    %13190 = vmatprep.mubr.bf16.mxu0 %v11515
    %13191 = vmatmul.mubr.bf16.gmra.mxu0 %v11514
    %v13192 = vpop.f32.mrf.mxu0
    %v13193 = vadd.f32 %v13152, %v13192
    %v13194 = vpop.f32.mrf.mxu0
    %v13195 = vadd.f32 %v13154, %v13194
    %v13196 = vpop.f32.mrf.mxu0
    %v13197 = vpop.f32.mrf.mxu0
    %13198 = vdwg.mxu0
    %13199 = vmatprep.subr.bf16.mxu0 %v12785
    %13200 = vmatpush1.bf16.msra.mxu0 %v12784
    %13201 = vmatprep.subr.bf16.mxu0 %v12781
    %13202 = vmatpush1.bf16.msra.mxu0 %v12780
    %13203 = vmatprep.subr.bf16.mxu0 %v12777
    %13204 = vmatpush1.bf16.msra.mxu0 %v12776
    %13205 = vmatprep.subr.bf16.mxu0 %v12773
    %13206 = vmatpush1.bf16.msra.mxu0 %v12772
    %13207 = vmatprep.subr.bf16.mxu0 %v12769
    %13208 = vmatpush1.bf16.msra.mxu0 %v12768
    %13209 = vmatprep.subr.bf16.mxu0 %v12765
    %13210 = vmatpush1.bf16.msra.mxu0 %v12764
    %13211 = vmatprep.subr.bf16.mxu0 %v12761
    %13212 = vmatpush1.bf16.msra.mxu0 %v12760
    %13213 = vmatprep.subr.bf16.mxu0 %v12757
    %13214 = vmatpush1.bf16.msra.mxu0 %v12756
    %13215 = vmatprep.subr.bf16.mxu0 %v12817
    %13216 = vmatpush2.bf16.msra.mxu0 %v12816
    %13217 = vmatprep.subr.bf16.mxu0 %v12813
    %13218 = vmatpush2.bf16.msra.mxu0 %v12812
    %13219 = vmatprep.subr.bf16.mxu0 %v12809
    %13220 = vmatpush2.bf16.msra.mxu0 %v12808
    %13221 = vmatprep.subr.bf16.mxu0 %v12805
    %13222 = vmatpush2.bf16.msra.mxu0 %v12804
    %13223 = vmatprep.subr.bf16.mxu0 %v12801
    %13224 = vmatpush2.bf16.msra.mxu0 %v12800
    %13225 = vmatprep.subr.bf16.mxu0 %v12797
    %13226 = vmatpush2.bf16.msra.mxu0 %v12796
    %13227 = vmatprep.subr.bf16.mxu0 %v12793
    %13228 = vmatpush2.bf16.msra.mxu0 %v12792
    %13229 = vmatprep.subr.bf16.mxu0 %v12789
    %13230 = vmatpush2.bf16.msra.mxu0 %v12788
    %13231 = vmatprep.mubr.bf16.mxu0 %v11517
    %13232 = vmatmul.mubr.bf16.gmra.mxu0 %v11516
    %v13233 = vpop.f32.mrf.mxu0
    %v13234 = vadd.f32 %v13193, %v13233
    %v13235 = vpop.f32.mrf.mxu0
    %v13236 = vadd.f32 %v13195, %v13235
    %v13237 = vpop.f32.mrf.mxu0
    %v13238 = vpop.f32.mrf.mxu0
    %13239 = vdwg.mxu0
    %13240 = vmatprep.subr.bf16.mxu0 %v12595
    %13241 = vmatpush1.bf16.msra.mxu0 %v12594
    %13242 = vmatprep.subr.bf16.mxu0 %v12591
    %13243 = vmatpush1.bf16.msra.mxu0 %v12590
    %13244 = vmatprep.subr.bf16.mxu0 %v12587
    %13245 = vmatpush1.bf16.msra.mxu0 %v12586
    %13246 = vmatprep.subr.bf16.mxu0 %v12583
    %13247 = vmatpush1.bf16.msra.mxu0 %v12582
    %13248 = vmatprep.subr.bf16.mxu0 %v12579
    %13249 = vmatpush1.bf16.msra.mxu0 %v12578
    %13250 = vmatprep.subr.bf16.mxu0 %v12575
    %13251 = vmatpush1.bf16.msra.mxu0 %v12574
    %13252 = vmatprep.subr.bf16.mxu0 %v12571
    %13253 = vmatpush1.bf16.msra.mxu0 %v12570
    %13254 = vmatprep.subr.bf16.mxu0 %v12567
    %13255 = vmatpush1.bf16.msra.mxu0 %v12566
    %13256 = vmatprep.subr.bf16.mxu0 %v12627
    %13257 = vmatpush2.bf16.msra.mxu0 %v12626
    %13258 = vmatprep.subr.bf16.mxu0 %v12623
    %13259 = vmatpush2.bf16.msra.mxu0 %v12622
    %13260 = vmatprep.subr.bf16.mxu0 %v12619
    %13261 = vmatpush2.bf16.msra.mxu0 %v12618
    %13262 = vmatprep.subr.bf16.mxu0 %v12615
    %13263 = vmatpush2.bf16.msra.mxu0 %v12614
    %13264 = vmatprep.subr.bf16.mxu0 %v12611
    %13265 = vmatpush2.bf16.msra.mxu0 %v12610
    %13266 = vmatprep.subr.bf16.mxu0 %v12607
    %13267 = vmatpush2.bf16.msra.mxu0 %v12606
    %13268 = vmatprep.subr.bf16.mxu0 %v12603
    %13269 = vmatpush2.bf16.msra.mxu0 %v12602
    %13270 = vmatprep.subr.bf16.mxu0 %v12599
    %13271 = vmatpush2.bf16.msra.mxu0 %v12598
    %13272 = vmatprep.mubr.bf16.mxu0 %v11511
    %13273 = vmatmul.mubr.bf16.gmra.mxu0 %v11510
    %v13274 = vpop.f32.mrf.mxu0
    %v13275 = vadd.f32 %v11787, %v13274
    %v13276 = vpop.f32.mrf.mxu0
    %v13277 = vadd.f32 %v11791, %v13276
    %v13278 = vpop.f32.mrf.mxu0
    %v13279 = vpop.f32.mrf.mxu0
    %13280 = vdwg.mxu0
    %13281 = vmatprep.subr.bf16.mxu0 %v12659
    %13282 = vmatpush1.bf16.msra.mxu0 %v12658
    %13283 = vmatprep.subr.bf16.mxu0 %v12655
    %13284 = vmatpush1.bf16.msra.mxu0 %v12654
    %13285 = vmatprep.subr.bf16.mxu0 %v12651
    %13286 = vmatpush1.bf16.msra.mxu0 %v12650
    %13287 = vmatprep.subr.bf16.mxu0 %v12647
    %13288 = vmatpush1.bf16.msra.mxu0 %v12646
    %13289 = vmatprep.subr.bf16.mxu0 %v12643
    %13290 = vmatpush1.bf16.msra.mxu0 %v12642
    %13291 = vmatprep.subr.bf16.mxu0 %v12639
    %13292 = vmatpush1.bf16.msra.mxu0 %v12638
    %13293 = vmatprep.subr.bf16.mxu0 %v12635
    %13294 = vmatpush1.bf16.msra.mxu0 %v12634
    %13295 = vmatprep.subr.bf16.mxu0 %v12631
    %13296 = vmatpush1.bf16.msra.mxu0 %v12630
    %13297 = vmatprep.subr.bf16.mxu0 %v12691
    %13298 = vmatpush2.bf16.msra.mxu0 %v12690
    %13299 = vmatprep.subr.bf16.mxu0 %v12687
    %13300 = vmatpush2.bf16.msra.mxu0 %v12686
    %13301 = vmatprep.subr.bf16.mxu0 %v12683
    %13302 = vmatpush2.bf16.msra.mxu0 %v12682
    %13303 = vmatprep.subr.bf16.mxu0 %v12679
    %13304 = vmatpush2.bf16.msra.mxu0 %v12678
    %13305 = vmatprep.subr.bf16.mxu0 %v12675
    %13306 = vmatpush2.bf16.msra.mxu0 %v12674
    %13307 = vmatprep.subr.bf16.mxu0 %v12671
    %13308 = vmatpush2.bf16.msra.mxu0 %v12670
    %13309 = vmatprep.subr.bf16.mxu0 %v12667
    %13310 = vmatpush2.bf16.msra.mxu0 %v12666
    %13311 = vmatprep.subr.bf16.mxu0 %v12663
    %13312 = vmatpush2.bf16.msra.mxu0 %v12662
    %13313 = vmatprep.mubr.bf16.mxu0 %v11513
    %13314 = vmatmul.mubr.bf16.gmra.mxu0 %v11512
    %v13315 = vpop.f32.mrf.mxu0
    %v13316 = vadd.f32 %v13275, %v13315
    %v13317 = vpop.f32.mrf.mxu0
    %v13318 = vadd.f32 %v13277, %v13317
    %v13319 = vpop.f32.mrf.mxu0
    %v13320 = vpop.f32.mrf.mxu0
    %13321 = vdwg.mxu0
    %13322 = vmatprep.subr.bf16.mxu0 %v12723
    %13323 = vmatpush1.bf16.msra.mxu0 %v12722
    %13324 = vmatprep.subr.bf16.mxu0 %v12719
    %13325 = vmatpush1.bf16.msra.mxu0 %v12718
    %13326 = vmatprep.subr.bf16.mxu0 %v12715
    %13327 = vmatpush1.bf16.msra.mxu0 %v12714
    %13328 = vmatprep.subr.bf16.mxu0 %v12711
    %13329 = vmatpush1.bf16.msra.mxu0 %v12710
    %13330 = vmatprep.subr.bf16.mxu0 %v12707
    %13331 = vmatpush1.bf16.msra.mxu0 %v12706
    %13332 = vmatprep.subr.bf16.mxu0 %v12703
    %13333 = vmatpush1.bf16.msra.mxu0 %v12702
    %13334 = vmatprep.subr.bf16.mxu0 %v12699
    %13335 = vmatpush1.bf16.msra.mxu0 %v12698
    %13336 = vmatprep.subr.bf16.mxu0 %v12695
    %13337 = vmatpush1.bf16.msra.mxu0 %v12694
    %13338 = vmatprep.subr.bf16.mxu0 %v12755
    %13339 = vmatpush2.bf16.msra.mxu0 %v12754
    %13340 = vmatprep.subr.bf16.mxu0 %v12751
    %13341 = vmatpush2.bf16.msra.mxu0 %v12750
    %13342 = vmatprep.subr.bf16.mxu0 %v12747
    %13343 = vmatpush2.bf16.msra.mxu0 %v12746
    %13344 = vmatprep.subr.bf16.mxu0 %v12743
    %13345 = vmatpush2.bf16.msra.mxu0 %v12742
    %13346 = vmatprep.subr.bf16.mxu0 %v12739
    %13347 = vmatpush2.bf16.msra.mxu0 %v12738
    %13348 = vmatprep.subr.bf16.mxu0 %v12735
    %13349 = vmatpush2.bf16.msra.mxu0 %v12734
    %13350 = vmatprep.subr.bf16.mxu0 %v12731
    %13351 = vmatpush2.bf16.msra.mxu0 %v12730
    %13352 = vmatprep.subr.bf16.mxu0 %v12727
    %13353 = vmatpush2.bf16.msra.mxu0 %v12726
    %13354 = vmatprep.mubr.bf16.mxu0 %v11515
    %13355 = vmatmul.mubr.bf16.gmra.mxu0 %v11514
    %v13356 = vpop.f32.mrf.mxu0
    %v13357 = vadd.f32 %v13316, %v13356
    %v13358 = vpop.f32.mrf.mxu0
    %v13359 = vadd.f32 %v13318, %v13358
    %v13360 = vpop.f32.mrf.mxu0
    %v13361 = vpop.f32.mrf.mxu0
    %13362 = vdwg.mxu0
    %13363 = vmatprep.subr.bf16.mxu0 %v12787
    %13364 = vmatpush1.bf16.msra.mxu0 %v12786
    %13365 = vmatprep.subr.bf16.mxu0 %v12783
    %13366 = vmatpush1.bf16.msra.mxu0 %v12782
    %13367 = vmatprep.subr.bf16.mxu0 %v12779
    %13368 = vmatpush1.bf16.msra.mxu0 %v12778
    %13369 = vmatprep.subr.bf16.mxu0 %v12775
    %13370 = vmatpush1.bf16.msra.mxu0 %v12774
    %13371 = vmatprep.subr.bf16.mxu0 %v12771
    %13372 = vmatpush1.bf16.msra.mxu0 %v12770
    %13373 = vmatprep.subr.bf16.mxu0 %v12767
    %13374 = vmatpush1.bf16.msra.mxu0 %v12766
    %13375 = vmatprep.subr.bf16.mxu0 %v12763
    %13376 = vmatpush1.bf16.msra.mxu0 %v12762
    %13377 = vmatprep.subr.bf16.mxu0 %v12759
    %13378 = vmatpush1.bf16.msra.mxu0 %v12758
    %13379 = vmatprep.subr.bf16.mxu0 %v12819
    %13380 = vmatpush2.bf16.msra.mxu0 %v12818
    %13381 = vmatprep.subr.bf16.mxu0 %v12815
    %13382 = vmatpush2.bf16.msra.mxu0 %v12814
    %13383 = vmatprep.subr.bf16.mxu0 %v12811
    %13384 = vmatpush2.bf16.msra.mxu0 %v12810
    %13385 = vmatprep.subr.bf16.mxu0 %v12807
    %13386 = vmatpush2.bf16.msra.mxu0 %v12806
    %13387 = vmatprep.subr.bf16.mxu0 %v12803
    %13388 = vmatpush2.bf16.msra.mxu0 %v12802
    %13389 = vmatprep.subr.bf16.mxu0 %v12799
    %13390 = vmatpush2.bf16.msra.mxu0 %v12798
    %13391 = vmatprep.subr.bf16.mxu0 %v12795
    %13392 = vmatpush2.bf16.msra.mxu0 %v12794
    %13393 = vmatprep.subr.bf16.mxu0 %v12791
    %13394 = vmatpush2.bf16.msra.mxu0 %v12790
    %13395 = vmatprep.mubr.bf16.mxu0 %v11517
    %13396 = vmatmul.mubr.bf16.gmra.mxu0 %v11516
    %v13397 = vpop.f32.mrf.mxu0
    %v13398 = vadd.f32 %v13357, %v13397
    %v13399 = vpop.f32.mrf.mxu0
    %v13400 = vadd.f32 %v13359, %v13399
    %v13401 = vpop.f32.mrf.mxu0
    %v13402 = vpop.f32.mrf.mxu0
    %13403 = vdwg.mxu0
    %v13404 = vmax.f32 %v13234, 0.0
    %v13405 = vmax.f32 %v13236, 0.0
    %v13406 = vmax.f32 %v13398, 0.0
    %v13407 = vmax.f32 %v13400, 0.0
    %v13408 = vpack.c.bf16 %v13404, %v13404
    %v13409 = vpack.c.bf16 %v13405, %v13405
    %v13410 = vpack.c.bf16 %v13406, %v13406
    %v13411 = vpack.c.bf16 %v13407, %v13407
    %v13412 = vld [vmem:[#allocation11] sm:$0xff]
    %v13413 = vld [vmem:[#allocation11 + $0x8] sm:$0xff]
    %v13414 = vld [vmem:[#allocation11 + $0x10] sm:$0xff]
    %v13415 = vld [vmem:[#allocation11 + $0x18] sm:$0xff]
    %v13416 = vld [vmem:[#allocation11 + $0x20] sm:$0xff]
    %v13417 = vld [vmem:[#allocation11 + $0x28] sm:$0xff]
    %v13418 = vld [vmem:[#allocation11 + $0x30] sm:$0xff]
    %v13419 = vld [vmem:[#allocation11 + $0x38] sm:$0xff]
    %v13420 = vld [vmem:[#allocation11 + $0x40] sm:$0xff]
    %v13421 = vld [vmem:[#allocation11 + $0x48] sm:$0xff]
    %v13422 = vld [vmem:[#allocation11 + $0x50] sm:$0xff]
    %v13423 = vld [vmem:[#allocation11 + $0x58] sm:$0xff]
    %v13424 = vld [vmem:[#allocation11 + $0x60] sm:$0xff]
    %v13425 = vld [vmem:[#allocation11 + $0x68] sm:$0xff]
    %v13426 = vld [vmem:[#allocation11 + $0x70] sm:$0xff]
    %v13427 = vld [vmem:[#allocation11 + $0x78] sm:$0xff]
    %v13428 = vld [vmem:[#allocation11 + $0x80] sm:$0xff]
    %v13429 = vld [vmem:[#allocation11 + $0x88] sm:$0xff]
    %v13430 = vld [vmem:[#allocation11 + $0x90] sm:$0xff]
    %v13431 = vld [vmem:[#allocation11 + $0x98] sm:$0xff]
    %v13432 = vld [vmem:[#allocation11 + $0xa0] sm:$0xff]
    %v13433 = vld [vmem:[#allocation11 + $0xa8] sm:$0xff]
    %v13434 = vld [vmem:[#allocation11 + $0xb0] sm:$0xff]
    %v13435 = vld [vmem:[#allocation11 + $0xb8] sm:$0xff]
    %v13436 = vld [vmem:[#allocation11 + $0xc0] sm:$0xff]
    %v13437 = vld [vmem:[#allocation11 + $0xc8] sm:$0xff]
    %v13438 = vld [vmem:[#allocation11 + $0xd0] sm:$0xff]
    %v13439 = vld [vmem:[#allocation11 + $0xd8] sm:$0xff]
    %v13440 = vld [vmem:[#allocation11 + $0xe0] sm:$0xff]
    %v13441 = vld [vmem:[#allocation11 + $0xe8] sm:$0xff]
    %v13442 = vld [vmem:[#allocation11 + $0xf0] sm:$0xff]
    %v13443 = vld [vmem:[#allocation11 + $0xf8] sm:$0xff]
    %v13444 = vld [vmem:[#allocation11 + $0x100] sm:$0xff]
    %v13445 = vld [vmem:[#allocation11 + $0x108] sm:$0xff]
    %v13446 = vld [vmem:[#allocation11 + $0x110] sm:$0xff]
    %v13447 = vld [vmem:[#allocation11 + $0x118] sm:$0xff]
    %v13448 = vld [vmem:[#allocation11 + $0x120] sm:$0xff]
    %v13449 = vld [vmem:[#allocation11 + $0x128] sm:$0xff]
    %v13450 = vld [vmem:[#allocation11 + $0x130] sm:$0xff]
    %v13451 = vld [vmem:[#allocation11 + $0x138] sm:$0xff]
    %v13452 = vld [vmem:[#allocation11 + $0x140] sm:$0xff]
    %v13453 = vld [vmem:[#allocation11 + $0x148] sm:$0xff]
    %v13454 = vld [vmem:[#allocation11 + $0x150] sm:$0xff]
    %v13455 = vld [vmem:[#allocation11 + $0x158] sm:$0xff]
    %v13456 = vld [vmem:[#allocation11 + $0x160] sm:$0xff]
    %v13457 = vld [vmem:[#allocation11 + $0x168] sm:$0xff]
    %v13458 = vld [vmem:[#allocation11 + $0x170] sm:$0xff]
    %v13459 = vld [vmem:[#allocation11 + $0x178] sm:$0xff]
    %v13460 = vld [vmem:[#allocation11 + $0x180] sm:$0xff]
    %v13461 = vld [vmem:[#allocation11 + $0x188] sm:$0xff]
    %v13462 = vld [vmem:[#allocation11 + $0x190] sm:$0xff]
    %v13463 = vld [vmem:[#allocation11 + $0x198] sm:$0xff]
    %v13464 = vld [vmem:[#allocation11 + $0x1a0] sm:$0xff]
    %v13465 = vld [vmem:[#allocation11 + $0x1a8] sm:$0xff]
    %v13466 = vld [vmem:[#allocation11 + $0x1b0] sm:$0xff]
    %v13467 = vld [vmem:[#allocation11 + $0x1b8] sm:$0xff]
    %v13468 = vld [vmem:[#allocation11 + $0x1c0] sm:$0xff]
    %v13469 = vld [vmem:[#allocation11 + $0x1c8] sm:$0xff]
    %v13470 = vld [vmem:[#allocation11 + $0x1d0] sm:$0xff]
    %v13471 = vld [vmem:[#allocation11 + $0x1d8] sm:$0xff]
    %v13472 = vld [vmem:[#allocation11 + $0x1e0] sm:$0xff]
    %v13473 = vld [vmem:[#allocation11 + $0x1e8] sm:$0xff]
    %v13474 = vld [vmem:[#allocation11 + $0x1f0] sm:$0xff]
    %v13475 = vld [vmem:[#allocation11 + $0x1f8] sm:$0xff]
    %v13476 = vld [vmem:[#allocation13] sm:$0x3]
    %v13478 = vlaneseq
    %v13479 = vshrl.u32 %v13478, 7
    %v13480 = vsub.s32 0, %v13479
    %v13481 = vrot.slane %v13476, %v13480
    %v13482 = vlaneseq
    %v13483 = vshrl.u32 %v13482, 7
    %v13484 = vsub.s32 1, %v13483
    %v13485 = vrot.slane %v13476, %v13484
    %v13552 = vunpack.c.l.b16 %v13412
    %v13553 = vunpack.c.h.b16 %v13412
    %v13554 = vunpack.c.l.b16 %v13413
    %v13555 = vunpack.c.h.b16 %v13413
    %v13556 = vunpack.c.l.b16 %v13414
    %v13557 = vunpack.c.h.b16 %v13414
    %v13558 = vunpack.c.l.b16 %v13415
    %v13559 = vunpack.c.h.b16 %v13415
    %v13560 = vunpack.c.l.b16 %v13416
    %v13561 = vunpack.c.h.b16 %v13416
    %v13562 = vunpack.c.l.b16 %v13417
    %v13563 = vunpack.c.h.b16 %v13417
    %v13564 = vunpack.c.l.b16 %v13418
    %v13565 = vunpack.c.h.b16 %v13418
    %v13566 = vunpack.c.l.b16 %v13419
    %v13567 = vunpack.c.h.b16 %v13419
    %v13568 = vunpack.c.l.b16 %v13420
    %v13569 = vunpack.c.h.b16 %v13420
    %v13570 = vunpack.c.l.b16 %v13421
    %v13571 = vunpack.c.h.b16 %v13421
    %v13572 = vunpack.c.l.b16 %v13422
    %v13573 = vunpack.c.h.b16 %v13422
    %v13574 = vunpack.c.l.b16 %v13423
    %v13575 = vunpack.c.h.b16 %v13423
    %v13576 = vunpack.c.l.b16 %v13424
    %v13577 = vunpack.c.h.b16 %v13424
    %v13578 = vunpack.c.l.b16 %v13425
    %v13579 = vunpack.c.h.b16 %v13425
    %v13580 = vunpack.c.l.b16 %v13426
    %v13581 = vunpack.c.h.b16 %v13426
    %v13582 = vunpack.c.l.b16 %v13427
    %v13583 = vunpack.c.h.b16 %v13427
    %v13584 = vunpack.c.l.b16 %v13428
    %v13585 = vunpack.c.h.b16 %v13428
    %v13586 = vunpack.c.l.b16 %v13429
    %v13587 = vunpack.c.h.b16 %v13429
    %v13588 = vunpack.c.l.b16 %v13430
    %v13589 = vunpack.c.h.b16 %v13430
    %v13590 = vunpack.c.l.b16 %v13431
    %v13591 = vunpack.c.h.b16 %v13431
    %v13592 = vunpack.c.l.b16 %v13432
    %v13593 = vunpack.c.h.b16 %v13432
    %v13594 = vunpack.c.l.b16 %v13433
    %v13595 = vunpack.c.h.b16 %v13433
    %v13596 = vunpack.c.l.b16 %v13434
    %v13597 = vunpack.c.h.b16 %v13434
    %v13598 = vunpack.c.l.b16 %v13435
    %v13599 = vunpack.c.h.b16 %v13435
    %v13600 = vunpack.c.l.b16 %v13436
    %v13601 = vunpack.c.h.b16 %v13436
    %v13602 = vunpack.c.l.b16 %v13437
    %v13603 = vunpack.c.h.b16 %v13437
    %v13604 = vunpack.c.l.b16 %v13438
    %v13605 = vunpack.c.h.b16 %v13438
    %v13606 = vunpack.c.l.b16 %v13439
    %v13607 = vunpack.c.h.b16 %v13439
    %v13608 = vunpack.c.l.b16 %v13440
    %v13609 = vunpack.c.h.b16 %v13440
    %v13610 = vunpack.c.l.b16 %v13441
    %v13611 = vunpack.c.h.b16 %v13441
    %v13612 = vunpack.c.l.b16 %v13442
    %v13613 = vunpack.c.h.b16 %v13442
    %v13614 = vunpack.c.l.b16 %v13443
    %v13615 = vunpack.c.h.b16 %v13443
    %v13616 = vunpack.c.l.b16 %v13444
    %v13617 = vunpack.c.h.b16 %v13444
    %v13618 = vunpack.c.l.b16 %v13445
    %v13619 = vunpack.c.h.b16 %v13445
    %v13620 = vunpack.c.l.b16 %v13446
    %v13621 = vunpack.c.h.b16 %v13446
    %v13622 = vunpack.c.l.b16 %v13447
    %v13623 = vunpack.c.h.b16 %v13447
    %v13624 = vunpack.c.l.b16 %v13448
    %v13625 = vunpack.c.h.b16 %v13448
    %v13626 = vunpack.c.l.b16 %v13449
    %v13627 = vunpack.c.h.b16 %v13449
    %v13628 = vunpack.c.l.b16 %v13450
    %v13629 = vunpack.c.h.b16 %v13450
    %v13630 = vunpack.c.l.b16 %v13451
    %v13631 = vunpack.c.h.b16 %v13451
    %v13632 = vunpack.c.l.b16 %v13452
    %v13633 = vunpack.c.h.b16 %v13452
    %v13634 = vunpack.c.l.b16 %v13453
    %v13635 = vunpack.c.h.b16 %v13453
    %v13636 = vunpack.c.l.b16 %v13454
    %v13637 = vunpack.c.h.b16 %v13454
    %v13638 = vunpack.c.l.b16 %v13455
    %v13639 = vunpack.c.h.b16 %v13455
    %v13640 = vunpack.c.l.b16 %v13456
    %v13641 = vunpack.c.h.b16 %v13456
    %v13642 = vunpack.c.l.b16 %v13457
    %v13643 = vunpack.c.h.b16 %v13457
    %v13644 = vunpack.c.l.b16 %v13458
    %v13645 = vunpack.c.h.b16 %v13458
    %v13646 = vunpack.c.l.b16 %v13459
    %v13647 = vunpack.c.h.b16 %v13459
    %v13648 = vunpack.c.l.b16 %v13460
    %v13649 = vunpack.c.h.b16 %v13460
    %v13650 = vunpack.c.l.b16 %v13461
    %v13651 = vunpack.c.h.b16 %v13461
    %v13652 = vunpack.c.l.b16 %v13462
    %v13653 = vunpack.c.h.b16 %v13462
    %v13654 = vunpack.c.l.b16 %v13463
    %v13655 = vunpack.c.h.b16 %v13463
    %v13656 = vunpack.c.l.b16 %v13464
    %v13657 = vunpack.c.h.b16 %v13464
    %v13658 = vunpack.c.l.b16 %v13465
    %v13659 = vunpack.c.h.b16 %v13465
    %v13660 = vunpack.c.l.b16 %v13466
    %v13661 = vunpack.c.h.b16 %v13466
    %v13662 = vunpack.c.l.b16 %v13467
    %v13663 = vunpack.c.h.b16 %v13467
    %v13664 = vunpack.c.l.b16 %v13468
    %v13665 = vunpack.c.h.b16 %v13468
    %v13666 = vunpack.c.l.b16 %v13469
    %v13667 = vunpack.c.h.b16 %v13469
    %v13668 = vunpack.c.l.b16 %v13470
    %v13669 = vunpack.c.h.b16 %v13470
    %v13670 = vunpack.c.l.b16 %v13471
    %v13671 = vunpack.c.h.b16 %v13471
    %v13672 = vunpack.c.l.b16 %v13472
    %v13673 = vunpack.c.h.b16 %v13472
    %v13674 = vunpack.c.l.b16 %v13473
    %v13675 = vunpack.c.h.b16 %v13473
    %v13676 = vunpack.c.l.b16 %v13474
    %v13677 = vunpack.c.h.b16 %v13474
    %v13678 = vunpack.c.l.b16 %v13475
    %v13679 = vunpack.c.h.b16 %v13475
    %v13680 = vpack.c.b16 %v13554, %v13552
    %v13681 = vpack.c.b16 %v13555, %v13553
    %v13682 = vpack.c.b16 %v13558, %v13556
    %v13683 = vpack.c.b16 %v13559, %v13557
    %v13684 = vpack.c.b16 %v13562, %v13560
    %v13685 = vpack.c.b16 %v13563, %v13561
    %v13686 = vpack.c.b16 %v13566, %v13564
    %v13687 = vpack.c.b16 %v13567, %v13565
    %v13688 = vpack.c.b16 %v13570, %v13568
    %v13689 = vpack.c.b16 %v13571, %v13569
    %v13690 = vpack.c.b16 %v13574, %v13572
    %v13691 = vpack.c.b16 %v13575, %v13573
    %v13692 = vpack.c.b16 %v13578, %v13576
    %v13693 = vpack.c.b16 %v13579, %v13577
    %v13694 = vpack.c.b16 %v13582, %v13580
    %v13695 = vpack.c.b16 %v13583, %v13581
    %v13696 = vpack.c.b16 %v13586, %v13584
    %v13697 = vpack.c.b16 %v13587, %v13585
    %v13698 = vpack.c.b16 %v13590, %v13588
    %v13699 = vpack.c.b16 %v13591, %v13589
    %v13700 = vpack.c.b16 %v13594, %v13592
    %v13701 = vpack.c.b16 %v13595, %v13593
    %v13702 = vpack.c.b16 %v13598, %v13596
    %v13703 = vpack.c.b16 %v13599, %v13597
    %v13704 = vpack.c.b16 %v13602, %v13600
    %v13705 = vpack.c.b16 %v13603, %v13601
    %v13706 = vpack.c.b16 %v13606, %v13604
    %v13707 = vpack.c.b16 %v13607, %v13605
    %v13708 = vpack.c.b16 %v13610, %v13608
    %v13709 = vpack.c.b16 %v13611, %v13609
    %v13710 = vpack.c.b16 %v13614, %v13612
    %v13711 = vpack.c.b16 %v13615, %v13613
    %v13712 = vpack.c.b16 %v13618, %v13616
    %v13713 = vpack.c.b16 %v13619, %v13617
    %v13714 = vpack.c.b16 %v13622, %v13620
    %v13715 = vpack.c.b16 %v13623, %v13621
    %v13716 = vpack.c.b16 %v13626, %v13624
    %v13717 = vpack.c.b16 %v13627, %v13625
    %v13718 = vpack.c.b16 %v13630, %v13628
    %v13719 = vpack.c.b16 %v13631, %v13629
    %v13720 = vpack.c.b16 %v13634, %v13632
    %v13721 = vpack.c.b16 %v13635, %v13633
    %v13722 = vpack.c.b16 %v13638, %v13636
    %v13723 = vpack.c.b16 %v13639, %v13637
    %v13724 = vpack.c.b16 %v13642, %v13640
    %v13725 = vpack.c.b16 %v13643, %v13641
    %v13726 = vpack.c.b16 %v13646, %v13644
    %v13727 = vpack.c.b16 %v13647, %v13645
    %v13728 = vpack.c.b16 %v13650, %v13648
    %v13729 = vpack.c.b16 %v13651, %v13649
    %v13730 = vpack.c.b16 %v13654, %v13652
    %v13731 = vpack.c.b16 %v13655, %v13653
    %v13732 = vpack.c.b16 %v13658, %v13656
    %v13733 = vpack.c.b16 %v13659, %v13657
    %v13734 = vpack.c.b16 %v13662, %v13660
    %v13735 = vpack.c.b16 %v13663, %v13661
    %v13736 = vpack.c.b16 %v13666, %v13664
    %v13737 = vpack.c.b16 %v13667, %v13665
    %v13738 = vpack.c.b16 %v13670, %v13668
    %v13739 = vpack.c.b16 %v13671, %v13669
    %v13740 = vpack.c.b16 %v13674, %v13672
    %v13741 = vpack.c.b16 %v13675, %v13673
    %v13742 = vpack.c.b16 %v13678, %v13676
    %v13743 = vpack.c.b16 %v13679, %v13677
    %13808 = vmatprep.subr.bf16.mxu0 %v13695
    %13809 = vmatpush1.bf16.msra.mxu0 %v13694
    %13810 = vmatprep.subr.bf16.mxu0 %v13693
    %13811 = vmatpush1.bf16.msra.mxu0 %v13692
    %13812 = vmatprep.subr.bf16.mxu0 %v13691
    %13813 = vmatpush1.bf16.msra.mxu0 %v13690
    %13814 = vmatprep.subr.bf16.mxu0 %v13689
    %13815 = vmatpush1.bf16.msra.mxu0 %v13688
    %13816 = vmatprep.subr.bf16.mxu0 %v13687
    %13817 = vmatpush1.bf16.msra.mxu0 %v13686
    %13818 = vmatprep.subr.bf16.mxu0 %v13685
    %13819 = vmatpush1.bf16.msra.mxu0 %v13684
    %13820 = vmatprep.subr.bf16.mxu0 %v13683
    %13821 = vmatpush1.bf16.msra.mxu0 %v13682
    %13822 = vmatprep.subr.bf16.mxu0 %v13681
    %13823 = vmatpush1.bf16.msra.mxu0 %v13680
    %13824 = vmatprep.subr.bf16.mxu0 %v13711
    %13825 = vmatpush2.bf16.msra.mxu0 %v13710
    %13826 = vmatprep.subr.bf16.mxu0 %v13709
    %13827 = vmatpush2.bf16.msra.mxu0 %v13708
    %13828 = vmatprep.subr.bf16.mxu0 %v13707
    %13829 = vmatpush2.bf16.msra.mxu0 %v13706
    %13830 = vmatprep.subr.bf16.mxu0 %v13705
    %13831 = vmatpush2.bf16.msra.mxu0 %v13704
    %13832 = vmatprep.subr.bf16.mxu0 %v13703
    %13833 = vmatpush2.bf16.msra.mxu0 %v13702
    %13834 = vmatprep.subr.bf16.mxu0 %v13701
    %13835 = vmatpush2.bf16.msra.mxu0 %v13700
    %13836 = vmatprep.subr.bf16.mxu0 %v13699
    %13837 = vmatpush2.bf16.msra.mxu0 %v13698
    %13838 = vmatprep.subr.bf16.mxu0 %v13697
    %13839 = vmatpush2.bf16.msra.mxu0 %v13696
    %13840 = vmatprep.mubr.bf16.mxu0 %v13409
    %13841 = vmatmul.mubr.bf16.gmra.mxu0 %v13408
    %v13842 = vpop.f32.mrf.mxu0
    %v13843 = vadd.f32 %v13481, %v13842
    %v13844 = vpop.f32.mrf.mxu0
    %v13845 = vadd.f32 %v13485, %v13844
    %v13846 = vpop.f32.mrf.mxu0
    %v13847 = vpop.f32.mrf.mxu0
    %13848 = vdwg.mxu0
    %13849 = vmatprep.subr.bf16.mxu0 %v13727
    %13850 = vmatpush1.bf16.msra.mxu0 %v13726
    %13851 = vmatprep.subr.bf16.mxu0 %v13725
    %13852 = vmatpush1.bf16.msra.mxu0 %v13724
    %13853 = vmatprep.subr.bf16.mxu0 %v13723
    %13854 = vmatpush1.bf16.msra.mxu0 %v13722
    %13855 = vmatprep.subr.bf16.mxu0 %v13721
    %13856 = vmatpush1.bf16.msra.mxu0 %v13720
    %13857 = vmatprep.subr.bf16.mxu0 %v13719
    %13858 = vmatpush1.bf16.msra.mxu0 %v13718
    %13859 = vmatprep.subr.bf16.mxu0 %v13717
    %13860 = vmatpush1.bf16.msra.mxu0 %v13716
    %13861 = vmatprep.subr.bf16.mxu0 %v13715
    %13862 = vmatpush1.bf16.msra.mxu0 %v13714
    %13863 = vmatprep.subr.bf16.mxu0 %v13713
    %13864 = vmatpush1.bf16.msra.mxu0 %v13712
    %13865 = vmatprep.subr.bf16.mxu0 %v13743
    %13866 = vmatpush2.bf16.msra.mxu0 %v13742
    %13867 = vmatprep.subr.bf16.mxu0 %v13741
    %13868 = vmatpush2.bf16.msra.mxu0 %v13740
    %13869 = vmatprep.subr.bf16.mxu0 %v13739
    %13870 = vmatpush2.bf16.msra.mxu0 %v13738
    %13871 = vmatprep.subr.bf16.mxu0 %v13737
    %13872 = vmatpush2.bf16.msra.mxu0 %v13736
    %13873 = vmatprep.subr.bf16.mxu0 %v13735
    %13874 = vmatpush2.bf16.msra.mxu0 %v13734
    %13875 = vmatprep.subr.bf16.mxu0 %v13733
    %13876 = vmatpush2.bf16.msra.mxu0 %v13732
    %13877 = vmatprep.subr.bf16.mxu0 %v13731
    %13878 = vmatpush2.bf16.msra.mxu0 %v13730
    %13879 = vmatprep.subr.bf16.mxu0 %v13729
    %13880 = vmatpush2.bf16.msra.mxu0 %v13728
    %13881 = vmatprep.mubr.bf16.mxu0 %v13411
    %13882 = vmatmul.mubr.bf16.gmra.mxu0 %v13410
    %v13883 = vpop.f32.mrf.mxu0
    %v13884 = vadd.f32 %v13843, %v13883
    %v13885 = vpop.f32.mrf.mxu0
    %v13886 = vadd.f32 %v13845, %v13885
    %v13887 = vpop.f32.mrf.mxu0
    %v13888 = vpop.f32.mrf.mxu0
    %13889 = vdwg.mxu0
    %v13890 = vmax.f32 %v13884, 0.0
    %v13891 = vmax.f32 %v13886, 0.0
    %v13892 = vpack.c.bf16 %v13890, %v13890
    %v13893 = vpack.c.bf16 %v13891, %v13891
    %v13894 = vld [vmem:[#allocation14] sm:$0xf]
    %v13895 = vld [vmem:[#allocation14 + $0x4] sm:$0xf]
    %v13896 = vld [vmem:[#allocation14 + $0x8] sm:$0xf]
    %v13897 = vld [vmem:[#allocation14 + $0xc] sm:$0xf]
    %v13898 = vld [vmem:[#allocation14 + $0x10] sm:$0xf]
    %v13899 = vld [vmem:[#allocation14 + $0x14] sm:$0xf]
    %v13900 = vld [vmem:[#allocation14 + $0x18] sm:$0xf]
    %v13901 = vld [vmem:[#allocation14 + $0x1c] sm:$0xf]
    %v13902 = vld [vmem:[#allocation14 + $0x20] sm:$0xf]
    %v13903 = vld [vmem:[#allocation14 + $0x24] sm:$0xf]
    %v13904 = vld [vmem:[#allocation14 + $0x28] sm:$0xf]
    %v13905 = vld [vmem:[#allocation14 + $0x2c] sm:$0xf]
    %v13906 = vld [vmem:[#allocation14 + $0x30] sm:$0xf]
    %v13907 = vld [vmem:[#allocation14 + $0x34] sm:$0xf]
    %v13908 = vld [vmem:[#allocation14 + $0x38] sm:$0xf]
    %v13909 = vld [vmem:[#allocation14 + $0x3c] sm:$0xf]
    %v13910 = vld [vmem:[#allocation14 + $0x40] sm:$0xf]
    %v13911 = vld [vmem:[#allocation14 + $0x44] sm:$0xf]
    %v13912 = vld [vmem:[#allocation14 + $0x48] sm:$0xf]
    %v13913 = vld [vmem:[#allocation14 + $0x4c] sm:$0xf]
    %v13914 = vld [vmem:[#allocation14 + $0x50] sm:$0xf]
    %v13915 = vld [vmem:[#allocation14 + $0x54] sm:$0xf]
    %v13916 = vld [vmem:[#allocation14 + $0x58] sm:$0xf]
    %v13917 = vld [vmem:[#allocation14 + $0x5c] sm:$0xf]
    %v13918 = vld [vmem:[#allocation14 + $0x60] sm:$0xf]
    %v13919 = vld [vmem:[#allocation14 + $0x64] sm:$0xf]
    %v13920 = vld [vmem:[#allocation14 + $0x68] sm:$0xf]
    %v13921 = vld [vmem:[#allocation14 + $0x6c] sm:$0xf]
    %v13922 = vld [vmem:[#allocation14 + $0x70] sm:$0xf]
    %v13923 = vld [vmem:[#allocation14 + $0x74] sm:$0xf]
    %v13924 = vld [vmem:[#allocation14 + $0x78] sm:$0xf]
    %v13925 = vld [vmem:[#allocation14 + $0x7c] sm:$0xf]
    %v13926 = vld [vmem:[#allocation16] sm:$0x1]
    %v13928 = vlaneseq
    %v13929 = vshrl.u32 %v13928, 7
    %v13930 = vsub.s32 0, %v13929
    %v13931 = vrot.slane %v13926, %v13930
    %v13965 = vunpack.c.l.b16 %v13894
    %v13966 = vunpack.c.l.b16 %v13895
    %v13967 = vunpack.c.l.b16 %v13896
    %v13968 = vunpack.c.l.b16 %v13897
    %v13969 = vunpack.c.l.b16 %v13898
    %v13970 = vunpack.c.l.b16 %v13899
    %v13971 = vunpack.c.l.b16 %v13900
    %v13972 = vunpack.c.l.b16 %v13901
    %v13973 = vunpack.c.l.b16 %v13902
    %v13974 = vunpack.c.l.b16 %v13903
    %v13975 = vunpack.c.l.b16 %v13904
    %v13976 = vunpack.c.l.b16 %v13905
    %v13977 = vunpack.c.l.b16 %v13906
    %v13978 = vunpack.c.l.b16 %v13907
    %v13979 = vunpack.c.l.b16 %v13908
    %v13980 = vunpack.c.l.b16 %v13909
    %v13981 = vunpack.c.l.b16 %v13910
    %v13982 = vunpack.c.l.b16 %v13911
    %v13983 = vunpack.c.l.b16 %v13912
    %v13984 = vunpack.c.l.b16 %v13913
    %v13985 = vunpack.c.l.b16 %v13914
    %v13986 = vunpack.c.l.b16 %v13915
    %v13987 = vunpack.c.l.b16 %v13916
    %v13988 = vunpack.c.l.b16 %v13917
    %v13989 = vunpack.c.l.b16 %v13918
    %v13990 = vunpack.c.l.b16 %v13919
    %v13991 = vunpack.c.l.b16 %v13920
    %v13992 = vunpack.c.l.b16 %v13921
    %v13993 = vunpack.c.l.b16 %v13922
    %v13994 = vunpack.c.l.b16 %v13923
    %v13995 = vunpack.c.l.b16 %v13924
    %v13996 = vunpack.c.l.b16 %v13925
    %v13997 = vpack.c.b16 %v13966, %v13965
    %v13998 = vpack.c.b16 %v13968, %v13967
    %v13999 = vpack.c.b16 %v13970, %v13969
    %v14000 = vpack.c.b16 %v13972, %v13971
    %v14001 = vpack.c.b16 %v13974, %v13973
    %v14002 = vpack.c.b16 %v13976, %v13975
    %v14003 = vpack.c.b16 %v13978, %v13977
    %v14004 = vpack.c.b16 %v13980, %v13979
    %v14005 = vpack.c.b16 %v13982, %v13981
    %v14006 = vpack.c.b16 %v13984, %v13983
    %v14007 = vpack.c.b16 %v13986, %v13985
    %v14008 = vpack.c.b16 %v13988, %v13987
    %v14009 = vpack.c.b16 %v13990, %v13989
    %v14010 = vpack.c.b16 %v13992, %v13991
    %v14011 = vpack.c.b16 %v13994, %v13993
    %v14012 = vpack.c.b16 %v13996, %v13995
    %14029 = vmatprep.subr.bf16.mxu0 0
    %14030 = vmatpush1.bf16.msra.mxu0 %v14004
    %14031 = vmatprep.subr.bf16.mxu0 0
    %14032 = vmatpush1.bf16.msra.mxu0 %v14003
    %14033 = vmatprep.subr.bf16.mxu0 0
    %14034 = vmatpush1.bf16.msra.mxu0 %v14002
    %14035 = vmatprep.subr.bf16.mxu0 0
    %14036 = vmatpush1.bf16.msra.mxu0 %v14001
    %14037 = vmatprep.subr.bf16.mxu0 0
    %14038 = vmatpush1.bf16.msra.mxu0 %v14000
    %14039 = vmatprep.subr.bf16.mxu0 0
    %14040 = vmatpush1.bf16.msra.mxu0 %v13999
    %14041 = vmatprep.subr.bf16.mxu0 0
    %14042 = vmatpush1.bf16.msra.mxu0 %v13998
    %14043 = vmatprep.subr.bf16.mxu0 0
    %14044 = vmatpush1.bf16.msra.mxu0 %v13997
    %14045 = vmatprep.subr.bf16.mxu0 0
    %14046 = vmatpush2.bf16.msra.mxu0 %v14012
    %14047 = vmatprep.subr.bf16.mxu0 0
    %14048 = vmatpush2.bf16.msra.mxu0 %v14011
    %14049 = vmatprep.subr.bf16.mxu0 0
    %14050 = vmatpush2.bf16.msra.mxu0 %v14010
    %14051 = vmatprep.subr.bf16.mxu0 0
    %14052 = vmatpush2.bf16.msra.mxu0 %v14009
    %14053 = vmatprep.subr.bf16.mxu0 0
    %14054 = vmatpush2.bf16.msra.mxu0 %v14008
    %14055 = vmatprep.subr.bf16.mxu0 0
    %14056 = vmatpush2.bf16.msra.mxu0 %v14007
    %14057 = vmatprep.subr.bf16.mxu0 0
    %14058 = vmatpush2.bf16.msra.mxu0 %v14006
    %14059 = vmatprep.subr.bf16.mxu0 0
    %14060 = vmatpush2.bf16.msra.mxu0 %v14005
    %14061 = vmatprep.mubr.bf16.mxu0 %v13893
    %14062 = vmatmul.mubr.bf16.gmra.mxu0 %v13892
    %v14063 = vpop.f32.mrf.mxu0
    %v14064 = vadd.f32 %v13931, %v14063
    %v14065 = vpop.f32.mrf.mxu0
    %v14066 = vpop.f32.mrf.mxu0
    %v14067 = vpop.f32.mrf.mxu0
    %14068 = vdwg.mxu0
    %v14069 = vmax.f32 %v14064, 0.0
    %v14070 = vpack.c.bf16 %v14069, %v14069
    %v14071 = vld [vmem:[#allocation17] sm:$0xff]
    %v14072 = vld [vmem:[#allocation17 + $0x8] sm:$0xff]
    %v14073 = vld [vmem:[#allocation17 + $0x10] sm:$0xff]
    %v14074 = vld [vmem:[#allocation17 + $0x18] sm:$0xff]
    %v14075 = vld [vmem:[#allocation17 + $0x20] sm:$0xff]
    %v14076 = vld [vmem:[#allocation17 + $0x28] sm:$0xff]
    %v14077 = vld [vmem:[#allocation17 + $0x30] sm:$0xff]
    %v14078 = vld [vmem:[#allocation17 + $0x38] sm:$0xff]
    %v14079 = vld [vmem:[#allocation17 + $0x40] sm:$0xff]
    %v14080 = vld [vmem:[#allocation17 + $0x48] sm:$0xff]
    %v14081 = vld [vmem:[#allocation17 + $0x50] sm:$0xff]
    %v14082 = vld [vmem:[#allocation17 + $0x58] sm:$0xff]
    %v14083 = vld [vmem:[#allocation17 + $0x60] sm:$0xff]
    %v14084 = vld [vmem:[#allocation17 + $0x68] sm:$0xff]
    %v14085 = vld [vmem:[#allocation17 + $0x70] sm:$0xff]
    %v14086 = vld [vmem:[#allocation17 + $0x78] sm:$0xff]
    %v14087 = vld [vmem:[#allocation19] sm:$0x3]
    %v14089 = vlaneseq
    %v14090 = vshrl.u32 %v14089, 7
    %v14091 = vsub.s32 0, %v14090
    %v14092 = vrot.slane %v14087, %v14091
    %v14093 = vlaneseq
    %v14094 = vshrl.u32 %v14093, 7
    %v14095 = vsub.s32 1, %v14094
    %v14096 = vrot.slane %v14087, %v14095
    %v14115 = vunpack.c.l.b16 %v14071
    %v14116 = vunpack.c.h.b16 %v14071
    %v14117 = vunpack.c.l.b16 %v14072
    %v14118 = vunpack.c.h.b16 %v14072
    %v14119 = vunpack.c.l.b16 %v14073
    %v14120 = vunpack.c.h.b16 %v14073
    %v14121 = vunpack.c.l.b16 %v14074
    %v14122 = vunpack.c.h.b16 %v14074
    %v14123 = vunpack.c.l.b16 %v14075
    %v14124 = vunpack.c.h.b16 %v14075
    %v14125 = vunpack.c.l.b16 %v14076
    %v14126 = vunpack.c.h.b16 %v14076
    %v14127 = vunpack.c.l.b16 %v14077
    %v14128 = vunpack.c.h.b16 %v14077
    %v14129 = vunpack.c.l.b16 %v14078
    %v14130 = vunpack.c.h.b16 %v14078
    %v14131 = vunpack.c.l.b16 %v14079
    %v14132 = vunpack.c.h.b16 %v14079
    %v14133 = vunpack.c.l.b16 %v14080
    %v14134 = vunpack.c.h.b16 %v14080
    %v14135 = vunpack.c.l.b16 %v14081
    %v14136 = vunpack.c.h.b16 %v14081
    %v14137 = vunpack.c.l.b16 %v14082
    %v14138 = vunpack.c.h.b16 %v14082
    %v14139 = vunpack.c.l.b16 %v14083
    %v14140 = vunpack.c.h.b16 %v14083
    %v14141 = vunpack.c.l.b16 %v14084
    %v14142 = vunpack.c.h.b16 %v14084
    %v14143 = vunpack.c.l.b16 %v14085
    %v14144 = vunpack.c.h.b16 %v14085
    %v14145 = vunpack.c.l.b16 %v14086
    %v14146 = vunpack.c.h.b16 %v14086
    %v14147 = vpack.c.b16 %v14117, %v14115
    %v14148 = vpack.c.b16 %v14118, %v14116
    %v14149 = vpack.c.b16 %v14121, %v14119
    %v14150 = vpack.c.b16 %v14122, %v14120
    %v14151 = vpack.c.b16 %v14125, %v14123
    %v14152 = vpack.c.b16 %v14126, %v14124
    %v14153 = vpack.c.b16 %v14129, %v14127
    %v14154 = vpack.c.b16 %v14130, %v14128
    %v14155 = vpack.c.b16 %v14133, %v14131
    %v14156 = vpack.c.b16 %v14134, %v14132
    %v14157 = vpack.c.b16 %v14137, %v14135
    %v14158 = vpack.c.b16 %v14138, %v14136
    %v14159 = vpack.c.b16 %v14141, %v14139
    %v14160 = vpack.c.b16 %v14142, %v14140
    %v14161 = vpack.c.b16 %v14145, %v14143
    %v14162 = vpack.c.b16 %v14146, %v14144
    %14179 = vmatprep.subr.bf16.mxu0 %v14162
    %14180 = vmatpush1.bf16.msra.mxu0 %v14161
    %14181 = vmatprep.subr.bf16.mxu0 %v14160
    %14182 = vmatpush1.bf16.msra.mxu0 %v14159
    %14183 = vmatprep.subr.bf16.mxu0 %v14158
    %14184 = vmatpush1.bf16.msra.mxu0 %v14157
    %14185 = vmatprep.subr.bf16.mxu0 %v14156
    %14186 = vmatpush1.bf16.msra.mxu0 %v14155
    %14187 = vmatprep.subr.bf16.mxu0 %v14154
    %14188 = vmatpush1.bf16.msra.mxu0 %v14153
    %14189 = vmatprep.subr.bf16.mxu0 %v14152
    %14190 = vmatpush1.bf16.msra.mxu0 %v14151
    %14191 = vmatprep.subr.bf16.mxu0 %v14150
    %14192 = vmatpush1.bf16.msra.mxu0 %v14149
    %14193 = vmatprep.subr.bf16.mxu0 %v14148
    %14194 = vmatpush1.bf16.msra.mxu0 %v14147
    %14195 = vmatprep.subr.bf16.mxu0 0
    %14196 = vmatpush2.bf16.msra.mxu0 0
    %14197 = vmatprep.subr.bf16.mxu0 0
    %14198 = vmatpush2.bf16.msra.mxu0 0
    %14199 = vmatprep.subr.bf16.mxu0 0
    %14200 = vmatpush2.bf16.msra.mxu0 0
    %14201 = vmatprep.subr.bf16.mxu0 0
    %14202 = vmatpush2.bf16.msra.mxu0 0
    %14203 = vmatprep.subr.bf16.mxu0 0
    %14204 = vmatpush2.bf16.msra.mxu0 0
    %14205 = vmatprep.subr.bf16.mxu0 0
    %14206 = vmatpush2.bf16.msra.mxu0 0
    %14207 = vmatprep.subr.bf16.mxu0 0
    %14208 = vmatpush2.bf16.msra.mxu0 0
    %14209 = vmatprep.subr.bf16.mxu0 0
    %14210 = vmatpush2.bf16.msra.mxu0 0
    %14211 = vmatprep.mubr.bf16.mxu0 0
    %14212 = vmatmul.mubr.bf16.gmra.mxu0 %v14070
    %v14213 = vpop.f32.mrf.mxu0
    %v14214 = vadd.f32 %v14092, %v14213
    %v14215 = vpop.f32.mrf.mxu0
    %v14216 = vadd.f32 %v14096, %v14215
    %v14217 = vpop.f32.mrf.mxu0
    %v14218 = vpop.f32.mrf.mxu0
    %14219 = vdwg.mxu0
    %14220 = vst [vmem:[#allocation20] sm:$0xff] %v14214
    %14221 = vst [vmem:[#allocation20 + $0x8] sm:$0xff] %v14216
    %v14222 = vmax.f32 %v14214, %v14216
    %14223 = vmax.xlane.f32.xlu0 %v14222
    %v14224 = vpop.xlane.xlu0 %14223
    %v14225 = vsub.f32 %v14214, %v14224
    %v14226 = vsub.f32 %v14216, %v14224
    %v14227 = vmul.f32 %v14225, 1.442695
    %v14228 = vpow.pop %v14227
    %v14229 = vmul.f32 %v14226, 1.442695
    %v14230 = vpow.pop %v14229
    %v14231 = vadd.f32 %v14228, %v14230
    %14232 = vadd.xlane.f32.xlu0 %v14231
    %v14233 = vpop.xlane.xlu0 %14232
    %v14234 = vrcp.pop %v14233
    %v14235 = vmul.f32 %v14228, %v14234
    %v14236 = vmul.f32 %v14230, %v14234
    %14237 = vst [vmem:[#allocation21] sm:$0xff] %v14235
    %14238 = vst [vmem:[#allocation21 + $0x8] sm:$0xff] %v14236
    // Predicated region
    $region90: #{tpu_custom_call.1} parent=1 // pred_check
      _
    $region91: #{tpu_custom_call.1} parent=1 // pred_check_branch
      %14240 = sbr.rel (0) target = $region93
    $region92: #{tpu_custom_call.1} parent=1 // pred_region
      %s14242 = ssub.s32 256, 256
      %14243 = vsyncadd [#allocation4], %s14242
      %s14245 = sshll.u32 [#allocation20], 4
      %s14246 = int_to_ptr.vmem [resolvable:$true] %s14245
      %14248 = dma.vmem_to_hbm [thread:$0]  %s14246, 256, %s11, [#allocation4]
    $region93: #{tpu_custom_call.1} parent=1 // pred_fallthru
      _
    // Predicated region
    $region94: #{tpu_custom_call.1} parent=1 // pred_check
      _
    $region95: #{tpu_custom_call.1} parent=1 // pred_check_branch
      %14250 = sbr.rel (0) target = $region97
    $region96: #{tpu_custom_call.1} parent=1 // pred_region
      %s14252 = ssub.s32 256, 256
      %14253 = vsyncadd [#allocation22], %s14252
      %s14255 = sshll.u32 [#allocation21], 4
      %s14256 = int_to_ptr.vmem [resolvable:$true] %s14255
      %14258 = dma.vmem_to_hbm [thread:$0]  %s14256, 256, %s12, [#allocation22]
    $region97: #{tpu_custom_call.1} parent=1 // pred_fallthru
      _
    // Predicated region
    $region98: #{tpu_custom_call.1} parent=1 // pred_check
      _
    $region99: #{tpu_custom_call.1} parent=1 // pred_check_branch
      %14260 = sbr.rel (0) target = $region101
    $region100: #{tpu_custom_call.1} parent=1 // pred_region
      %14261 = dma.done [#allocation4], 256
    $region101: #{tpu_custom_call.1} parent=1 // pred_fallthru
      _
    // Predicated region
    $region102: #{tpu_custom_call.1} parent=1 // pred_check
      _
    $region103: #{tpu_custom_call.1} parent=1 // pred_check_branch
      %14263 = sbr.rel (0) target = $region105
    $region104: #{tpu_custom_call.1} parent=1 // pred_region
      %14264 = dma.done [#allocation22], 256
    $region105: #{tpu_custom_call.1} parent=1 // pred_fallthru
      _
    %14265 = vsyncpa [#allocation3], 1
    %14266 = vsyncpa [#allocation6], 1
    %14267 = vsyncpa [#allocation9], 1
    %14268 = vsyncpa [#allocation12], 1
    %14269 = vsyncpa [#allocation15], 1
    %14270 = vsyncpa [#allocation18], 1
    %14271 = vsyncpa [#allocation4], 1
    %14272 = vsyncpa [#allocation22], 1

</llo_original>
